<compile_context>
chip_gen: v5e
topology: v5e:2x2
jax: 0.10.0
libtpu: 0.0.40
codegen_flags: <defaults>
</compile_context>

<pallas_src>
import functools
import math

import jax
import jax.numpy as jnp
from jax.experimental import pallas as pl
from jax.experimental.pallas import tpu as pltpu

LN_EPS = 1e-5  # PyTorch nn.LayerNorm default


def _layernorm(z, gamma, beta):
    mu = jnp.mean(z, axis=-1, keepdims=True)
    var = jnp.mean((z - mu) ** 2, axis=-1, keepdims=True)
    return (z - mu) * jax.lax.rsqrt(var + LN_EPS) * gamma + beta


def transformer_kernel(
    x_ref,                     # (block_b, N, D)   f32
    ln1g_ref, ln1b_ref,        # (1, D)            f32
    wqkv_ref, bqkv_ref,        # (D, 3D) bf16      ; (1, 3D) f32  (Q cols pre-scaled)
    wo_ref, bo_ref,            # (D, D) bf16       ; (1, D) f32
    ln2g_ref, ln2b_ref,        # (1, D)            f32
    w1_ref, b1_ref,            # (D, mlp) bf16     ; (1, mlp) f32
    w2_ref, b2_ref,            # (mlp, D) bf16     ; (1, D) f32
    o_ref,                     # (block_b, N, D)   f32
    xres_ref,                  # (block_b*N, D)    f32 VMEM scratch: residual stream
    *, heads, depth,
):
    """Full shared-weight transformer stack for one batch block (depth loop in-kernel)."""
    Bt, N, D = x_ref.shape
    hd = D // heads
    M = Bt * N

    # Small broadcast params, loaded once (f32).
    ln1g, ln1b = ln1g_ref[...], ln1b_ref[...]
    ln2g, ln2b = ln2g_ref[...], ln2b_ref[...]
    bqkv = bqkv_ref[...]
    bo, b1, b2 = bo_ref[...], b1_ref[...], b2_ref[...]

    # Residual stream lives in VMEM scratch, updated in place each layer.
    xres_ref[...] = x_ref[...].astype(jnp.float32).reshape(M, D)

    def layer(_, carry):
        x = xres_ref[...]                                     # (M, D) f32

        # ---- attention sub-block: x = x + Wo @ MHSA(LN1(x)) ----------------------
        xn = _layernorm(x, ln1g, ln1b)
        # Fused, lane-dense QKV projection: (M, D) @ (D, 3D).  Q columns of wqkv/bqkv
        # are pre-scaled by 1/sqrt(hd), so scores need no extra multiply.
        qkv = jnp.dot(xn.astype(jnp.bfloat16), wqkv_ref[...],
                      preferred_element_type=jnp.float32) + bqkv        # (M, 3D) f32
        qkv = qkv.astype(jnp.bfloat16)

        head_outs = []
        for h in range(heads):                                # static unroll over heads
            q3 = qkv[:, h * hd:(h + 1) * hd].reshape(Bt, N, hd)
            k3 = qkv[:, D + h * hd:D + (h + 1) * hd].reshape(Bt, N, hd)
            v3 = qkv[:, 2 * D + h * hd:2 * D + (h + 1) * hd].reshape(Bt, N, hd)
            # batched over the batch block, contraction on last dims (no explicit .T)
            s = jnp.einsum('bqd,bkd->bqk', q3, k3,
                           preferred_element_type=jnp.float32)          # (Bt, N, N) f32
            s = s - jnp.max(s, axis=-1, keepdims=True)
            p = jnp.exp(s)
            p = p * pl.reciprocal(jnp.sum(p, axis=-1, keepdims=True), approx=True)
            head_outs.append(
                jnp.einsum('bqk,bkd->bqd', p.astype(jnp.bfloat16), v3,
                           preferred_element_type=jnp.float32))         # (Bt, N, hd)

        # Concat heads (head-major, matching Wo row layout) -> single full-width out-proj.
        att = jnp.concatenate(head_outs, axis=-1).reshape(M, D)
        x = x + jnp.dot(att.astype(jnp.bfloat16), wo_ref[...],
                        preferred_element_type=jnp.float32) + bo        # residual

        # ---- feed-forward sub-block: x = x + W2 @ gelu(W1 @ LN2(x)) --------------
        xn2 = _layernorm(x, ln2g, ln2b)
        h1 = jnp.dot(xn2.astype(jnp.bfloat16), w1_ref[...],
                     preferred_element_type=jnp.float32) + b1
        h1 = jax.nn.gelu(h1, approximate=True)
        ffn = jnp.dot(h1.astype(jnp.bfloat16), w2_ref[...],
                      preferred_element_type=jnp.float32) + b2
        xres_ref[...] = x + ffn                               # residual, back to scratch
        return carry

    # Shared weights across depth -> loop in-kernel; unroll for cross-layer scheduling.
    jax.lax.fori_loop(0, depth, layer, 0, unroll=True)

    o_ref[...] = xres_ref[...].reshape(Bt, N, D).astype(o_ref.dtype)


def _prep_params(params, heads):
    """Fold the attention scale into Q, cast matmul weights to bf16."""
    (ln1g, ln1b, wqkv, bqkv, wo, bo, ln2g, ln2b, w1, b1, w2, b2) = params
    D = wqkv.shape[0]
    hd = D // heads
    scale = 1.0 / math.sqrt(hd)
    # Columns [0, D) are Q (all heads), [D, 2D) K, [2D, 3D) V.
    col_scale = jnp.concatenate([jnp.full((D,), scale, jnp.float32),
                                 jnp.ones((2 * D,), jnp.float32)])
    wqkv_s = (wqkv * col_scale[None, :]).astype(jnp.bfloat16)
    bqkv_s = (bqkv * col_scale[None, :]).astype(jnp.float32)
    return (ln1g, ln1b, wqkv_s, bqkv_s, wo.astype(jnp.bfloat16), bo,
            ln2g, ln2b, w1.astype(jnp.bfloat16), b1, w2.astype(jnp.bfloat16), b2)


def _vmem_capacity_bytes():
    """Per-TensorCore VMEM capacity; conservative (v7x) fallback if the query fails."""
    try:
        return int(pltpu.get_tpu_info().vmem_capacity_bytes)
    except Exception:
        return 64 << 20


def _const_spec(shape, single_buffer):
    """BlockSpec for a weight fetched once (constant index map); single-buffered if possible."""
    index_map = lambda b, _shape=shape: (0,) * len(_shape)
    if single_buffer:
        try:
            return pl.BlockSpec(shape, index_map, pipeline_mode=pl.Buffered(1))
        except TypeError:
            pass
    return pl.BlockSpec(shape, index_map)


def transformer_forward(x, params, depth, heads, block_b=None):
    """Apply the whole shared-weight transformer in ONE pallas_call (grid over batch blocks)."""
    B, N, D = x.shape
    assert D % heads == 0
    kparams = _prep_params(params, heads)
    mlp_dim = kparams[8].shape[1]

    if block_b is None:
        # Largest divisor of B keeping ~<=512 rows per grid step (MXU fill vs. score tile).
        block_b = 1
        for cand in range(B, 0, -1):
            if B % cand == 0 and cand * N <= 512:
                block_b = cand
                break
        # Guarantee >=2 grid steps when B > 1 so the "parallel" batch axis can shard
        # across v7x's two TensorCores.
        if block_b == B and B > 1:
            for cand in range(B // 2, 0, -1):
                if B % cand == 0:
                    block_b = cand
                    break
    assert B % block_b == 0

    M = block_b * N
    # VMEM budget: weights (single-buffered consts, x2 margin) + double-buffered x/o
    # blocks + residual scratch + in-kernel intermediates (qkv, h1, score/exp, LN temps).
    w_bytes = sum(int(w.size) * w.dtype.itemsize for w in kparams)
    io_bytes = 2 * 2 * (M * D * x.dtype.itemsize)
    scratch_bytes = M * D * 4
    interm_bytes = (M * 3 * D * 4          # qkv
                    + M * mlp_dim * 4      # h1
                    + 2 * block_b * N * N * 4   # score + exp (per head, live one at a time)
                    + 4 * M * D * 4)       # xn / att / misc temporaries
    vmem_needed = 2 * w_bytes + io_bytes + scratch_bytes + interm_bytes + (4 << 20)
    vmem_cap = _vmem_capacity_bytes()
    vmem_limit = int(min(max(vmem_needed, 16 << 20), int(0.75 * vmem_cap)))

    x_spec = pl.BlockSpec((block_b, N, D), lambda b: (b, 0, 0))
    out_spec = pl.BlockSpec((block_b, N, D), lambda b: (b, 0, 0))

    def build(single_buffer_weights):
        in_specs = [x_spec] + [_const_spec(w.shape, single_buffer_weights) for w in kparams]
        return pl.pallas_call(
            functools.partial(transformer_kernel, heads=heads, depth=depth),
            out_shape=jax.ShapeDtypeStruct((B, N, D), x.dtype),
            grid_spec=pltpu.PrefetchScalarGridSpec(
                num_scalar_prefetch=0,
                grid=(B // block_b,),
                in_specs=in_specs,
                out_specs=out_spec,
                scratch_shapes=[pltpu.VMEM((M, D), jnp.float32)],
            ),
            compiler_params=pltpu.CompilerParams(
                dimension_semantics=("parallel",),   # batch blocks shard across TCs (v7x)
                vmem_limit_bytes=vmem_limit,
            ),
        )

    try:
        return build(True)(x, *kparams)
    except Exception:
        # Fallback if this jax build rejects pipeline_mode=pl.Buffered(1) on pallas_call specs.
        return build(False)(x, *kparams)


def init_params(key, dim, mlp_dim):
    ks = jax.random.split(key, 4)
    std = 0.02
    ln1_g = jnp.ones((1, dim), jnp.float32)
    ln1_b = jnp.zeros((1, dim), jnp.float32)
    w_qkv = std * jax.random.normal(ks[0], (dim, 3 * dim), jnp.float32)
    b_qkv = jnp.zeros((1, 3 * dim), jnp.float32)
    w_o = std * jax.random.normal(ks[1], (dim, dim), jnp.float32)
    b_o = jnp.zeros((1, dim), jnp.float32)
    ln2_g = jnp.ones((1, dim), jnp.float32)
    ln2_b = jnp.zeros((1, dim), jnp.float32)
    w1 = std * jax.random.normal(ks[2], (dim, mlp_dim), jnp.float32)
    b1 = jnp.zeros((1, mlp_dim), jnp.float32)
    w2 = std * jax.random.normal(ks[3], (mlp_dim, dim), jnp.float32)
    b2 = jnp.zeros((1, dim), jnp.float32)
    return (ln1_g, ln1_b, w_qkv, b_qkv, w_o, b_o,
            ln2_g, ln2_b, w1, b1, w2, b2)


def reference_forward(x, params, depth, heads):
    """Pure-JAX f32 reference (same shared-weight semantics)."""
    (ln1g, ln1b, wqkv, bqkv, wo, bo, ln2g, ln2b, w1, b1, w2, b2) = params
    B, N, D = x.shape
    hd = D // heads
    scale = 1.0 / math.sqrt(hd)

    def block(x):
        xn = _layernorm(x, ln1g, ln1b)
        qkv = xn @ wqkv + bqkv
        q, k, v = jnp.split(qkv, 3, axis=-1)
        sh = lambda t: t.reshape(B, N, heads, hd).transpose(0, 2, 1, 3)
        q, k, v = sh(q), sh(k), sh(v)
        s = jnp.einsum('bhqd,bhkd->bhqk', q, k) * scale
        p = jax.nn.softmax(s, axis=-1)
        o = jnp.einsum('bhqk,bhkd->bhqd', p, v).transpose(0, 2, 1, 3).reshape(B, N, D)
        x = x + (o @ wo + bo)
        xn2 = _layernorm(x, ln2g, ln2b)
        h1 = jax.nn.gelu(xn2 @ w1 + b1, approximate=True)
        return x + (h1 @ w2 + b2)

    for _ in range(depth):
        x = block(x)
    return x


if __name__ == "__main__":
    # Lane/sublane-aligned toy config (D % 128 == 0, N % 8 == 0).  For benchmarking,
    # use N and block_b*N as multiples of 128/256 to actually fill the MXU.
    B, N, D = 2, 16, 128
    MLP_DIM = 256
    DEPTH = 2
    HEADS = 4

    key = jax.random.PRNGKey(0)
    kx, kp = jax.random.split(key)
    x = jax.random.normal(kx, (B, N, D), jnp.float32)
    params = init_params(kp, D, MLP_DIM)

    out = transformer_forward(x, params, DEPTH, HEADS)
    out = jax.block_until_ready(out)
    assert out.shape == (B, N, D), out.shape
    assert bool(jnp.all(jnp.isfinite(out)))

    ref = reference_forward(x, params, DEPTH, HEADS)
    err = float(jnp.max(jnp.abs(out - ref)))
    assert err < 5e-2, f"max abs error vs reference: {err}"
    print("KERNEL_OK")
</pallas_src>

<mosaic_0001>
module attributes {stable_mosaic.version = 11 : i64} {
  func.func @transformer_kernel(%arg0: i32, %arg1: memref<1x16x128xf32, #tpu.memory_space<vmem>>, %arg2: memref<1x128xf32, #tpu.memory_space<vmem>>, %arg3: memref<1x128xf32, #tpu.memory_space<vmem>>, %arg4: memref<128x384xbf16, #tpu.memory_space<vmem>>, %arg5: memref<1x384xf32, #tpu.memory_space<vmem>>, %arg6: memref<128x128xbf16, #tpu.memory_space<vmem>>, %arg7: memref<1x128xf32, #tpu.memory_space<vmem>>, %arg8: memref<1x128xf32, #tpu.memory_space<vmem>>, %arg9: memref<1x128xf32, #tpu.memory_space<vmem>>, %arg10: memref<128x256xbf16, #tpu.memory_space<vmem>>, %arg11: memref<1x256xf32, #tpu.memory_space<vmem>>, %arg12: memref<256x128xbf16, #tpu.memory_space<vmem>>, %arg13: memref<1x128xf32, #tpu.memory_space<vmem>>, %arg14: memref<1x16x128xf32, #tpu.memory_space<vmem>>, %arg15: memref<16x128xf32, #tpu.memory_space<vmem>>) attributes {dimension_semantics = [#tpu.dimension_semantics<parallel>], iteration_bounds = array<i64: 2>, scalar_prefetch = 0 : i64, scratch_operands = 1 : i64, tpu.core_type = #tpu.core_type<tc>, window_params = [{transform_indices = @transform_0, window_bounds = array<i64: 1, 16, 128>}, {pipeline_mode = #tpu.pipeline_mode<synchronous>, transform_indices = @transform_1, window_bounds = array<i64: 1, 128>}, {pipeline_mode = #tpu.pipeline_mode<synchronous>, transform_indices = @transform_2, window_bounds = array<i64: 1, 128>}, {pipeline_mode = #tpu.pipeline_mode<synchronous>, transform_indices = @transform_3, window_bounds = array<i64: 128, 384>}, {pipeline_mode = #tpu.pipeline_mode<synchronous>, transform_indices = @transform_4, window_bounds = array<i64: 1, 384>}, {pipeline_mode = #tpu.pipeline_mode<synchronous>, transform_indices = @transform_5, window_bounds = array<i64: 128, 128>}, {pipeline_mode = #tpu.pipeline_mode<synchronous>, transform_indices = @transform_6, window_bounds = array<i64: 1, 128>}, {pipeline_mode = #tpu.pipeline_mode<synchronous>, transform_indices = @transform_7, window_bounds = array<i64: 1, 128>}, {pipeline_mode = #tpu.pipeline_mode<synchronous>, transform_indices = @transform_8, window_bounds = array<i64: 1, 128>}, {pipeline_mode = #tpu.pipeline_mode<synchronous>, transform_indices = @transform_9, window_bounds = array<i64: 128, 256>}, {pipeline_mode = #tpu.pipeline_mode<synchronous>, transform_indices = @transform_10, window_bounds = array<i64: 1, 256>}, {pipeline_mode = #tpu.pipeline_mode<synchronous>, transform_indices = @transform_11, window_bounds = array<i64: 256, 128>}, {pipeline_mode = #tpu.pipeline_mode<synchronous>, transform_indices = @transform_12, window_bounds = array<i64: 1, 128>}, {transform_indices = @transform_13, window_bounds = array<i64: 1, 16, 128>}]} {
    %c0 = arith.constant 0 : index
    %c0_0 = arith.constant 0 : index
    %0 = vector.load %arg2[%c0, %c0_0] : memref<1x128xf32, #tpu.memory_space<vmem>>, vector<1x128xf32>
    %c0_1 = arith.constant 0 : index
    %c0_2 = arith.constant 0 : index
    %1 = vector.load %arg3[%c0_1, %c0_2] : memref<1x128xf32, #tpu.memory_space<vmem>>, vector<1x128xf32>
    %c0_3 = arith.constant 0 : index
    %c0_4 = arith.constant 0 : index
    %2 = vector.load %arg8[%c0_3, %c0_4] : memref<1x128xf32, #tpu.memory_space<vmem>>, vector<1x128xf32>
    %c0_5 = arith.constant 0 : index
    %c0_6 = arith.constant 0 : index
    %3 = vector.load %arg9[%c0_5, %c0_6] : memref<1x128xf32, #tpu.memory_space<vmem>>, vector<1x128xf32>
    %c0_7 = arith.constant 0 : index
    %c0_8 = arith.constant 0 : index
    %4 = vector.load %arg5[%c0_7, %c0_8] : memref<1x384xf32, #tpu.memory_space<vmem>>, vector<1x384xf32>
    %c0_9 = arith.constant 0 : index
    %c0_10 = arith.constant 0 : index
    %5 = vector.load %arg7[%c0_9, %c0_10] : memref<1x128xf32, #tpu.memory_space<vmem>>, vector<1x128xf32>
    %c0_11 = arith.constant 0 : index
    %c0_12 = arith.constant 0 : index
    %6 = vector.load %arg11[%c0_11, %c0_12] : memref<1x256xf32, #tpu.memory_space<vmem>>, vector<1x256xf32>
    %c0_13 = arith.constant 0 : index
    %c0_14 = arith.constant 0 : index
    %7 = vector.load %arg13[%c0_13, %c0_14] : memref<1x128xf32, #tpu.memory_space<vmem>>, vector<1x128xf32>
    %c0_15 = arith.constant 0 : index
    %c0_16 = arith.constant 0 : index
    %c0_17 = arith.constant 0 : index
    %8 = vector.load %arg1[%c0_15, %c0_16, %c0_17] : memref<1x16x128xf32, #tpu.memory_space<vmem>>, vector<1x16x128xf32>
    %9 = vector.shape_cast %8 : vector<1x16x128xf32> to vector<16x128xf32>
    %c0_18 = arith.constant 0 : index
    %c0_19 = arith.constant 0 : index
    %10 = vector.load %arg15[%c0_18, %c0_19] : memref<16x128xf32, #tpu.memory_space<vmem>>, vector<16x128xf32>
    tpu.vector_store %arg15[%c0_18, %c0_19], %9 {strides = array<i32>} : memref<16x128xf32, #tpu.memory_space<vmem>>, vector<16x128xf32>,
    %c0_i32 = arith.constant 0 : i32
    %c0_20 = arith.constant 0 : index
    %c0_21 = arith.constant 0 : index
    %11 = vector.load %arg15[%c0_20, %c0_21] : memref<16x128xf32, #tpu.memory_space<vmem>>, vector<16x128xf32>
    %cst = arith.constant dense<0.000000e+00> : vector<16xf32>
    %12 = vector.multi_reduction <add>, %11, %cst [1] : vector<16x128xf32> to vector<16xf32>
    %13 = vector.shape_cast %12 : vector<16xf32> to vector<16x1xf32>
    %cst_22 = arith.constant 1.280000e+02 : f32
    %14 = vector.broadcast %cst_22 : f32 to vector<16x1xf32>
    %15 = arith.divf %13, %14 : vector<16x1xf32>
    %16 = vector.broadcast %15 : vector<16x1xf32> to vector<16x128xf32>
    %17 = arith.subf %11, %16 : vector<16x128xf32>
    %18 = arith.mulf %17, %17 : vector<16x128xf32>
    %cst_23 = arith.constant dense<0.000000e+00> : vector<16xf32>
    %19 = vector.multi_reduction <add>, %18, %cst_23 [1] : vector<16x128xf32> to vector<16xf32>
    %20 = vector.shape_cast %19 : vector<16xf32> to vector<16x1xf32>
    %cst_24 = arith.constant 1.280000e+02 : f32
    %21 = vector.broadcast %cst_24 : f32 to vector<16x1xf32>
    %22 = arith.divf %20, %21 : vector<16x1xf32>
    %23 = vector.broadcast %15 : vector<16x1xf32> to vector<16x128xf32>
    %24 = arith.subf %11, %23 : vector<16x128xf32>
    %cst_25 = arith.constant 9.99999974E-6 : f32
    %25 = vector.broadcast %cst_25 : f32 to vector<16x1xf32>
    %26 = arith.addf %22, %25 : vector<16x1xf32>
    %27 = math.rsqrt %26 : vector<16x1xf32>
    %28 = vector.broadcast %27 : vector<16x1xf32> to vector<16x128xf32>
    %29 = arith.mulf %24, %28 : vector<16x128xf32>
    %30 = vector.broadcast %0 : vector<1x128xf32> to vector<16x128xf32>
    %31 = arith.mulf %29, %30 : vector<16x128xf32>
    %32 = vector.broadcast %1 : vector<1x128xf32> to vector<16x128xf32>
    %33 = arith.addf %31, %32 : vector<16x128xf32>
    %34 = arith.truncf %33 : vector<16x128xf32> to vector<16x128xbf16>
    %c0_26 = arith.constant 0 : index
    %c0_27 = arith.constant 0 : index
    %35 = vector.load %arg4[%c0_26, %c0_27] : memref<128x384xbf16, #tpu.memory_space<vmem>>, vector<128x384xbf16>
    %cst_28 = arith.constant dense<0.000000e+00> : vector<16x384xf32>
    %36 = tpu.matmul %34, %35, %cst_28 {dimension_numbers = #tpu.dot_dimension_numbers<[1], [0], [0], [1], [0, 0, 1, 1], [], []>} : vector<16x128xbf16>, vector<128x384xbf16>, vector<16x384xf32> -> vector<16x384xf32>
    %37 = vector.broadcast %4 : vector<1x384xf32> to vector<16x384xf32>
    %38 = arith.addf %36, %37 : vector<16x384xf32>
    %39 = arith.truncf %38 : vector<16x384xf32> to vector<16x384xbf16>
    %40 = vector.extract_strided_slice %39 {offsets = [0, 0], sizes = [16, 32], strides = [1, 1]} : vector<16x384xbf16> to vector<16x32xbf16>
    %41 = vector.shape_cast %40 : vector<16x32xbf16> to vector<1x16x32xbf16>
    %42 = vector.extract_strided_slice %39 {offsets = [0, 128], sizes = [16, 32], strides = [1, 1]} : vector<16x384xbf16> to vector<16x32xbf16>
    %43 = vector.shape_cast %42 : vector<16x32xbf16> to vector<1x16x32xbf16>
    %44 = vector.extract_strided_slice %39 {offsets = [0, 256], sizes = [16, 32], strides = [1, 1]} : vector<16x384xbf16> to vector<16x32xbf16>
    %45 = vector.shape_cast %44 : vector<16x32xbf16> to vector<1x16x32xbf16>
    "tpu.trace_start"() <{level = 10 : i32, message = "bqd,bkd->bqk"}> : () -> ()
    %cst_29 = arith.constant dense<0.000000e+00> : vector<1x16x16xf32>
    %46 = tpu.matmul %41, %43, %cst_29 {dimension_numbers = #tpu.dot_dimension_numbers<[2], [2], [1], [1], [0, 0, 0, 1, 1, 1], [0], [0]>} : vector<1x16x32xbf16>, vector<1x16x32xbf16>, vector<1x16x16xf32> -> vector<1x16x16xf32>
    "tpu.trace_stop"() : () -> ()
    %cst_30 = arith.constant dense<0xFF800000> : vector<1x16xf32>
    %47 = vector.multi_reduction <maximumf>, %46, %cst_30 [2] : vector<1x16x16xf32> to vector<1x16xf32>
    %48 = vector.shape_cast %47 : vector<1x16xf32> to vector<1x16x1xf32>
    %49 = vector.broadcast %48 : vector<1x16x1xf32> to vector<1x16x16xf32>
    %50 = arith.subf %46, %49 : vector<1x16x16xf32>
    %51 = math.exp %50 : vector<1x16x16xf32>
    %cst_31 = arith.constant dense<0.000000e+00> : vector<1x16xf32>
    %52 = vector.multi_reduction <add>, %51, %cst_31 [2] : vector<1x16x16xf32> to vector<1x16xf32>
    %53 = vector.shape_cast %52 : vector<1x16xf32> to vector<1x16x1xf32>
    %54 = tpu.reciprocal %53 {approx = true} : vector<1x16x1xf32> -> vector<1x16x1xf32>
    %55 = vector.broadcast %54 : vector<1x16x1xf32> to vector<1x16x16xf32>
    %56 = arith.mulf %51, %55 : vector<1x16x16xf32>
    %57 = arith.truncf %56 : vector<1x16x16xf32> to vector<1x16x16xbf16>
    "tpu.trace_start"() <{level = 10 : i32, message = "bqk,bkd->bqd"}> : () -> ()
    %cst_32 = arith.constant dense<0.000000e+00> : vector<1x16x32xf32>
    %58 = tpu.matmul %57, %45, %cst_32 {dimension_numbers = #tpu.dot_dimension_numbers<[2], [1], [1], [2], [0, 0, 0, 1, 1, 2], [0], [0]>} : vector<1x16x16xbf16>, vector<1x16x32xbf16>, vector<1x16x32xf32> -> vector<1x16x32xf32>
    "tpu.trace_stop"() : () -> ()
    %59 = vector.extract_strided_slice %39 {offsets = [0, 32], sizes = [16, 32], strides = [1, 1]} : vector<16x384xbf16> to vector<16x32xbf16>
    %60 = vector.shape_cast %59 : vector<16x32xbf16> to vector<1x16x32xbf16>
    %61 = vector.extract_strided_slice %39 {offsets = [0, 160], sizes = [16, 32], strides = [1, 1]} : vector<16x384xbf16> to vector<16x32xbf16>
    %62 = vector.shape_cast %61 : vector<16x32xbf16> to vector<1x16x32xbf16>
    %63 = vector.extract_strided_slice %39 {offsets = [0, 288], sizes = [16, 32], strides = [1, 1]} : vector<16x384xbf16> to vector<16x32xbf16>
    %64 = vector.shape_cast %63 : vector<16x32xbf16> to vector<1x16x32xbf16>
    "tpu.trace_start"() <{level = 10 : i32, message = "bqd,bkd->bqk"}> : () -> ()
    %cst_33 = arith.constant dense<0.000000e+00> : vector<1x16x16xf32>
    %65 = tpu.matmul %60, %62, %cst_33 {dimension_numbers = #tpu.dot_dimension_numbers<[2], [2], [1], [1], [0, 0, 0, 1, 1, 1], [0], [0]>} : vector<1x16x32xbf16>, vector<1x16x32xbf16>, vector<1x16x16xf32> -> vector<1x16x16xf32>
    "tpu.trace_stop"() : () -> ()
    %cst_34 = arith.constant dense<0xFF800000> : vector<1x16xf32>
    %66 = vector.multi_reduction <maximumf>, %65, %cst_34 [2] : vector<1x16x16xf32> to vector<1x16xf32>
    %67 = vector.shape_cast %66 : vector<1x16xf32> to vector<1x16x1xf32>
    %68 = vector.broadcast %67 : vector<1x16x1xf32> to vector<1x16x16xf32>
    %69 = arith.subf %65, %68 : vector<1x16x16xf32>
    %70 = math.exp %69 : vector<1x16x16xf32>
    %cst_35 = arith.constant dense<0.000000e+00> : vector<1x16xf32>
    %71 = vector.multi_reduction <add>, %70, %cst_35 [2] : vector<1x16x16xf32> to vector<1x16xf32>
    %72 = vector.shape_cast %71 : vector<1x16xf32> to vector<1x16x1xf32>
    %73 = tpu.reciprocal %72 {approx = true} : vector<1x16x1xf32> -> vector<1x16x1xf32>
    %74 = vector.broadcast %73 : vector<1x16x1xf32> to vector<1x16x16xf32>
    %75 = arith.mulf %70, %74 : vector<1x16x16xf32>
    %76 = arith.truncf %75 : vector<1x16x16xf32> to vector<1x16x16xbf16>
    "tpu.trace_start"() <{level = 10 : i32, message = "bqk,bkd->bqd"}> : () -> ()
    %cst_36 = arith.constant dense<0.000000e+00> : vector<1x16x32xf32>
    %77 = tpu.matmul %76, %64, %cst_36 {dimension_numbers = #tpu.dot_dimension_numbers<[2], [1], [1], [2], [0, 0, 0, 1, 1, 2], [0], [0]>} : vector<1x16x16xbf16>, vector<1x16x32xbf16>, vector<1x16x32xf32> -> vector<1x16x32xf32>
    "tpu.trace_stop"() : () -> ()
    %78 = vector.extract_strided_slice %39 {offsets = [0, 64], sizes = [16, 32], strides = [1, 1]} : vector<16x384xbf16> to vector<16x32xbf16>
    %79 = vector.shape_cast %78 : vector<16x32xbf16> to vector<1x16x32xbf16>
    %80 = vector.extract_strided_slice %39 {offsets = [0, 192], sizes = [16, 32], strides = [1, 1]} : vector<16x384xbf16> to vector<16x32xbf16>
    %81 = vector.shape_cast %80 : vector<16x32xbf16> to vector<1x16x32xbf16>
    %82 = vector.extract_strided_slice %39 {offsets = [0, 320], sizes = [16, 32], strides = [1, 1]} : vector<16x384xbf16> to vector<16x32xbf16>
    %83 = vector.shape_cast %82 : vector<16x32xbf16> to vector<1x16x32xbf16>
    "tpu.trace_start"() <{level = 10 : i32, message = "bqd,bkd->bqk"}> : () -> ()
    %cst_37 = arith.constant dense<0.000000e+00> : vector<1x16x16xf32>
    %84 = tpu.matmul %79, %81, %cst_37 {dimension_numbers = #tpu.dot_dimension_numbers<[2], [2], [1], [1], [0, 0, 0, 1, 1, 1], [0], [0]>} : vector<1x16x32xbf16>, vector<1x16x32xbf16>, vector<1x16x16xf32> -> vector<1x16x16xf32>
    "tpu.trace_stop"() : () -> ()
    %cst_38 = arith.constant dense<0xFF800000> : vector<1x16xf32>
    %85 = vector.multi_reduction <maximumf>, %84, %cst_38 [2] : vector<1x16x16xf32> to vector<1x16xf32>
    %86 = vector.shape_cast %85 : vector<1x16xf32> to vector<1x16x1xf32>
    %87 = vector.broadcast %86 : vector<1x16x1xf32> to vector<1x16x16xf32>
    %88 = arith.subf %84, %87 : vector<1x16x16xf32>
    %89 = math.exp %88 : vector<1x16x16xf32>
    %cst_39 = arith.constant dense<0.000000e+00> : vector<1x16xf32>
    %90 = vector.multi_reduction <add>, %89, %cst_39 [2] : vector<1x16x16xf32> to vector<1x16xf32>
    %91 = vector.shape_cast %90 : vector<1x16xf32> to vector<1x16x1xf32>
    %92 = tpu.reciprocal %91 {approx = true} : vector<1x16x1xf32> -> vector<1x16x1xf32>
    %93 = vector.broadcast %92 : vector<1x16x1xf32> to vector<1x16x16xf32>
    %94 = arith.mulf %89, %93 : vector<1x16x16xf32>
    %95 = arith.truncf %94 : vector<1x16x16xf32> to vector<1x16x16xbf16>
    "tpu.trace_start"() <{level = 10 : i32, message = "bqk,bkd->bqd"}> : () -> ()
    %cst_40 = arith.constant dense<0.000000e+00> : vector<1x16x32xf32>
    %96 = tpu.matmul %95, %83, %cst_40 {dimension_numbers = #tpu.dot_dimension_numbers<[2], [1], [1], [2], [0, 0, 0, 1, 1, 2], [0], [0]>} : vector<1x16x16xbf16>, vector<1x16x32xbf16>, vector<1x16x32xf32> -> vector<1x16x32xf32>
    "tpu.trace_stop"() : () -> ()
    %97 = vector.extract_strided_slice %39 {offsets = [0, 96], sizes = [16, 32], strides = [1, 1]} : vector<16x384xbf16> to vector<16x32xbf16>
    %98 = vector.shape_cast %97 : vector<16x32xbf16> to vector<1x16x32xbf16>
    %99 = vector.extract_strided_slice %39 {offsets = [0, 224], sizes = [16, 32], strides = [1, 1]} : vector<16x384xbf16> to vector<16x32xbf16>
    %100 = vector.shape_cast %99 : vector<16x32xbf16> to vector<1x16x32xbf16>
    %101 = vector.extract_strided_slice %39 {offsets = [0, 352], sizes = [16, 32], strides = [1, 1]} : vector<16x384xbf16> to vector<16x32xbf16>
    %102 = vector.shape_cast %101 : vector<16x32xbf16> to vector<1x16x32xbf16>
    "tpu.trace_start"() <{level = 10 : i32, message = "bqd,bkd->bqk"}> : () -> ()
    %cst_41 = arith.constant dense<0.000000e+00> : vector<1x16x16xf32>
    %103 = tpu.matmul %98, %100, %cst_41 {dimension_numbers = #tpu.dot_dimension_numbers<[2], [2], [1], [1], [0, 0, 0, 1, 1, 1], [0], [0]>} : vector<1x16x32xbf16>, vector<1x16x32xbf16>, vector<1x16x16xf32> -> vector<1x16x16xf32>
    "tpu.trace_stop"() : () -> ()
    %cst_42 = arith.constant dense<0xFF800000> : vector<1x16xf32>
    %104 = vector.multi_reduction <maximumf>, %103, %cst_42 [2] : vector<1x16x16xf32> to vector<1x16xf32>
    %105 = vector.shape_cast %104 : vector<1x16xf32> to vector<1x16x1xf32>
    %106 = vector.broadcast %105 : vector<1x16x1xf32> to vector<1x16x16xf32>
    %107 = arith.subf %103, %106 : vector<1x16x16xf32>
    %108 = math.exp %107 : vector<1x16x16xf32>
    %cst_43 = arith.constant dense<0.000000e+00> : vector<1x16xf32>
    %109 = vector.multi_reduction <add>, %108, %cst_43 [2] : vector<1x16x16xf32> to vector<1x16xf32>
    %110 = vector.shape_cast %109 : vector<1x16xf32> to vector<1x16x1xf32>
    %111 = tpu.reciprocal %110 {approx = true} : vector<1x16x1xf32> -> vector<1x16x1xf32>
    %112 = vector.broadcast %111 : vector<1x16x1xf32> to vector<1x16x16xf32>
    %113 = arith.mulf %108, %112 : vector<1x16x16xf32>
    %114 = arith.truncf %113 : vector<1x16x16xf32> to vector<1x16x16xbf16>
    "tpu.trace_start"() <{level = 10 : i32, message = "bqk,bkd->bqd"}> : () -> ()
    %cst_44 = arith.constant dense<0.000000e+00> : vector<1x16x32xf32>
    %115 = tpu.matmul %114, %102, %cst_44 {dimension_numbers = #tpu.dot_dimension_numbers<[2], [1], [1], [2], [0, 0, 0, 1, 1, 2], [0], [0]>} : vector<1x16x16xbf16>, vector<1x16x32xbf16>, vector<1x16x32xf32> -> vector<1x16x32xf32>
    "tpu.trace_stop"() : () -> ()
    %116 = tpu.concatenate %58, %77, %96, %115 in 2 : vector<1x16x32xf32>, vector<1x16x32xf32>, vector<1x16x32xf32>, vector<1x16x32xf32> -> vector<1x16x128xf32>
    %117 = vector.shape_cast %116 : vector<1x16x128xf32> to vector<16x128xf32>
    %118 = arith.truncf %117 : vector<16x128xf32> to vector<16x128xbf16>
    %c0_45 = arith.constant 0 : index
    %c0_46 = arith.constant 0 : index
    %119 = vector.load %arg6[%c0_45, %c0_46] : memref<128x128xbf16, #tpu.memory_space<vmem>>, vector<128x128xbf16>
    %cst_47 = arith.constant dense<0.000000e+00> : vector<16x128xf32>
    %120 = tpu.matmul %118, %119, %cst_47 {dimension_numbers = #tpu.dot_dimension_numbers<[1], [0], [0], [1], [0, 0, 1, 1], [], []>} : vector<16x128xbf16>, vector<128x128xbf16>, vector<16x128xf32> -> vector<16x128xf32>
    %121 = arith.addf %11, %120 : vector<16x128xf32>
    %122 = vector.broadcast %5 : vector<1x128xf32> to vector<16x128xf32>
    %123 = arith.addf %121, %122 : vector<16x128xf32>
    %cst_48 = arith.constant dense<0.000000e+00> : vector<16xf32>
    %124 = vector.multi_reduction <add>, %123, %cst_48 [1] : vector<16x128xf32> to vector<16xf32>
    %125 = vector.shape_cast %124 : vector<16xf32> to vector<16x1xf32>
    %cst_49 = arith.constant 1.280000e+02 : f32
    %126 = vector.broadcast %cst_49 : f32 to vector<16x1xf32>
    %127 = arith.divf %125, %126 : vector<16x1xf32>
    %128 = vector.broadcast %127 : vector<16x1xf32> to vector<16x128xf32>
    %129 = arith.subf %123, %128 : vector<16x128xf32>
    %130 = arith.mulf %129, %129 : vector<16x128xf32>
    %cst_50 = arith.constant dense<0.000000e+00> : vector<16xf32>
    %131 = vector.multi_reduction <add>, %130, %cst_50 [1] : vector<16x128xf32> to vector<16xf32>
    %132 = vector.shape_cast %131 : vector<16xf32> to vector<16x1xf32>
    %cst_51 = arith.constant 1.280000e+02 : f32
    %133 = vector.broadcast %cst_51 : f32 to vector<16x1xf32>
    %134 = arith.divf %132, %133 : vector<16x1xf32>
    %135 = vector.broadcast %127 : vector<16x1xf32> to vector<16x128xf32>
    %136 = arith.subf %123, %135 : vector<16x128xf32>
    %cst_52 = arith.constant 9.99999974E-6 : f32
    %137 = vector.broadcast %cst_52 : f32 to vector<16x1xf32>
    %138 = arith.addf %134, %137 : vector<16x1xf32>
    %139 = math.rsqrt %138 : vector<16x1xf32>
    %140 = vector.broadcast %139 : vector<16x1xf32> to vector<16x128xf32>
    %141 = arith.mulf %136, %140 : vector<16x128xf32>
    %142 = vector.broadcast %2 : vector<1x128xf32> to vector<16x128xf32>
    %143 = arith.mulf %141, %142 : vector<16x128xf32>
    %144 = vector.broadcast %3 : vector<1x128xf32> to vector<16x128xf32>
    %145 = arith.addf %143, %144 : vector<16x128xf32>
    %146 = arith.truncf %145 : vector<16x128xf32> to vector<16x128xbf16>
    %c0_53 = arith.constant 0 : index
    %c0_54 = arith.constant 0 : index
    %147 = vector.load %arg10[%c0_53, %c0_54] : memref<128x256xbf16, #tpu.memory_space<vmem>>, vector<128x256xbf16>
    %cst_55 = arith.constant dense<0.000000e+00> : vector<16x256xf32>
    %148 = tpu.matmul %146, %147, %cst_55 {dimension_numbers = #tpu.dot_dimension_numbers<[1], [0], [0], [1], [0, 0, 1, 1], [], []>} : vector<16x128xbf16>, vector<128x256xbf16>, vector<16x256xf32> -> vector<16x256xf32>
    %149 = vector.broadcast %6 : vector<1x256xf32> to vector<16x256xf32>
    %150 = arith.addf %148, %149 : vector<16x256xf32>
    %151 = arith.mulf %150, %150 : vector<16x256xf32>
    %152 = arith.mulf %150, %151 : vector<16x256xf32>
    %cst_56 = arith.constant 4.471500e-02 : f32
    %153 = vector.broadcast %cst_56 : f32 to vector<16x256xf32>
    %154 = arith.mulf %153, %152 : vector<16x256xf32>
    %155 = arith.addf %150, %154 : vector<16x256xf32>
    %cst_57 = arith.constant 0.797884583 : f32
    %156 = vector.broadcast %cst_57 : f32 to vector<16x256xf32>
    %157 = arith.mulf %156, %155 : vector<16x256xf32>
    %158 = math.tanh %157 : vector<16x256xf32>
    %cst_58 = arith.constant 1.000000e+00 : f32
    %159 = vector.broadcast %cst_58 : f32 to vector<16x256xf32>
    %160 = arith.addf %159, %158 : vector<16x256xf32>
    %cst_59 = arith.constant 5.000000e-01 : f32
    %161 = vector.broadcast %cst_59 : f32 to vector<16x256xf32>
    %162 = arith.mulf %161, %160 : vector<16x256xf32>
    %163 = arith.mulf %150, %162 : vector<16x256xf32>
    %164 = arith.truncf %163 : vector<16x256xf32> to vector<16x256xbf16>
    %c0_60 = arith.constant 0 : index
    %c0_61 = arith.constant 0 : index
    %165 = vector.load %arg12[%c0_60, %c0_61] : memref<256x128xbf16, #tpu.memory_space<vmem>>, vector<256x128xbf16>
    %cst_62 = arith.constant dense<0.000000e+00> : vector<16x128xf32>
    %166 = tpu.matmul %164, %165, %cst_62 {dimension_numbers = #tpu.dot_dimension_numbers<[1], [0], [0], [1], [0, 0, 1, 1], [], []>} : vector<16x256xbf16>, vector<256x128xbf16>, vector<16x128xf32> -> vector<16x128xf32>
    %167 = vector.broadcast %7 : vector<1x128xf32> to vector<16x128xf32>
    %168 = arith.addf %166, %167 : vector<16x128xf32>
    %169 = arith.addf %123, %168 : vector<16x128xf32>
    %c0_63 = arith.constant 0 : index
    %c0_64 = arith.constant 0 : index
    %170 = vector.load %arg15[%c0_63, %c0_64] : memref<16x128xf32, #tpu.memory_space<vmem>>, vector<16x128xf32>
    tpu.vector_store %arg15[%c0_63, %c0_64], %169 {strides = array<i32>} : memref<16x128xf32, #tpu.memory_space<vmem>>, vector<16x128xf32>,
    %c1_i32 = arith.constant 1 : i32
    %c0_65 = arith.constant 0 : index
    %c0_66 = arith.constant 0 : index
    %171 = vector.load %arg15[%c0_65, %c0_66] : memref<16x128xf32, #tpu.memory_space<vmem>>, vector<16x128xf32>
    %cst_67 = arith.constant dense<0.000000e+00> : vector<16xf32>
    %172 = vector.multi_reduction <add>, %171, %cst_67 [1] : vector<16x128xf32> to vector<16xf32>
    %173 = vector.shape_cast %172 : vector<16xf32> to vector<16x1xf32>
    %cst_68 = arith.constant 1.280000e+02 : f32
    %174 = vector.broadcast %cst_68 : f32 to vector<16x1xf32>
    %175 = arith.divf %173, %174 : vector<16x1xf32>
    %176 = vector.broadcast %175 : vector<16x1xf32> to vector<16x128xf32>
    %177 = arith.subf %171, %176 : vector<16x128xf32>
    %178 = arith.mulf %177, %177 : vector<16x128xf32>
    %cst_69 = arith.constant dense<0.000000e+00> : vector<16xf32>
    %179 = vector.multi_reduction <add>, %178, %cst_69 [1] : vector<16x128xf32> to vector<16xf32>
    %180 = vector.shape_cast %179 : vector<16xf32> to vector<16x1xf32>
    %cst_70 = arith.constant 1.280000e+02 : f32
    %181 = vector.broadcast %cst_70 : f32 to vector<16x1xf32>
    %182 = arith.divf %180, %181 : vector<16x1xf32>
    %183 = vector.broadcast %175 : vector<16x1xf32> to vector<16x128xf32>
    %184 = arith.subf %171, %183 : vector<16x128xf32>
    %cst_71 = arith.constant 9.99999974E-6 : f32
    %185 = vector.broadcast %cst_71 : f32 to vector<16x1xf32>
    %186 = arith.addf %182, %185 : vector<16x1xf32>
    %187 = math.rsqrt %186 : vector<16x1xf32>
    %188 = vector.broadcast %187 : vector<16x1xf32> to vector<16x128xf32>
    %189 = arith.mulf %184, %188 : vector<16x128xf32>
    %190 = vector.broadcast %0 : vector<1x128xf32> to vector<16x128xf32>
    %191 = arith.mulf %189, %190 : vector<16x128xf32>
    %192 = vector.broadcast %1 : vector<1x128xf32> to vector<16x128xf32>
    %193 = arith.addf %191, %192 : vector<16x128xf32>
    %194 = arith.truncf %193 : vector<16x128xf32> to vector<16x128xbf16>
    %c0_72 = arith.constant 0 : index
    %c0_73 = arith.constant 0 : index
    %195 = vector.load %arg4[%c0_72, %c0_73] : memref<128x384xbf16, #tpu.memory_space<vmem>>, vector<128x384xbf16>
    %cst_74 = arith.constant dense<0.000000e+00> : vector<16x384xf32>
    %196 = tpu.matmul %194, %195, %cst_74 {dimension_numbers = #tpu.dot_dimension_numbers<[1], [0], [0], [1], [0, 0, 1, 1], [], []>} : vector<16x128xbf16>, vector<128x384xbf16>, vector<16x384xf32> -> vector<16x384xf32>
    %197 = vector.broadcast %4 : vector<1x384xf32> to vector<16x384xf32>
    %198 = arith.addf %196, %197 : vector<16x384xf32>
    %199 = arith.truncf %198 : vector<16x384xf32> to vector<16x384xbf16>
    %200 = vector.extract_strided_slice %199 {offsets = [0, 0], sizes = [16, 32], strides = [1, 1]} : vector<16x384xbf16> to vector<16x32xbf16>
    %201 = vector.shape_cast %200 : vector<16x32xbf16> to vector<1x16x32xbf16>
    %202 = vector.extract_strided_slice %199 {offsets = [0, 128], sizes = [16, 32], strides = [1, 1]} : vector<16x384xbf16> to vector<16x32xbf16>
    %203 = vector.shape_cast %202 : vector<16x32xbf16> to vector<1x16x32xbf16>
    %204 = vector.extract_strided_slice %199 {offsets = [0, 256], sizes = [16, 32], strides = [1, 1]} : vector<16x384xbf16> to vector<16x32xbf16>
    %205 = vector.shape_cast %204 : vector<16x32xbf16> to vector<1x16x32xbf16>
    "tpu.trace_start"() <{level = 10 : i32, message = "bqd,bkd->bqk"}> : () -> ()
    %cst_75 = arith.constant dense<0.000000e+00> : vector<1x16x16xf32>
    %206 = tpu.matmul %201, %203, %cst_75 {dimension_numbers = #tpu.dot_dimension_numbers<[2], [2], [1], [1], [0, 0, 0, 1, 1, 1], [0], [0]>} : vector<1x16x32xbf16>, vector<1x16x32xbf16>, vector<1x16x16xf32> -> vector<1x16x16xf32>
    "tpu.trace_stop"() : () -> ()
    %cst_76 = arith.constant dense<0xFF800000> : vector<1x16xf32>
    %207 = vector.multi_reduction <maximumf>, %206, %cst_76 [2] : vector<1x16x16xf32> to vector<1x16xf32>
    %208 = vector.shape_cast %207 : vector<1x16xf32> to vector<1x16x1xf32>
    %209 = vector.broadcast %208 : vector<1x16x1xf32> to vector<1x16x16xf32>
    %210 = arith.subf %206, %209 : vector<1x16x16xf32>
    %211 = math.exp %210 : vector<1x16x16xf32>
    %cst_77 = arith.constant dense<0.000000e+00> : vector<1x16xf32>
    %212 = vector.multi_reduction <add>, %211, %cst_77 [2] : vector<1x16x16xf32> to vector<1x16xf32>
    %213 = vector.shape_cast %212 : vector<1x16xf32> to vector<1x16x1xf32>
    %214 = tpu.reciprocal %213 {approx = true} : vector<1x16x1xf32> -> vector<1x16x1xf32>
    %215 = vector.broadcast %214 : vector<1x16x1xf32> to vector<1x16x16xf32>
    %216 = arith.mulf %211, %215 : vector<1x16x16xf32>
    %217 = arith.truncf %216 : vector<1x16x16xf32> to vector<1x16x16xbf16>
    "tpu.trace_start"() <{level = 10 : i32, message = "bqk,bkd->bqd"}> : () -> ()
    %cst_78 = arith.constant dense<0.000000e+00> : vector<1x16x32xf32>
    %218 = tpu.matmul %217, %205, %cst_78 {dimension_numbers = #tpu.dot_dimension_numbers<[2], [1], [1], [2], [0, 0, 0, 1, 1, 2], [0], [0]>} : vector<1x16x16xbf16>, vector<1x16x32xbf16>, vector<1x16x32xf32> -> vector<1x16x32xf32>
    "tpu.trace_stop"() : () -> ()
    %219 = vector.extract_strided_slice %199 {offsets = [0, 32], sizes = [16, 32], strides = [1, 1]} : vector<16x384xbf16> to vector<16x32xbf16>
    %220 = vector.shape_cast %219 : vector<16x32xbf16> to vector<1x16x32xbf16>
    %221 = vector.extract_strided_slice %199 {offsets = [0, 160], sizes = [16, 32], strides = [1, 1]} : vector<16x384xbf16> to vector<16x32xbf16>
    %222 = vector.shape_cast %221 : vector<16x32xbf16> to vector<1x16x32xbf16>
    %223 = vector.extract_strided_slice %199 {offsets = [0, 288], sizes = [16, 32], strides = [1, 1]} : vector<16x384xbf16> to vector<16x32xbf16>
    %224 = vector.shape_cast %223 : vector<16x32xbf16> to vector<1x16x32xbf16>
    "tpu.trace_start"() <{level = 10 : i32, message = "bqd,bkd->bqk"}> : () -> ()
    %cst_79 = arith.constant dense<0.000000e+00> : vector<1x16x16xf32>
    %225 = tpu.matmul %220, %222, %cst_79 {dimension_numbers = #tpu.dot_dimension_numbers<[2], [2], [1], [1], [0, 0, 0, 1, 1, 1], [0], [0]>} : vector<1x16x32xbf16>, vector<1x16x32xbf16>, vector<1x16x16xf32> -> vector<1x16x16xf32>
    "tpu.trace_stop"() : () -> ()
    %cst_80 = arith.constant dense<0xFF800000> : vector<1x16xf32>
    %226 = vector.multi_reduction <maximumf>, %225, %cst_80 [2] : vector<1x16x16xf32> to vector<1x16xf32>
    %227 = vector.shape_cast %226 : vector<1x16xf32> to vector<1x16x1xf32>
    %228 = vector.broadcast %227 : vector<1x16x1xf32> to vector<1x16x16xf32>
    %229 = arith.subf %225, %228 : vector<1x16x16xf32>
    %230 = math.exp %229 : vector<1x16x16xf32>
    %cst_81 = arith.constant dense<0.000000e+00> : vector<1x16xf32>
    %231 = vector.multi_reduction <add>, %230, %cst_81 [2] : vector<1x16x16xf32> to vector<1x16xf32>
    %232 = vector.shape_cast %231 : vector<1x16xf32> to vector<1x16x1xf32>
    %233 = tpu.reciprocal %232 {approx = true} : vector<1x16x1xf32> -> vector<1x16x1xf32>
    %234 = vector.broadcast %233 : vector<1x16x1xf32> to vector<1x16x16xf32>
    %235 = arith.mulf %230, %234 : vector<1x16x16xf32>
    %236 = arith.truncf %235 : vector<1x16x16xf32> to vector<1x16x16xbf16>
    "tpu.trace_start"() <{level = 10 : i32, message = "bqk,bkd->bqd"}> : () -> ()
    %cst_82 = arith.constant dense<0.000000e+00> : vector<1x16x32xf32>
    %237 = tpu.matmul %236, %224, %cst_82 {dimension_numbers = #tpu.dot_dimension_numbers<[2], [1], [1], [2], [0, 0, 0, 1, 1, 2], [0], [0]>} : vector<1x16x16xbf16>, vector<1x16x32xbf16>, vector<1x16x32xf32> -> vector<1x16x32xf32>
    "tpu.trace_stop"() : () -> ()
    %238 = vector.extract_strided_slice %199 {offsets = [0, 64], sizes = [16, 32], strides = [1, 1]} : vector<16x384xbf16> to vector<16x32xbf16>
    %239 = vector.shape_cast %238 : vector<16x32xbf16> to vector<1x16x32xbf16>
    %240 = vector.extract_strided_slice %199 {offsets = [0, 192], sizes = [16, 32], strides = [1, 1]} : vector<16x384xbf16> to vector<16x32xbf16>
    %241 = vector.shape_cast %240 : vector<16x32xbf16> to vector<1x16x32xbf16>
    %242 = vector.extract_strided_slice %199 {offsets = [0, 320], sizes = [16, 32], strides = [1, 1]} : vector<16x384xbf16> to vector<16x32xbf16>
    %243 = vector.shape_cast %242 : vector<16x32xbf16> to vector<1x16x32xbf16>
    "tpu.trace_start"() <{level = 10 : i32, message = "bqd,bkd->bqk"}> : () -> ()
    %cst_83 = arith.constant dense<0.000000e+00> : vector<1x16x16xf32>
    %244 = tpu.matmul %239, %241, %cst_83 {dimension_numbers = #tpu.dot_dimension_numbers<[2], [2], [1], [1], [0, 0, 0, 1, 1, 1], [0], [0]>} : vector<1x16x32xbf16>, vector<1x16x32xbf16>, vector<1x16x16xf32> -> vector<1x16x16xf32>
    "tpu.trace_stop"() : () -> ()
    %cst_84 = arith.constant dense<0xFF800000> : vector<1x16xf32>
    %245 = vector.multi_reduction <maximumf>, %244, %cst_84 [2] : vector<1x16x16xf32> to vector<1x16xf32>
    %246 = vector.shape_cast %245 : vector<1x16xf32> to vector<1x16x1xf32>
    %247 = vector.broadcast %246 : vector<1x16x1xf32> to vector<1x16x16xf32>
    %248 = arith.subf %244, %247 : vector<1x16x16xf32>
    %249 = math.exp %248 : vector<1x16x16xf32>
    %cst_85 = arith.constant dense<0.000000e+00> : vector<1x16xf32>
    %250 = vector.multi_reduction <add>, %249, %cst_85 [2] : vector<1x16x16xf32> to vector<1x16xf32>
    %251 = vector.shape_cast %250 : vector<1x16xf32> to vector<1x16x1xf32>
    %252 = tpu.reciprocal %251 {approx = true} : vector<1x16x1xf32> -> vector<1x16x1xf32>
    %253 = vector.broadcast %252 : vector<1x16x1xf32> to vector<1x16x16xf32>
    %254 = arith.mulf %249, %253 : vector<1x16x16xf32>
    %255 = arith.truncf %254 : vector<1x16x16xf32> to vector<1x16x16xbf16>
    "tpu.trace_start"() <{level = 10 : i32, message = "bqk,bkd->bqd"}> : () -> ()
    %cst_86 = arith.constant dense<0.000000e+00> : vector<1x16x32xf32>
    %256 = tpu.matmul %255, %243, %cst_86 {dimension_numbers = #tpu.dot_dimension_numbers<[2], [1], [1], [2], [0, 0, 0, 1, 1, 2], [0], [0]>} : vector<1x16x16xbf16>, vector<1x16x32xbf16>, vector<1x16x32xf32> -> vector<1x16x32xf32>
    "tpu.trace_stop"() : () -> ()
    %257 = vector.extract_strided_slice %199 {offsets = [0, 96], sizes = [16, 32], strides = [1, 1]} : vector<16x384xbf16> to vector<16x32xbf16>
    %258 = vector.shape_cast %257 : vector<16x32xbf16> to vector<1x16x32xbf16>
    %259 = vector.extract_strided_slice %199 {offsets = [0, 224], sizes = [16, 32], strides = [1, 1]} : vector<16x384xbf16> to vector<16x32xbf16>
    %260 = vector.shape_cast %259 : vector<16x32xbf16> to vector<1x16x32xbf16>
    %261 = vector.extract_strided_slice %199 {offsets = [0, 352], sizes = [16, 32], strides = [1, 1]} : vector<16x384xbf16> to vector<16x32xbf16>
    %262 = vector.shape_cast %261 : vector<16x32xbf16> to vector<1x16x32xbf16>
    "tpu.trace_start"() <{level = 10 : i32, message = "bqd,bkd->bqk"}> : () -> ()
    %cst_87 = arith.constant dense<0.000000e+00> : vector<1x16x16xf32>
    %263 = tpu.matmul %258, %260, %cst_87 {dimension_numbers = #tpu.dot_dimension_numbers<[2], [2], [1], [1], [0, 0, 0, 1, 1, 1], [0], [0]>} : vector<1x16x32xbf16>, vector<1x16x32xbf16>, vector<1x16x16xf32> -> vector<1x16x16xf32>
    "tpu.trace_stop"() : () -> ()
    %cst_88 = arith.constant dense<0xFF800000> : vector<1x16xf32>
    %264 = vector.multi_reduction <maximumf>, %263, %cst_88 [2] : vector<1x16x16xf32> to vector<1x16xf32>
    %265 = vector.shape_cast %264 : vector<1x16xf32> to vector<1x16x1xf32>
    %266 = vector.broadcast %265 : vector<1x16x1xf32> to vector<1x16x16xf32>
    %267 = arith.subf %263, %266 : vector<1x16x16xf32>
    %268 = math.exp %267 : vector<1x16x16xf32>
    %cst_89 = arith.constant dense<0.000000e+00> : vector<1x16xf32>
    %269 = vector.multi_reduction <add>, %268, %cst_89 [2] : vector<1x16x16xf32> to vector<1x16xf32>
    %270 = vector.shape_cast %269 : vector<1x16xf32> to vector<1x16x1xf32>
    %271 = tpu.reciprocal %270 {approx = true} : vector<1x16x1xf32> -> vector<1x16x1xf32>
    %272 = vector.broadcast %271 : vector<1x16x1xf32> to vector<1x16x16xf32>
    %273 = arith.mulf %268, %272 : vector<1x16x16xf32>
    %274 = arith.truncf %273 : vector<1x16x16xf32> to vector<1x16x16xbf16>
    "tpu.trace_start"() <{level = 10 : i32, message = "bqk,bkd->bqd"}> : () -> ()
    %cst_90 = arith.constant dense<0.000000e+00> : vector<1x16x32xf32>
    %275 = tpu.matmul %274, %262, %cst_90 {dimension_numbers = #tpu.dot_dimension_numbers<[2], [1], [1], [2], [0, 0, 0, 1, 1, 2], [0], [0]>} : vector<1x16x16xbf16>, vector<1x16x32xbf16>, vector<1x16x32xf32> -> vector<1x16x32xf32>
    "tpu.trace_stop"() : () -> ()
    %276 = tpu.concatenate %218, %237, %256, %275 in 2 : vector<1x16x32xf32>, vector<1x16x32xf32>, vector<1x16x32xf32>, vector<1x16x32xf32> -> vector<1x16x128xf32>
    %277 = vector.shape_cast %276 : vector<1x16x128xf32> to vector<16x128xf32>
    %278 = arith.truncf %277 : vector<16x128xf32> to vector<16x128xbf16>
    %c0_91 = arith.constant 0 : index
    %c0_92 = arith.constant 0 : index
    %279 = vector.load %arg6[%c0_91, %c0_92] : memref<128x128xbf16, #tpu.memory_space<vmem>>, vector<128x128xbf16>
    %cst_93 = arith.constant dense<0.000000e+00> : vector<16x128xf32>
    %280 = tpu.matmul %278, %279, %cst_93 {dimension_numbers = #tpu.dot_dimension_numbers<[1], [0], [0], [1], [0, 0, 1, 1], [], []>} : vector<16x128xbf16>, vector<128x128xbf16>, vector<16x128xf32> -> vector<16x128xf32>
    %281 = arith.addf %171, %280 : vector<16x128xf32>
    %282 = vector.broadcast %5 : vector<1x128xf32> to vector<16x128xf32>
    %283 = arith.addf %281, %282 : vector<16x128xf32>
    %cst_94 = arith.constant dense<0.000000e+00> : vector<16xf32>
    %284 = vector.multi_reduction <add>, %283, %cst_94 [1] : vector<16x128xf32> to vector<16xf32>
    %285 = vector.shape_cast %284 : vector<16xf32> to vector<16x1xf32>
    %cst_95 = arith.constant 1.280000e+02 : f32
    %286 = vector.broadcast %cst_95 : f32 to vector<16x1xf32>
    %287 = arith.divf %285, %286 : vector<16x1xf32>
    %288 = vector.broadcast %287 : vector<16x1xf32> to vector<16x128xf32>
    %289 = arith.subf %283, %288 : vector<16x128xf32>
    %290 = arith.mulf %289, %289 : vector<16x128xf32>
    %cst_96 = arith.constant dense<0.000000e+00> : vector<16xf32>
    %291 = vector.multi_reduction <add>, %290, %cst_96 [1] : vector<16x128xf32> to vector<16xf32>
    %292 = vector.shape_cast %291 : vector<16xf32> to vector<16x1xf32>
    %cst_97 = arith.constant 1.280000e+02 : f32
    %293 = vector.broadcast %cst_97 : f32 to vector<16x1xf32>
    %294 = arith.divf %292, %293 : vector<16x1xf32>
    %295 = vector.broadcast %287 : vector<16x1xf32> to vector<16x128xf32>
    %296 = arith.subf %283, %295 : vector<16x128xf32>
    %cst_98 = arith.constant 9.99999974E-6 : f32
    %297 = vector.broadcast %cst_98 : f32 to vector<16x1xf32>
    %298 = arith.addf %294, %297 : vector<16x1xf32>
    %299 = math.rsqrt %298 : vector<16x1xf32>
    %300 = vector.broadcast %299 : vector<16x1xf32> to vector<16x128xf32>
    %301 = arith.mulf %296, %300 : vector<16x128xf32>
    %302 = vector.broadcast %2 : vector<1x128xf32> to vector<16x128xf32>
    %303 = arith.mulf %301, %302 : vector<16x128xf32>
    %304 = vector.broadcast %3 : vector<1x128xf32> to vector<16x128xf32>
    %305 = arith.addf %303, %304 : vector<16x128xf32>
    %306 = arith.truncf %305 : vector<16x128xf32> to vector<16x128xbf16>
    %c0_99 = arith.constant 0 : index
    %c0_100 = arith.constant 0 : index
    %307 = vector.load %arg10[%c0_99, %c0_100] : memref<128x256xbf16, #tpu.memory_space<vmem>>, vector<128x256xbf16>
    %cst_101 = arith.constant dense<0.000000e+00> : vector<16x256xf32>
    %308 = tpu.matmul %306, %307, %cst_101 {dimension_numbers = #tpu.dot_dimension_numbers<[1], [0], [0], [1], [0, 0, 1, 1], [], []>} : vector<16x128xbf16>, vector<128x256xbf16>, vector<16x256xf32> -> vector<16x256xf32>
    %309 = vector.broadcast %6 : vector<1x256xf32> to vector<16x256xf32>
    %310 = arith.addf %308, %309 : vector<16x256xf32>
    %311 = arith.mulf %310, %310 : vector<16x256xf32>
    %312 = arith.mulf %310, %311 : vector<16x256xf32>
    %cst_102 = arith.constant 4.471500e-02 : f32
    %313 = vector.broadcast %cst_102 : f32 to vector<16x256xf32>
    %314 = arith.mulf %313, %312 : vector<16x256xf32>
    %315 = arith.addf %310, %314 : vector<16x256xf32>
    %cst_103 = arith.constant 0.797884583 : f32
    %316 = vector.broadcast %cst_103 : f32 to vector<16x256xf32>
    %317 = arith.mulf %316, %315 : vector<16x256xf32>
    %318 = math.tanh %317 : vector<16x256xf32>
    %cst_104 = arith.constant 1.000000e+00 : f32
    %319 = vector.broadcast %cst_104 : f32 to vector<16x256xf32>
    %320 = arith.addf %319, %318 : vector<16x256xf32>
    %cst_105 = arith.constant 5.000000e-01 : f32
    %321 = vector.broadcast %cst_105 : f32 to vector<16x256xf32>
    %322 = arith.mulf %321, %320 : vector<16x256xf32>
    %323 = arith.mulf %310, %322 : vector<16x256xf32>
    %324 = arith.truncf %323 : vector<16x256xf32> to vector<16x256xbf16>
    %c0_106 = arith.constant 0 : index
    %c0_107 = arith.constant 0 : index
    %325 = vector.load %arg12[%c0_106, %c0_107] : memref<256x128xbf16, #tpu.memory_space<vmem>>, vector<256x128xbf16>
    %cst_108 = arith.constant dense<0.000000e+00> : vector<16x128xf32>
    %326 = tpu.matmul %324, %325, %cst_108 {dimension_numbers = #tpu.dot_dimension_numbers<[1], [0], [0], [1], [0, 0, 1, 1], [], []>} : vector<16x256xbf16>, vector<256x128xbf16>, vector<16x128xf32> -> vector<16x128xf32>
    %327 = vector.broadcast %7 : vector<1x128xf32> to vector<16x128xf32>
    %328 = arith.addf %326, %327 : vector<16x128xf32>
    %329 = arith.addf %283, %328 : vector<16x128xf32>
    %c0_109 = arith.constant 0 : index
    %c0_110 = arith.constant 0 : index
    %330 = vector.load %arg15[%c0_109, %c0_110] : memref<16x128xf32, #tpu.memory_space<vmem>>, vector<16x128xf32>
    tpu.vector_store %arg15[%c0_109, %c0_110], %329 {strides = array<i32>} : memref<16x128xf32, #tpu.memory_space<vmem>>, vector<16x128xf32>,
    %c0_111 = arith.constant 0 : index
    %c0_112 = arith.constant 0 : index
    %331 = vector.load %arg15[%c0_111, %c0_112] : memref<16x128xf32, #tpu.memory_space<vmem>>, vector<16x128xf32>
    %332 = vector.shape_cast %331 : vector<16x128xf32> to vector<1x16x128xf32>
    %c0_113 = arith.constant 0 : index
    %c0_114 = arith.constant 0 : index
    %c0_115 = arith.constant 0 : index
    %333 = vector.load %arg14[%c0_113, %c0_114, %c0_115] : memref<1x16x128xf32, #tpu.memory_space<vmem>>, vector<1x16x128xf32>
    tpu.vector_store %arg14[%c0_113, %c0_114, %c0_115], %332 {strides = array<i32>} : memref<1x16x128xf32, #tpu.memory_space<vmem>>, vector<1x16x128xf32>,
    return
  }
  func.func @transform_0(%arg0: i32) -> (i32, i32, i32) {
    %c0_i32 = arith.constant 0 : i32
    %c0_i32_0 = arith.constant 0 : i32
    %c0_i32_1 = arith.constant 0 : i32
    return %arg0, %c0_i32, %c0_i32_0 : i32, i32, i32
  }
  func.func @transform_1(%arg0: i32) -> (i32, i32) {
    %c0_i32 = arith.constant 0 : i32
    %c0_i32_0 = arith.constant 0 : i32
    %c0_i32_1 = arith.constant 0 : i32
    return %c0_i32, %c0_i32_0 : i32, i32
  }
  func.func @transform_2(%arg0: i32) -> (i32, i32) {
    %c0_i32 = arith.constant 0 : i32
    %c0_i32_0 = arith.constant 0 : i32
    %c0_i32_1 = arith.constant 0 : i32
    return %c0_i32, %c0_i32_0 : i32, i32
  }
  func.func @transform_3(%arg0: i32) -> (i32, i32) {
    %c0_i32 = arith.constant 0 : i32
    %c0_i32_0 = arith.constant 0 : i32
    %c0_i32_1 = arith.constant 0 : i32
    return %c0_i32, %c0_i32_0 : i32, i32
  }
  func.func @transform_4(%arg0: i32) -> (i32, i32) {
    %c0_i32 = arith.constant 0 : i32
    %c0_i32_0 = arith.constant 0 : i32
    %c0_i32_1 = arith.constant 0 : i32
    return %c0_i32, %c0_i32_0 : i32, i32
  }
  func.func @transform_5(%arg0: i32) -> (i32, i32) {
    %c0_i32 = arith.constant 0 : i32
    %c0_i32_0 = arith.constant 0 : i32
    %c0_i32_1 = arith.constant 0 : i32
    return %c0_i32, %c0_i32_0 : i32, i32
  }
  func.func @transform_6(%arg0: i32) -> (i32, i32) {
    %c0_i32 = arith.constant 0 : i32
    %c0_i32_0 = arith.constant 0 : i32
    %c0_i32_1 = arith.constant 0 : i32
    return %c0_i32, %c0_i32_0 : i32, i32
  }
  func.func @transform_7(%arg0: i32) -> (i32, i32) {
    %c0_i32 = arith.constant 0 : i32
    %c0_i32_0 = arith.constant 0 : i32
    %c0_i32_1 = arith.constant 0 : i32
    return %c0_i32, %c0_i32_0 : i32, i32
  }
  func.func @transform_8(%arg0: i32) -> (i32, i32) {
    %c0_i32 = arith.constant 0 : i32
    %c0_i32_0 = arith.constant 0 : i32
    %c0_i32_1 = arith.constant 0 : i32
    return %c0_i32, %c0_i32_0 : i32, i32
  }
  func.func @transform_9(%arg0: i32) -> (i32, i32) {
    %c0_i32 = arith.constant 0 : i32
    %c0_i32_0 = arith.constant 0 : i32
    %c0_i32_1 = arith.constant 0 : i32
    return %c0_i32, %c0_i32_0 : i32, i32
  }
  func.func @transform_10(%arg0: i32) -> (i32, i32) {
    %c0_i32 = arith.constant 0 : i32
    %c0_i32_0 = arith.constant 0 : i32
    %c0_i32_1 = arith.constant 0 : i32
    return %c0_i32, %c0_i32_0 : i32, i32
  }
  func.func @transform_11(%arg0: i32) -> (i32, i32) {
    %c0_i32 = arith.constant 0 : i32
    %c0_i32_0 = arith.constant 0 : i32
    %c0_i32_1 = arith.constant 0 : i32
    return %c0_i32, %c0_i32_0 : i32, i32
  }
  func.func @transform_12(%arg0: i32) -> (i32, i32) {
    %c0_i32 = arith.constant 0 : i32
    %c0_i32_0 = arith.constant 0 : i32
    %c0_i32_1 = arith.constant 0 : i32
    return %c0_i32, %c0_i32_0 : i32, i32
  }
  func.func @transform_13(%arg0: i32) -> (i32, i32, i32) {
    %c0_i32 = arith.constant 0 : i32
    %c0_i32_0 = arith.constant 0 : i32
    %c0_i32_1 = arith.constant 0 : i32
    return %arg0, %c0_i32, %c0_i32_0 : i32, i32, i32
  }
}

module attributes {stable_mosaic.version = 11 : i64} {
  func.func @transformer_kernel(%arg0: i32, %arg1: memref<1x16x128xf32, #tpu.memory_space<vmem>>, %arg2: memref<1x128xf32, #tpu.memory_space<vmem>>, %arg3: memref<1x128xf32, #tpu.memory_space<vmem>>, %arg4: memref<128x384xbf16, #tpu.memory_space<vmem>>, %arg5: memref<1x384xf32, #tpu.memory_space<vmem>>, %arg6: memref<128x128xbf16, #tpu.memory_space<vmem>>, %arg7: memref<1x128xf32, #tpu.memory_space<vmem>>, %arg8: memref<1x128xf32, #tpu.memory_space<vmem>>, %arg9: memref<1x128xf32, #tpu.memory_space<vmem>>, %arg10: memref<128x256xbf16, #tpu.memory_space<vmem>>, %arg11: memref<1x256xf32, #tpu.memory_space<vmem>>, %arg12: memref<256x128xbf16, #tpu.memory_space<vmem>>, %arg13: memref<1x128xf32, #tpu.memory_space<vmem>>, %arg14: memref<1x16x128xf32, #tpu.memory_space<vmem>>, %arg15: memref<16x128xf32, #tpu.memory_space<vmem>>) attributes {dimension_semantics = [#tpu.dimension_semantics<parallel>], iteration_bounds = array<i64: 2>, scalar_prefetch = 0 : i64, scratch_operands = 1 : i64, tpu.core_type = #tpu.core_type<tc>, window_params = [{transform_indices = @transform_0, window_bounds = array<i64: 1, 16, 128>}, {pipeline_mode = #tpu.pipeline_mode<synchronous>, transform_indices = @transform_1, window_bounds = array<i64: 1, 128>}, {pipeline_mode = #tpu.pipeline_mode<synchronous>, transform_indices = @transform_2, window_bounds = array<i64: 1, 128>}, {pipeline_mode = #tpu.pipeline_mode<synchronous>, transform_indices = @transform_3, window_bounds = array<i64: 128, 384>}, {pipeline_mode = #tpu.pipeline_mode<synchronous>, transform_indices = @transform_4, window_bounds = array<i64: 1, 384>}, {pipeline_mode = #tpu.pipeline_mode<synchronous>, transform_indices = @transform_5, window_bounds = array<i64: 128, 128>}, {pipeline_mode = #tpu.pipeline_mode<synchronous>, transform_indices = @transform_6, window_bounds = array<i64: 1, 128>}, {pipeline_mode = #tpu.pipeline_mode<synchronous>, transform_indices = @transform_7, window_bounds = array<i64: 1, 128>}, {pipeline_mode = #tpu.pipeline_mode<synchronous>, transform_indices = @transform_8, window_bounds = array<i64: 1, 128>}, {pipeline_mode = #tpu.pipeline_mode<synchronous>, transform_indices = @transform_9, window_bounds = array<i64: 128, 256>}, {pipeline_mode = #tpu.pipeline_mode<synchronous>, transform_indices = @transform_10, window_bounds = array<i64: 1, 256>}, {pipeline_mode = #tpu.pipeline_mode<synchronous>, transform_indices = @transform_11, window_bounds = array<i64: 256, 128>}, {pipeline_mode = #tpu.pipeline_mode<synchronous>, transform_indices = @transform_12, window_bounds = array<i64: 1, 128>}, {transform_indices = @transform_13, window_bounds = array<i64: 1, 16, 128>}]} {
    %c0 = arith.constant 0 : index
    %c0_0 = arith.constant 0 : index
    %0 = vector.load %arg2[%c0, %c0_0] : memref<1x128xf32, #tpu.memory_space<vmem>>, vector<1x128xf32>
    %c0_1 = arith.constant 0 : index
    %c0_2 = arith.constant 0 : index
    %1 = vector.load %arg3[%c0_1, %c0_2] : memref<1x128xf32, #tpu.memory_space<vmem>>, vector<1x128xf32>
    %c0_3 = arith.constant 0 : index
    %c0_4 = arith.constant 0 : index
    %2 = vector.load %arg8[%c0_3, %c0_4] : memref<1x128xf32, #tpu.memory_space<vmem>>, vector<1x128xf32>
    %c0_5 = arith.constant 0 : index
    %c0_6 = arith.constant 0 : index
    %3 = vector.load %arg9[%c0_5, %c0_6] : memref<1x128xf32, #tpu.memory_space<vmem>>, vector<1x128xf32>
    %c0_7 = arith.constant 0 : index
    %c0_8 = arith.constant 0 : index
    %4 = vector.load %arg5[%c0_7, %c0_8] : memref<1x384xf32, #tpu.memory_space<vmem>>, vector<1x384xf32>
    %c0_9 = arith.constant 0 : index
    %c0_10 = arith.constant 0 : index
    %5 = vector.load %arg7[%c0_9, %c0_10] : memref<1x128xf32, #tpu.memory_space<vmem>>, vector<1x128xf32>
    %c0_11 = arith.constant 0 : index
    %c0_12 = arith.constant 0 : index
    %6 = vector.load %arg11[%c0_11, %c0_12] : memref<1x256xf32, #tpu.memory_space<vmem>>, vector<1x256xf32>
    %c0_13 = arith.constant 0 : index
    %c0_14 = arith.constant 0 : index
    %7 = vector.load %arg13[%c0_13, %c0_14] : memref<1x128xf32, #tpu.memory_space<vmem>>, vector<1x128xf32>
    %c0_15 = arith.constant 0 : index
    %c0_16 = arith.constant 0 : index
    %c0_17 = arith.constant 0 : index
    %8 = vector.load %arg1[%c0_15, %c0_16, %c0_17] : memref<1x16x128xf32, #tpu.memory_space<vmem>>, vector<1x16x128xf32>
    %9 = vector.shape_cast %8 : vector<1x16x128xf32> to vector<16x128xf32>
    %c0_18 = arith.constant 0 : index
    %c0_19 = arith.constant 0 : index
    %10 = vector.load %arg15[%c0_18, %c0_19] : memref<16x128xf32, #tpu.memory_space<vmem>>, vector<16x128xf32>
    tpu.vector_store %arg15[%c0_18, %c0_19], %9 {strides = array<i32>} : memref<16x128xf32, #tpu.memory_space<vmem>>, vector<16x128xf32>,
    %c0_i32 = arith.constant 0 : i32
    %c0_20 = arith.constant 0 : index
    %c0_21 = arith.constant 0 : index
    %11 = vector.load %arg15[%c0_20, %c0_21] : memref<16x128xf32, #tpu.memory_space<vmem>>, vector<16x128xf32>
    %cst = arith.constant dense<0.000000e+00> : vector<16xf32>
    %12 = vector.multi_reduction <add>, %11, %cst [1] : vector<16x128xf32> to vector<16xf32>
    %13 = vector.shape_cast %12 : vector<16xf32> to vector<16x1xf32>
    %cst_22 = arith.constant 1.280000e+02 : f32
    %14 = vector.broadcast %cst_22 : f32 to vector<16x1xf32>
    %15 = arith.divf %13, %14 : vector<16x1xf32>
    %16 = vector.broadcast %15 : vector<16x1xf32> to vector<16x128xf32>
    %17 = arith.subf %11, %16 : vector<16x128xf32>
    %18 = arith.mulf %17, %17 : vector<16x128xf32>
    %cst_23 = arith.constant dense<0.000000e+00> : vector<16xf32>
    %19 = vector.multi_reduction <add>, %18, %cst_23 [1] : vector<16x128xf32> to vector<16xf32>
    %20 = vector.shape_cast %19 : vector<16xf32> to vector<16x1xf32>
    %cst_24 = arith.constant 1.280000e+02 : f32
    %21 = vector.broadcast %cst_24 : f32 to vector<16x1xf32>
    %22 = arith.divf %20, %21 : vector<16x1xf32>
    %23 = vector.broadcast %15 : vector<16x1xf32> to vector<16x128xf32>
    %24 = arith.subf %11, %23 : vector<16x128xf32>
    %cst_25 = arith.constant 9.99999974E-6 : f32
    %25 = vector.broadcast %cst_25 : f32 to vector<16x1xf32>
    %26 = arith.addf %22, %25 : vector<16x1xf32>
    %27 = math.rsqrt %26 : vector<16x1xf32>
    %28 = vector.broadcast %27 : vector<16x1xf32> to vector<16x128xf32>
    %29 = arith.mulf %24, %28 : vector<16x128xf32>
    %30 = vector.broadcast %0 : vector<1x128xf32> to vector<16x128xf32>
    %31 = arith.mulf %29, %30 : vector<16x128xf32>
    %32 = vector.broadcast %1 : vector<1x128xf32> to vector<16x128xf32>
    %33 = arith.addf %31, %32 : vector<16x128xf32>
    %34 = arith.truncf %33 : vector<16x128xf32> to vector<16x128xbf16>
    %c0_26 = arith.constant 0 : index
    %c0_27 = arith.constant 0 : index
    %35 = vector.load %arg4[%c0_26, %c0_27] : memref<128x384xbf16, #tpu.memory_space<vmem>>, vector<128x384xbf16>
    %cst_28 = arith.constant dense<0.000000e+00> : vector<16x384xf32>
    %36 = tpu.matmul %34, %35, %cst_28 {dimension_numbers = #tpu.dot_dimension_numbers<[1], [0], [0], [1], [0, 0, 1, 1], [], []>} : vector<16x128xbf16>, vector<128x384xbf16>, vector<16x384xf32> -> vector<16x384xf32>
    %37 = vector.broadcast %4 : vector<1x384xf32> to vector<16x384xf32>
    %38 = arith.addf %36, %37 : vector<16x384xf32>
    %39 = arith.truncf %38 : vector<16x384xf32> to vector<16x384xbf16>
    %40 = vector.extract_strided_slice %39 {offsets = [0, 0], sizes = [16, 32], strides = [1, 1]} : vector<16x384xbf16> to vector<16x32xbf16>
    %41 = vector.shape_cast %40 : vector<16x32xbf16> to vector<1x16x32xbf16>
    %42 = vector.extract_strided_slice %39 {offsets = [0, 128], sizes = [16, 32], strides = [1, 1]} : vector<16x384xbf16> to vector<16x32xbf16>
    %43 = vector.shape_cast %42 : vector<16x32xbf16> to vector<1x16x32xbf16>
    %44 = vector.extract_strided_slice %39 {offsets = [0, 256], sizes = [16, 32], strides = [1, 1]} : vector<16x384xbf16> to vector<16x32xbf16>
    %45 = vector.shape_cast %44 : vector<16x32xbf16> to vector<1x16x32xbf16>
    "tpu.trace_start"() <{level = 10 : i32, message = "bqd,bkd->bqk"}> : () -> ()
    %cst_29 = arith.constant dense<0.000000e+00> : vector<1x16x16xf32>
    %46 = tpu.matmul %41, %43, %cst_29 {dimension_numbers = #tpu.dot_dimension_numbers<[2], [2], [1], [1], [0, 0, 0, 1, 1, 1], [0], [0]>} : vector<1x16x32xbf16>, vector<1x16x32xbf16>, vector<1x16x16xf32> -> vector<1x16x16xf32>
    "tpu.trace_stop"() : () -> ()
    %cst_30 = arith.constant dense<0xFF800000> : vector<1x16xf32>
    %47 = vector.multi_reduction <maximumf>, %46, %cst_30 [2] : vector<1x16x16xf32> to vector<1x16xf32>
    %48 = vector.shape_cast %47 : vector<1x16xf32> to vector<1x16x1xf32>
    %49 = vector.broadcast %48 : vector<1x16x1xf32> to vector<1x16x16xf32>
    %50 = arith.subf %46, %49 : vector<1x16x16xf32>
    %51 = math.exp %50 : vector<1x16x16xf32>
    %cst_31 = arith.constant dense<0.000000e+00> : vector<1x16xf32>
    %52 = vector.multi_reduction <add>, %51, %cst_31 [2] : vector<1x16x16xf32> to vector<1x16xf32>
    %53 = vector.shape_cast %52 : vector<1x16xf32> to vector<1x16x1xf32>
    %54 = tpu.reciprocal %53 {approx = true} : vector<1x16x1xf32> -> vector<1x16x1xf32>
    %55 = vector.broadcast %54 : vector<1x16x1xf32> to vector<1x16x16xf32>
    %56 = arith.mulf %51, %55 : vector<1x16x16xf32>
    %57 = arith.truncf %56 : vector<1x16x16xf32> to vector<1x16x16xbf16>
    "tpu.trace_start"() <{level = 10 : i32, message = "bqk,bkd->bqd"}> : () -> ()
    %cst_32 = arith.constant dense<0.000000e+00> : vector<1x16x32xf32>
    %58 = tpu.matmul %57, %45, %cst_32 {dimension_numbers = #tpu.dot_dimension_numbers<[2], [1], [1], [2], [0, 0, 0, 1, 1, 2], [0], [0]>} : vector<1x16x16xbf16>, vector<1x16x32xbf16>, vector<1x16x32xf32> -> vector<1x16x32xf32>
    "tpu.trace_stop"() : () -> ()
    %59 = vector.extract_strided_slice %39 {offsets = [0, 32], sizes = [16, 32], strides = [1, 1]} : vector<16x384xbf16> to vector<16x32xbf16>
    %60 = vector.shape_cast %59 : vector<16x32xbf16> to vector<1x16x32xbf16>
    %61 = vector.extract_strided_slice %39 {offsets = [0, 160], sizes = [16, 32], strides = [1, 1]} : vector<16x384xbf16> to vector<16x32xbf16>
    %62 = vector.shape_cast %61 : vector<16x32xbf16> to vector<1x16x32xbf16>
    %63 = vector.extract_strided_slice %39 {offsets = [0, 288], sizes = [16, 32], strides = [1, 1]} : vector<16x384xbf16> to vector<16x32xbf16>
    %64 = vector.shape_cast %63 : vector<16x32xbf16> to vector<1x16x32xbf16>
    "tpu.trace_start"() <{level = 10 : i32, message = "bqd,bkd->bqk"}> : () -> ()
    %cst_33 = arith.constant dense<0.000000e+00> : vector<1x16x16xf32>
    %65 = tpu.matmul %60, %62, %cst_33 {dimension_numbers = #tpu.dot_dimension_numbers<[2], [2], [1], [1], [0, 0, 0, 1, 1, 1], [0], [0]>} : vector<1x16x32xbf16>, vector<1x16x32xbf16>, vector<1x16x16xf32> -> vector<1x16x16xf32>
    "tpu.trace_stop"() : () -> ()
    %cst_34 = arith.constant dense<0xFF800000> : vector<1x16xf32>
    %66 = vector.multi_reduction <maximumf>, %65, %cst_34 [2] : vector<1x16x16xf32> to vector<1x16xf32>
    %67 = vector.shape_cast %66 : vector<1x16xf32> to vector<1x16x1xf32>
    %68 = vector.broadcast %67 : vector<1x16x1xf32> to vector<1x16x16xf32>
    %69 = arith.subf %65, %68 : vector<1x16x16xf32>
    %70 = math.exp %69 : vector<1x16x16xf32>
    %cst_35 = arith.constant dense<0.000000e+00> : vector<1x16xf32>
    %71 = vector.multi_reduction <add>, %70, %cst_35 [2] : vector<1x16x16xf32> to vector<1x16xf32>
    %72 = vector.shape_cast %71 : vector<1x16xf32> to vector<1x16x1xf32>
    %73 = tpu.reciprocal %72 {approx = true} : vector<1x16x1xf32> -> vector<1x16x1xf32>
    %74 = vector.broadcast %73 : vector<1x16x1xf32> to vector<1x16x16xf32>
    %75 = arith.mulf %70, %74 : vector<1x16x16xf32>
    %76 = arith.truncf %75 : vector<1x16x16xf32> to vector<1x16x16xbf16>
    "tpu.trace_start"() <{level = 10 : i32, message = "bqk,bkd->bqd"}> : () -> ()
    %cst_36 = arith.constant dense<0.000000e+00> : vector<1x16x32xf32>
    %77 = tpu.matmul %76, %64, %cst_36 {dimension_numbers = #tpu.dot_dimension_numbers<[2], [1], [1], [2], [0, 0, 0, 1, 1, 2], [0], [0]>} : vector<1x16x16xbf16>, vector<1x16x32xbf16>, vector<1x16x32xf32> -> vector<1x16x32xf32>
    "tpu.trace_stop"() : () -> ()
    %78 = vector.extract_strided_slice %39 {offsets = [0, 64], sizes = [16, 32], strides = [1, 1]} : vector<16x384xbf16> to vector<16x32xbf16>
    %79 = vector.shape_cast %78 : vector<16x32xbf16> to vector<1x16x32xbf16>
    %80 = vector.extract_strided_slice %39 {offsets = [0, 192], sizes = [16, 32], strides = [1, 1]} : vector<16x384xbf16> to vector<16x32xbf16>
    %81 = vector.shape_cast %80 : vector<16x32xbf16> to vector<1x16x32xbf16>
    %82 = vector.extract_strided_slice %39 {offsets = [0, 320], sizes = [16, 32], strides = [1, 1]} : vector<16x384xbf16> to vector<16x32xbf16>
    %83 = vector.shape_cast %82 : vector<16x32xbf16> to vector<1x16x32xbf16>
    "tpu.trace_start"() <{level = 10 : i32, message = "bqd,bkd->bqk"}> : () -> ()
    %cst_37 = arith.constant dense<0.000000e+00> : vector<1x16x16xf32>
    %84 = tpu.matmul %79, %81, %cst_37 {dimension_numbers = #tpu.dot_dimension_numbers<[2], [2], [1], [1], [0, 0, 0, 1, 1, 1], [0], [0]>} : vector<1x16x32xbf16>, vector<1x16x32xbf16>, vector<1x16x16xf32> -> vector<1x16x16xf32>
    "tpu.trace_stop"() : () -> ()
    %cst_38 = arith.constant dense<0xFF800000> : vector<1x16xf32>
    %85 = vector.multi_reduction <maximumf>, %84, %cst_38 [2] : vector<1x16x16xf32> to vector<1x16xf32>
    %86 = vector.shape_cast %85 : vector<1x16xf32> to vector<1x16x1xf32>
    %87 = vector.broadcast %86 : vector<1x16x1xf32> to vector<1x16x16xf32>
    %88 = arith.subf %84, %87 : vector<1x16x16xf32>
    %89 = math.exp %88 : vector<1x16x16xf32>
    %cst_39 = arith.constant dense<0.000000e+00> : vector<1x16xf32>
    %90 = vector.multi_reduction <add>, %89, %cst_39 [2] : vector<1x16x16xf32> to vector<1x16xf32>
    %91 = vector.shape_cast %90 : vector<1x16xf32> to vector<1x16x1xf32>
    %92 = tpu.reciprocal %91 {approx = true} : vector<1x16x1xf32> -> vector<1x16x1xf32>
    %93 = vector.broadcast %92 : vector<1x16x1xf32> to vector<1x16x16xf32>
    %94 = arith.mulf %89, %93 : vector<1x16x16xf32>
    %95 = arith.truncf %94 : vector<1x16x16xf32> to vector<1x16x16xbf16>
    "tpu.trace_start"() <{level = 10 : i32, message = "bqk,bkd->bqd"}> : () -> ()
    %cst_40 = arith.constant dense<0.000000e+00> : vector<1x16x32xf32>
    %96 = tpu.matmul %95, %83, %cst_40 {dimension_numbers = #tpu.dot_dimension_numbers<[2], [1], [1], [2], [0, 0, 0, 1, 1, 2], [0], [0]>} : vector<1x16x16xbf16>, vector<1x16x32xbf16>, vector<1x16x32xf32> -> vector<1x16x32xf32>
    "tpu.trace_stop"() : () -> ()
    %97 = vector.extract_strided_slice %39 {offsets = [0, 96], sizes = [16, 32], strides = [1, 1]} : vector<16x384xbf16> to vector<16x32xbf16>
    %98 = vector.shape_cast %97 : vector<16x32xbf16> to vector<1x16x32xbf16>
    %99 = vector.extract_strided_slice %39 {offsets = [0, 224], sizes = [16, 32], strides = [1, 1]} : vector<16x384xbf16> to vector<16x32xbf16>
    %100 = vector.shape_cast %99 : vector<16x32xbf16> to vector<1x16x32xbf16>
    %101 = vector.extract_strided_slice %39 {offsets = [0, 352], sizes = [16, 32], strides = [1, 1]} : vector<16x384xbf16> to vector<16x32xbf16>
    %102 = vector.shape_cast %101 : vector<16x32xbf16> to vector<1x16x32xbf16>
    "tpu.trace_start"() <{level = 10 : i32, message = "bqd,bkd->bqk"}> : () -> ()
    %cst_41 = arith.constant dense<0.000000e+00> : vector<1x16x16xf32>
    %103 = tpu.matmul %98, %100, %cst_41 {dimension_numbers = #tpu.dot_dimension_numbers<[2], [2], [1], [1], [0, 0, 0, 1, 1, 1], [0], [0]>} : vector<1x16x32xbf16>, vector<1x16x32xbf16>, vector<1x16x16xf32> -> vector<1x16x16xf32>
    "tpu.trace_stop"() : () -> ()
    %cst_42 = arith.constant dense<0xFF800000> : vector<1x16xf32>
    %104 = vector.multi_reduction <maximumf>, %103, %cst_42 [2] : vector<1x16x16xf32> to vector<1x16xf32>
    %105 = vector.shape_cast %104 : vector<1x16xf32> to vector<1x16x1xf32>
    %106 = vector.broadcast %105 : vector<1x16x1xf32> to vector<1x16x16xf32>
    %107 = arith.subf %103, %106 : vector<1x16x16xf32>
    %108 = math.exp %107 : vector<1x16x16xf32>
    %cst_43 = arith.constant dense<0.000000e+00> : vector<1x16xf32>
    %109 = vector.multi_reduction <add>, %108, %cst_43 [2] : vector<1x16x16xf32> to vector<1x16xf32>
    %110 = vector.shape_cast %109 : vector<1x16xf32> to vector<1x16x1xf32>
    %111 = tpu.reciprocal %110 {approx = true} : vector<1x16x1xf32> -> vector<1x16x1xf32>
    %112 = vector.broadcast %111 : vector<1x16x1xf32> to vector<1x16x16xf32>
    %113 = arith.mulf %108, %112 : vector<1x16x16xf32>
    %114 = arith.truncf %113 : vector<1x16x16xf32> to vector<1x16x16xbf16>
    "tpu.trace_start"() <{level = 10 : i32, message = "bqk,bkd->bqd"}> : () -> ()
    %cst_44 = arith.constant dense<0.000000e+00> : vector<1x16x32xf32>
    %115 = tpu.matmul %114, %102, %cst_44 {dimension_numbers = #tpu.dot_dimension_numbers<[2], [1], [1], [2], [0, 0, 0, 1, 1, 2], [0], [0]>} : vector<1x16x16xbf16>, vector<1x16x32xbf16>, vector<1x16x32xf32> -> vector<1x16x32xf32>
    "tpu.trace_stop"() : () -> ()
    %116 = tpu.concatenate %58, %77, %96, %115 in 2 : vector<1x16x32xf32>, vector<1x16x32xf32>, vector<1x16x32xf32>, vector<1x16x32xf32> -> vector<1x16x128xf32>
    %117 = vector.shape_cast %116 : vector<1x16x128xf32> to vector<16x128xf32>
    %118 = arith.truncf %117 : vector<16x128xf32> to vector<16x128xbf16>
    %c0_45 = arith.constant 0 : index
    %c0_46 = arith.constant 0 : index
    %119 = vector.load %arg6[%c0_45, %c0_46] : memref<128x128xbf16, #tpu.memory_space<vmem>>, vector<128x128xbf16>
    %cst_47 = arith.constant dense<0.000000e+00> : vector<16x128xf32>
    %120 = tpu.matmul %118, %119, %cst_47 {dimension_numbers = #tpu.dot_dimension_numbers<[1], [0], [0], [1], [0, 0, 1, 1], [], []>} : vector<16x128xbf16>, vector<128x128xbf16>, vector<16x128xf32> -> vector<16x128xf32>
    %121 = arith.addf %11, %120 : vector<16x128xf32>
    %122 = vector.broadcast %5 : vector<1x128xf32> to vector<16x128xf32>
    %123 = arith.addf %121, %122 : vector<16x128xf32>
    %cst_48 = arith.constant dense<0.000000e+00> : vector<16xf32>
    %124 = vector.multi_reduction <add>, %123, %cst_48 [1] : vector<16x128xf32> to vector<16xf32>
    %125 = vector.shape_cast %124 : vector<16xf32> to vector<16x1xf32>
    %cst_49 = arith.constant 1.280000e+02 : f32
    %126 = vector.broadcast %cst_49 : f32 to vector<16x1xf32>
    %127 = arith.divf %125, %126 : vector<16x1xf32>
    %128 = vector.broadcast %127 : vector<16x1xf32> to vector<16x128xf32>
    %129 = arith.subf %123, %128 : vector<16x128xf32>
    %130 = arith.mulf %129, %129 : vector<16x128xf32>
    %cst_50 = arith.constant dense<0.000000e+00> : vector<16xf32>
    %131 = vector.multi_reduction <add>, %130, %cst_50 [1] : vector<16x128xf32> to vector<16xf32>
    %132 = vector.shape_cast %131 : vector<16xf32> to vector<16x1xf32>
    %cst_51 = arith.constant 1.280000e+02 : f32
    %133 = vector.broadcast %cst_51 : f32 to vector<16x1xf32>
    %134 = arith.divf %132, %133 : vector<16x1xf32>
    %135 = vector.broadcast %127 : vector<16x1xf32> to vector<16x128xf32>
    %136 = arith.subf %123, %135 : vector<16x128xf32>
    %cst_52 = arith.constant 9.99999974E-6 : f32
    %137 = vector.broadcast %cst_52 : f32 to vector<16x1xf32>
    %138 = arith.addf %134, %137 : vector<16x1xf32>
    %139 = math.rsqrt %138 : vector<16x1xf32>
    %140 = vector.broadcast %139 : vector<16x1xf32> to vector<16x128xf32>
    %141 = arith.mulf %136, %140 : vector<16x128xf32>
    %142 = vector.broadcast %2 : vector<1x128xf32> to vector<16x128xf32>
    %143 = arith.mulf %141, %142 : vector<16x128xf32>
    %144 = vector.broadcast %3 : vector<1x128xf32> to vector<16x128xf32>
    %145 = arith.addf %143, %144 : vector<16x128xf32>
    %146 = arith.truncf %145 : vector<16x128xf32> to vector<16x128xbf16>
    %c0_53 = arith.constant 0 : index
    %c0_54 = arith.constant 0 : index
    %147 = vector.load %arg10[%c0_53, %c0_54] : memref<128x256xbf16, #tpu.memory_space<vmem>>, vector<128x256xbf16>
    %cst_55 = arith.constant dense<0.000000e+00> : vector<16x256xf32>
    %148 = tpu.matmul %146, %147, %cst_55 {dimension_numbers = #tpu.dot_dimension_numbers<[1], [0], [0], [1], [0, 0, 1, 1], [], []>} : vector<16x128xbf16>, vector<128x256xbf16>, vector<16x256xf32> -> vector<16x256xf32>
    %149 = vector.broadcast %6 : vector<1x256xf32> to vector<16x256xf32>
    %150 = arith.addf %148, %149 : vector<16x256xf32>
    %151 = arith.mulf %150, %150 : vector<16x256xf32>
    %152 = arith.mulf %150, %151 : vector<16x256xf32>
    %cst_56 = arith.constant 4.471500e-02 : f32
    %153 = vector.broadcast %cst_56 : f32 to vector<16x256xf32>
    %154 = arith.mulf %153, %152 : vector<16x256xf32>
    %155 = arith.addf %150, %154 : vector<16x256xf32>
    %cst_57 = arith.constant 0.797884583 : f32
    %156 = vector.broadcast %cst_57 : f32 to vector<16x256xf32>
    %157 = arith.mulf %156, %155 : vector<16x256xf32>
    %158 = math.tanh %157 : vector<16x256xf32>
    %cst_58 = arith.constant 1.000000e+00 : f32
    %159 = vector.broadcast %cst_58 : f32 to vector<16x256xf32>
    %160 = arith.addf %159, %158 : vector<16x256xf32>
    %cst_59 = arith.constant 5.000000e-01 : f32
    %161 = vector.broadcast %cst_59 : f32 to vector<16x256xf32>
    %162 = arith.mulf %161, %160 : vector<16x256xf32>
    %163 = arith.mulf %150, %162 : vector<16x256xf32>
    %164 = arith.truncf %163 : vector<16x256xf32> to vector<16x256xbf16>
    %c0_60 = arith.constant 0 : index
    %c0_61 = arith.constant 0 : index
    %165 = vector.load %arg12[%c0_60, %c0_61] : memref<256x128xbf16, #tpu.memory_space<vmem>>, vector<256x128xbf16>
    %cst_62 = arith.constant dense<0.000000e+00> : vector<16x128xf32>
    %166 = tpu.matmul %164, %165, %cst_62 {dimension_numbers = #tpu.dot_dimension_numbers<[1], [0], [0], [1], [0, 0, 1, 1], [], []>} : vector<16x256xbf16>, vector<256x128xbf16>, vector<16x128xf32> -> vector<16x128xf32>
    %167 = vector.broadcast %7 : vector<1x128xf32> to vector<16x128xf32>
    %168 = arith.addf %166, %167 : vector<16x128xf32>
    %169 = arith.addf %123, %168 : vector<16x128xf32>
    %c0_63 = arith.constant 0 : index
    %c0_64 = arith.constant 0 : index
    %170 = vector.load %arg15[%c0_63, %c0_64] : memref<16x128xf32, #tpu.memory_space<vmem>>, vector<16x128xf32>
    tpu.vector_store %arg15[%c0_63, %c0_64], %169 {strides = array<i32>} : memref<16x128xf32, #tpu.memory_space<vmem>>, vector<16x128xf32>,
    %c1_i32 = arith.constant 1 : i32
    %c0_65 = arith.constant 0 : index
    %c0_66 = arith.constant 0 : index
    %171 = vector.load %arg15[%c0_65, %c0_66] : memref<16x128xf32, #tpu.memory_space<vmem>>, vector<16x128xf32>
    %cst_67 = arith.constant dense<0.000000e+00> : vector<16xf32>
    %172 = vector.multi_reduction <add>, %171, %cst_67 [1] : vector<16x128xf32> to vector<16xf32>
    %173 = vector.shape_cast %172 : vector<16xf32> to vector<16x1xf32>
    %cst_68 = arith.constant 1.280000e+02 : f32
    %174 = vector.broadcast %cst_68 : f32 to vector<16x1xf32>
    %175 = arith.divf %173, %174 : vector<16x1xf32>
    %176 = vector.broadcast %175 : vector<16x1xf32> to vector<16x128xf32>
    %177 = arith.subf %171, %176 : vector<16x128xf32>
    %178 = arith.mulf %177, %177 : vector<16x128xf32>
    %cst_69 = arith.constant dense<0.000000e+00> : vector<16xf32>
    %179 = vector.multi_reduction <add>, %178, %cst_69 [1] : vector<16x128xf32> to vector<16xf32>
    %180 = vector.shape_cast %179 : vector<16xf32> to vector<16x1xf32>
    %cst_70 = arith.constant 1.280000e+02 : f32
    %181 = vector.broadcast %cst_70 : f32 to vector<16x1xf32>
    %182 = arith.divf %180, %181 : vector<16x1xf32>
    %183 = vector.broadcast %175 : vector<16x1xf32> to vector<16x128xf32>
    %184 = arith.subf %171, %183 : vector<16x128xf32>
    %cst_71 = arith.constant 9.99999974E-6 : f32
    %185 = vector.broadcast %cst_71 : f32 to vector<16x1xf32>
    %186 = arith.addf %182, %185 : vector<16x1xf32>
    %187 = math.rsqrt %186 : vector<16x1xf32>
    %188 = vector.broadcast %187 : vector<16x1xf32> to vector<16x128xf32>
    %189 = arith.mulf %184, %188 : vector<16x128xf32>
    %190 = vector.broadcast %0 : vector<1x128xf32> to vector<16x128xf32>
    %191 = arith.mulf %189, %190 : vector<16x128xf32>
    %192 = vector.broadcast %1 : vector<1x128xf32> to vector<16x128xf32>
    %193 = arith.addf %191, %192 : vector<16x128xf32>
    %194 = arith.truncf %193 : vector<16x128xf32> to vector<16x128xbf16>
    %c0_72 = arith.constant 0 : index
    %c0_73 = arith.constant 0 : index
    %195 = vector.load %arg4[%c0_72, %c0_73] : memref<128x384xbf16, #tpu.memory_space<vmem>>, vector<128x384xbf16>
    %cst_74 = arith.constant dense<0.000000e+00> : vector<16x384xf32>
    %196 = tpu.matmul %194, %195, %cst_74 {dimension_numbers = #tpu.dot_dimension_numbers<[1], [0], [0], [1], [0, 0, 1, 1], [], []>} : vector<16x128xbf16>, vector<128x384xbf16>, vector<16x384xf32> -> vector<16x384xf32>
    %197 = vector.broadcast %4 : vector<1x384xf32> to vector<16x384xf32>
    %198 = arith.addf %196, %197 : vector<16x384xf32>
    %199 = arith.truncf %198 : vector<16x384xf32> to vector<16x384xbf16>
    %200 = vector.extract_strided_slice %199 {offsets = [0, 0], sizes = [16, 32], strides = [1, 1]} : vector<16x384xbf16> to vector<16x32xbf16>
    %201 = vector.shape_cast %200 : vector<16x32xbf16> to vector<1x16x32xbf16>
    %202 = vector.extract_strided_slice %199 {offsets = [0, 128], sizes = [16, 32], strides = [1, 1]} : vector<16x384xbf16> to vector<16x32xbf16>
    %203 = vector.shape_cast %202 : vector<16x32xbf16> to vector<1x16x32xbf16>
    %204 = vector.extract_strided_slice %199 {offsets = [0, 256], sizes = [16, 32], strides = [1, 1]} : vector<16x384xbf16> to vector<16x32xbf16>
    %205 = vector.shape_cast %204 : vector<16x32xbf16> to vector<1x16x32xbf16>
    "tpu.trace_start"() <{level = 10 : i32, message = "bqd,bkd->bqk"}> : () -> ()
    %cst_75 = arith.constant dense<0.000000e+00> : vector<1x16x16xf32>
    %206 = tpu.matmul %201, %203, %cst_75 {dimension_numbers = #tpu.dot_dimension_numbers<[2], [2], [1], [1], [0, 0, 0, 1, 1, 1], [0], [0]>} : vector<1x16x32xbf16>, vector<1x16x32xbf16>, vector<1x16x16xf32> -> vector<1x16x16xf32>
    "tpu.trace_stop"() : () -> ()
    %cst_76 = arith.constant dense<0xFF800000> : vector<1x16xf32>
    %207 = vector.multi_reduction <maximumf>, %206, %cst_76 [2] : vector<1x16x16xf32> to vector<1x16xf32>
    %208 = vector.shape_cast %207 : vector<1x16xf32> to vector<1x16x1xf32>
    %209 = vector.broadcast %208 : vector<1x16x1xf32> to vector<1x16x16xf32>
    %210 = arith.subf %206, %209 : vector<1x16x16xf32>
    %211 = math.exp %210 : vector<1x16x16xf32>
    %cst_77 = arith.constant dense<0.000000e+00> : vector<1x16xf32>
    %212 = vector.multi_reduction <add>, %211, %cst_77 [2] : vector<1x16x16xf32> to vector<1x16xf32>
    %213 = vector.shape_cast %212 : vector<1x16xf32> to vector<1x16x1xf32>
    %214 = tpu.reciprocal %213 {approx = true} : vector<1x16x1xf32> -> vector<1x16x1xf32>
    %215 = vector.broadcast %214 : vector<1x16x1xf32> to vector<1x16x16xf32>
    %216 = arith.mulf %211, %215 : vector<1x16x16xf32>
    %217 = arith.truncf %216 : vector<1x16x16xf32> to vector<1x16x16xbf16>
    "tpu.trace_start"() <{level = 10 : i32, message = "bqk,bkd->bqd"}> : () -> ()
    %cst_78 = arith.constant dense<0.000000e+00> : vector<1x16x32xf32>
    %218 = tpu.matmul %217, %205, %cst_78 {dimension_numbers = #tpu.dot_dimension_numbers<[2], [1], [1], [2], [0, 0, 0, 1, 1, 2], [0], [0]>} : vector<1x16x16xbf16>, vector<1x16x32xbf16>, vector<1x16x32xf32> -> vector<1x16x32xf32>
    "tpu.trace_stop"() : () -> ()
    %219 = vector.extract_strided_slice %199 {offsets = [0, 32], sizes = [16, 32], strides = [1, 1]} : vector<16x384xbf16> to vector<16x32xbf16>
    %220 = vector.shape_cast %219 : vector<16x32xbf16> to vector<1x16x32xbf16>
    %221 = vector.extract_strided_slice %199 {offsets = [0, 160], sizes = [16, 32], strides = [1, 1]} : vector<16x384xbf16> to vector<16x32xbf16>
    %222 = vector.shape_cast %221 : vector<16x32xbf16> to vector<1x16x32xbf16>
    %223 = vector.extract_strided_slice %199 {offsets = [0, 288], sizes = [16, 32], strides = [1, 1]} : vector<16x384xbf16> to vector<16x32xbf16>
    %224 = vector.shape_cast %223 : vector<16x32xbf16> to vector<1x16x32xbf16>
    "tpu.trace_start"() <{level = 10 : i32, message = "bqd,bkd->bqk"}> : () -> ()
    %cst_79 = arith.constant dense<0.000000e+00> : vector<1x16x16xf32>
    %225 = tpu.matmul %220, %222, %cst_79 {dimension_numbers = #tpu.dot_dimension_numbers<[2], [2], [1], [1], [0, 0, 0, 1, 1, 1], [0], [0]>} : vector<1x16x32xbf16>, vector<1x16x32xbf16>, vector<1x16x16xf32> -> vector<1x16x16xf32>
    "tpu.trace_stop"() : () -> ()
    %cst_80 = arith.constant dense<0xFF800000> : vector<1x16xf32>
    %226 = vector.multi_reduction <maximumf>, %225, %cst_80 [2] : vector<1x16x16xf32> to vector<1x16xf32>
    %227 = vector.shape_cast %226 : vector<1x16xf32> to vector<1x16x1xf32>
    %228 = vector.broadcast %227 : vector<1x16x1xf32> to vector<1x16x16xf32>
    %229 = arith.subf %225, %228 : vector<1x16x16xf32>
    %230 = math.exp %229 : vector<1x16x16xf32>
    %cst_81 = arith.constant dense<0.000000e+00> : vector<1x16xf32>
    %231 = vector.multi_reduction <add>, %230, %cst_81 [2] : vector<1x16x16xf32> to vector<1x16xf32>
    %232 = vector.shape_cast %231 : vector<1x16xf32> to vector<1x16x1xf32>
    %233 = tpu.reciprocal %232 {approx = true} : vector<1x16x1xf32> -> vector<1x16x1xf32>
    %234 = vector.broadcast %233 : vector<1x16x1xf32> to vector<1x16x16xf32>
    %235 = arith.mulf %230, %234 : vector<1x16x16xf32>
    %236 = arith.truncf %235 : vector<1x16x16xf32> to vector<1x16x16xbf16>
    "tpu.trace_start"() <{level = 10 : i32, message = "bqk,bkd->bqd"}> : () -> ()
    %cst_82 = arith.constant dense<0.000000e+00> : vector<1x16x32xf32>
    %237 = tpu.matmul %236, %224, %cst_82 {dimension_numbers = #tpu.dot_dimension_numbers<[2], [1], [1], [2], [0, 0, 0, 1, 1, 2], [0], [0]>} : vector<1x16x16xbf16>, vector<1x16x32xbf16>, vector<1x16x32xf32> -> vector<1x16x32xf32>
    "tpu.trace_stop"() : () -> ()
    %238 = vector.extract_strided_slice %199 {offsets = [0, 64], sizes = [16, 32], strides = [1, 1]} : vector<16x384xbf16> to vector<16x32xbf16>
    %239 = vector.shape_cast %238 : vector<16x32xbf16> to vector<1x16x32xbf16>
    %240 = vector.extract_strided_slice %199 {offsets = [0, 192], sizes = [16, 32], strides = [1, 1]} : vector<16x384xbf16> to vector<16x32xbf16>
    %241 = vector.shape_cast %240 : vector<16x32xbf16> to vector<1x16x32xbf16>
    %242 = vector.extract_strided_slice %199 {offsets = [0, 320], sizes = [16, 32], strides = [1, 1]} : vector<16x384xbf16> to vector<16x32xbf16>
    %243 = vector.shape_cast %242 : vector<16x32xbf16> to vector<1x16x32xbf16>
    "tpu.trace_start"() <{level = 10 : i32, message = "bqd,bkd->bqk"}> : () -> ()
    %cst_83 = arith.constant dense<0.000000e+00> : vector<1x16x16xf32>
    %244 = tpu.matmul %239, %241, %cst_83 {dimension_numbers = #tpu.dot_dimension_numbers<[2], [2], [1], [1], [0, 0, 0, 1, 1, 1], [0], [0]>} : vector<1x16x32xbf16>, vector<1x16x32xbf16>, vector<1x16x16xf32> -> vector<1x16x16xf32>
    "tpu.trace_stop"() : () -> ()
    %cst_84 = arith.constant dense<0xFF800000> : vector<1x16xf32>
    %245 = vector.multi_reduction <maximumf>, %244, %cst_84 [2] : vector<1x16x16xf32> to vector<1x16xf32>
    %246 = vector.shape_cast %245 : vector<1x16xf32> to vector<1x16x1xf32>
    %247 = vector.broadcast %246 : vector<1x16x1xf32> to vector<1x16x16xf32>
    %248 = arith.subf %244, %247 : vector<1x16x16xf32>
    %249 = math.exp %248 : vector<1x16x16xf32>
    %cst_85 = arith.constant dense<0.000000e+00> : vector<1x16xf32>
    %250 = vector.multi_reduction <add>, %249, %cst_85 [2] : vector<1x16x16xf32> to vector<1x16xf32>
    %251 = vector.shape_cast %250 : vector<1x16xf32> to vector<1x16x1xf32>
    %252 = tpu.reciprocal %251 {approx = true} : vector<1x16x1xf32> -> vector<1x16x1xf32>
    %253 = vector.broadcast %252 : vector<1x16x1xf32> to vector<1x16x16xf32>
    %254 = arith.mulf %249, %253 : vector<1x16x16xf32>
    %255 = arith.truncf %254 : vector<1x16x16xf32> to vector<1x16x16xbf16>
    "tpu.trace_start"() <{level = 10 : i32, message = "bqk,bkd->bqd"}> : () -> ()
    %cst_86 = arith.constant dense<0.000000e+00> : vector<1x16x32xf32>
    %256 = tpu.matmul %255, %243, %cst_86 {dimension_numbers = #tpu.dot_dimension_numbers<[2], [1], [1], [2], [0, 0, 0, 1, 1, 2], [0], [0]>} : vector<1x16x16xbf16>, vector<1x16x32xbf16>, vector<1x16x32xf32> -> vector<1x16x32xf32>
    "tpu.trace_stop"() : () -> ()
    %257 = vector.extract_strided_slice %199 {offsets = [0, 96], sizes = [16, 32], strides = [1, 1]} : vector<16x384xbf16> to vector<16x32xbf16>
    %258 = vector.shape_cast %257 : vector<16x32xbf16> to vector<1x16x32xbf16>
    %259 = vector.extract_strided_slice %199 {offsets = [0, 224], sizes = [16, 32], strides = [1, 1]} : vector<16x384xbf16> to vector<16x32xbf16>
    %260 = vector.shape_cast %259 : vector<16x32xbf16> to vector<1x16x32xbf16>
    %261 = vector.extract_strided_slice %199 {offsets = [0, 352], sizes = [16, 32], strides = [1, 1]} : vector<16x384xbf16> to vector<16x32xbf16>
    %262 = vector.shape_cast %261 : vector<16x32xbf16> to vector<1x16x32xbf16>
    "tpu.trace_start"() <{level = 10 : i32, message = "bqd,bkd->bqk"}> : () -> ()
    %cst_87 = arith.constant dense<0.000000e+00> : vector<1x16x16xf32>
    %263 = tpu.matmul %258, %260, %cst_87 {dimension_numbers = #tpu.dot_dimension_numbers<[2], [2], [1], [1], [0, 0, 0, 1, 1, 1], [0], [0]>} : vector<1x16x32xbf16>, vector<1x16x32xbf16>, vector<1x16x16xf32> -> vector<1x16x16xf32>
    "tpu.trace_stop"() : () -> ()
    %cst_88 = arith.constant dense<0xFF800000> : vector<1x16xf32>
    %264 = vector.multi_reduction <maximumf>, %263, %cst_88 [2] : vector<1x16x16xf32> to vector<1x16xf32>
    %265 = vector.shape_cast %264 : vector<1x16xf32> to vector<1x16x1xf32>
    %266 = vector.broadcast %265 : vector<1x16x1xf32> to vector<1x16x16xf32>
    %267 = arith.subf %263, %266 : vector<1x16x16xf32>
    %268 = math.exp %267 : vector<1x16x16xf32>
    %cst_89 = arith.constant dense<0.000000e+00> : vector<1x16xf32>
    %269 = vector.multi_reduction <add>, %268, %cst_89 [2] : vector<1x16x16xf32> to vector<1x16xf32>
    %270 = vector.shape_cast %269 : vector<1x16xf32> to vector<1x16x1xf32>
    %271 = tpu.reciprocal %270 {approx = true} : vector<1x16x1xf32> -> vector<1x16x1xf32>
    %272 = vector.broadcast %271 : vector<1x16x1xf32> to vector<1x16x16xf32>
    %273 = arith.mulf %268, %272 : vector<1x16x16xf32>
    %274 = arith.truncf %273 : vector<1x16x16xf32> to vector<1x16x16xbf16>
    "tpu.trace_start"() <{level = 10 : i32, message = "bqk,bkd->bqd"}> : () -> ()
    %cst_90 = arith.constant dense<0.000000e+00> : vector<1x16x32xf32>
    %275 = tpu.matmul %274, %262, %cst_90 {dimension_numbers = #tpu.dot_dimension_numbers<[2], [1], [1], [2], [0, 0, 0, 1, 1, 2], [0], [0]>} : vector<1x16x16xbf16>, vector<1x16x32xbf16>, vector<1x16x32xf32> -> vector<1x16x32xf32>
    "tpu.trace_stop"() : () -> ()
    %276 = tpu.concatenate %218, %237, %256, %275 in 2 : vector<1x16x32xf32>, vector<1x16x32xf32>, vector<1x16x32xf32>, vector<1x16x32xf32> -> vector<1x16x128xf32>
    %277 = vector.shape_cast %276 : vector<1x16x128xf32> to vector<16x128xf32>
    %278 = arith.truncf %277 : vector<16x128xf32> to vector<16x128xbf16>
    %c0_91 = arith.constant 0 : index
    %c0_92 = arith.constant 0 : index
    %279 = vector.load %arg6[%c0_91, %c0_92] : memref<128x128xbf16, #tpu.memory_space<vmem>>, vector<128x128xbf16>
    %cst_93 = arith.constant dense<0.000000e+00> : vector<16x128xf32>
    %280 = tpu.matmul %278, %279, %cst_93 {dimension_numbers = #tpu.dot_dimension_numbers<[1], [0], [0], [1], [0, 0, 1, 1], [], []>} : vector<16x128xbf16>, vector<128x128xbf16>, vector<16x128xf32> -> vector<16x128xf32>
    %281 = arith.addf %171, %280 : vector<16x128xf32>
    %282 = vector.broadcast %5 : vector<1x128xf32> to vector<16x128xf32>
    %283 = arith.addf %281, %282 : vector<16x128xf32>
    %cst_94 = arith.constant dense<0.000000e+00> : vector<16xf32>
    %284 = vector.multi_reduction <add>, %283, %cst_94 [1] : vector<16x128xf32> to vector<16xf32>
    %285 = vector.shape_cast %284 : vector<16xf32> to vector<16x1xf32>
    %cst_95 = arith.constant 1.280000e+02 : f32
    %286 = vector.broadcast %cst_95 : f32 to vector<16x1xf32>
    %287 = arith.divf %285, %286 : vector<16x1xf32>
    %288 = vector.broadcast %287 : vector<16x1xf32> to vector<16x128xf32>
    %289 = arith.subf %283, %288 : vector<16x128xf32>
    %290 = arith.mulf %289, %289 : vector<16x128xf32>
    %cst_96 = arith.constant dense<0.000000e+00> : vector<16xf32>
    %291 = vector.multi_reduction <add>, %290, %cst_96 [1] : vector<16x128xf32> to vector<16xf32>
    %292 = vector.shape_cast %291 : vector<16xf32> to vector<16x1xf32>
    %cst_97 = arith.constant 1.280000e+02 : f32
    %293 = vector.broadcast %cst_97 : f32 to vector<16x1xf32>
    %294 = arith.divf %292, %293 : vector<16x1xf32>
    %295 = vector.broadcast %287 : vector<16x1xf32> to vector<16x128xf32>
    %296 = arith.subf %283, %295 : vector<16x128xf32>
    %cst_98 = arith.constant 9.99999974E-6 : f32
    %297 = vector.broadcast %cst_98 : f32 to vector<16x1xf32>
    %298 = arith.addf %294, %297 : vector<16x1xf32>
    %299 = math.rsqrt %298 : vector<16x1xf32>
    %300 = vector.broadcast %299 : vector<16x1xf32> to vector<16x128xf32>
    %301 = arith.mulf %296, %300 : vector<16x128xf32>
    %302 = vector.broadcast %2 : vector<1x128xf32> to vector<16x128xf32>
    %303 = arith.mulf %301, %302 : vector<16x128xf32>
    %304 = vector.broadcast %3 : vector<1x128xf32> to vector<16x128xf32>
    %305 = arith.addf %303, %304 : vector<16x128xf32>
    %306 = arith.truncf %305 : vector<16x128xf32> to vector<16x128xbf16>
    %c0_99 = arith.constant 0 : index
    %c0_100 = arith.constant 0 : index
    %307 = vector.load %arg10[%c0_99, %c0_100] : memref<128x256xbf16, #tpu.memory_space<vmem>>, vector<128x256xbf16>
    %cst_101 = arith.constant dense<0.000000e+00> : vector<16x256xf32>
    %308 = tpu.matmul %306, %307, %cst_101 {dimension_numbers = #tpu.dot_dimension_numbers<[1], [0], [0], [1], [0, 0, 1, 1], [], []>} : vector<16x128xbf16>, vector<128x256xbf16>, vector<16x256xf32> -> vector<16x256xf32>
    %309 = vector.broadcast %6 : vector<1x256xf32> to vector<16x256xf32>
    %310 = arith.addf %308, %309 : vector<16x256xf32>
    %311 = arith.mulf %310, %310 : vector<16x256xf32>
    %312 = arith.mulf %310, %311 : vector<16x256xf32>
    %cst_102 = arith.constant 4.471500e-02 : f32
    %313 = vector.broadcast %cst_102 : f32 to vector<16x256xf32>
    %314 = arith.mulf %313, %312 : vector<16x256xf32>
    %315 = arith.addf %310, %314 : vector<16x256xf32>
    %cst_103 = arith.constant 0.797884583 : f32
    %316 = vector.broadcast %cst_103 : f32 to vector<16x256xf32>
    %317 = arith.mulf %316, %315 : vector<16x256xf32>
    %318 = math.tanh %317 : vector<16x256xf32>
    %cst_104 = arith.constant 1.000000e+00 : f32
    %319 = vector.broadcast %cst_104 : f32 to vector<16x256xf32>
    %320 = arith.addf %319, %318 : vector<16x256xf32>
    %cst_105 = arith.constant 5.000000e-01 : f32
    %321 = vector.broadcast %cst_105 : f32 to vector<16x256xf32>
    %322 = arith.mulf %321, %320 : vector<16x256xf32>
    %323 = arith.mulf %310, %322 : vector<16x256xf32>
    %324 = arith.truncf %323 : vector<16x256xf32> to vector<16x256xbf16>
    %c0_106 = arith.constant 0 : index
    %c0_107 = arith.constant 0 : index
    %325 = vector.load %arg12[%c0_106, %c0_107] : memref<256x128xbf16, #tpu.memory_space<vmem>>, vector<256x128xbf16>
    %cst_108 = arith.constant dense<0.000000e+00> : vector<16x128xf32>
    %326 = tpu.matmul %324, %325, %cst_108 {dimension_numbers = #tpu.dot_dimension_numbers<[1], [0], [0], [1], [0, 0, 1, 1], [], []>} : vector<16x256xbf16>, vector<256x128xbf16>, vector<16x128xf32> -> vector<16x128xf32>
    %327 = vector.broadcast %7 : vector<1x128xf32> to vector<16x128xf32>
    %328 = arith.addf %326, %327 : vector<16x128xf32>
    %329 = arith.addf %283, %328 : vector<16x128xf32>
    %c0_109 = arith.constant 0 : index
    %c0_110 = arith.constant 0 : index
    %330 = vector.load %arg15[%c0_109, %c0_110] : memref<16x128xf32, #tpu.memory_space<vmem>>, vector<16x128xf32>
    tpu.vector_store %arg15[%c0_109, %c0_110], %329 {strides = array<i32>} : memref<16x128xf32, #tpu.memory_space<vmem>>, vector<16x128xf32>,
    %c0_111 = arith.constant 0 : index
    %c0_112 = arith.constant 0 : index
    %331 = vector.load %arg15[%c0_111, %c0_112] : memref<16x128xf32, #tpu.memory_space<vmem>>, vector<16x128xf32>
    %332 = vector.shape_cast %331 : vector<16x128xf32> to vector<1x16x128xf32>
    %c0_113 = arith.constant 0 : index
    %c0_114 = arith.constant 0 : index
    %c0_115 = arith.constant 0 : index
    %333 = vector.load %arg14[%c0_113, %c0_114, %c0_115] : memref<1x16x128xf32, #tpu.memory_space<vmem>>, vector<1x16x128xf32>
    tpu.vector_store %arg14[%c0_113, %c0_114, %c0_115], %332 {strides = array<i32>} : memref<1x16x128xf32, #tpu.memory_space<vmem>>, vector<1x16x128xf32>,
    return
  }
  func.func @transform_0(%arg0: i32) -> (i32, i32, i32) {
    %c0_i32 = arith.constant 0 : i32
    %c0_i32_0 = arith.constant 0 : i32
    %c0_i32_1 = arith.constant 0 : i32
    return %arg0, %c0_i32, %c0_i32_0 : i32, i32, i32
  }
  func.func @transform_1(%arg0: i32) -> (i32, i32) {
    %c0_i32 = arith.constant 0 : i32
    %c0_i32_0 = arith.constant 0 : i32
    %c0_i32_1 = arith.constant 0 : i32
    return %c0_i32, %c0_i32_0 : i32, i32
  }
  func.func @transform_2(%arg0: i32) -> (i32, i32) {
    %c0_i32 = arith.constant 0 : i32
    %c0_i32_0 = arith.constant 0 : i32
    %c0_i32_1 = arith.constant 0 : i32
    return %c0_i32, %c0_i32_0 : i32, i32
  }
  func.func @transform_3(%arg0: i32) -> (i32, i32) {
    %c0_i32 = arith.constant 0 : i32
    %c0_i32_0 = arith.constant 0 : i32
    %c0_i32_1 = arith.constant 0 : i32
    return %c0_i32, %c0_i32_0 : i32, i32
  }
  func.func @transform_4(%arg0: i32) -> (i32, i32) {
    %c0_i32 = arith.constant 0 : i32
    %c0_i32_0 = arith.constant 0 : i32
    %c0_i32_1 = arith.constant 0 : i32
    return %c0_i32, %c0_i32_0 : i32, i32
  }
  func.func @transform_5(%arg0: i32) -> (i32, i32) {
    %c0_i32 = arith.constant 0 : i32
    %c0_i32_0 = arith.constant 0 : i32
    %c0_i32_1 = arith.constant 0 : i32
    return %c0_i32, %c0_i32_0 : i32, i32
  }
  func.func @transform_6(%arg0: i32) -> (i32, i32) {
    %c0_i32 = arith.constant 0 : i32
    %c0_i32_0 = arith.constant 0 : i32
    %c0_i32_1 = arith.constant 0 : i32
    return %c0_i32, %c0_i32_0 : i32, i32
  }
  func.func @transform_7(%arg0: i32) -> (i32, i32) {
    %c0_i32 = arith.constant 0 : i32
    %c0_i32_0 = arith.constant 0 : i32
    %c0_i32_1 = arith.constant 0 : i32
    return %c0_i32, %c0_i32_0 : i32, i32
  }
  func.func @transform_8(%arg0: i32) -> (i32, i32) {
    %c0_i32 = arith.constant 0 : i32
    %c0_i32_0 = arith.constant 0 : i32
    %c0_i32_1 = arith.constant 0 : i32
    return %c0_i32, %c0_i32_0 : i32, i32
  }
  func.func @transform_9(%arg0: i32) -> (i32, i32) {
    %c0_i32 = arith.constant 0 : i32
    %c0_i32_0 = arith.constant 0 : i32
    %c0_i32_1 = arith.constant 0 : i32
    return %c0_i32, %c0_i32_0 : i32, i32
  }
  func.func @transform_10(%arg0: i32) -> (i32, i32) {
    %c0_i32 = arith.constant 0 : i32
    %c0_i32_0 = arith.constant 0 : i32
    %c0_i32_1 = arith.constant 0 : i32
    return %c0_i32, %c0_i32_0 : i32, i32
  }
  func.func @transform_11(%arg0: i32) -> (i32, i32) {
    %c0_i32 = arith.constant 0 : i32
    %c0_i32_0 = arith.constant 0 : i32
    %c0_i32_1 = arith.constant 0 : i32
    return %c0_i32, %c0_i32_0 : i32, i32
  }
  func.func @transform_12(%arg0: i32) -> (i32, i32) {
    %c0_i32 = arith.constant 0 : i32
    %c0_i32_0 = arith.constant 0 : i32
    %c0_i32_1 = arith.constant 0 : i32
    return %c0_i32, %c0_i32_0 : i32, i32
  }
  func.func @transform_13(%arg0: i32) -> (i32, i32, i32) {
    %c0_i32 = arith.constant 0 : i32
    %c0_i32_0 = arith.constant 0 : i32
    %c0_i32_1 = arith.constant 0 : i32
    return %arg0, %c0_i32, %c0_i32_0 : i32, i32, i32
  }
}

</mosaic_0001>

<llo_original>
// kernel: tpu_custom_call.1
$region0: #{tpu_custom_call.1}
  #allocation0 [shape = 'u32[]', space=smem, size = 0x4, offset = 0x4, fixed_abs, tag = 'smem constant byte address 0x4 - core index']
  #allocation1 [shape = 'u32[72,128]{1,0:T(1,128)}', space=vmem, size = 0x9000, scoped, tag = 'internal scratch']
  #allocation2 [shape = 'f32[16,128]{1,0:T(8,128)}', space=vmem, size = 0x2000, scoped, tag = 'scratch operand']
  %s0 = inlined_call_operand.hbm [shape: f32[2,16,128], index: 0, kind: input, shape index: {}]
  %s1 = inlined_call_operand.hbm [shape: f32[1,128], index: 1, kind: input, shape index: {}]
  %s2 = inlined_call_operand.hbm [shape: f32[1,128], index: 2, kind: input, shape index: {}]
  %s3 = inlined_call_operand.hbm [shape: bf16[128,384], index: 3, kind: input, shape index: {}]
  %s4 = inlined_call_operand.vmem [shape: f32[1,384], index: 4, kind: input, shape index: {}]
  %s5 = inlined_call_operand.hbm [shape: bf16[128,128], index: 5, kind: input, shape index: {}]
  %s6 = inlined_call_operand.hbm [shape: f32[1,128], index: 6, kind: input, shape index: {}]
  %s7 = inlined_call_operand.vmem [shape: f32[1,128], index: 7, kind: input, shape index: {}]
  %s8 = inlined_call_operand.vmem [shape: f32[1,128], index: 8, kind: input, shape index: {}]
  %s9 = inlined_call_operand.hbm [shape: bf16[128,256], index: 9, kind: input, shape index: {}]
  %s10 = inlined_call_operand.vmem [shape: f32[1,256], index: 10, kind: input, shape index: {}]
  %s11 = inlined_call_operand.hbm [shape: bf16[256,128], index: 11, kind: input, shape index: {}]
  %s12 = inlined_call_operand.vmem [shape: f32[1,128], index: 12, kind: input, shape index: {}]
  %s13 = inlined_call_operand.hbm [shape: f32[2,16,128], index: 13, kind: output, shape index: {}]
  %s14 = sld [smem:[#allocation0]]
  $region117: #{tpu_custom_call.1} parent=0
    _
  %s16 = ssub.s32 1, %s14
  %s17 = scalar_select 0, %s16, %s14
  $region1: #{tpu_custom_call.1} parent=0
    #allocation3 [shape = 'u8[16384]{0}', space=vmem, size = 0x4000, scoped, tag = 'input window, operand 0']
    #allocation4 [shape = 's32[2]{0}', space=sflag, size = 0x8, scoped, tag = 'scoped memory for tpu_custom_call.1']
    #allocation5 [shape = 's32[2]{0}', space=sflag, size = 0x8, scoped, tag = 'scoped memory for tpu_custom_call.1']
    #allocation6 [shape = 'u8[512]{0}', space=vmem, size = 0x400, scoped, tag = 'input window, operand 1, single buffered']
    #allocation7 [shape = 's32[1]{0}', space=sflag, size = 0x4, scoped, tag = 'scoped memory for tpu_custom_call.1']
    #allocation8 [shape = 'u8[512]{0}', space=vmem, size = 0x400, scoped, tag = 'input window, operand 2, single buffered']
    #allocation9 [shape = 'u8[98304]{0}', space=vmem, size = 0x18000, scoped, tag = 'input window, operand 3, single buffered']
    #allocation10 [shape = 's32[1]{0}', space=sflag, size = 0x4, scoped, tag = 'scoped memory for tpu_custom_call.1']
    #allocation11 [shape = 'u8[32768]{0}', space=vmem, size = 0x8000, scoped, tag = 'input window, operand 5, single buffered']
    #allocation12 [shape = 'u8[512]{0}', space=vmem, size = 0x400, scoped, tag = 'input window, operand 6, single buffered']
    #allocation13 [shape = 's32[1]{0}', space=sflag, size = 0x4, scoped, tag = 'scoped memory for tpu_custom_call.1']
    #allocation14 [shape = 'u8[65536]{0}', space=vmem, size = 0x10000, scoped, tag = 'input window, operand 9, single buffered']
    #allocation15 [shape = 'u8[65536]{0}', space=vmem, size = 0x10000, scoped, tag = 'input window, operand 11, single buffered']
    #allocation16 [shape = 's32[1]{0}', space=sflag, size = 0x4, scoped, tag = 'scoped memory for tpu_custom_call.1']
    #allocation17 [shape = 'u8[16384]{0}', space=vmem, size = 0x4000, scoped, tag = 'output window, operand 0']
    %18 = vsyncpa [#allocation4], 0
    %s19 = scalar_lea.sflag [#allocation4], 1
    %20 = vsyncpa %s19, 0
    %21 = vsyncpa [#allocation7], 0
    %22 = vsyncpa [#allocation10], 0
    %23 = vsyncpa [#allocation13], 0
    %24 = vsyncpa [#allocation16], 0
    %25 = vsyncpa [#allocation5], 0
    %s26 = scalar_lea.sflag [#allocation5], 1
    %27 = vsyncpa %s26, 0
    loop: start=0, step=1, limit=4
    $region2: #{tpu_custom_call.1} parent=1 // loop_pre_header
      _
    $region3: #{tpu_custom_call.1} parent=1 // loop_header
      %s29 = sphi 0, %s33
      %p30 = scmp.ge.s32.totalorder %s29, 4
      %s39 = sphi 0, %s41
      %s42 = sphi 0, %s39
      %s43 = sphi 0, %s42
      %s59 = sphi 0, %s43
      %s63 = sphi 0, %s63
      %s65 = sphi 0, %s63
      %s66 = sphi 0, %s65
      %s80 = sphi 0, %s66
      %s84 = sphi 0, %s84
      %s86 = sphi 0, %s84
      %s87 = sphi 0, %s86
      %s101 = sphi 0, %s87
      %s105 = sphi 0, %s105
      %s107 = sphi 0, %s105
      %s108 = sphi 0, %s107
      %s122 = sphi 0, %s108
      %s126 = sphi 0, %s126
      %s128 = sphi 0, %s126
      %s129 = sphi 0, %s128
      %s143 = sphi 0, %s129
      %s147 = sphi 0, %s147
      %s149 = sphi 0, %s147
      %s150 = sphi 0, %s149
      %s164 = sphi 0, %s150
      %s168 = sphi 0, %s168
      %s170 = sphi 0, %s168
      %s171 = sphi 0, %s170
      %s185 = sphi 0, %s171
      %s189 = sphi 0, %s189
      %s191 = sphi 0, %s189
      %s192 = sphi 0, %s191
      %s206 = sphi 0, %s192
      %s210 = sphi 0, %s210
      %s212 = sphi 0, %s210
      %s213 = sphi 0, %s212
      %s227 = sphi 0, %s213
      %s231 = sphi 0, %s231
      %s233 = sphi 0, %s231
      %s234 = sphi 0, %s233
      %s248 = sphi 0, %s234
      %s252 = sphi 0, %s252
      %s254 = sphi 0, %s252
      %s255 = sphi 0, %s254
      %s269 = sphi 0, %s255
      %s273 = sphi 0, %s273
      %s275 = sphi 0, %s273
      %s276 = sphi 0, %s275
      %s290 = sphi 0, %s276
      %s294 = sphi 0, %s294
      %s296 = sphi 0, %s294
      %s297 = sphi 0, %s296
      %s311 = sphi 0, %s297
      %s317 = sphi 0, %s319
      %s320 = sphi 0, %s317
      %s321 = sphi 0, %s320
      %s337 = sphi 0, %s321
    $region4: #{tpu_custom_call.1} parent=1 // loop_header_branch
      %32 = sbr.rel (%p30) target = $region8
    $region5: #{tpu_custom_call.1} parent=1 // loop_body
      %s34 = ssub.s32 %s29, 1
      %s35 = ssub.s32 %s29, 2
      %s36 = sadd.s32 %s29, 1
      %s37 = ssub.s32 %s29, %s36
      %p38 = scmp.eq.s32.totalorder %s37, 0
      %s40 = sadd.s32 %s39, 1
      %s41 = scalar_select %p38, %s39, %s40
      %p44 = pneg %p38
      %p45 = scmp.eq.s32.totalorder %s29, 1
      %p46 = por %p44, %p45
      %p47 = scmp.ne.s32.totalorder %s39, %s42
      %p48 = scmp.eq.s32.totalorder %s29, 0
      %p49 = por %p47, %p48
      %p50 = scmp.ne.s32.totalorder %s39, %s42
      %p51 = scmp.eq.s32.totalorder %s34, 1
      %p52 = por %p50, %p51
      %p53 = scmp.ne.s32.totalorder %s42, %s43
      %p54 = scmp.eq.s32.totalorder %s34, 0
      %p55 = por %p53, %p54
      %p56 = scmp.ne.s32.totalorder %s42, %s43
      %p57 = scmp.eq.s32.totalorder %s35, 1
      %p58 = por %p56, %p57
      %p60 = scmp.ne.s32.totalorder %s43, %s59
      %p61 = scmp.eq.s32.totalorder %s35, 0
      %p62 = por %p60, %p61
      %s64 = sadd.s32 %s63, 1
      %p67 = scmp.eq.s32.totalorder %s29, 1
      %p68 = scmp.ne.s32.totalorder %s63, %s65
      %p69 = scmp.eq.s32.totalorder %s29, 0
      %p70 = por %p68, %p69
      %p71 = scmp.ne.s32.totalorder %s63, %s65
      %p72 = scmp.eq.s32.totalorder %s34, 1
      %p73 = por %p71, %p72
      %p74 = scmp.ne.s32.totalorder %s65, %s66
      %p75 = scmp.eq.s32.totalorder %s34, 0
      %p76 = por %p74, %p75
      %p77 = scmp.ne.s32.totalorder %s65, %s66
      %p78 = scmp.eq.s32.totalorder %s35, 1
      %p79 = por %p77, %p78
      %p81 = scmp.ne.s32.totalorder %s66, %s80
      %p82 = scmp.eq.s32.totalorder %s35, 0
      %p83 = por %p81, %p82
      %s85 = sadd.s32 %s84, 1
      %p88 = scmp.eq.s32.totalorder %s29, 1
      %p89 = scmp.ne.s32.totalorder %s84, %s86
      %p90 = scmp.eq.s32.totalorder %s29, 0
      %p91 = por %p89, %p90
      %p92 = scmp.ne.s32.totalorder %s84, %s86
      %p93 = scmp.eq.s32.totalorder %s34, 1
      %p94 = por %p92, %p93
      %p95 = scmp.ne.s32.totalorder %s86, %s87
      %p96 = scmp.eq.s32.totalorder %s34, 0
      %p97 = por %p95, %p96
      %p98 = scmp.ne.s32.totalorder %s86, %s87
      %p99 = scmp.eq.s32.totalorder %s35, 1
      %p100 = por %p98, %p99
      %p102 = scmp.ne.s32.totalorder %s87, %s101
      %p103 = scmp.eq.s32.totalorder %s35, 0
      %p104 = por %p102, %p103
      %s106 = sadd.s32 %s105, 1
      %p109 = scmp.eq.s32.totalorder %s29, 1
      %p110 = scmp.ne.s32.totalorder %s105, %s107
      %p111 = scmp.eq.s32.totalorder %s29, 0
      %p112 = por %p110, %p111
      %p113 = scmp.ne.s32.totalorder %s105, %s107
      %p114 = scmp.eq.s32.totalorder %s34, 1
      %p115 = por %p113, %p114
      %p116 = scmp.ne.s32.totalorder %s107, %s108
      %p117 = scmp.eq.s32.totalorder %s34, 0
      %p118 = por %p116, %p117
      %p119 = scmp.ne.s32.totalorder %s107, %s108
      %p120 = scmp.eq.s32.totalorder %s35, 1
      %p121 = por %p119, %p120
      %p123 = scmp.ne.s32.totalorder %s108, %s122
      %p124 = scmp.eq.s32.totalorder %s35, 0
      %p125 = por %p123, %p124
      %s127 = sadd.s32 %s126, 1
      %p130 = scmp.eq.s32.totalorder %s29, 1
      %p131 = scmp.ne.s32.totalorder %s126, %s128
      %p132 = scmp.eq.s32.totalorder %s29, 0
      %p133 = por %p131, %p132
      %p134 = scmp.ne.s32.totalorder %s126, %s128
      %p135 = scmp.eq.s32.totalorder %s34, 1
      %p136 = por %p134, %p135
      %p137 = scmp.ne.s32.totalorder %s128, %s129
      %p138 = scmp.eq.s32.totalorder %s34, 0
      %p139 = por %p137, %p138
      %p140 = scmp.ne.s32.totalorder %s128, %s129
      %p141 = scmp.eq.s32.totalorder %s35, 1
      %p142 = por %p140, %p141
      %p144 = scmp.ne.s32.totalorder %s129, %s143
      %p145 = scmp.eq.s32.totalorder %s35, 0
      %p146 = por %p144, %p145
      %s148 = sadd.s32 %s147, 1
      %p151 = scmp.eq.s32.totalorder %s29, 1
      %p152 = scmp.ne.s32.totalorder %s147, %s149
      %p153 = scmp.eq.s32.totalorder %s29, 0
      %p154 = por %p152, %p153
      %p155 = scmp.ne.s32.totalorder %s147, %s149
      %p156 = scmp.eq.s32.totalorder %s34, 1
      %p157 = por %p155, %p156
      %p158 = scmp.ne.s32.totalorder %s149, %s150
      %p159 = scmp.eq.s32.totalorder %s34, 0
      %p160 = por %p158, %p159
      %p161 = scmp.ne.s32.totalorder %s149, %s150
      %p162 = scmp.eq.s32.totalorder %s35, 1
      %p163 = por %p161, %p162
      %p165 = scmp.ne.s32.totalorder %s150, %s164
      %p166 = scmp.eq.s32.totalorder %s35, 0
      %p167 = por %p165, %p166
      %s169 = sadd.s32 %s168, 1
      %p172 = scmp.eq.s32.totalorder %s29, 1
      %p173 = scmp.ne.s32.totalorder %s168, %s170
      %p174 = scmp.eq.s32.totalorder %s29, 0
      %p175 = por %p173, %p174
      %p176 = scmp.ne.s32.totalorder %s168, %s170
      %p177 = scmp.eq.s32.totalorder %s34, 1
      %p178 = por %p176, %p177
      %p179 = scmp.ne.s32.totalorder %s170, %s171
      %p180 = scmp.eq.s32.totalorder %s34, 0
      %p181 = por %p179, %p180
      %p182 = scmp.ne.s32.totalorder %s170, %s171
      %p183 = scmp.eq.s32.totalorder %s35, 1
      %p184 = por %p182, %p183
      %p186 = scmp.ne.s32.totalorder %s171, %s185
      %p187 = scmp.eq.s32.totalorder %s35, 0
      %p188 = por %p186, %p187
      %s190 = sadd.s32 %s189, 1
      %p193 = scmp.eq.s32.totalorder %s29, 1
      %p194 = scmp.ne.s32.totalorder %s189, %s191
      %p195 = scmp.eq.s32.totalorder %s29, 0
      %p196 = por %p194, %p195
      %p197 = scmp.ne.s32.totalorder %s189, %s191
      %p198 = scmp.eq.s32.totalorder %s34, 1
      %p199 = por %p197, %p198
      %p200 = scmp.ne.s32.totalorder %s191, %s192
      %p201 = scmp.eq.s32.totalorder %s34, 0
      %p202 = por %p200, %p201
      %p203 = scmp.ne.s32.totalorder %s191, %s192
      %p204 = scmp.eq.s32.totalorder %s35, 1
      %p205 = por %p203, %p204
      %p207 = scmp.ne.s32.totalorder %s192, %s206
      %p208 = scmp.eq.s32.totalorder %s35, 0
      %p209 = por %p207, %p208
      %s211 = sadd.s32 %s210, 1
      %p214 = scmp.eq.s32.totalorder %s29, 1
      %p215 = scmp.ne.s32.totalorder %s210, %s212
      %p216 = scmp.eq.s32.totalorder %s29, 0
      %p217 = por %p215, %p216
      %p218 = scmp.ne.s32.totalorder %s210, %s212
      %p219 = scmp.eq.s32.totalorder %s34, 1
      %p220 = por %p218, %p219
      %p221 = scmp.ne.s32.totalorder %s212, %s213
      %p222 = scmp.eq.s32.totalorder %s34, 0
      %p223 = por %p221, %p222
      %p224 = scmp.ne.s32.totalorder %s212, %s213
      %p225 = scmp.eq.s32.totalorder %s35, 1
      %p226 = por %p224, %p225
      %p228 = scmp.ne.s32.totalorder %s213, %s227
      %p229 = scmp.eq.s32.totalorder %s35, 0
      %p230 = por %p228, %p229
      %s232 = sadd.s32 %s231, 1
      %p235 = scmp.eq.s32.totalorder %s29, 1
      %p236 = scmp.ne.s32.totalorder %s231, %s233
      %p237 = scmp.eq.s32.totalorder %s29, 0
      %p238 = por %p236, %p237
      %p239 = scmp.ne.s32.totalorder %s231, %s233
      %p240 = scmp.eq.s32.totalorder %s34, 1
      %p241 = por %p239, %p240
      %p242 = scmp.ne.s32.totalorder %s233, %s234
      %p243 = scmp.eq.s32.totalorder %s34, 0
      %p244 = por %p242, %p243
      %p245 = scmp.ne.s32.totalorder %s233, %s234
      %p246 = scmp.eq.s32.totalorder %s35, 1
      %p247 = por %p245, %p246
      %p249 = scmp.ne.s32.totalorder %s234, %s248
      %p250 = scmp.eq.s32.totalorder %s35, 0
      %p251 = por %p249, %p250
      %s253 = sadd.s32 %s252, 1
      %p256 = scmp.eq.s32.totalorder %s29, 1
      %p257 = scmp.ne.s32.totalorder %s252, %s254
      %p258 = scmp.eq.s32.totalorder %s29, 0
      %p259 = por %p257, %p258
      %p260 = scmp.ne.s32.totalorder %s252, %s254
      %p261 = scmp.eq.s32.totalorder %s34, 1
      %p262 = por %p260, %p261
      %p263 = scmp.ne.s32.totalorder %s254, %s255
      %p264 = scmp.eq.s32.totalorder %s34, 0
      %p265 = por %p263, %p264
      %p266 = scmp.ne.s32.totalorder %s254, %s255
      %p267 = scmp.eq.s32.totalorder %s35, 1
      %p268 = por %p266, %p267
      %p270 = scmp.ne.s32.totalorder %s255, %s269
      %p271 = scmp.eq.s32.totalorder %s35, 0
      %p272 = por %p270, %p271
      %s274 = sadd.s32 %s273, 1
      %p277 = scmp.eq.s32.totalorder %s29, 1
      %p278 = scmp.ne.s32.totalorder %s273, %s275
      %p279 = scmp.eq.s32.totalorder %s29, 0
      %p280 = por %p278, %p279
      %p281 = scmp.ne.s32.totalorder %s273, %s275
      %p282 = scmp.eq.s32.totalorder %s34, 1
      %p283 = por %p281, %p282
      %p284 = scmp.ne.s32.totalorder %s275, %s276
      %p285 = scmp.eq.s32.totalorder %s34, 0
      %p286 = por %p284, %p285
      %p287 = scmp.ne.s32.totalorder %s275, %s276
      %p288 = scmp.eq.s32.totalorder %s35, 1
      %p289 = por %p287, %p288
      %p291 = scmp.ne.s32.totalorder %s276, %s290
      %p292 = scmp.eq.s32.totalorder %s35, 0
      %p293 = por %p291, %p292
      %s295 = sadd.s32 %s294, 1
      %p298 = scmp.eq.s32.totalorder %s29, 1
      %p299 = scmp.ne.s32.totalorder %s294, %s296
      %p300 = scmp.eq.s32.totalorder %s29, 0
      %p301 = por %p299, %p300
      %p302 = scmp.ne.s32.totalorder %s294, %s296
      %p303 = scmp.eq.s32.totalorder %s34, 1
      %p304 = por %p302, %p303
      %p305 = scmp.ne.s32.totalorder %s296, %s297
      %p306 = scmp.eq.s32.totalorder %s34, 0
      %p307 = por %p305, %p306
      %p308 = scmp.ne.s32.totalorder %s296, %s297
      %p309 = scmp.eq.s32.totalorder %s35, 1
      %p310 = por %p308, %p309
      %p312 = scmp.ne.s32.totalorder %s297, %s311
      %p313 = scmp.eq.s32.totalorder %s35, 0
      %p314 = por %p312, %p313
      %s315 = ssub.s32 %s29, %s36
      %p316 = scmp.eq.s32.totalorder %s315, 0
      %s318 = sadd.s32 %s317, 1
      %s319 = scalar_select %p316, %s317, %s318
      %p322 = pneg %p316
      %p323 = scmp.eq.s32.totalorder %s29, 1
      %p324 = por %p322, %p323
      %p325 = scmp.ne.s32.totalorder %s317, %s320
      %p326 = scmp.eq.s32.totalorder %s29, 0
      %p327 = por %p325, %p326
      %p328 = scmp.ne.s32.totalorder %s317, %s320
      %p329 = scmp.eq.s32.totalorder %s34, 1
      %p330 = por %p328, %p329
      %p331 = scmp.ne.s32.totalorder %s320, %s321
      %p332 = scmp.eq.s32.totalorder %s34, 0
      %p333 = por %p331, %p332
      %p334 = scmp.ne.s32.totalorder %s320, %s321
      %p335 = scmp.eq.s32.totalorder %s35, 1
      %p336 = por %p334, %p335
      %p338 = scmp.ne.s32.totalorder %s321, %s337
      %p339 = scmp.eq.s32.totalorder %s35, 0
      %p340 = por %p338, %p339
      %p341 = scmp.le.s32.totalorder 1, %s29
      %p342 = scmp.lt.s32.totalorder %s29, 3
      %p343 = pnand %p341, %p342
      %p344 = pneg %p343
      // Predicated region
      $region9: #{tpu_custom_call.1} parent=5 // pred_check
        _
      $region10: #{tpu_custom_call.1} parent=5 // pred_check_branch
        %346 = sbr.rel (%p343) target = $region12
      $region11: #{tpu_custom_call.1} parent=5 // pred_region
        %s347 = ssub.s32 %s29, 1
        // Predicated region
        $region13: #{tpu_custom_call.1} parent=11 // pred_check
          %p348 = pneg %p76
        $region14: #{tpu_custom_call.1} parent=11 // pred_check_branch
          %350 = sbr.rel (%p348) target = $region16
        $region15: #{tpu_custom_call.1} parent=11 // pred_region
          %352 = vsyncadd [#allocation7], 0
          %s354 = sshll.u32 %s1, 4
          %s355 = int_to_ptr.hbm [resolvable:$true] %s354
          %s356 = sshll.u32 [#allocation6], 4
          %s357 = int_to_ptr.vmem [resolvable:$true] %s356
          %359 = dma.hbm_to_vmem [thread:$0]  %s355, 16, %s357, [#allocation7]
        $region16: #{tpu_custom_call.1} parent=11 // pred_fallthru
          _
        // Predicated region
        $region17: #{tpu_custom_call.1} parent=11 // pred_check
          %p360 = pneg %p97
        $region18: #{tpu_custom_call.1} parent=11 // pred_check_branch
          %362 = sbr.rel (%p360) target = $region20
        $region19: #{tpu_custom_call.1} parent=11 // pred_region
          %364 = vsyncadd [#allocation7], 0
          %s366 = sshll.u32 %s2, 4
          %s367 = int_to_ptr.hbm [resolvable:$true] %s366
          %s368 = sshll.u32 [#allocation8], 4
          %s369 = int_to_ptr.vmem [resolvable:$true] %s368
          %371 = dma.hbm_to_vmem [thread:$0]  %s367, 16, %s369, [#allocation7]
        $region20: #{tpu_custom_call.1} parent=11 // pred_fallthru
          _
        // Predicated region
        $region21: #{tpu_custom_call.1} parent=11 // pred_check
          %p372 = pneg %p118
        $region22: #{tpu_custom_call.1} parent=11 // pred_check_branch
          %374 = sbr.rel (%p372) target = $region24
        $region23: #{tpu_custom_call.1} parent=11 // pred_region
          %376 = vsyncadd [#allocation10], 0
          %s377 = sshll.u32 %s3, 4
          %s378 = int_to_ptr.hbm [resolvable:$true] %s377
          %s379 = sshll.u32 [#allocation9], 4
          %s380 = int_to_ptr.vmem [resolvable:$true] %s379
          %385 = dma.hbm_to_vmem [thread:$0]  %s378, 3072, %s380, [#allocation10], 192, 192, 12
        $region24: #{tpu_custom_call.1} parent=11 // pred_fallthru
          _
        // Predicated region
        $region25: #{tpu_custom_call.1} parent=11 // pred_check
          %p386 = pneg %p139
        $region26: #{tpu_custom_call.1} parent=11 // pred_check_branch
          %388 = sbr.rel (%p386) target = $region28
        $region27: #{tpu_custom_call.1} parent=11 // pred_region
          _
        $region28: #{tpu_custom_call.1} parent=11 // pred_fallthru
          _
        // Predicated region
        $region29: #{tpu_custom_call.1} parent=11 // pred_check
          %p389 = pneg %p160
        $region30: #{tpu_custom_call.1} parent=11 // pred_check_branch
          %391 = sbr.rel (%p389) target = $region32
        $region31: #{tpu_custom_call.1} parent=11 // pred_region
          %393 = vsyncadd [#allocation10], 0
          %s394 = sshll.u32 %s5, 4
          %s395 = int_to_ptr.hbm [resolvable:$true] %s394
          %s396 = sshll.u32 [#allocation11], 4
          %s397 = int_to_ptr.vmem [resolvable:$true] %s396
          %402 = dma.hbm_to_vmem [thread:$0]  %s395, 1024, %s397, [#allocation10], 64, 64, 4
        $region32: #{tpu_custom_call.1} parent=11 // pred_fallthru
          _
        // Predicated region
        $region33: #{tpu_custom_call.1} parent=11 // pred_check
          %p403 = pneg %p181
        $region34: #{tpu_custom_call.1} parent=11 // pred_check_branch
          %405 = sbr.rel (%p403) target = $region36
        $region35: #{tpu_custom_call.1} parent=11 // pred_region
          %407 = vsyncadd [#allocation13], 0
          %s409 = sshll.u32 %s6, 4
          %s410 = int_to_ptr.hbm [resolvable:$true] %s409
          %s411 = sshll.u32 [#allocation12], 4
          %s412 = int_to_ptr.vmem [resolvable:$true] %s411
          %414 = dma.hbm_to_vmem [thread:$0]  %s410, 16, %s412, [#allocation13]
        $region36: #{tpu_custom_call.1} parent=11 // pred_fallthru
          _
        // Predicated region
        $region37: #{tpu_custom_call.1} parent=11 // pred_check
          %p415 = pneg %p202
        $region38: #{tpu_custom_call.1} parent=11 // pred_check_branch
          %417 = sbr.rel (%p415) target = $region40
        $region39: #{tpu_custom_call.1} parent=11 // pred_region
          _
        $region40: #{tpu_custom_call.1} parent=11 // pred_fallthru
          _
        // Predicated region
        $region41: #{tpu_custom_call.1} parent=11 // pred_check
          %p418 = pneg %p223
        $region42: #{tpu_custom_call.1} parent=11 // pred_check_branch
          %420 = sbr.rel (%p418) target = $region44
        $region43: #{tpu_custom_call.1} parent=11 // pred_region
          _
        $region44: #{tpu_custom_call.1} parent=11 // pred_fallthru
          _
        // Predicated region
        $region45: #{tpu_custom_call.1} parent=11 // pred_check
          %p421 = pneg %p244
        $region46: #{tpu_custom_call.1} parent=11 // pred_check_branch
          %423 = sbr.rel (%p421) target = $region48
        $region47: #{tpu_custom_call.1} parent=11 // pred_region
          %425 = vsyncadd [#allocation13], 0
          %s426 = sshll.u32 %s9, 4
          %s427 = int_to_ptr.hbm [resolvable:$true] %s426
          %s428 = sshll.u32 [#allocation14], 4
          %s429 = int_to_ptr.vmem [resolvable:$true] %s428
          %434 = dma.hbm_to_vmem [thread:$0]  %s427, 2048, %s429, [#allocation13], 128, 128, 8
        $region48: #{tpu_custom_call.1} parent=11 // pred_fallthru
          _
        // Predicated region
        $region49: #{tpu_custom_call.1} parent=11 // pred_check
          %p435 = pneg %p265
        $region50: #{tpu_custom_call.1} parent=11 // pred_check_branch
          %437 = sbr.rel (%p435) target = $region52
        $region51: #{tpu_custom_call.1} parent=11 // pred_region
          _
        $region52: #{tpu_custom_call.1} parent=11 // pred_fallthru
          _
        // Predicated region
        $region53: #{tpu_custom_call.1} parent=11 // pred_check
          %p438 = pneg %p286
        $region54: #{tpu_custom_call.1} parent=11 // pred_check_branch
          %440 = sbr.rel (%p438) target = $region56
        $region55: #{tpu_custom_call.1} parent=11 // pred_region
          %442 = vsyncadd [#allocation16], 0
          %s443 = sshll.u32 %s11, 4
          %s444 = int_to_ptr.hbm [resolvable:$true] %s443
          %s445 = sshll.u32 [#allocation15], 4
          %s446 = int_to_ptr.vmem [resolvable:$true] %s445
          %451 = dma.hbm_to_vmem [thread:$0]  %s444, 2048, %s446, [#allocation16], 64, 64, 4
        $region56: #{tpu_custom_call.1} parent=11 // pred_fallthru
          _
        // Predicated region
        $region57: #{tpu_custom_call.1} parent=11 // pred_check
          %p452 = pneg %p307
        $region58: #{tpu_custom_call.1} parent=11 // pred_check_branch
          %454 = sbr.rel (%p452) target = $region60
        $region59: #{tpu_custom_call.1} parent=11 // pred_region
          _
        $region60: #{tpu_custom_call.1} parent=11 // pred_fallthru
          _
      $region12: #{tpu_custom_call.1} parent=5 // pred_fallthru
        _
      %p455 = scmp.lt.s32.totalorder %s29, 2
      // Predicated region
      $region61: #{tpu_custom_call.1} parent=5 // pred_check
        %p456 = pneg %p455
      $region62: #{tpu_custom_call.1} parent=5 // pred_check_branch
        %458 = sbr.rel (%p456) target = $region64
      $region63: #{tpu_custom_call.1} parent=5 // pred_region
        // Predicated region
        $region65: #{tpu_custom_call.1} parent=63 // pred_check
          %p459 = pneg %p49
        $region66: #{tpu_custom_call.1} parent=63 // pred_check_branch
          %461 = sbr.rel (%p459) target = $region68
        $region67: #{tpu_custom_call.1} parent=63 // pred_region
          %s462 = sand.u32 %s39, 1
          %s463 = scalar_lea.sflag [#allocation4], %s462
          %s464 = sand.u32 %s39, 1
          %s465 = smul.addr %s464, 16
          %s466 = scalar_lea.vmem [#allocation3], %s465
          %468 = vsyncadd %s463, 0
          %s469 = smul.addr %s29, 2
          %s470 = smul.addr %s469, 8
          %s471 = scalar_lea.hbm %s0, %s470
          %s472 = sshll.u32 %s471, 4
          %s473 = int_to_ptr.hbm [resolvable:$true] %s472
          %s474 = sshll.u32 %s466, 4
          %s475 = int_to_ptr.vmem [resolvable:$true] %s474
          %480 = dma.hbm_to_vmem [thread:$0]  %s473, 256, %s475, %s463, 128, 128, 8
        $region68: #{tpu_custom_call.1} parent=63 // pred_fallthru
          _
      $region64: #{tpu_custom_call.1} parent=5 // pred_fallthru
        _
      %p481 = scmp.le.s32.totalorder 1, %s29
      %p482 = scmp.lt.s32.totalorder %s29, 3
      %p483 = pnand %p481, %p482
      %p484 = pneg %p483
      // Predicated region
      $region69: #{tpu_custom_call.1} parent=5 // pred_check
        _
      $region70: #{tpu_custom_call.1} parent=5 // pred_check_branch
        %486 = sbr.rel (%p483) target = $region72
      $region71: #{tpu_custom_call.1} parent=5 // pred_region
        %s487 = ssub.s32 %s29, 1
        %s488 = sand.u32 %s42, 1
        %s489 = scalar_lea.sflag [#allocation4], %s488
        %s490 = sand.u32 %s42, 1
        %s491 = smul.addr %s490, 16
        %s492 = scalar_lea.vmem [#allocation3], %s491
        // Predicated region
        $region73: #{tpu_custom_call.1} parent=71 // pred_check
          %p493 = pneg %p55
        $region74: #{tpu_custom_call.1} parent=71 // pred_check_branch
          %495 = sbr.rel (%p493) target = $region76
        $region75: #{tpu_custom_call.1} parent=71 // pred_region
          %497 = dma.done %s489, 256
        $region76: #{tpu_custom_call.1} parent=71 // pred_fallthru
          _
        // Predicated region
        $region77: #{tpu_custom_call.1} parent=71 // pred_check
          %p498 = pneg %p76
        $region78: #{tpu_custom_call.1} parent=71 // pred_check_branch
          %500 = sbr.rel (%p498) target = $region80
        $region79: #{tpu_custom_call.1} parent=71 // pred_region
          %502 = dma.done [#allocation7], 16
        $region80: #{tpu_custom_call.1} parent=71 // pred_fallthru
          _
        // Predicated region
        $region81: #{tpu_custom_call.1} parent=71 // pred_check
          %p503 = pneg %p97
        $region82: #{tpu_custom_call.1} parent=71 // pred_check_branch
          %505 = sbr.rel (%p503) target = $region84
        $region83: #{tpu_custom_call.1} parent=71 // pred_region
          %507 = dma.done [#allocation7], 16
        $region84: #{tpu_custom_call.1} parent=71 // pred_fallthru
          _
        // Predicated region
        $region85: #{tpu_custom_call.1} parent=71 // pred_check
          %p508 = pneg %p118
        $region86: #{tpu_custom_call.1} parent=71 // pred_check_branch
          %510 = sbr.rel (%p508) target = $region88
        $region87: #{tpu_custom_call.1} parent=71 // pred_region
          %512 = dma.done [#allocation10], 3072
        $region88: #{tpu_custom_call.1} parent=71 // pred_fallthru
          _
        // Predicated region
        $region89: #{tpu_custom_call.1} parent=71 // pred_check
          %p513 = pneg %p160
        $region90: #{tpu_custom_call.1} parent=71 // pred_check_branch
          %515 = sbr.rel (%p513) target = $region92
        $region91: #{tpu_custom_call.1} parent=71 // pred_region
          %517 = dma.done [#allocation10], 1024
        $region92: #{tpu_custom_call.1} parent=71 // pred_fallthru
          _
        // Predicated region
        $region93: #{tpu_custom_call.1} parent=71 // pred_check
          %p518 = pneg %p181
        $region94: #{tpu_custom_call.1} parent=71 // pred_check_branch
          %520 = sbr.rel (%p518) target = $region96
        $region95: #{tpu_custom_call.1} parent=71 // pred_region
          %522 = dma.done [#allocation13], 16
        $region96: #{tpu_custom_call.1} parent=71 // pred_fallthru
          _
        // Predicated region
        $region97: #{tpu_custom_call.1} parent=71 // pred_check
          %p523 = pneg %p244
        $region98: #{tpu_custom_call.1} parent=71 // pred_check_branch
          %525 = sbr.rel (%p523) target = $region100
        $region99: #{tpu_custom_call.1} parent=71 // pred_region
          %527 = dma.done [#allocation13], 2048
        $region100: #{tpu_custom_call.1} parent=71 // pred_fallthru
          _
        // Predicated region
        $region101: #{tpu_custom_call.1} parent=71 // pred_check
          %p528 = pneg %p286
        $region102: #{tpu_custom_call.1} parent=71 // pred_check_branch
          %530 = sbr.rel (%p528) target = $region104
        $region103: #{tpu_custom_call.1} parent=71 // pred_region
          %532 = dma.done [#allocation16], 2048
        $region104: #{tpu_custom_call.1} parent=71 // pred_fallthru
          _
        %s533 = sand.u32 %s42, 1
        %s534 = scalar_lea.sflag [#allocation4], %s533
        %s535 = sand.u32 %s42, 1
        %s536 = smul.addr %s535, 16
        %s537 = scalar_lea.vmem [#allocation3], %s536
        %p538 = pneg %p55
        %p539 = pneg %p52
        %p540 = pneg %p76
        %p541 = pneg %p73
        %p542 = pneg %p97
        %p543 = pneg %p94
        %p544 = pneg %p118
        %p545 = pneg %p115
        %p546 = pneg %p139
        %p547 = pneg %p136
        %p548 = pneg %p160
        %p549 = pneg %p157
        %p550 = pneg %p181
        %p551 = pneg %p178
        %p552 = pneg %p202
        %p553 = pneg %p199
        %p554 = pneg %p223
        %p555 = pneg %p220
        %p556 = pneg %p244
        %p557 = pneg %p241
        %p558 = pneg %p265
        %p559 = pneg %p262
        %p560 = pneg %p286
        %p561 = pneg %p283
        %p562 = pneg %p307
        %p563 = pneg %p304
        %p564 = pneg %p333
        %p565 = pneg %p330
        %s566 = sand.u32 %s320, 1
        %s567 = scalar_lea.sflag [#allocation5], %s566
        %s568 = sand.u32 %s320, 1
        %s569 = smul.addr %s568, 16
        %s570 = scalar_lea.vmem [#allocation17], %s569
        %v572 = vld [vmem:[#allocation6] sm:$0x1]
        %v573 = vld [vmem:[#allocation8] sm:$0x1]
        %v574 = vld [vmem:[%s7] sm:$0x1]
        %v575 = vld [vmem:[%s8] sm:$0x1]
        %v576 = vld [vmem:[%s4] sm:$0x7]
        %v577 = vld [vmem:[#allocation12] sm:$0x1]
        %v578 = vld [vmem:[%s10] sm:$0x3]
        %v579 = vld [vmem:[%s12] sm:$0x1]
        %v580 = vld [vmem:[%s492] sm:$0xff]
        %v581 = vld [vmem:[%s492 + $0x8] sm:$0xff]
        %582 = vst [vmem:[#allocation2] sm:$0xff] %v580
        %583 = vst [vmem:[#allocation2 + $0x8] sm:$0xff] %v581
        %v584 = vld [vmem:[#allocation2] sm:$0xff]
        %v585 = vld [vmem:[#allocation2 + $0x8] sm:$0xff]
        %586 = vadd.xlane.f32.xlu0 %v584
        %v587 = vpop.xlane.xlu0 %586
        %588 = vadd.xlane.f32.xlu0 %v585
        %v589 = vpop.xlane.xlu0 %588
        %v590 = vrcp.pop 128.0
        %v591 = vmul.f32 128.0, %v590
        %v592 = vsub.f32 1.0, %v591
        %v593 = vmul.f32 %v590, %v592
        %v594 = vadd.f32 %v590, %v593
        %vm595 = vweird.f32 %v590
        %v596 = vsel %vm595, %v590, %v594
        %v597 = vmul.f32 %v587, %v596
        %v598 = vmul.f32 %v589, %v596
        %v599 = vsub.f32 %v584, %v597
        %v600 = vsub.f32 %v585, %v598
        %v601 = vmul.f32 %v599, %v599
        %v602 = vmul.f32 %v600, %v600
        %603 = vadd.xlane.f32.xlu0 %v601
        %v604 = vpop.xlane.xlu0 %603
        %605 = vadd.xlane.f32.xlu0 %v602
        %v606 = vpop.xlane.xlu0 %605
        %v607 = vmul.f32 %v604, %v596
        %v608 = vmul.f32 %v606, %v596
        %v609 = vadd.f32 %v607, 1e-05
        %v610 = vadd.f32 %v608, 1e-05
        %v611 = vrsqrt.pop %v609
        %v612 = vmul.f32 %v611, %v609
        %v613 = vmul.f32 %v612, %v611
        %v614 = vmul.f32 0.5, %v613
        %v615 = vsub.f32 1.5, %v614
        %v616 = vmul.f32 %v611, %v615
        %vm617 = vweird.f32 %v609
        %vm618 = vweird.f32 %v611
        %vm619 = vmor %vm617, %vm618
        %v620 = vsel %vm619, %v611, %v616
        %v621 = vrsqrt.pop %v610
        %v622 = vmul.f32 %v621, %v610
        %v623 = vmul.f32 %v622, %v621
        %v624 = vmul.f32 0.5, %v623
        %v625 = vsub.f32 1.5, %v624
        %v626 = vmul.f32 %v621, %v625
        %vm627 = vweird.f32 %v610
        %vm628 = vweird.f32 %v621
        %vm629 = vmor %vm627, %vm628
        %v630 = vsel %vm629, %v621, %v626
        %v631 = vmul.f32 %v599, %v620
        %v632 = vmul.f32 %v600, %v630
        %v634 = vperm.slane %v572, 0
        %v636 = vmul.f32 %v631, %v634
        %v637 = vmul.f32 %v632, %v634
        %v639 = vperm.slane %v573, 0
        %v641 = vadd.f32 %v636, %v639
        %v642 = vadd.f32 %v637, %v639
        %v643 = vpack.c.bf16 %v642, %v641
        %v644 = vld [vmem:[#allocation9] sm:$0xff]
        %v645 = vld [vmem:[#allocation9 + $0x8] sm:$0xf]
        %v646 = vld [vmem:[#allocation9 + $0xc] sm:$0xff]
        %v647 = vld [vmem:[#allocation9 + $0x14] sm:$0xf]
        %v648 = vld [vmem:[#allocation9 + $0x18] sm:$0xff]
        %v649 = vld [vmem:[#allocation9 + $0x20] sm:$0xf]
        %v650 = vld [vmem:[#allocation9 + $0x24] sm:$0xff]
        %v651 = vld [vmem:[#allocation9 + $0x2c] sm:$0xf]
        %v652 = vld [vmem:[#allocation9 + $0x30] sm:$0xff]
        %v653 = vld [vmem:[#allocation9 + $0x38] sm:$0xf]
        %v654 = vld [vmem:[#allocation9 + $0x3c] sm:$0xff]
        %v655 = vld [vmem:[#allocation9 + $0x44] sm:$0xf]
        %v656 = vld [vmem:[#allocation9 + $0x48] sm:$0xff]
        %v657 = vld [vmem:[#allocation9 + $0x50] sm:$0xf]
        %v658 = vld [vmem:[#allocation9 + $0x54] sm:$0xff]
        %v659 = vld [vmem:[#allocation9 + $0x5c] sm:$0xf]
        %v660 = vld [vmem:[#allocation9 + $0x60] sm:$0xff]
        %v661 = vld [vmem:[#allocation9 + $0x68] sm:$0xf]
        %v662 = vld [vmem:[#allocation9 + $0x6c] sm:$0xff]
        %v663 = vld [vmem:[#allocation9 + $0x74] sm:$0xf]
        %v664 = vld [vmem:[#allocation9 + $0x78] sm:$0xff]
        %v665 = vld [vmem:[#allocation9 + $0x80] sm:$0xf]
        %v666 = vld [vmem:[#allocation9 + $0x84] sm:$0xff]
        %v667 = vld [vmem:[#allocation9 + $0x8c] sm:$0xf]
        %v668 = vld [vmem:[#allocation9 + $0x90] sm:$0xff]
        %v669 = vld [vmem:[#allocation9 + $0x98] sm:$0xf]
        %v670 = vld [vmem:[#allocation9 + $0x9c] sm:$0xff]
        %v671 = vld [vmem:[#allocation9 + $0xa4] sm:$0xf]
        %v672 = vld [vmem:[#allocation9 + $0xa8] sm:$0xff]
        %v673 = vld [vmem:[#allocation9 + $0xb0] sm:$0xf]
        %v674 = vld [vmem:[#allocation9 + $0xb4] sm:$0xff]
        %v675 = vld [vmem:[#allocation9 + $0xbc] sm:$0xf]
        %v677 = vperm.slane %v576, 0
        %v678 = vperm.slane %v576, 1
        %v679 = vperm.slane %v576, 2
        %v715 = vunpack.c.l.b16 %v644
        %v716 = vunpack.c.h.b16 %v644
        %v717 = vunpack.c.l.b16 %v645
        %v718 = vunpack.c.l.b16 %v646
        %v719 = vunpack.c.h.b16 %v646
        %v720 = vunpack.c.l.b16 %v647
        %v721 = vunpack.c.l.b16 %v648
        %v722 = vunpack.c.h.b16 %v648
        %v723 = vunpack.c.l.b16 %v649
        %v724 = vunpack.c.l.b16 %v650
        %v725 = vunpack.c.h.b16 %v650
        %v726 = vunpack.c.l.b16 %v651
        %v727 = vunpack.c.l.b16 %v652
        %v728 = vunpack.c.h.b16 %v652
        %v729 = vunpack.c.l.b16 %v653
        %v730 = vunpack.c.l.b16 %v654
        %v731 = vunpack.c.h.b16 %v654
        %v732 = vunpack.c.l.b16 %v655
        %v733 = vunpack.c.l.b16 %v656
        %v734 = vunpack.c.h.b16 %v656
        %v735 = vunpack.c.l.b16 %v657
        %v736 = vunpack.c.l.b16 %v658
        %v737 = vunpack.c.h.b16 %v658
        %v738 = vunpack.c.l.b16 %v659
        %v739 = vunpack.c.l.b16 %v660
        %v740 = vunpack.c.h.b16 %v660
        %v741 = vunpack.c.l.b16 %v661
        %v742 = vunpack.c.l.b16 %v662
        %v743 = vunpack.c.h.b16 %v662
        %v744 = vunpack.c.l.b16 %v663
        %v745 = vunpack.c.l.b16 %v664
        %v746 = vunpack.c.h.b16 %v664
        %v747 = vunpack.c.l.b16 %v665
        %v748 = vunpack.c.l.b16 %v666
        %v749 = vunpack.c.h.b16 %v666
        %v750 = vunpack.c.l.b16 %v667
        %v751 = vunpack.c.l.b16 %v668
        %v752 = vunpack.c.h.b16 %v668
        %v753 = vunpack.c.l.b16 %v669
        %v754 = vunpack.c.l.b16 %v670
        %v755 = vunpack.c.h.b16 %v670
        %v756 = vunpack.c.l.b16 %v671
        %v757 = vunpack.c.l.b16 %v672
        %v758 = vunpack.c.h.b16 %v672
        %v759 = vunpack.c.l.b16 %v673
        %v760 = vunpack.c.l.b16 %v674
        %v761 = vunpack.c.h.b16 %v674
        %v762 = vunpack.c.l.b16 %v675
        %v763 = vpack.c.b16 %v718, %v715
        %v764 = vpack.c.b16 %v719, %v716
        %v765 = vpack.c.b16 %v720, %v717
        %v766 = vpack.c.b16 %v724, %v721
        %v767 = vpack.c.b16 %v725, %v722
        %v768 = vpack.c.b16 %v726, %v723
        %v769 = vpack.c.b16 %v730, %v727
        %v770 = vpack.c.b16 %v731, %v728
        %v771 = vpack.c.b16 %v732, %v729
        %v772 = vpack.c.b16 %v736, %v733
        %v773 = vpack.c.b16 %v737, %v734
        %v774 = vpack.c.b16 %v738, %v735
        %v775 = vpack.c.b16 %v742, %v739
        %v776 = vpack.c.b16 %v743, %v740
        %v777 = vpack.c.b16 %v744, %v741
        %v778 = vpack.c.b16 %v748, %v745
        %v779 = vpack.c.b16 %v749, %v746
        %v780 = vpack.c.b16 %v750, %v747
        %v781 = vpack.c.b16 %v754, %v751
        %v782 = vpack.c.b16 %v755, %v752
        %v783 = vpack.c.b16 %v756, %v753
        %v784 = vpack.c.b16 %v760, %v757
        %v785 = vpack.c.b16 %v761, %v758
        %v786 = vpack.c.b16 %v762, %v759
        %811 = vmatpush.bf16.msra.mxu0 %v784
        %812 = vmatpush.bf16.msra.mxu0 %v781
        %813 = vmatpush.bf16.msra.mxu0 %v778
        %814 = vmatpush.bf16.msra.mxu0 %v775
        %815 = vmatpush.bf16.msra.mxu0 %v772
        %816 = vmatpush.bf16.msra.mxu0 %v769
        %817 = vmatpush.bf16.msra.mxu0 %v766
        %818 = vmatpush.bf16.msra.mxu0 %v763
        %819 = vmatmul.bf16.gmra.mxu0 %v643
        %v820 = vpop.f32.mrf.mxu0
        %v821 = vadd.f32 %v677, %v820
        %v822 = vpop.f32.mrf.mxu0
        %v823 = vadd.f32 %v677, %v822
        %824 = vdwg.mxu0
        %825 = vmatpush.bf16.msra.mxu0 %v785
        %826 = vmatpush.bf16.msra.mxu0 %v782
        %827 = vmatpush.bf16.msra.mxu0 %v779
        %828 = vmatpush.bf16.msra.mxu0 %v776
        %829 = vmatpush.bf16.msra.mxu0 %v773
        %830 = vmatpush.bf16.msra.mxu0 %v770
        %831 = vmatpush.bf16.msra.mxu0 %v767
        %832 = vmatpush.bf16.msra.mxu0 %v764
        %833 = vmatmul.bf16.gmra.mxu0 %v643
        %v834 = vpop.f32.mrf.mxu0
        %v835 = vadd.f32 %v678, %v834
        %v836 = vpop.f32.mrf.mxu0
        %v837 = vadd.f32 %v678, %v836
        %838 = vdwg.mxu0
        %839 = vmatpush.bf16.msra.mxu0 %v786
        %840 = vmatpush.bf16.msra.mxu0 %v783
        %841 = vmatpush.bf16.msra.mxu0 %v780
        %842 = vmatpush.bf16.msra.mxu0 %v777
        %843 = vmatpush.bf16.msra.mxu0 %v774
        %844 = vmatpush.bf16.msra.mxu0 %v771
        %845 = vmatpush.bf16.msra.mxu0 %v768
        %846 = vmatpush.bf16.msra.mxu0 %v765
        %847 = vmatmul.bf16.gmra.mxu0 %v643
        %v848 = vpop.f32.mrf.mxu0
        %v849 = vadd.f32 %v679, %v848
        %v850 = vpop.f32.mrf.mxu0
        %v851 = vadd.f32 %v679, %v850
        %852 = vdwg.mxu0
        %v853 = vpack.c.bf16 %v835, %v821
        %v854 = vpack.c.bf16 %v849, %v849
        %v855 = vpack.c.bf16 %v837, %v823
        %v856 = vpack.c.bf16 %v851, %v851
        %v859 = vrot.slane %v853, 4
        %v860 = vrot.slane %v855, 4
        %v861 = vunpack.c.l.b16 %v853
        %v862 = vunpack.c.l.b16 %v855
        %v863 = vpack.c.b16 %v862, %v861
        %v864 = vunpack.c.l.b16 %v859
        %v865 = vunpack.c.l.b16 %v860
        %v866 = vpack.c.b16 %v865, %v864
        %vm867 = vcmask 261120
        %v869 = vsel %vm867, %v863, 0
        %v872 = vsel %vm867, %v866, 0
        %874 = vmatpush.bf16.xpose.msra.mxu0 0
        %875 = vmatpush.bf16.xpose.msra.mxu0 0
        %876 = vmatpush.bf16.xpose.msra.mxu0 0
        %877 = vmatpush.bf16.xpose.msra.mxu0 0
        %878 = vmatpush.bf16.xpose.msra.mxu0 0
        %879 = vmatpush.bf16.xpose.msra.mxu0 0
        %880 = vmatpush.bf16.xpose.msra.mxu0 0
        %881 = vmatpush.bf16.xpose.msra.mxu0 %v872
        %882 = vmatmul.bf16.gmra.mxu0 %v869
        %v883 = vpop.f32.mrf.mxu0
        %v884 = vadd.f32 0.0, %v883
        %v885 = vpop.f32.mrf.mxu0
        %v886 = vadd.f32 0.0, %v885
        %887 = vdwg.mxu0
        %vm888 = vcmask 130048
        %v889 = vsel %vm888, %v884, -inf
        %890 = vmax.xlane.f32.xlu0 %v889
        %v891 = vpop.xlane.xlu0 %890
        %v892 = vsel %vm888, %v886, -inf
        %893 = vmax.xlane.f32.xlu0 %v892
        %v894 = vpop.xlane.xlu0 %893
        %v895 = vsub.f32 %v884, %v891
        %v896 = vsub.f32 %v886, %v894
        %v897 = vmul.f32 %v895, 1.442695
        %v898 = vpow.pop %v897
        %v899 = vmul.f32 %v896, 1.442695
        %v900 = vpow.pop %v899
        %v901 = vsel %vm888, %v898, 0.0
        %902 = vadd.xlane.f32.xlu0 %v901
        %v903 = vpop.xlane.xlu0 %902
        %v904 = vsel %vm888, %v900, 0.0
        %905 = vadd.xlane.f32.xlu0 %v904
        %v906 = vpop.xlane.xlu0 %905
        %v907 = vrcp.pop %v903
        %v908 = vrcp.pop %v906
        %v909 = vmul.f32 %v898, %v907
        %v910 = vmul.f32 %v900, %v908
        %v911 = vpack.c.bf16 %v909, %v909
        %v912 = vpack.c.bf16 %v910, %v910
        %v915 = vunpack.c.l.b16 %v911
        %v916 = vunpack.c.l.b16 %v912
        %v917 = vpack.c.b16 %v916, %v915
        %v920 = vunpack.c.l.b16 %v854
        %v921 = vunpack.c.l.b16 %v856
        %v922 = vpack.c.b16 %v921, %v920
        %v925 = vsel %vm888, %v917, 0
        %927 = vmatpush.bf16.msra.mxu0 0
        %928 = vmatpush.bf16.msra.mxu0 0
        %929 = vmatpush.bf16.msra.mxu0 0
        %930 = vmatpush.bf16.msra.mxu0 0
        %931 = vmatpush.bf16.msra.mxu0 0
        %932 = vmatpush.bf16.msra.mxu0 0
        %933 = vmatpush.bf16.msra.mxu0 0
        %934 = vmatpush.bf16.msra.mxu0 %v922
        %935 = vmatmul.bf16.gmra.mxu0 %v925
        %v936 = vpop.f32.mrf.mxu0
        %v937 = vadd.f32 0.0, %v936
        %v938 = vpop.f32.mrf.mxu0
        %v939 = vadd.f32 0.0, %v938
        %940 = vdwg.mxu0
        %941 = vrot.lane.b32.xlu0 %v853, 96
        %v942 = vpop.permute.xlu0 %941
        %943 = vrot.lane.b32.xlu0 %v855, 96
        %v944 = vpop.permute.xlu0 %943
        %v945 = vrot.slane %v942, 4
        %v946 = vrot.slane %v944, 4
        %947 = vrot.lane.b32.xlu0 %v863, 96
        %v948 = vpop.permute.xlu0 %947
        %v949 = vunpack.c.l.b16 %v945
        %v950 = vunpack.c.l.b16 %v946
        %v951 = vpack.c.b16 %v950, %v949
        %v953 = vsel %vm867, %v948, 0
        %v956 = vsel %vm867, %v951, 0
        %958 = vmatpush.bf16.xpose.msra.mxu0 0
        %959 = vmatpush.bf16.xpose.msra.mxu0 0
        %960 = vmatpush.bf16.xpose.msra.mxu0 0
        %961 = vmatpush.bf16.xpose.msra.mxu0 0
        %962 = vmatpush.bf16.xpose.msra.mxu0 0
        %963 = vmatpush.bf16.xpose.msra.mxu0 0
        %964 = vmatpush.bf16.xpose.msra.mxu0 0
        %965 = vmatpush.bf16.xpose.msra.mxu0 %v956
        %966 = vmatmul.bf16.gmra.mxu0 %v953
        %v967 = vpop.f32.mrf.mxu0
        %v968 = vadd.f32 0.0, %v967
        %v969 = vpop.f32.mrf.mxu0
        %v970 = vadd.f32 0.0, %v969
        %971 = vdwg.mxu0
        %v972 = vsel %vm888, %v968, -inf
        %973 = vmax.xlane.f32.xlu0 %v972
        %v974 = vpop.xlane.xlu0 %973
        %v975 = vsel %vm888, %v970, -inf
        %976 = vmax.xlane.f32.xlu0 %v975
        %v977 = vpop.xlane.xlu0 %976
        %v978 = vsub.f32 %v968, %v974
        %v979 = vsub.f32 %v970, %v977
        %v980 = vmul.f32 %v978, 1.442695
        %v981 = vpow.pop %v980
        %v982 = vmul.f32 %v979, 1.442695
        %v983 = vpow.pop %v982
        %v984 = vsel %vm888, %v981, 0.0
        %985 = vadd.xlane.f32.xlu0 %v984
        %v986 = vpop.xlane.xlu0 %985
        %v987 = vsel %vm888, %v983, 0.0
        %988 = vadd.xlane.f32.xlu0 %v987
        %v989 = vpop.xlane.xlu0 %988
        %v990 = vrcp.pop %v986
        %v991 = vrcp.pop %v989
        %v992 = vmul.f32 %v981, %v990
        %v993 = vmul.f32 %v983, %v991
        %v994 = vpack.c.bf16 %v992, %v992
        %v995 = vpack.c.bf16 %v993, %v993
        %v998 = vunpack.c.l.b16 %v994
        %v999 = vunpack.c.l.b16 %v995
        %v1000 = vpack.c.b16 %v999, %v998
        %1001 = vrot.lane.b32.xlu0 %v922, 96
        %v1002 = vpop.permute.xlu0 %1001
        %v1005 = vsel %vm888, %v1000, 0
        %1007 = vmatpush.bf16.msra.mxu0 0
        %1008 = vmatpush.bf16.msra.mxu0 0
        %1009 = vmatpush.bf16.msra.mxu0 0
        %1010 = vmatpush.bf16.msra.mxu0 0
        %1011 = vmatpush.bf16.msra.mxu0 0
        %1012 = vmatpush.bf16.msra.mxu0 0
        %1013 = vmatpush.bf16.msra.mxu0 0
        %1014 = vmatpush.bf16.msra.mxu0 %v1002
        %1015 = vmatmul.bf16.gmra.mxu0 %v1005
        %v1016 = vpop.f32.mrf.mxu0
        %v1017 = vadd.f32 0.0, %v1016
        %v1018 = vpop.f32.mrf.mxu0
        %v1019 = vadd.f32 0.0, %v1018
        %1020 = vdwg.mxu0
        %1021 = vrot.lane.b32.xlu0 %v853, 64
        %v1022 = vpop.permute.xlu0 %1021
        %1023 = vrot.lane.b32.xlu0 %v855, 64
        %v1024 = vpop.permute.xlu0 %1023
        %v1025 = vrot.slane %v1022, 4
        %v1026 = vrot.slane %v1024, 4
        %1027 = vrot.lane.b32.xlu0 %v863, 64
        %v1028 = vpop.permute.xlu0 %1027
        %v1029 = vunpack.c.l.b16 %v1025
        %v1030 = vunpack.c.l.b16 %v1026
        %v1031 = vpack.c.b16 %v1030, %v1029
        %v1033 = vsel %vm867, %v1028, 0
        %v1036 = vsel %vm867, %v1031, 0
        %1038 = vmatpush.bf16.xpose.msra.mxu0 0
        %1039 = vmatpush.bf16.xpose.msra.mxu0 0
        %1040 = vmatpush.bf16.xpose.msra.mxu0 0
        %1041 = vmatpush.bf16.xpose.msra.mxu0 0
        %1042 = vmatpush.bf16.xpose.msra.mxu0 0
        %1043 = vmatpush.bf16.xpose.msra.mxu0 0
        %1044 = vmatpush.bf16.xpose.msra.mxu0 0
        %1045 = vmatpush.bf16.xpose.msra.mxu0 %v1036
        %1046 = vmatmul.bf16.gmra.mxu0 %v1033
        %v1047 = vpop.f32.mrf.mxu0
        %v1048 = vadd.f32 0.0, %v1047
        %v1049 = vpop.f32.mrf.mxu0
        %v1050 = vadd.f32 0.0, %v1049
        %1051 = vdwg.mxu0
        %v1052 = vsel %vm888, %v1048, -inf
        %1053 = vmax.xlane.f32.xlu0 %v1052
        %v1054 = vpop.xlane.xlu0 %1053
        %v1055 = vsel %vm888, %v1050, -inf
        %1056 = vmax.xlane.f32.xlu0 %v1055
        %v1057 = vpop.xlane.xlu0 %1056
        %v1058 = vsub.f32 %v1048, %v1054
        %v1059 = vsub.f32 %v1050, %v1057
        %v1060 = vmul.f32 %v1058, 1.442695
        %v1061 = vpow.pop %v1060
        %v1062 = vmul.f32 %v1059, 1.442695
        %v1063 = vpow.pop %v1062
        %v1064 = vsel %vm888, %v1061, 0.0
        %1065 = vadd.xlane.f32.xlu0 %v1064
        %v1066 = vpop.xlane.xlu0 %1065
        %v1067 = vsel %vm888, %v1063, 0.0
        %1068 = vadd.xlane.f32.xlu0 %v1067
        %v1069 = vpop.xlane.xlu0 %1068
        %v1070 = vrcp.pop %v1066
        %v1071 = vrcp.pop %v1069
        %v1072 = vmul.f32 %v1061, %v1070
        %v1073 = vmul.f32 %v1063, %v1071
        %v1074 = vpack.c.bf16 %v1072, %v1072
        %v1075 = vpack.c.bf16 %v1073, %v1073
        %v1078 = vunpack.c.l.b16 %v1074
        %v1079 = vunpack.c.l.b16 %v1075
        %v1080 = vpack.c.b16 %v1079, %v1078
        %1081 = vrot.lane.b32.xlu0 %v922, 64
        %v1082 = vpop.permute.xlu0 %1081
        %v1085 = vsel %vm888, %v1080, 0
        %1087 = vmatpush.bf16.msra.mxu0 0
        %1088 = vmatpush.bf16.msra.mxu0 0
        %1089 = vmatpush.bf16.msra.mxu0 0
        %1090 = vmatpush.bf16.msra.mxu0 0
        %1091 = vmatpush.bf16.msra.mxu0 0
        %1092 = vmatpush.bf16.msra.mxu0 0
        %1093 = vmatpush.bf16.msra.mxu0 0
        %1094 = vmatpush.bf16.msra.mxu0 %v1082
        %1095 = vmatmul.bf16.gmra.mxu0 %v1085
        %v1096 = vpop.f32.mrf.mxu0
        %v1097 = vadd.f32 0.0, %v1096
        %v1098 = vpop.f32.mrf.mxu0
        %v1099 = vadd.f32 0.0, %v1098
        %1100 = vdwg.mxu0
        %1101 = vrot.lane.b32.xlu0 %v853, 32
        %v1102 = vpop.permute.xlu0 %1101
        %1103 = vrot.lane.b32.xlu0 %v855, 32
        %v1104 = vpop.permute.xlu0 %1103
        %v1105 = vrot.slane %v1102, 4
        %v1106 = vrot.slane %v1104, 4
        %1107 = vrot.lane.b32.xlu0 %v863, 32
        %v1108 = vpop.permute.xlu0 %1107
        %v1109 = vunpack.c.l.b16 %v1105
        %v1110 = vunpack.c.l.b16 %v1106
        %v1111 = vpack.c.b16 %v1110, %v1109
        %v1113 = vsel %vm867, %v1108, 0
        %v1116 = vsel %vm867, %v1111, 0
        %1118 = vmatpush.bf16.xpose.msra.mxu0 0
        %1119 = vmatpush.bf16.xpose.msra.mxu0 0
        %1120 = vmatpush.bf16.xpose.msra.mxu0 0
        %1121 = vmatpush.bf16.xpose.msra.mxu0 0
        %1122 = vmatpush.bf16.xpose.msra.mxu0 0
        %1123 = vmatpush.bf16.xpose.msra.mxu0 0
        %1124 = vmatpush.bf16.xpose.msra.mxu0 0
        %1125 = vmatpush.bf16.xpose.msra.mxu0 %v1116
        %1126 = vmatmul.bf16.gmra.mxu0 %v1113
        %v1127 = vpop.f32.mrf.mxu0
        %v1128 = vadd.f32 0.0, %v1127
        %v1129 = vpop.f32.mrf.mxu0
        %v1130 = vadd.f32 0.0, %v1129
        %1131 = vdwg.mxu0
        %v1132 = vsel %vm888, %v1128, -inf
        %1133 = vmax.xlane.f32.xlu0 %v1132
        %v1134 = vpop.xlane.xlu0 %1133
        %v1135 = vsel %vm888, %v1130, -inf
        %1136 = vmax.xlane.f32.xlu0 %v1135
        %v1137 = vpop.xlane.xlu0 %1136
        %v1138 = vsub.f32 %v1128, %v1134
        %v1139 = vsub.f32 %v1130, %v1137
        %v1140 = vmul.f32 %v1138, 1.442695
        %v1141 = vpow.pop %v1140
        %v1142 = vmul.f32 %v1139, 1.442695
        %v1143 = vpow.pop %v1142
        %v1144 = vsel %vm888, %v1141, 0.0
        %1145 = vadd.xlane.f32.xlu0 %v1144
        %v1146 = vpop.xlane.xlu0 %1145
        %v1147 = vsel %vm888, %v1143, 0.0
        %1148 = vadd.xlane.f32.xlu0 %v1147
        %v1149 = vpop.xlane.xlu0 %1148
        %v1150 = vrcp.pop %v1146
        %v1151 = vrcp.pop %v1149
        %v1152 = vmul.f32 %v1141, %v1150
        %v1153 = vmul.f32 %v1143, %v1151
        %v1154 = vpack.c.bf16 %v1152, %v1152
        %v1155 = vpack.c.bf16 %v1153, %v1153
        %v1158 = vunpack.c.l.b16 %v1154
        %v1159 = vunpack.c.l.b16 %v1155
        %v1160 = vpack.c.b16 %v1159, %v1158
        %1161 = vrot.lane.b32.xlu0 %v922, 32
        %v1162 = vpop.permute.xlu0 %1161
        %v1165 = vsel %vm888, %v1160, 0
        %1167 = vmatpush.bf16.msra.mxu0 0
        %1168 = vmatpush.bf16.msra.mxu0 0
        %1169 = vmatpush.bf16.msra.mxu0 0
        %1170 = vmatpush.bf16.msra.mxu0 0
        %1171 = vmatpush.bf16.msra.mxu0 0
        %1172 = vmatpush.bf16.msra.mxu0 0
        %1173 = vmatpush.bf16.msra.mxu0 0
        %1174 = vmatpush.bf16.msra.mxu0 %v1162
        %1175 = vmatmul.bf16.gmra.mxu0 %v1165
        %v1176 = vpop.f32.mrf.mxu0
        %v1177 = vadd.f32 0.0, %v1176
        %v1178 = vpop.f32.mrf.mxu0
        %v1179 = vadd.f32 0.0, %v1178
        %1180 = vdwg.mxu0
        %1183 = vrot.lane.b32.xlu0 %v1017, 32
        %v1184 = vpop.permute.xlu0 %1183
        %1185 = vrot.lane.b32.xlu0 %v1019, 32
        %v1186 = vpop.permute.xlu0 %1185
        %1191 = vrot.lane.b32.xlu0 %v1097, 64
        %v1192 = vpop.permute.xlu0 %1191
        %1193 = vrot.lane.b32.xlu0 %v1099, 64
        %v1194 = vpop.permute.xlu0 %1193
        %1199 = vrot.lane.b32.xlu0 %v1177, 96
        %v1200 = vpop.permute.xlu0 %1199
        %1201 = vrot.lane.b32.xlu0 %v1179, 96
        %v1202 = vpop.permute.xlu0 %1201
        %v1205 = vsel %vm867, %v937, %v1184
        %v1206 = vsel %vm867, %v939, %v1186
        %vm1207 = vcmask 523264
        %v1208 = vsel %vm1207, %v1205, %v1192
        %v1209 = vsel %vm1207, %v1206, %v1194
        %vm1210 = vcmask 785408
        %v1211 = vsel %vm1210, %v1208, %v1200
        %v1212 = vsel %vm1210, %v1209, %v1202
        %v1213 = vpack.c.bf16 %v1212, %v1211
        %v1214 = vld [vmem:[#allocation11] sm:$0xf]
        %v1215 = vld [vmem:[#allocation11 + $0x4] sm:$0xf]
        %v1216 = vld [vmem:[#allocation11 + $0x8] sm:$0xf]
        %v1217 = vld [vmem:[#allocation11 + $0xc] sm:$0xf]
        %v1218 = vld [vmem:[#allocation11 + $0x10] sm:$0xf]
        %v1219 = vld [vmem:[#allocation11 + $0x14] sm:$0xf]
        %v1220 = vld [vmem:[#allocation11 + $0x18] sm:$0xf]
        %v1221 = vld [vmem:[#allocation11 + $0x1c] sm:$0xf]
        %v1222 = vld [vmem:[#allocation11 + $0x20] sm:$0xf]
        %v1223 = vld [vmem:[#allocation11 + $0x24] sm:$0xf]
        %v1224 = vld [vmem:[#allocation11 + $0x28] sm:$0xf]
        %v1225 = vld [vmem:[#allocation11 + $0x2c] sm:$0xf]
        %v1226 = vld [vmem:[#allocation11 + $0x30] sm:$0xf]
        %v1227 = vld [vmem:[#allocation11 + $0x34] sm:$0xf]
        %v1228 = vld [vmem:[#allocation11 + $0x38] sm:$0xf]
        %v1229 = vld [vmem:[#allocation11 + $0x3c] sm:$0xf]
        %v1246 = vunpack.c.l.b16 %v1214
        %v1247 = vunpack.c.l.b16 %v1215
        %v1248 = vunpack.c.l.b16 %v1216
        %v1249 = vunpack.c.l.b16 %v1217
        %v1250 = vunpack.c.l.b16 %v1218
        %v1251 = vunpack.c.l.b16 %v1219
        %v1252 = vunpack.c.l.b16 %v1220
        %v1253 = vunpack.c.l.b16 %v1221
        %v1254 = vunpack.c.l.b16 %v1222
        %v1255 = vunpack.c.l.b16 %v1223
        %v1256 = vunpack.c.l.b16 %v1224
        %v1257 = vunpack.c.l.b16 %v1225
        %v1258 = vunpack.c.l.b16 %v1226
        %v1259 = vunpack.c.l.b16 %v1227
        %v1260 = vunpack.c.l.b16 %v1228
        %v1261 = vunpack.c.l.b16 %v1229
        %v1262 = vpack.c.b16 %v1247, %v1246
        %v1263 = vpack.c.b16 %v1249, %v1248
        %v1264 = vpack.c.b16 %v1251, %v1250
        %v1265 = vpack.c.b16 %v1253, %v1252
        %v1266 = vpack.c.b16 %v1255, %v1254
        %v1267 = vpack.c.b16 %v1257, %v1256
        %v1268 = vpack.c.b16 %v1259, %v1258
        %v1269 = vpack.c.b16 %v1261, %v1260
        %1278 = vmatpush.bf16.msra.mxu0 %v1269
        %1279 = vmatpush.bf16.msra.mxu0 %v1268
        %1280 = vmatpush.bf16.msra.mxu0 %v1267
        %1281 = vmatpush.bf16.msra.mxu0 %v1266
        %1282 = vmatpush.bf16.msra.mxu0 %v1265
        %1283 = vmatpush.bf16.msra.mxu0 %v1264
        %1284 = vmatpush.bf16.msra.mxu0 %v1263
        %1285 = vmatpush.bf16.msra.mxu0 %v1262
        %1286 = vmatmul.bf16.gmra.mxu0 %v1213
        %v1287 = vpop.f32.mrf.mxu0
        %v1288 = vadd.f32 0.0, %v1287
        %v1289 = vpop.f32.mrf.mxu0
        %v1290 = vadd.f32 0.0, %v1289
        %1291 = vdwg.mxu0
        %v1292 = vadd.f32 %v584, %v1288
        %v1293 = vadd.f32 %v585, %v1290
        %v1295 = vperm.slane %v577, 0
        %v1297 = vadd.f32 %v1292, %v1295
        %v1298 = vadd.f32 %v1293, %v1295
        %1299 = vadd.xlane.f32.xlu0 %v1297
        %v1300 = vpop.xlane.xlu0 %1299
        %1301 = vadd.xlane.f32.xlu0 %v1298
        %v1302 = vpop.xlane.xlu0 %1301
        %v1303 = vmul.f32 %v1300, %v596
        %v1304 = vmul.f32 %v1302, %v596
        %v1305 = vsub.f32 %v1297, %v1303
        %v1306 = vsub.f32 %v1298, %v1304
        %v1307 = vmul.f32 %v1305, %v1305
        %v1308 = vmul.f32 %v1306, %v1306
        %1309 = vadd.xlane.f32.xlu0 %v1307
        %v1310 = vpop.xlane.xlu0 %1309
        %1311 = vadd.xlane.f32.xlu0 %v1308
        %v1312 = vpop.xlane.xlu0 %1311
        %v1313 = vmul.f32 %v1310, %v596
        %v1314 = vmul.f32 %v1312, %v596
        %v1315 = vadd.f32 %v1313, 1e-05
        %v1316 = vadd.f32 %v1314, 1e-05
        %v1317 = vrsqrt.pop %v1315
        %v1318 = vmul.f32 %v1317, %v1315
        %v1319 = vmul.f32 %v1318, %v1317
        %v1320 = vmul.f32 0.5, %v1319
        %v1321 = vsub.f32 1.5, %v1320
        %v1322 = vmul.f32 %v1317, %v1321
        %vm1323 = vweird.f32 %v1315
        %vm1324 = vweird.f32 %v1317
        %vm1325 = vmor %vm1323, %vm1324
        %v1326 = vsel %vm1325, %v1317, %v1322
        %v1327 = vrsqrt.pop %v1316
        %v1328 = vmul.f32 %v1327, %v1316
        %v1329 = vmul.f32 %v1328, %v1327
        %v1330 = vmul.f32 0.5, %v1329
        %v1331 = vsub.f32 1.5, %v1330
        %v1332 = vmul.f32 %v1327, %v1331
        %vm1333 = vweird.f32 %v1316
        %vm1334 = vweird.f32 %v1327
        %vm1335 = vmor %vm1333, %vm1334
        %v1336 = vsel %vm1335, %v1327, %v1332
        %v1337 = vmul.f32 %v1305, %v1326
        %v1338 = vmul.f32 %v1306, %v1336
        %v1340 = vperm.slane %v574, 0
        %v1342 = vmul.f32 %v1337, %v1340
        %v1343 = vmul.f32 %v1338, %v1340
        %v1345 = vperm.slane %v575, 0
        %v1347 = vadd.f32 %v1342, %v1345
        %v1348 = vadd.f32 %v1343, %v1345
        %v1349 = vpack.c.bf16 %v1348, %v1347
        %v1350 = vld [vmem:[#allocation14] sm:$0xff]
        %v1351 = vld [vmem:[#allocation14 + $0x8] sm:$0xff]
        %v1352 = vld [vmem:[#allocation14 + $0x10] sm:$0xff]
        %v1353 = vld [vmem:[#allocation14 + $0x18] sm:$0xff]
        %v1354 = vld [vmem:[#allocation14 + $0x20] sm:$0xff]
        %v1355 = vld [vmem:[#allocation14 + $0x28] sm:$0xff]
        %v1356 = vld [vmem:[#allocation14 + $0x30] sm:$0xff]
        %v1357 = vld [vmem:[#allocation14 + $0x38] sm:$0xff]
        %v1358 = vld [vmem:[#allocation14 + $0x40] sm:$0xff]
        %v1359 = vld [vmem:[#allocation14 + $0x48] sm:$0xff]
        %v1360 = vld [vmem:[#allocation14 + $0x50] sm:$0xff]
        %v1361 = vld [vmem:[#allocation14 + $0x58] sm:$0xff]
        %v1362 = vld [vmem:[#allocation14 + $0x60] sm:$0xff]
        %v1363 = vld [vmem:[#allocation14 + $0x68] sm:$0xff]
        %v1364 = vld [vmem:[#allocation14 + $0x70] sm:$0xff]
        %v1365 = vld [vmem:[#allocation14 + $0x78] sm:$0xff]
        %v1367 = vperm.slane %v578, 0
        %v1368 = vperm.slane %v578, 1
        %v1387 = vunpack.c.l.b16 %v1350
        %v1388 = vunpack.c.h.b16 %v1350
        %v1389 = vunpack.c.l.b16 %v1351
        %v1390 = vunpack.c.h.b16 %v1351
        %v1391 = vunpack.c.l.b16 %v1352
        %v1392 = vunpack.c.h.b16 %v1352
        %v1393 = vunpack.c.l.b16 %v1353
        %v1394 = vunpack.c.h.b16 %v1353
        %v1395 = vunpack.c.l.b16 %v1354
        %v1396 = vunpack.c.h.b16 %v1354
        %v1397 = vunpack.c.l.b16 %v1355
        %v1398 = vunpack.c.h.b16 %v1355
        %v1399 = vunpack.c.l.b16 %v1356
        %v1400 = vunpack.c.h.b16 %v1356
        %v1401 = vunpack.c.l.b16 %v1357
        %v1402 = vunpack.c.h.b16 %v1357
        %v1403 = vunpack.c.l.b16 %v1358
        %v1404 = vunpack.c.h.b16 %v1358
        %v1405 = vunpack.c.l.b16 %v1359
        %v1406 = vunpack.c.h.b16 %v1359
        %v1407 = vunpack.c.l.b16 %v1360
        %v1408 = vunpack.c.h.b16 %v1360
        %v1409 = vunpack.c.l.b16 %v1361
        %v1410 = vunpack.c.h.b16 %v1361
        %v1411 = vunpack.c.l.b16 %v1362
        %v1412 = vunpack.c.h.b16 %v1362
        %v1413 = vunpack.c.l.b16 %v1363
        %v1414 = vunpack.c.h.b16 %v1363
        %v1415 = vunpack.c.l.b16 %v1364
        %v1416 = vunpack.c.h.b16 %v1364
        %v1417 = vunpack.c.l.b16 %v1365
        %v1418 = vunpack.c.h.b16 %v1365
        %v1419 = vpack.c.b16 %v1389, %v1387
        %v1420 = vpack.c.b16 %v1390, %v1388
        %v1421 = vpack.c.b16 %v1393, %v1391
        %v1422 = vpack.c.b16 %v1394, %v1392
        %v1423 = vpack.c.b16 %v1397, %v1395
        %v1424 = vpack.c.b16 %v1398, %v1396
        %v1425 = vpack.c.b16 %v1401, %v1399
        %v1426 = vpack.c.b16 %v1402, %v1400
        %v1427 = vpack.c.b16 %v1405, %v1403
        %v1428 = vpack.c.b16 %v1406, %v1404
        %v1429 = vpack.c.b16 %v1409, %v1407
        %v1430 = vpack.c.b16 %v1410, %v1408
        %v1431 = vpack.c.b16 %v1413, %v1411
        %v1432 = vpack.c.b16 %v1414, %v1412
        %v1433 = vpack.c.b16 %v1417, %v1415
        %v1434 = vpack.c.b16 %v1418, %v1416
        %1451 = vmatpush.bf16.msra.mxu0 %v1433
        %1452 = vmatpush.bf16.msra.mxu0 %v1431
        %1453 = vmatpush.bf16.msra.mxu0 %v1429
        %1454 = vmatpush.bf16.msra.mxu0 %v1427
        %1455 = vmatpush.bf16.msra.mxu0 %v1425
        %1456 = vmatpush.bf16.msra.mxu0 %v1423
        %1457 = vmatpush.bf16.msra.mxu0 %v1421
        %1458 = vmatpush.bf16.msra.mxu0 %v1419
        %1459 = vmatmul.bf16.gmra.mxu0 %v1349
        %v1460 = vpop.f32.mrf.mxu0
        %v1461 = vadd.f32 %v1367, %v1460
        %v1462 = vpop.f32.mrf.mxu0
        %v1463 = vadd.f32 %v1367, %v1462
        %1464 = vdwg.mxu0
        %1465 = vmatpush.bf16.msra.mxu0 %v1434
        %1466 = vmatpush.bf16.msra.mxu0 %v1432
        %1467 = vmatpush.bf16.msra.mxu0 %v1430
        %1468 = vmatpush.bf16.msra.mxu0 %v1428
        %1469 = vmatpush.bf16.msra.mxu0 %v1426
        %1470 = vmatpush.bf16.msra.mxu0 %v1424
        %1471 = vmatpush.bf16.msra.mxu0 %v1422
        %1472 = vmatpush.bf16.msra.mxu0 %v1420
        %1473 = vmatmul.bf16.gmra.mxu0 %v1349
        %v1474 = vpop.f32.mrf.mxu0
        %v1475 = vadd.f32 %v1368, %v1474
        %v1476 = vpop.f32.mrf.mxu0
        %v1477 = vadd.f32 %v1368, %v1476
        %1478 = vdwg.mxu0
        %v1479 = vmul.f32 %v1461, %v1461
        %v1480 = vmul.f32 %v1475, %v1475
        %v1481 = vmul.f32 %v1463, %v1463
        %v1482 = vmul.f32 %v1477, %v1477
        %v1483 = vmul.f32 %v1461, %v1479
        %v1484 = vmul.f32 %v1475, %v1480
        %v1485 = vmul.f32 %v1463, %v1481
        %v1486 = vmul.f32 %v1477, %v1482
        %v1487 = vmul.f32 %v1483, 0.044715
        %v1488 = vmul.f32 %v1484, 0.044715
        %v1489 = vmul.f32 %v1485, 0.044715
        %v1490 = vmul.f32 %v1486, 0.044715
        %v1491 = vadd.f32 %v1461, %v1487
        %v1492 = vadd.f32 %v1475, %v1488
        %v1493 = vadd.f32 %v1463, %v1489
        %v1494 = vadd.f32 %v1477, %v1490
        %v1495 = vmul.f32 %v1491, 0.7978846
        %v1496 = vmul.f32 %v1492, 0.7978846
        %v1497 = vmul.f32 %v1493, 0.7978846
        %v1498 = vmul.f32 %v1494, 0.7978846
        %v1499 = vtanh.pop %v1495
        %v1500 = vtanh.pop %v1496
        %v1501 = vtanh.pop %v1497
        %v1502 = vtanh.pop %v1498
        %v1503 = vadd.f32 %v1499, 1.0
        %v1504 = vadd.f32 %v1500, 1.0
        %v1505 = vadd.f32 %v1501, 1.0
        %v1506 = vadd.f32 %v1502, 1.0
        %v1507 = vmul.f32 %v1503, 0.5
        %v1508 = vmul.f32 %v1504, 0.5
        %v1509 = vmul.f32 %v1505, 0.5
        %v1510 = vmul.f32 %v1506, 0.5
        %v1511 = vmul.f32 %v1461, %v1507
        %v1512 = vmul.f32 %v1475, %v1508
        %v1513 = vmul.f32 %v1463, %v1509
        %v1514 = vmul.f32 %v1477, %v1510
        %v1515 = vpack.c.bf16 %v1513, %v1511
        %v1516 = vpack.c.bf16 %v1514, %v1512
        %v1517 = vld [vmem:[#allocation15] sm:$0xf]
        %v1518 = vld [vmem:[#allocation15 + $0x4] sm:$0xf]
        %v1519 = vld [vmem:[#allocation15 + $0x8] sm:$0xf]
        %v1520 = vld [vmem:[#allocation15 + $0xc] sm:$0xf]
        %v1521 = vld [vmem:[#allocation15 + $0x10] sm:$0xf]
        %v1522 = vld [vmem:[#allocation15 + $0x14] sm:$0xf]
        %v1523 = vld [vmem:[#allocation15 + $0x18] sm:$0xf]
        %v1524 = vld [vmem:[#allocation15 + $0x1c] sm:$0xf]
        %v1525 = vld [vmem:[#allocation15 + $0x20] sm:$0xf]
        %v1526 = vld [vmem:[#allocation15 + $0x24] sm:$0xf]
        %v1527 = vld [vmem:[#allocation15 + $0x28] sm:$0xf]
        %v1528 = vld [vmem:[#allocation15 + $0x2c] sm:$0xf]
        %v1529 = vld [vmem:[#allocation15 + $0x30] sm:$0xf]
        %v1530 = vld [vmem:[#allocation15 + $0x34] sm:$0xf]
        %v1531 = vld [vmem:[#allocation15 + $0x38] sm:$0xf]
        %v1532 = vld [vmem:[#allocation15 + $0x3c] sm:$0xf]
        %v1533 = vld [vmem:[#allocation15 + $0x40] sm:$0xf]
        %v1534 = vld [vmem:[#allocation15 + $0x44] sm:$0xf]
        %v1535 = vld [vmem:[#allocation15 + $0x48] sm:$0xf]
        %v1536 = vld [vmem:[#allocation15 + $0x4c] sm:$0xf]
        %v1537 = vld [vmem:[#allocation15 + $0x50] sm:$0xf]
        %v1538 = vld [vmem:[#allocation15 + $0x54] sm:$0xf]
        %v1539 = vld [vmem:[#allocation15 + $0x58] sm:$0xf]
        %v1540 = vld [vmem:[#allocation15 + $0x5c] sm:$0xf]
        %v1541 = vld [vmem:[#allocation15 + $0x60] sm:$0xf]
        %v1542 = vld [vmem:[#allocation15 + $0x64] sm:$0xf]
        %v1543 = vld [vmem:[#allocation15 + $0x68] sm:$0xf]
        %v1544 = vld [vmem:[#allocation15 + $0x6c] sm:$0xf]
        %v1545 = vld [vmem:[#allocation15 + $0x70] sm:$0xf]
        %v1546 = vld [vmem:[#allocation15 + $0x74] sm:$0xf]
        %v1547 = vld [vmem:[#allocation15 + $0x78] sm:$0xf]
        %v1548 = vld [vmem:[#allocation15 + $0x7c] sm:$0xf]
        %v1550 = vperm.slane %v579, 0
        %v1584 = vunpack.c.l.b16 %v1517
        %v1585 = vunpack.c.l.b16 %v1518
        %v1586 = vunpack.c.l.b16 %v1519
        %v1587 = vunpack.c.l.b16 %v1520
        %v1588 = vunpack.c.l.b16 %v1521
        %v1589 = vunpack.c.l.b16 %v1522
        %v1590 = vunpack.c.l.b16 %v1523
        %v1591 = vunpack.c.l.b16 %v1524
        %v1592 = vunpack.c.l.b16 %v1525
        %v1593 = vunpack.c.l.b16 %v1526
        %v1594 = vunpack.c.l.b16 %v1527
        %v1595 = vunpack.c.l.b16 %v1528
        %v1596 = vunpack.c.l.b16 %v1529
        %v1597 = vunpack.c.l.b16 %v1530
        %v1598 = vunpack.c.l.b16 %v1531
        %v1599 = vunpack.c.l.b16 %v1532
        %v1600 = vunpack.c.l.b16 %v1533
        %v1601 = vunpack.c.l.b16 %v1534
        %v1602 = vunpack.c.l.b16 %v1535
        %v1603 = vunpack.c.l.b16 %v1536
        %v1604 = vunpack.c.l.b16 %v1537
        %v1605 = vunpack.c.l.b16 %v1538
        %v1606 = vunpack.c.l.b16 %v1539
        %v1607 = vunpack.c.l.b16 %v1540
        %v1608 = vunpack.c.l.b16 %v1541
        %v1609 = vunpack.c.l.b16 %v1542
        %v1610 = vunpack.c.l.b16 %v1543
        %v1611 = vunpack.c.l.b16 %v1544
        %v1612 = vunpack.c.l.b16 %v1545
        %v1613 = vunpack.c.l.b16 %v1546
        %v1614 = vunpack.c.l.b16 %v1547
        %v1615 = vunpack.c.l.b16 %v1548
        %v1616 = vpack.c.b16 %v1585, %v1584
        %v1617 = vpack.c.b16 %v1587, %v1586
        %v1618 = vpack.c.b16 %v1589, %v1588
        %v1619 = vpack.c.b16 %v1591, %v1590
        %v1620 = vpack.c.b16 %v1593, %v1592
        %v1621 = vpack.c.b16 %v1595, %v1594
        %v1622 = vpack.c.b16 %v1597, %v1596
        %v1623 = vpack.c.b16 %v1599, %v1598
        %v1624 = vpack.c.b16 %v1601, %v1600
        %v1625 = vpack.c.b16 %v1603, %v1602
        %v1626 = vpack.c.b16 %v1605, %v1604
        %v1627 = vpack.c.b16 %v1607, %v1606
        %v1628 = vpack.c.b16 %v1609, %v1608
        %v1629 = vpack.c.b16 %v1611, %v1610
        %v1630 = vpack.c.b16 %v1613, %v1612
        %v1631 = vpack.c.b16 %v1615, %v1614
        %1648 = vmatpush.bf16.msra.mxu0 %v1623
        %1649 = vmatpush.bf16.msra.mxu0 %v1622
        %1650 = vmatpush.bf16.msra.mxu0 %v1621
        %1651 = vmatpush.bf16.msra.mxu0 %v1620
        %1652 = vmatpush.bf16.msra.mxu0 %v1619
        %1653 = vmatpush.bf16.msra.mxu0 %v1618
        %1654 = vmatpush.bf16.msra.mxu0 %v1617
        %1655 = vmatpush.bf16.msra.mxu0 %v1616
        %1656 = vmatmul.bf16.gmra.mxu0 %v1515
        %v1657 = vpop.f32.mrf.mxu0
        %v1658 = vadd.f32 %v1550, %v1657
        %v1659 = vpop.f32.mrf.mxu0
        %v1660 = vadd.f32 %v1550, %v1659
        %1661 = vdwg.mxu0
        %1662 = vmatpush.bf16.msra.mxu0 %v1631
        %1663 = vmatpush.bf16.msra.mxu0 %v1630
        %1664 = vmatpush.bf16.msra.mxu0 %v1629
        %1665 = vmatpush.bf16.msra.mxu0 %v1628
        %1666 = vmatpush.bf16.msra.mxu0 %v1627
        %1667 = vmatpush.bf16.msra.mxu0 %v1626
        %1668 = vmatpush.bf16.msra.mxu0 %v1625
        %1669 = vmatpush.bf16.msra.mxu0 %v1624
        %1670 = vmatmul.bf16.gmra.mxu0 %v1516
        %v1671 = vpop.f32.mrf.mxu0
        %v1672 = vadd.f32 %v1658, %v1671
        %v1673 = vpop.f32.mrf.mxu0
        %v1674 = vadd.f32 %v1660, %v1673
        %1675 = vdwg.mxu0
        %v1676 = vadd.f32 %v1297, %v1672
        %v1677 = vadd.f32 %v1298, %v1674
        %1678 = vst [vmem:[#allocation2] sm:$0xff] %v1676
        %1679 = vst [vmem:[#allocation2 + $0x8] sm:$0xff] %v1677
        %v1680 = vld [vmem:[#allocation2] sm:$0xff]
        %v1681 = vld [vmem:[#allocation2 + $0x8] sm:$0xff]
        %1682 = vadd.xlane.f32.xlu0 %v1680
        %v1683 = vpop.xlane.xlu0 %1682
        %1684 = vadd.xlane.f32.xlu0 %v1681
        %v1685 = vpop.xlane.xlu0 %1684
        %v1686 = vmul.f32 %v1683, %v596
        %v1687 = vmul.f32 %v1685, %v596
        %v1688 = vsub.f32 %v1680, %v1686
        %v1689 = vsub.f32 %v1681, %v1687
        %v1690 = vmul.f32 %v1688, %v1688
        %v1691 = vmul.f32 %v1689, %v1689
        %1692 = vadd.xlane.f32.xlu0 %v1690
        %v1693 = vpop.xlane.xlu0 %1692
        %1694 = vadd.xlane.f32.xlu0 %v1691
        %v1695 = vpop.xlane.xlu0 %1694
        %v1696 = vmul.f32 %v1693, %v596
        %v1697 = vmul.f32 %v1695, %v596
        %v1698 = vadd.f32 %v1696, 1e-05
        %v1699 = vadd.f32 %v1697, 1e-05
        %v1700 = vrsqrt.pop %v1698
        %v1701 = vmul.f32 %v1700, %v1698
        %v1702 = vmul.f32 %v1701, %v1700
        %v1703 = vmul.f32 0.5, %v1702
        %v1704 = vsub.f32 1.5, %v1703
        %v1705 = vmul.f32 %v1700, %v1704
        %vm1706 = vweird.f32 %v1698
        %vm1707 = vweird.f32 %v1700
        %vm1708 = vmor %vm1706, %vm1707
        %v1709 = vsel %vm1708, %v1700, %v1705
        %v1710 = vrsqrt.pop %v1699
        %v1711 = vmul.f32 %v1710, %v1699
        %v1712 = vmul.f32 %v1711, %v1710
        %v1713 = vmul.f32 0.5, %v1712
        %v1714 = vsub.f32 1.5, %v1713
        %v1715 = vmul.f32 %v1710, %v1714
        %vm1716 = vweird.f32 %v1699
        %vm1717 = vweird.f32 %v1710
        %vm1718 = vmor %vm1716, %vm1717
        %v1719 = vsel %vm1718, %v1710, %v1715
        %v1720 = vmul.f32 %v1688, %v1709
        %v1721 = vmul.f32 %v1689, %v1719
        %v1722 = vmul.f32 %v1720, %v634
        %v1723 = vmul.f32 %v1721, %v634
        %v1724 = vadd.f32 %v1722, %v639
        %v1725 = vadd.f32 %v1723, %v639
        %v1726 = vpack.c.bf16 %v1725, %v1724
        %v1727 = vld [vmem:[#allocation9] sm:$0xff]
        %v1728 = vld [vmem:[#allocation9 + $0x8] sm:$0xf]
        %v1729 = vld [vmem:[#allocation9 + $0xc] sm:$0xff]
        %v1730 = vld [vmem:[#allocation9 + $0x14] sm:$0xf]
        %v1731 = vld [vmem:[#allocation9 + $0x18] sm:$0xff]
        %v1732 = vld [vmem:[#allocation9 + $0x20] sm:$0xf]
        %v1733 = vld [vmem:[#allocation9 + $0x24] sm:$0xff]
        %v1734 = vld [vmem:[#allocation9 + $0x2c] sm:$0xf]
        %v1735 = vld [vmem:[#allocation9 + $0x30] sm:$0xff]
        %v1736 = vld [vmem:[#allocation9 + $0x38] sm:$0xf]
        %v1737 = vld [vmem:[#allocation9 + $0x3c] sm:$0xff]
        %v1738 = vld [vmem:[#allocation9 + $0x44] sm:$0xf]
        %v1739 = vld [vmem:[#allocation9 + $0x48] sm:$0xff]
        %v1740 = vld [vmem:[#allocation9 + $0x50] sm:$0xf]
        %v1741 = vld [vmem:[#allocation9 + $0x54] sm:$0xff]
        %v1742 = vld [vmem:[#allocation9 + $0x5c] sm:$0xf]
        %v1743 = vld [vmem:[#allocation9 + $0x60] sm:$0xff]
        %v1744 = vld [vmem:[#allocation9 + $0x68] sm:$0xf]
        %v1745 = vld [vmem:[#allocation9 + $0x6c] sm:$0xff]
        %v1746 = vld [vmem:[#allocation9 + $0x74] sm:$0xf]
        %v1747 = vld [vmem:[#allocation9 + $0x78] sm:$0xff]
        %v1748 = vld [vmem:[#allocation9 + $0x80] sm:$0xf]
        %v1749 = vld [vmem:[#allocation9 + $0x84] sm:$0xff]
        %v1750 = vld [vmem:[#allocation9 + $0x8c] sm:$0xf]
        %v1751 = vld [vmem:[#allocation9 + $0x90] sm:$0xff]
        %v1752 = vld [vmem:[#allocation9 + $0x98] sm:$0xf]
        %v1753 = vld [vmem:[#allocation9 + $0x9c] sm:$0xff]
        %v1754 = vld [vmem:[#allocation9 + $0xa4] sm:$0xf]
        %v1755 = vld [vmem:[#allocation9 + $0xa8] sm:$0xff]
        %v1756 = vld [vmem:[#allocation9 + $0xb0] sm:$0xf]
        %v1757 = vld [vmem:[#allocation9 + $0xb4] sm:$0xff]
        %v1758 = vld [vmem:[#allocation9 + $0xbc] sm:$0xf]
        %v1791 = vunpack.c.l.b16 %v1727
        %v1792 = vunpack.c.h.b16 %v1727
        %v1793 = vunpack.c.l.b16 %v1728
        %v1794 = vunpack.c.l.b16 %v1729
        %v1795 = vunpack.c.h.b16 %v1729
        %v1796 = vunpack.c.l.b16 %v1730
        %v1797 = vunpack.c.l.b16 %v1731
        %v1798 = vunpack.c.h.b16 %v1731
        %v1799 = vunpack.c.l.b16 %v1732
        %v1800 = vunpack.c.l.b16 %v1733
        %v1801 = vunpack.c.h.b16 %v1733
        %v1802 = vunpack.c.l.b16 %v1734
        %v1803 = vunpack.c.l.b16 %v1735
        %v1804 = vunpack.c.h.b16 %v1735
        %v1805 = vunpack.c.l.b16 %v1736
        %v1806 = vunpack.c.l.b16 %v1737
        %v1807 = vunpack.c.h.b16 %v1737
        %v1808 = vunpack.c.l.b16 %v1738
        %v1809 = vunpack.c.l.b16 %v1739
        %v1810 = vunpack.c.h.b16 %v1739
        %v1811 = vunpack.c.l.b16 %v1740
        %v1812 = vunpack.c.l.b16 %v1741
        %v1813 = vunpack.c.h.b16 %v1741
        %v1814 = vunpack.c.l.b16 %v1742
        %v1815 = vunpack.c.l.b16 %v1743
        %v1816 = vunpack.c.h.b16 %v1743
        %v1817 = vunpack.c.l.b16 %v1744
        %v1818 = vunpack.c.l.b16 %v1745
        %v1819 = vunpack.c.h.b16 %v1745
        %v1820 = vunpack.c.l.b16 %v1746
        %v1821 = vunpack.c.l.b16 %v1747
        %v1822 = vunpack.c.h.b16 %v1747
        %v1823 = vunpack.c.l.b16 %v1748
        %v1824 = vunpack.c.l.b16 %v1749
        %v1825 = vunpack.c.h.b16 %v1749
        %v1826 = vunpack.c.l.b16 %v1750
        %v1827 = vunpack.c.l.b16 %v1751
        %v1828 = vunpack.c.h.b16 %v1751
        %v1829 = vunpack.c.l.b16 %v1752
        %v1830 = vunpack.c.l.b16 %v1753
        %v1831 = vunpack.c.h.b16 %v1753
        %v1832 = vunpack.c.l.b16 %v1754
        %v1833 = vunpack.c.l.b16 %v1755
        %v1834 = vunpack.c.h.b16 %v1755
        %v1835 = vunpack.c.l.b16 %v1756
        %v1836 = vunpack.c.l.b16 %v1757
        %v1837 = vunpack.c.h.b16 %v1757
        %v1838 = vunpack.c.l.b16 %v1758
        %v1839 = vpack.c.b16 %v1794, %v1791
        %v1840 = vpack.c.b16 %v1795, %v1792
        %v1841 = vpack.c.b16 %v1796, %v1793
        %v1842 = vpack.c.b16 %v1800, %v1797
        %v1843 = vpack.c.b16 %v1801, %v1798
        %v1844 = vpack.c.b16 %v1802, %v1799
        %v1845 = vpack.c.b16 %v1806, %v1803
        %v1846 = vpack.c.b16 %v1807, %v1804
        %v1847 = vpack.c.b16 %v1808, %v1805
        %v1848 = vpack.c.b16 %v1812, %v1809
        %v1849 = vpack.c.b16 %v1813, %v1810
        %v1850 = vpack.c.b16 %v1814, %v1811
        %v1851 = vpack.c.b16 %v1818, %v1815
        %v1852 = vpack.c.b16 %v1819, %v1816
        %v1853 = vpack.c.b16 %v1820, %v1817
        %v1854 = vpack.c.b16 %v1824, %v1821
        %v1855 = vpack.c.b16 %v1825, %v1822
        %v1856 = vpack.c.b16 %v1826, %v1823
        %v1857 = vpack.c.b16 %v1830, %v1827
        %v1858 = vpack.c.b16 %v1831, %v1828
        %v1859 = vpack.c.b16 %v1832, %v1829
        %v1860 = vpack.c.b16 %v1836, %v1833
        %v1861 = vpack.c.b16 %v1837, %v1834
        %v1862 = vpack.c.b16 %v1838, %v1835
        %1887 = vmatpush.bf16.msra.mxu0 %v1860
        %1888 = vmatpush.bf16.msra.mxu0 %v1857
        %1889 = vmatpush.bf16.msra.mxu0 %v1854
        %1890 = vmatpush.bf16.msra.mxu0 %v1851
        %1891 = vmatpush.bf16.msra.mxu0 %v1848
        %1892 = vmatpush.bf16.msra.mxu0 %v1845
        %1893 = vmatpush.bf16.msra.mxu0 %v1842
        %1894 = vmatpush.bf16.msra.mxu0 %v1839
        %1895 = vmatmul.bf16.gmra.mxu0 %v1726
        %v1896 = vpop.f32.mrf.mxu0
        %v1897 = vadd.f32 %v677, %v1896
        %v1898 = vpop.f32.mrf.mxu0
        %v1899 = vadd.f32 %v677, %v1898
        %1900 = vdwg.mxu0
        %1901 = vmatpush.bf16.msra.mxu0 %v1861
        %1902 = vmatpush.bf16.msra.mxu0 %v1858
        %1903 = vmatpush.bf16.msra.mxu0 %v1855
        %1904 = vmatpush.bf16.msra.mxu0 %v1852
        %1905 = vmatpush.bf16.msra.mxu0 %v1849
        %1906 = vmatpush.bf16.msra.mxu0 %v1846
        %1907 = vmatpush.bf16.msra.mxu0 %v1843
        %1908 = vmatpush.bf16.msra.mxu0 %v1840
        %1909 = vmatmul.bf16.gmra.mxu0 %v1726
        %v1910 = vpop.f32.mrf.mxu0
        %v1911 = vadd.f32 %v678, %v1910
        %v1912 = vpop.f32.mrf.mxu0
        %v1913 = vadd.f32 %v678, %v1912
        %1914 = vdwg.mxu0
        %1915 = vmatpush.bf16.msra.mxu0 %v1862
        %1916 = vmatpush.bf16.msra.mxu0 %v1859
        %1917 = vmatpush.bf16.msra.mxu0 %v1856
        %1918 = vmatpush.bf16.msra.mxu0 %v1853
        %1919 = vmatpush.bf16.msra.mxu0 %v1850
        %1920 = vmatpush.bf16.msra.mxu0 %v1847
        %1921 = vmatpush.bf16.msra.mxu0 %v1844
        %1922 = vmatpush.bf16.msra.mxu0 %v1841
        %1923 = vmatmul.bf16.gmra.mxu0 %v1726
        %v1924 = vpop.f32.mrf.mxu0
        %v1925 = vadd.f32 %v679, %v1924
        %v1926 = vpop.f32.mrf.mxu0
        %v1927 = vadd.f32 %v679, %v1926
        %1928 = vdwg.mxu0
        %v1929 = vpack.c.bf16 %v1911, %v1897
        %v1930 = vpack.c.bf16 %v1925, %v1925
        %v1931 = vpack.c.bf16 %v1913, %v1899
        %v1932 = vpack.c.bf16 %v1927, %v1927
        %v1935 = vrot.slane %v1929, 4
        %v1936 = vrot.slane %v1931, 4
        %v1937 = vunpack.c.l.b16 %v1929
        %v1938 = vunpack.c.l.b16 %v1931
        %v1939 = vpack.c.b16 %v1938, %v1937
        %v1940 = vunpack.c.l.b16 %v1935
        %v1941 = vunpack.c.l.b16 %v1936
        %v1942 = vpack.c.b16 %v1941, %v1940
        %v1944 = vsel %vm867, %v1939, 0
        %v1947 = vsel %vm867, %v1942, 0
        %1949 = vmatpush.bf16.xpose.msra.mxu0 0
        %1950 = vmatpush.bf16.xpose.msra.mxu0 0
        %1951 = vmatpush.bf16.xpose.msra.mxu0 0
        %1952 = vmatpush.bf16.xpose.msra.mxu0 0
        %1953 = vmatpush.bf16.xpose.msra.mxu0 0
        %1954 = vmatpush.bf16.xpose.msra.mxu0 0
        %1955 = vmatpush.bf16.xpose.msra.mxu0 0
        %1956 = vmatpush.bf16.xpose.msra.mxu0 %v1947
        %1957 = vmatmul.bf16.gmra.mxu0 %v1944
        %v1958 = vpop.f32.mrf.mxu0
        %v1959 = vadd.f32 0.0, %v1958
        %v1960 = vpop.f32.mrf.mxu0
        %v1961 = vadd.f32 0.0, %v1960
        %1962 = vdwg.mxu0
        %v1963 = vsel %vm888, %v1959, -inf
        %1964 = vmax.xlane.f32.xlu0 %v1963
        %v1965 = vpop.xlane.xlu0 %1964
        %v1966 = vsel %vm888, %v1961, -inf
        %1967 = vmax.xlane.f32.xlu0 %v1966
        %v1968 = vpop.xlane.xlu0 %1967
        %v1969 = vsub.f32 %v1959, %v1965
        %v1970 = vsub.f32 %v1961, %v1968
        %v1971 = vmul.f32 %v1969, 1.442695
        %v1972 = vpow.pop %v1971
        %v1973 = vmul.f32 %v1970, 1.442695
        %v1974 = vpow.pop %v1973
        %v1975 = vsel %vm888, %v1972, 0.0
        %1976 = vadd.xlane.f32.xlu0 %v1975
        %v1977 = vpop.xlane.xlu0 %1976
        %v1978 = vsel %vm888, %v1974, 0.0
        %1979 = vadd.xlane.f32.xlu0 %v1978
        %v1980 = vpop.xlane.xlu0 %1979
        %v1981 = vrcp.pop %v1977
        %v1982 = vrcp.pop %v1980
        %v1983 = vmul.f32 %v1972, %v1981
        %v1984 = vmul.f32 %v1974, %v1982
        %v1985 = vpack.c.bf16 %v1983, %v1983
        %v1986 = vpack.c.bf16 %v1984, %v1984
        %v1989 = vunpack.c.l.b16 %v1985
        %v1990 = vunpack.c.l.b16 %v1986
        %v1991 = vpack.c.b16 %v1990, %v1989
        %v1994 = vunpack.c.l.b16 %v1930
        %v1995 = vunpack.c.l.b16 %v1932
        %v1996 = vpack.c.b16 %v1995, %v1994
        %v1999 = vsel %vm888, %v1991, 0
        %2001 = vmatpush.bf16.msra.mxu0 0
        %2002 = vmatpush.bf16.msra.mxu0 0
        %2003 = vmatpush.bf16.msra.mxu0 0
        %2004 = vmatpush.bf16.msra.mxu0 0
        %2005 = vmatpush.bf16.msra.mxu0 0
        %2006 = vmatpush.bf16.msra.mxu0 0
        %2007 = vmatpush.bf16.msra.mxu0 0
        %2008 = vmatpush.bf16.msra.mxu0 %v1996
        %2009 = vmatmul.bf16.gmra.mxu0 %v1999
        %v2010 = vpop.f32.mrf.mxu0
        %v2011 = vadd.f32 0.0, %v2010
        %v2012 = vpop.f32.mrf.mxu0
        %v2013 = vadd.f32 0.0, %v2012
        %2014 = vdwg.mxu0
        %2015 = vrot.lane.b32.xlu0 %v1929, 96
        %v2016 = vpop.permute.xlu0 %2015
        %2017 = vrot.lane.b32.xlu0 %v1931, 96
        %v2018 = vpop.permute.xlu0 %2017
        %v2019 = vrot.slane %v2016, 4
        %v2020 = vrot.slane %v2018, 4
        %2021 = vrot.lane.b32.xlu0 %v1939, 96
        %v2022 = vpop.permute.xlu0 %2021
        %v2023 = vunpack.c.l.b16 %v2019
        %v2024 = vunpack.c.l.b16 %v2020
        %v2025 = vpack.c.b16 %v2024, %v2023
        %v2027 = vsel %vm867, %v2022, 0
        %v2030 = vsel %vm867, %v2025, 0
        %2032 = vmatpush.bf16.xpose.msra.mxu0 0
        %2033 = vmatpush.bf16.xpose.msra.mxu0 0
        %2034 = vmatpush.bf16.xpose.msra.mxu0 0
        %2035 = vmatpush.bf16.xpose.msra.mxu0 0
        %2036 = vmatpush.bf16.xpose.msra.mxu0 0
        %2037 = vmatpush.bf16.xpose.msra.mxu0 0
        %2038 = vmatpush.bf16.xpose.msra.mxu0 0
        %2039 = vmatpush.bf16.xpose.msra.mxu0 %v2030
        %2040 = vmatmul.bf16.gmra.mxu0 %v2027
        %v2041 = vpop.f32.mrf.mxu0
        %v2042 = vadd.f32 0.0, %v2041
        %v2043 = vpop.f32.mrf.mxu0
        %v2044 = vadd.f32 0.0, %v2043
        %2045 = vdwg.mxu0
        %v2046 = vsel %vm888, %v2042, -inf
        %2047 = vmax.xlane.f32.xlu0 %v2046
        %v2048 = vpop.xlane.xlu0 %2047
        %v2049 = vsel %vm888, %v2044, -inf
        %2050 = vmax.xlane.f32.xlu0 %v2049
        %v2051 = vpop.xlane.xlu0 %2050
        %v2052 = vsub.f32 %v2042, %v2048
        %v2053 = vsub.f32 %v2044, %v2051
        %v2054 = vmul.f32 %v2052, 1.442695
        %v2055 = vpow.pop %v2054
        %v2056 = vmul.f32 %v2053, 1.442695
        %v2057 = vpow.pop %v2056
        %v2058 = vsel %vm888, %v2055, 0.0
        %2059 = vadd.xlane.f32.xlu0 %v2058
        %v2060 = vpop.xlane.xlu0 %2059
        %v2061 = vsel %vm888, %v2057, 0.0
        %2062 = vadd.xlane.f32.xlu0 %v2061
        %v2063 = vpop.xlane.xlu0 %2062
        %v2064 = vrcp.pop %v2060
        %v2065 = vrcp.pop %v2063
        %v2066 = vmul.f32 %v2055, %v2064
        %v2067 = vmul.f32 %v2057, %v2065
        %v2068 = vpack.c.bf16 %v2066, %v2066
        %v2069 = vpack.c.bf16 %v2067, %v2067
        %v2072 = vunpack.c.l.b16 %v2068
        %v2073 = vunpack.c.l.b16 %v2069
        %v2074 = vpack.c.b16 %v2073, %v2072
        %2075 = vrot.lane.b32.xlu0 %v1996, 96
        %v2076 = vpop.permute.xlu0 %2075
        %v2079 = vsel %vm888, %v2074, 0
        %2081 = vmatpush.bf16.msra.mxu0 0
        %2082 = vmatpush.bf16.msra.mxu0 0
        %2083 = vmatpush.bf16.msra.mxu0 0
        %2084 = vmatpush.bf16.msra.mxu0 0
        %2085 = vmatpush.bf16.msra.mxu0 0
        %2086 = vmatpush.bf16.msra.mxu0 0
        %2087 = vmatpush.bf16.msra.mxu0 0
        %2088 = vmatpush.bf16.msra.mxu0 %v2076
        %2089 = vmatmul.bf16.gmra.mxu0 %v2079
        %v2090 = vpop.f32.mrf.mxu0
        %v2091 = vadd.f32 0.0, %v2090
        %v2092 = vpop.f32.mrf.mxu0
        %v2093 = vadd.f32 0.0, %v2092
        %2094 = vdwg.mxu0
        %2095 = vrot.lane.b32.xlu0 %v1929, 64
        %v2096 = vpop.permute.xlu0 %2095
        %2097 = vrot.lane.b32.xlu0 %v1931, 64
        %v2098 = vpop.permute.xlu0 %2097
        %v2099 = vrot.slane %v2096, 4
        %v2100 = vrot.slane %v2098, 4
        %2101 = vrot.lane.b32.xlu0 %v1939, 64
        %v2102 = vpop.permute.xlu0 %2101
        %v2103 = vunpack.c.l.b16 %v2099
        %v2104 = vunpack.c.l.b16 %v2100
        %v2105 = vpack.c.b16 %v2104, %v2103
        %v2107 = vsel %vm867, %v2102, 0
        %v2110 = vsel %vm867, %v2105, 0
        %2112 = vmatpush.bf16.xpose.msra.mxu0 0
        %2113 = vmatpush.bf16.xpose.msra.mxu0 0
        %2114 = vmatpush.bf16.xpose.msra.mxu0 0
        %2115 = vmatpush.bf16.xpose.msra.mxu0 0
        %2116 = vmatpush.bf16.xpose.msra.mxu0 0
        %2117 = vmatpush.bf16.xpose.msra.mxu0 0
        %2118 = vmatpush.bf16.xpose.msra.mxu0 0
        %2119 = vmatpush.bf16.xpose.msra.mxu0 %v2110
        %2120 = vmatmul.bf16.gmra.mxu0 %v2107
        %v2121 = vpop.f32.mrf.mxu0
        %v2122 = vadd.f32 0.0, %v2121
        %v2123 = vpop.f32.mrf.mxu0
        %v2124 = vadd.f32 0.0, %v2123
        %2125 = vdwg.mxu0
        %v2126 = vsel %vm888, %v2122, -inf
        %2127 = vmax.xlane.f32.xlu0 %v2126
        %v2128 = vpop.xlane.xlu0 %2127
        %v2129 = vsel %vm888, %v2124, -inf
        %2130 = vmax.xlane.f32.xlu0 %v2129
        %v2131 = vpop.xlane.xlu0 %2130
        %v2132 = vsub.f32 %v2122, %v2128
        %v2133 = vsub.f32 %v2124, %v2131
        %v2134 = vmul.f32 %v2132, 1.442695
        %v2135 = vpow.pop %v2134
        %v2136 = vmul.f32 %v2133, 1.442695
        %v2137 = vpow.pop %v2136
        %v2138 = vsel %vm888, %v2135, 0.0
        %2139 = vadd.xlane.f32.xlu0 %v2138
        %v2140 = vpop.xlane.xlu0 %2139
        %v2141 = vsel %vm888, %v2137, 0.0
        %2142 = vadd.xlane.f32.xlu0 %v2141
        %v2143 = vpop.xlane.xlu0 %2142
        %v2144 = vrcp.pop %v2140
        %v2145 = vrcp.pop %v2143
        %v2146 = vmul.f32 %v2135, %v2144
        %v2147 = vmul.f32 %v2137, %v2145
        %v2148 = vpack.c.bf16 %v2146, %v2146
        %v2149 = vpack.c.bf16 %v2147, %v2147
        %v2152 = vunpack.c.l.b16 %v2148
        %v2153 = vunpack.c.l.b16 %v2149
        %v2154 = vpack.c.b16 %v2153, %v2152
        %2155 = vrot.lane.b32.xlu0 %v1996, 64
        %v2156 = vpop.permute.xlu0 %2155
        %v2159 = vsel %vm888, %v2154, 0
        %2161 = vmatpush.bf16.msra.mxu0 0
        %2162 = vmatpush.bf16.msra.mxu0 0
        %2163 = vmatpush.bf16.msra.mxu0 0
        %2164 = vmatpush.bf16.msra.mxu0 0
        %2165 = vmatpush.bf16.msra.mxu0 0
        %2166 = vmatpush.bf16.msra.mxu0 0
        %2167 = vmatpush.bf16.msra.mxu0 0
        %2168 = vmatpush.bf16.msra.mxu0 %v2156
        %2169 = vmatmul.bf16.gmra.mxu0 %v2159
        %v2170 = vpop.f32.mrf.mxu0
        %v2171 = vadd.f32 0.0, %v2170
        %v2172 = vpop.f32.mrf.mxu0
        %v2173 = vadd.f32 0.0, %v2172
        %2174 = vdwg.mxu0
        %2175 = vrot.lane.b32.xlu0 %v1929, 32
        %v2176 = vpop.permute.xlu0 %2175
        %2177 = vrot.lane.b32.xlu0 %v1931, 32
        %v2178 = vpop.permute.xlu0 %2177
        %v2179 = vrot.slane %v2176, 4
        %v2180 = vrot.slane %v2178, 4
        %2181 = vrot.lane.b32.xlu0 %v1939, 32
        %v2182 = vpop.permute.xlu0 %2181
        %v2183 = vunpack.c.l.b16 %v2179
        %v2184 = vunpack.c.l.b16 %v2180
        %v2185 = vpack.c.b16 %v2184, %v2183
        %v2187 = vsel %vm867, %v2182, 0
        %v2190 = vsel %vm867, %v2185, 0
        %2192 = vmatpush.bf16.xpose.msra.mxu0 0
        %2193 = vmatpush.bf16.xpose.msra.mxu0 0
        %2194 = vmatpush.bf16.xpose.msra.mxu0 0
        %2195 = vmatpush.bf16.xpose.msra.mxu0 0
        %2196 = vmatpush.bf16.xpose.msra.mxu0 0
        %2197 = vmatpush.bf16.xpose.msra.mxu0 0
        %2198 = vmatpush.bf16.xpose.msra.mxu0 0
        %2199 = vmatpush.bf16.xpose.msra.mxu0 %v2190
        %2200 = vmatmul.bf16.gmra.mxu0 %v2187
        %v2201 = vpop.f32.mrf.mxu0
        %v2202 = vadd.f32 0.0, %v2201
        %v2203 = vpop.f32.mrf.mxu0
        %v2204 = vadd.f32 0.0, %v2203
        %2205 = vdwg.mxu0
        %v2206 = vsel %vm888, %v2202, -inf
        %2207 = vmax.xlane.f32.xlu0 %v2206
        %v2208 = vpop.xlane.xlu0 %2207
        %v2209 = vsel %vm888, %v2204, -inf
        %2210 = vmax.xlane.f32.xlu0 %v2209
        %v2211 = vpop.xlane.xlu0 %2210
        %v2212 = vsub.f32 %v2202, %v2208
        %v2213 = vsub.f32 %v2204, %v2211
        %v2214 = vmul.f32 %v2212, 1.442695
        %v2215 = vpow.pop %v2214
        %v2216 = vmul.f32 %v2213, 1.442695
        %v2217 = vpow.pop %v2216
        %v2218 = vsel %vm888, %v2215, 0.0
        %2219 = vadd.xlane.f32.xlu0 %v2218
        %v2220 = vpop.xlane.xlu0 %2219
        %v2221 = vsel %vm888, %v2217, 0.0
        %2222 = vadd.xlane.f32.xlu0 %v2221
        %v2223 = vpop.xlane.xlu0 %2222
        %v2224 = vrcp.pop %v2220
        %v2225 = vrcp.pop %v2223
        %v2226 = vmul.f32 %v2215, %v2224
        %v2227 = vmul.f32 %v2217, %v2225
        %v2228 = vpack.c.bf16 %v2226, %v2226
        %v2229 = vpack.c.bf16 %v2227, %v2227
        %v2232 = vunpack.c.l.b16 %v2228
        %v2233 = vunpack.c.l.b16 %v2229
        %v2234 = vpack.c.b16 %v2233, %v2232
        %2235 = vrot.lane.b32.xlu0 %v1996, 32
        %v2236 = vpop.permute.xlu0 %2235
        %v2239 = vsel %vm888, %v2234, 0
        %2241 = vmatpush.bf16.msra.mxu0 0
        %2242 = vmatpush.bf16.msra.mxu0 0
        %2243 = vmatpush.bf16.msra.mxu0 0
        %2244 = vmatpush.bf16.msra.mxu0 0
        %2245 = vmatpush.bf16.msra.mxu0 0
        %2246 = vmatpush.bf16.msra.mxu0 0
        %2247 = vmatpush.bf16.msra.mxu0 0
        %2248 = vmatpush.bf16.msra.mxu0 %v2236
        %2249 = vmatmul.bf16.gmra.mxu0 %v2239
        %v2250 = vpop.f32.mrf.mxu0
        %v2251 = vadd.f32 0.0, %v2250
        %v2252 = vpop.f32.mrf.mxu0
        %v2253 = vadd.f32 0.0, %v2252
        %2254 = vdwg.mxu0
        %2257 = vrot.lane.b32.xlu0 %v2091, 32
        %v2258 = vpop.permute.xlu0 %2257
        %2259 = vrot.lane.b32.xlu0 %v2093, 32
        %v2260 = vpop.permute.xlu0 %2259
        %2265 = vrot.lane.b32.xlu0 %v2171, 64
        %v2266 = vpop.permute.xlu0 %2265
        %2267 = vrot.lane.b32.xlu0 %v2173, 64
        %v2268 = vpop.permute.xlu0 %2267
        %2273 = vrot.lane.b32.xlu0 %v2251, 96
        %v2274 = vpop.permute.xlu0 %2273
        %2275 = vrot.lane.b32.xlu0 %v2253, 96
        %v2276 = vpop.permute.xlu0 %2275
        %v2279 = vsel %vm867, %v2011, %v2258
        %v2280 = vsel %vm867, %v2013, %v2260
        %v2281 = vsel %vm1207, %v2279, %v2266
        %v2282 = vsel %vm1207, %v2280, %v2268
        %v2283 = vsel %vm1210, %v2281, %v2274
        %v2284 = vsel %vm1210, %v2282, %v2276
        %v2285 = vpack.c.bf16 %v2284, %v2283
        %v2286 = vld [vmem:[#allocation11] sm:$0xf]
        %v2287 = vld [vmem:[#allocation11 + $0x4] sm:$0xf]
        %v2288 = vld [vmem:[#allocation11 + $0x8] sm:$0xf]
        %v2289 = vld [vmem:[#allocation11 + $0xc] sm:$0xf]
        %v2290 = vld [vmem:[#allocation11 + $0x10] sm:$0xf]
        %v2291 = vld [vmem:[#allocation11 + $0x14] sm:$0xf]
        %v2292 = vld [vmem:[#allocation11 + $0x18] sm:$0xf]
        %v2293 = vld [vmem:[#allocation11 + $0x1c] sm:$0xf]
        %v2294 = vld [vmem:[#allocation11 + $0x20] sm:$0xf]
        %v2295 = vld [vmem:[#allocation11 + $0x24] sm:$0xf]
        %v2296 = vld [vmem:[#allocation11 + $0x28] sm:$0xf]
        %v2297 = vld [vmem:[#allocation11 + $0x2c] sm:$0xf]
        %v2298 = vld [vmem:[#allocation11 + $0x30] sm:$0xf]
        %v2299 = vld [vmem:[#allocation11 + $0x34] sm:$0xf]
        %v2300 = vld [vmem:[#allocation11 + $0x38] sm:$0xf]
        %v2301 = vld [vmem:[#allocation11 + $0x3c] sm:$0xf]
        %v2318 = vunpack.c.l.b16 %v2286
        %v2319 = vunpack.c.l.b16 %v2287
        %v2320 = vunpack.c.l.b16 %v2288
        %v2321 = vunpack.c.l.b16 %v2289
        %v2322 = vunpack.c.l.b16 %v2290
        %v2323 = vunpack.c.l.b16 %v2291
        %v2324 = vunpack.c.l.b16 %v2292
        %v2325 = vunpack.c.l.b16 %v2293
        %v2326 = vunpack.c.l.b16 %v2294
        %v2327 = vunpack.c.l.b16 %v2295
        %v2328 = vunpack.c.l.b16 %v2296
        %v2329 = vunpack.c.l.b16 %v2297
        %v2330 = vunpack.c.l.b16 %v2298
        %v2331 = vunpack.c.l.b16 %v2299
        %v2332 = vunpack.c.l.b16 %v2300
        %v2333 = vunpack.c.l.b16 %v2301
        %v2334 = vpack.c.b16 %v2319, %v2318
        %v2335 = vpack.c.b16 %v2321, %v2320
        %v2336 = vpack.c.b16 %v2323, %v2322
        %v2337 = vpack.c.b16 %v2325, %v2324
        %v2338 = vpack.c.b16 %v2327, %v2326
        %v2339 = vpack.c.b16 %v2329, %v2328
        %v2340 = vpack.c.b16 %v2331, %v2330
        %v2341 = vpack.c.b16 %v2333, %v2332
        %2350 = vmatpush.bf16.msra.mxu0 %v2341
        %2351 = vmatpush.bf16.msra.mxu0 %v2340
        %2352 = vmatpush.bf16.msra.mxu0 %v2339
        %2353 = vmatpush.bf16.msra.mxu0 %v2338
        %2354 = vmatpush.bf16.msra.mxu0 %v2337
        %2355 = vmatpush.bf16.msra.mxu0 %v2336
        %2356 = vmatpush.bf16.msra.mxu0 %v2335
        %2357 = vmatpush.bf16.msra.mxu0 %v2334
        %2358 = vmatmul.bf16.gmra.mxu0 %v2285
        %v2359 = vpop.f32.mrf.mxu0
        %v2360 = vadd.f32 0.0, %v2359
        %v2361 = vpop.f32.mrf.mxu0
        %v2362 = vadd.f32 0.0, %v2361
        %2363 = vdwg.mxu0
        %v2364 = vadd.f32 %v1680, %v2360
        %v2365 = vadd.f32 %v1681, %v2362
        %v2366 = vadd.f32 %v2364, %v1295
        %v2367 = vadd.f32 %v2365, %v1295
        %2368 = vadd.xlane.f32.xlu0 %v2366
        %v2369 = vpop.xlane.xlu0 %2368
        %2370 = vadd.xlane.f32.xlu0 %v2367
        %v2371 = vpop.xlane.xlu0 %2370
        %v2372 = vmul.f32 %v2369, %v596
        %v2373 = vmul.f32 %v2371, %v596
        %v2374 = vsub.f32 %v2366, %v2372
        %v2375 = vsub.f32 %v2367, %v2373
        %v2376 = vmul.f32 %v2374, %v2374
        %v2377 = vmul.f32 %v2375, %v2375
        %2378 = vadd.xlane.f32.xlu0 %v2376
        %v2379 = vpop.xlane.xlu0 %2378
        %2380 = vadd.xlane.f32.xlu0 %v2377
        %v2381 = vpop.xlane.xlu0 %2380
        %v2382 = vmul.f32 %v2379, %v596
        %v2383 = vmul.f32 %v2381, %v596
        %v2384 = vadd.f32 %v2382, 1e-05
        %v2385 = vadd.f32 %v2383, 1e-05
        %v2386 = vrsqrt.pop %v2384
        %v2387 = vmul.f32 %v2386, %v2384
        %v2388 = vmul.f32 %v2387, %v2386
        %v2389 = vmul.f32 0.5, %v2388
        %v2390 = vsub.f32 1.5, %v2389
        %v2391 = vmul.f32 %v2386, %v2390
        %vm2392 = vweird.f32 %v2384
        %vm2393 = vweird.f32 %v2386
        %vm2394 = vmor %vm2392, %vm2393
        %v2395 = vsel %vm2394, %v2386, %v2391
        %v2396 = vrsqrt.pop %v2385
        %v2397 = vmul.f32 %v2396, %v2385
        %v2398 = vmul.f32 %v2397, %v2396
        %v2399 = vmul.f32 0.5, %v2398
        %v2400 = vsub.f32 1.5, %v2399
        %v2401 = vmul.f32 %v2396, %v2400
        %vm2402 = vweird.f32 %v2385
        %vm2403 = vweird.f32 %v2396
        %vm2404 = vmor %vm2402, %vm2403
        %v2405 = vsel %vm2404, %v2396, %v2401
        %v2406 = vmul.f32 %v2374, %v2395
        %v2407 = vmul.f32 %v2375, %v2405
        %v2408 = vmul.f32 %v2406, %v1340
        %v2409 = vmul.f32 %v2407, %v1340
        %v2410 = vadd.f32 %v2408, %v1345
        %v2411 = vadd.f32 %v2409, %v1345
        %v2412 = vpack.c.bf16 %v2411, %v2410
        %v2413 = vld [vmem:[#allocation14] sm:$0xff]
        %v2414 = vld [vmem:[#allocation14 + $0x8] sm:$0xff]
        %v2415 = vld [vmem:[#allocation14 + $0x10] sm:$0xff]
        %v2416 = vld [vmem:[#allocation14 + $0x18] sm:$0xff]
        %v2417 = vld [vmem:[#allocation14 + $0x20] sm:$0xff]
        %v2418 = vld [vmem:[#allocation14 + $0x28] sm:$0xff]
        %v2419 = vld [vmem:[#allocation14 + $0x30] sm:$0xff]
        %v2420 = vld [vmem:[#allocation14 + $0x38] sm:$0xff]
        %v2421 = vld [vmem:[#allocation14 + $0x40] sm:$0xff]
        %v2422 = vld [vmem:[#allocation14 + $0x48] sm:$0xff]
        %v2423 = vld [vmem:[#allocation14 + $0x50] sm:$0xff]
        %v2424 = vld [vmem:[#allocation14 + $0x58] sm:$0xff]
        %v2425 = vld [vmem:[#allocation14 + $0x60] sm:$0xff]
        %v2426 = vld [vmem:[#allocation14 + $0x68] sm:$0xff]
        %v2427 = vld [vmem:[#allocation14 + $0x70] sm:$0xff]
        %v2428 = vld [vmem:[#allocation14 + $0x78] sm:$0xff]
        %v2445 = vunpack.c.l.b16 %v2413
        %v2446 = vunpack.c.h.b16 %v2413
        %v2447 = vunpack.c.l.b16 %v2414
        %v2448 = vunpack.c.h.b16 %v2414
        %v2449 = vunpack.c.l.b16 %v2415
        %v2450 = vunpack.c.h.b16 %v2415
        %v2451 = vunpack.c.l.b16 %v2416
        %v2452 = vunpack.c.h.b16 %v2416
        %v2453 = vunpack.c.l.b16 %v2417
        %v2454 = vunpack.c.h.b16 %v2417
        %v2455 = vunpack.c.l.b16 %v2418
        %v2456 = vunpack.c.h.b16 %v2418
        %v2457 = vunpack.c.l.b16 %v2419
        %v2458 = vunpack.c.h.b16 %v2419
        %v2459 = vunpack.c.l.b16 %v2420
        %v2460 = vunpack.c.h.b16 %v2420
        %v2461 = vunpack.c.l.b16 %v2421
        %v2462 = vunpack.c.h.b16 %v2421
        %v2463 = vunpack.c.l.b16 %v2422
        %v2464 = vunpack.c.h.b16 %v2422
        %v2465 = vunpack.c.l.b16 %v2423
        %v2466 = vunpack.c.h.b16 %v2423
        %v2467 = vunpack.c.l.b16 %v2424
        %v2468 = vunpack.c.h.b16 %v2424
        %v2469 = vunpack.c.l.b16 %v2425
        %v2470 = vunpack.c.h.b16 %v2425
        %v2471 = vunpack.c.l.b16 %v2426
        %v2472 = vunpack.c.h.b16 %v2426
        %v2473 = vunpack.c.l.b16 %v2427
        %v2474 = vunpack.c.h.b16 %v2427
        %v2475 = vunpack.c.l.b16 %v2428
        %v2476 = vunpack.c.h.b16 %v2428
        %v2477 = vpack.c.b16 %v2447, %v2445
        %v2478 = vpack.c.b16 %v2448, %v2446
        %v2479 = vpack.c.b16 %v2451, %v2449
        %v2480 = vpack.c.b16 %v2452, %v2450
        %v2481 = vpack.c.b16 %v2455, %v2453
        %v2482 = vpack.c.b16 %v2456, %v2454
        %v2483 = vpack.c.b16 %v2459, %v2457
        %v2484 = vpack.c.b16 %v2460, %v2458
        %v2485 = vpack.c.b16 %v2463, %v2461
        %v2486 = vpack.c.b16 %v2464, %v2462
        %v2487 = vpack.c.b16 %v2467, %v2465
        %v2488 = vpack.c.b16 %v2468, %v2466
        %v2489 = vpack.c.b16 %v2471, %v2469
        %v2490 = vpack.c.b16 %v2472, %v2470
        %v2491 = vpack.c.b16 %v2475, %v2473
        %v2492 = vpack.c.b16 %v2476, %v2474
        %2509 = vmatpush.bf16.msra.mxu0 %v2491
        %2510 = vmatpush.bf16.msra.mxu0 %v2489
        %2511 = vmatpush.bf16.msra.mxu0 %v2487
        %2512 = vmatpush.bf16.msra.mxu0 %v2485
        %2513 = vmatpush.bf16.msra.mxu0 %v2483
        %2514 = vmatpush.bf16.msra.mxu0 %v2481
        %2515 = vmatpush.bf16.msra.mxu0 %v2479
        %2516 = vmatpush.bf16.msra.mxu0 %v2477
        %2517 = vmatmul.bf16.gmra.mxu0 %v2412
        %v2518 = vpop.f32.mrf.mxu0
        %v2519 = vadd.f32 %v1367, %v2518
        %v2520 = vpop.f32.mrf.mxu0
        %v2521 = vadd.f32 %v1367, %v2520
        %2522 = vdwg.mxu0
        %2523 = vmatpush.bf16.msra.mxu0 %v2492
        %2524 = vmatpush.bf16.msra.mxu0 %v2490
        %2525 = vmatpush.bf16.msra.mxu0 %v2488
        %2526 = vmatpush.bf16.msra.mxu0 %v2486
        %2527 = vmatpush.bf16.msra.mxu0 %v2484
        %2528 = vmatpush.bf16.msra.mxu0 %v2482
        %2529 = vmatpush.bf16.msra.mxu0 %v2480
        %2530 = vmatpush.bf16.msra.mxu0 %v2478
        %2531 = vmatmul.bf16.gmra.mxu0 %v2412
        %v2532 = vpop.f32.mrf.mxu0
        %v2533 = vadd.f32 %v1368, %v2532
        %v2534 = vpop.f32.mrf.mxu0
        %v2535 = vadd.f32 %v1368, %v2534
        %2536 = vdwg.mxu0
        %v2537 = vmul.f32 %v2519, %v2519
        %v2538 = vmul.f32 %v2533, %v2533
        %v2539 = vmul.f32 %v2521, %v2521
        %v2540 = vmul.f32 %v2535, %v2535
        %v2541 = vmul.f32 %v2519, %v2537
        %v2542 = vmul.f32 %v2533, %v2538
        %v2543 = vmul.f32 %v2521, %v2539
        %v2544 = vmul.f32 %v2535, %v2540
        %v2545 = vmul.f32 %v2541, 0.044715
        %v2546 = vmul.f32 %v2542, 0.044715
        %v2547 = vmul.f32 %v2543, 0.044715
        %v2548 = vmul.f32 %v2544, 0.044715
        %v2549 = vadd.f32 %v2519, %v2545
        %v2550 = vadd.f32 %v2533, %v2546
        %v2551 = vadd.f32 %v2521, %v2547
        %v2552 = vadd.f32 %v2535, %v2548
        %v2553 = vmul.f32 %v2549, 0.7978846
        %v2554 = vmul.f32 %v2550, 0.7978846
        %v2555 = vmul.f32 %v2551, 0.7978846
        %v2556 = vmul.f32 %v2552, 0.7978846
        %v2557 = vtanh.pop %v2553
        %v2558 = vtanh.pop %v2554
        %v2559 = vtanh.pop %v2555
        %v2560 = vtanh.pop %v2556
        %v2561 = vadd.f32 %v2557, 1.0
        %v2562 = vadd.f32 %v2558, 1.0
        %v2563 = vadd.f32 %v2559, 1.0
        %v2564 = vadd.f32 %v2560, 1.0
        %v2565 = vmul.f32 %v2561, 0.5
        %v2566 = vmul.f32 %v2562, 0.5
        %v2567 = vmul.f32 %v2563, 0.5
        %v2568 = vmul.f32 %v2564, 0.5
        %v2569 = vmul.f32 %v2519, %v2565
        %v2570 = vmul.f32 %v2533, %v2566
        %v2571 = vmul.f32 %v2521, %v2567
        %v2572 = vmul.f32 %v2535, %v2568
        %v2573 = vpack.c.bf16 %v2571, %v2569
        %v2574 = vpack.c.bf16 %v2572, %v2570
        %v2575 = vld [vmem:[#allocation15] sm:$0xf]
        %v2576 = vld [vmem:[#allocation15 + $0x4] sm:$0xf]
        %v2577 = vld [vmem:[#allocation15 + $0x8] sm:$0xf]
        %v2578 = vld [vmem:[#allocation15 + $0xc] sm:$0xf]
        %v2579 = vld [vmem:[#allocation15 + $0x10] sm:$0xf]
        %v2580 = vld [vmem:[#allocation15 + $0x14] sm:$0xf]
        %v2581 = vld [vmem:[#allocation15 + $0x18] sm:$0xf]
        %v2582 = vld [vmem:[#allocation15 + $0x1c] sm:$0xf]
        %v2583 = vld [vmem:[#allocation15 + $0x20] sm:$0xf]
        %v2584 = vld [vmem:[#allocation15 + $0x24] sm:$0xf]
        %v2585 = vld [vmem:[#allocation15 + $0x28] sm:$0xf]
        %v2586 = vld [vmem:[#allocation15 + $0x2c] sm:$0xf]
        %v2587 = vld [vmem:[#allocation15 + $0x30] sm:$0xf]
        %v2588 = vld [vmem:[#allocation15 + $0x34] sm:$0xf]
        %v2589 = vld [vmem:[#allocation15 + $0x38] sm:$0xf]
        %v2590 = vld [vmem:[#allocation15 + $0x3c] sm:$0xf]
        %v2591 = vld [vmem:[#allocation15 + $0x40] sm:$0xf]
        %v2592 = vld [vmem:[#allocation15 + $0x44] sm:$0xf]
        %v2593 = vld [vmem:[#allocation15 + $0x48] sm:$0xf]
        %v2594 = vld [vmem:[#allocation15 + $0x4c] sm:$0xf]
        %v2595 = vld [vmem:[#allocation15 + $0x50] sm:$0xf]
        %v2596 = vld [vmem:[#allocation15 + $0x54] sm:$0xf]
        %v2597 = vld [vmem:[#allocation15 + $0x58] sm:$0xf]
        %v2598 = vld [vmem:[#allocation15 + $0x5c] sm:$0xf]
        %v2599 = vld [vmem:[#allocation15 + $0x60] sm:$0xf]
        %v2600 = vld [vmem:[#allocation15 + $0x64] sm:$0xf]
        %v2601 = vld [vmem:[#allocation15 + $0x68] sm:$0xf]
        %v2602 = vld [vmem:[#allocation15 + $0x6c] sm:$0xf]
        %v2603 = vld [vmem:[#allocation15 + $0x70] sm:$0xf]
        %v2604 = vld [vmem:[#allocation15 + $0x74] sm:$0xf]
        %v2605 = vld [vmem:[#allocation15 + $0x78] sm:$0xf]
        %v2606 = vld [vmem:[#allocation15 + $0x7c] sm:$0xf]
        %v2639 = vunpack.c.l.b16 %v2575
        %v2640 = vunpack.c.l.b16 %v2576
        %v2641 = vunpack.c.l.b16 %v2577
        %v2642 = vunpack.c.l.b16 %v2578
        %v2643 = vunpack.c.l.b16 %v2579
        %v2644 = vunpack.c.l.b16 %v2580
        %v2645 = vunpack.c.l.b16 %v2581
        %v2646 = vunpack.c.l.b16 %v2582
        %v2647 = vunpack.c.l.b16 %v2583
        %v2648 = vunpack.c.l.b16 %v2584
        %v2649 = vunpack.c.l.b16 %v2585
        %v2650 = vunpack.c.l.b16 %v2586
        %v2651 = vunpack.c.l.b16 %v2587
        %v2652 = vunpack.c.l.b16 %v2588
        %v2653 = vunpack.c.l.b16 %v2589
        %v2654 = vunpack.c.l.b16 %v2590
        %v2655 = vunpack.c.l.b16 %v2591
        %v2656 = vunpack.c.l.b16 %v2592
        %v2657 = vunpack.c.l.b16 %v2593
        %v2658 = vunpack.c.l.b16 %v2594
        %v2659 = vunpack.c.l.b16 %v2595
        %v2660 = vunpack.c.l.b16 %v2596
        %v2661 = vunpack.c.l.b16 %v2597
        %v2662 = vunpack.c.l.b16 %v2598
        %v2663 = vunpack.c.l.b16 %v2599
        %v2664 = vunpack.c.l.b16 %v2600
        %v2665 = vunpack.c.l.b16 %v2601
        %v2666 = vunpack.c.l.b16 %v2602
        %v2667 = vunpack.c.l.b16 %v2603
        %v2668 = vunpack.c.l.b16 %v2604
        %v2669 = vunpack.c.l.b16 %v2605
        %v2670 = vunpack.c.l.b16 %v2606
        %v2671 = vpack.c.b16 %v2640, %v2639
        %v2672 = vpack.c.b16 %v2642, %v2641
        %v2673 = vpack.c.b16 %v2644, %v2643
        %v2674 = vpack.c.b16 %v2646, %v2645
        %v2675 = vpack.c.b16 %v2648, %v2647
        %v2676 = vpack.c.b16 %v2650, %v2649
        %v2677 = vpack.c.b16 %v2652, %v2651
        %v2678 = vpack.c.b16 %v2654, %v2653
        %v2679 = vpack.c.b16 %v2656, %v2655
        %v2680 = vpack.c.b16 %v2658, %v2657
        %v2681 = vpack.c.b16 %v2660, %v2659
        %v2682 = vpack.c.b16 %v2662, %v2661
        %v2683 = vpack.c.b16 %v2664, %v2663
        %v2684 = vpack.c.b16 %v2666, %v2665
        %v2685 = vpack.c.b16 %v2668, %v2667
        %v2686 = vpack.c.b16 %v2670, %v2669
        %2703 = vmatpush.bf16.msra.mxu0 %v2678
        %2704 = vmatpush.bf16.msra.mxu0 %v2677
        %2705 = vmatpush.bf16.msra.mxu0 %v2676
        %2706 = vmatpush.bf16.msra.mxu0 %v2675
        %2707 = vmatpush.bf16.msra.mxu0 %v2674
        %2708 = vmatpush.bf16.msra.mxu0 %v2673
        %2709 = vmatpush.bf16.msra.mxu0 %v2672
        %2710 = vmatpush.bf16.msra.mxu0 %v2671
        %2711 = vmatmul.bf16.gmra.mxu0 %v2573
        %v2712 = vpop.f32.mrf.mxu0
        %v2713 = vadd.f32 %v1550, %v2712
        %v2714 = vpop.f32.mrf.mxu0
        %v2715 = vadd.f32 %v1550, %v2714
        %2716 = vdwg.mxu0
        %2717 = vmatpush.bf16.msra.mxu0 %v2686
        %2718 = vmatpush.bf16.msra.mxu0 %v2685
        %2719 = vmatpush.bf16.msra.mxu0 %v2684
        %2720 = vmatpush.bf16.msra.mxu0 %v2683
        %2721 = vmatpush.bf16.msra.mxu0 %v2682
        %2722 = vmatpush.bf16.msra.mxu0 %v2681
        %2723 = vmatpush.bf16.msra.mxu0 %v2680
        %2724 = vmatpush.bf16.msra.mxu0 %v2679
        %2725 = vmatmul.bf16.gmra.mxu0 %v2574
        %v2726 = vpop.f32.mrf.mxu0
        %v2727 = vadd.f32 %v2713, %v2726
        %v2728 = vpop.f32.mrf.mxu0
        %v2729 = vadd.f32 %v2715, %v2728
        %2730 = vdwg.mxu0
        %v2731 = vadd.f32 %v2366, %v2727
        %v2732 = vadd.f32 %v2367, %v2729
        %2733 = vst [vmem:[#allocation2] sm:$0xff] %v2731
        %2734 = vst [vmem:[#allocation2 + $0x8] sm:$0xff] %v2732
        %v2735 = vld [vmem:[#allocation2] sm:$0xff]
        %v2736 = vld [vmem:[#allocation2 + $0x8] sm:$0xff]
        %2737 = vst [vmem:[%s570] sm:$0xff] %v2735
        %2738 = vst [vmem:[%s570 + $0x8] sm:$0xff] %v2736
        %s2739 = sand.u32 %s320, 1
        %s2740 = scalar_lea.sflag [#allocation5], %s2739
        %s2741 = sand.u32 %s320, 1
        %s2742 = smul.addr %s2741, 16
        %s2743 = scalar_lea.vmem [#allocation17], %s2742
        // Predicated region
        $region105: #{tpu_custom_call.1} parent=71 // pred_check
          %p2744 = pneg %p330
        $region106: #{tpu_custom_call.1} parent=71 // pred_check_branch
          %2746 = sbr.rel (%p2744) target = $region108
        $region107: #{tpu_custom_call.1} parent=71 // pred_region
          %2748 = vsyncadd %s2740, 0
          %s2749 = smul.addr %s34, 2
          %s2750 = smul.addr %s2749, 8
          %s2751 = scalar_lea.hbm %s13, %s2750
          %s2752 = sshll.u32 %s2743, 4
          %s2753 = int_to_ptr.vmem [resolvable:$true] %s2752
          %s2754 = sshll.u32 %s2751, 4
          %s2755 = int_to_ptr.hbm [resolvable:$true] %s2754
          %2760 = dma.vmem_to_hbm [thread:$0]  %s2753, 256, %s2755, %s2740, 128, 128, 8
        $region108: #{tpu_custom_call.1} parent=71 // pred_fallthru
          _
      $region72: #{tpu_custom_call.1} parent=5 // pred_fallthru
        _
      %p2761 = scmp.le.s32.totalorder 2, %s29
      // Predicated region
      $region109: #{tpu_custom_call.1} parent=5 // pred_check
        %p2762 = pneg %p2761
      $region110: #{tpu_custom_call.1} parent=5 // pred_check_branch
        %2764 = sbr.rel (%p2762) target = $region112
      $region111: #{tpu_custom_call.1} parent=5 // pred_region
        %s2765 = ssub.s32 %s29, 2
        // Predicated region
        $region113: #{tpu_custom_call.1} parent=111 // pred_check
          %p2766 = pneg %p336
        $region114: #{tpu_custom_call.1} parent=111 // pred_check_branch
          %2768 = sbr.rel (%p2766) target = $region116
        $region115: #{tpu_custom_call.1} parent=111 // pred_region
          %s2769 = sand.u32 %s321, 1
          %s2770 = scalar_lea.sflag [#allocation5], %s2769
          %s2771 = sand.u32 %s321, 1
          %s2772 = smul.addr %s2771, 16
          %s2773 = scalar_lea.vmem [#allocation17], %s2772
          %2775 = dma.done %s2770, 256
        $region116: #{tpu_custom_call.1} parent=111 // pred_fallthru
          _
      $region112: #{tpu_custom_call.1} parent=5 // pred_fallthru
        _
    $region6: #{tpu_custom_call.1} parent=1 // loop_footer
      %s33 = sadd.s32 1, %s29
    $region7: #{tpu_custom_call.1} parent=1 // loop_footer_branch
      %28 = sbr.rel target = $region3
    $region8: #{tpu_custom_call.1} parent=1 // loop_exit
      _
    %2776 = vsyncpa [#allocation4], 1
    %s2777 = scalar_lea.sflag [#allocation4], 1
    %2778 = vsyncpa %s2777, 1
    %2779 = vsyncpa [#allocation7], 1
    %2780 = vsyncpa [#allocation10], 1
    %2781 = vsyncpa [#allocation13], 1
    %2782 = vsyncpa [#allocation16], 1
    %2783 = vsyncpa [#allocation5], 1
    %s2784 = scalar_lea.sflag [#allocation5], 1
    %2785 = vsyncpa %s2784, 1

// kernel: tpu_custom_call.1
$region0: #{tpu_custom_call.1}
  #allocation0 [shape = 'u32[]', space=smem, size = 0x4, offset = 0x4, fixed_abs, tag = 'smem constant byte address 0x4 - core index']
  #allocation1 [shape = 'u32[72,128]{1,0:T(1,128)}', space=vmem, size = 0x9000, scoped, tag = 'internal scratch']
  #allocation2 [shape = 'f32[16,128]{1,0:T(8,128)}', space=vmem, size = 0x2000, scoped, tag = 'scratch operand']
  %s0 = inlined_call_operand.hbm [shape: f32[2,16,128], index: 0, kind: input, shape index: {}]
  %s1 = inlined_call_operand.hbm [shape: f32[1,128], index: 1, kind: input, shape index: {}]
  %s2 = inlined_call_operand.hbm [shape: f32[1,128], index: 2, kind: input, shape index: {}]
  %s3 = inlined_call_operand.hbm [shape: bf16[128,384], index: 3, kind: input, shape index: {}]
  %s4 = inlined_call_operand.vmem [shape: f32[1,384], index: 4, kind: input, shape index: {}]
  %s5 = inlined_call_operand.hbm [shape: bf16[128,128], index: 5, kind: input, shape index: {}]
  %s6 = inlined_call_operand.hbm [shape: f32[1,128], index: 6, kind: input, shape index: {}]
  %s7 = inlined_call_operand.vmem [shape: f32[1,128], index: 7, kind: input, shape index: {}]
  %s8 = inlined_call_operand.vmem [shape: f32[1,128], index: 8, kind: input, shape index: {}]
  %s9 = inlined_call_operand.hbm [shape: bf16[128,256], index: 9, kind: input, shape index: {}]
  %s10 = inlined_call_operand.vmem [shape: f32[1,256], index: 10, kind: input, shape index: {}]
  %s11 = inlined_call_operand.hbm [shape: bf16[256,128], index: 11, kind: input, shape index: {}]
  %s12 = inlined_call_operand.vmem [shape: f32[1,128], index: 12, kind: input, shape index: {}]
  %s13 = inlined_call_operand.hbm [shape: f32[2,16,128], index: 13, kind: output, shape index: {}]
  %s14 = sld [smem:[#allocation0]]
  $region117: #{tpu_custom_call.1} parent=0
    _
  %s16 = ssub.s32 1, %s14
  %s17 = scalar_select 0, %s16, %s14
  $region1: #{tpu_custom_call.1} parent=0
    #allocation3 [shape = 'u8[16384]{0}', space=vmem, size = 0x4000, scoped, tag = 'input window, operand 0']
    #allocation4 [shape = 's32[2]{0}', space=sflag, size = 0x8, scoped, tag = 'scoped memory for tpu_custom_call.1']
    #allocation5 [shape = 's32[2]{0}', space=sflag, size = 0x8, scoped, tag = 'scoped memory for tpu_custom_call.1']
    #allocation6 [shape = 'u8[512]{0}', space=vmem, size = 0x400, scoped, tag = 'input window, operand 1, single buffered']
    #allocation7 [shape = 's32[1]{0}', space=sflag, size = 0x4, scoped, tag = 'scoped memory for tpu_custom_call.1']
    #allocation8 [shape = 'u8[512]{0}', space=vmem, size = 0x400, scoped, tag = 'input window, operand 2, single buffered']
    #allocation9 [shape = 'u8[98304]{0}', space=vmem, size = 0x18000, scoped, tag = 'input window, operand 3, single buffered']
    #allocation10 [shape = 's32[1]{0}', space=sflag, size = 0x4, scoped, tag = 'scoped memory for tpu_custom_call.1']
    #allocation11 [shape = 'u8[32768]{0}', space=vmem, size = 0x8000, scoped, tag = 'input window, operand 5, single buffered']
    #allocation12 [shape = 'u8[512]{0}', space=vmem, size = 0x400, scoped, tag = 'input window, operand 6, single buffered']
    #allocation13 [shape = 's32[1]{0}', space=sflag, size = 0x4, scoped, tag = 'scoped memory for tpu_custom_call.1']
    #allocation14 [shape = 'u8[65536]{0}', space=vmem, size = 0x10000, scoped, tag = 'input window, operand 9, single buffered']
    #allocation15 [shape = 'u8[65536]{0}', space=vmem, size = 0x10000, scoped, tag = 'input window, operand 11, single buffered']
    #allocation16 [shape = 's32[1]{0}', space=sflag, size = 0x4, scoped, tag = 'scoped memory for tpu_custom_call.1']
    #allocation17 [shape = 'u8[16384]{0}', space=vmem, size = 0x4000, scoped, tag = 'output window, operand 0']
    %18 = vsyncpa [#allocation4], 0
    %s19 = scalar_lea.sflag [#allocation4], 1
    %20 = vsyncpa %s19, 0
    %21 = vsyncpa [#allocation7], 0
    %22 = vsyncpa [#allocation10], 0
    %23 = vsyncpa [#allocation13], 0
    %24 = vsyncpa [#allocation16], 0
    %25 = vsyncpa [#allocation5], 0
    %s26 = scalar_lea.sflag [#allocation5], 1
    %27 = vsyncpa %s26, 0
    loop: start=0, step=1, limit=4
    $region2: #{tpu_custom_call.1} parent=1 // loop_pre_header
      _
    $region3: #{tpu_custom_call.1} parent=1 // loop_header
      %s29 = sphi 0, %s33
      %p30 = scmp.ge.s32.totalorder %s29, 4
      %s39 = sphi 0, %s41
      %s42 = sphi 0, %s39
      %s43 = sphi 0, %s42
      %s59 = sphi 0, %s43
      %s63 = sphi 0, %s63
      %s65 = sphi 0, %s63
      %s66 = sphi 0, %s65
      %s80 = sphi 0, %s66
      %s84 = sphi 0, %s84
      %s86 = sphi 0, %s84
      %s87 = sphi 0, %s86
      %s101 = sphi 0, %s87
      %s105 = sphi 0, %s105
      %s107 = sphi 0, %s105
      %s108 = sphi 0, %s107
      %s122 = sphi 0, %s108
      %s126 = sphi 0, %s126
      %s128 = sphi 0, %s126
      %s129 = sphi 0, %s128
      %s143 = sphi 0, %s129
      %s147 = sphi 0, %s147
      %s149 = sphi 0, %s147
      %s150 = sphi 0, %s149
      %s164 = sphi 0, %s150
      %s168 = sphi 0, %s168
      %s170 = sphi 0, %s168
      %s171 = sphi 0, %s170
      %s185 = sphi 0, %s171
      %s189 = sphi 0, %s189
      %s191 = sphi 0, %s189
      %s192 = sphi 0, %s191
      %s206 = sphi 0, %s192
      %s210 = sphi 0, %s210
      %s212 = sphi 0, %s210
      %s213 = sphi 0, %s212
      %s227 = sphi 0, %s213
      %s231 = sphi 0, %s231
      %s233 = sphi 0, %s231
      %s234 = sphi 0, %s233
      %s248 = sphi 0, %s234
      %s252 = sphi 0, %s252
      %s254 = sphi 0, %s252
      %s255 = sphi 0, %s254
      %s269 = sphi 0, %s255
      %s273 = sphi 0, %s273
      %s275 = sphi 0, %s273
      %s276 = sphi 0, %s275
      %s290 = sphi 0, %s276
      %s294 = sphi 0, %s294
      %s296 = sphi 0, %s294
      %s297 = sphi 0, %s296
      %s311 = sphi 0, %s297
      %s317 = sphi 0, %s319
      %s320 = sphi 0, %s317
      %s321 = sphi 0, %s320
      %s337 = sphi 0, %s321
    $region4: #{tpu_custom_call.1} parent=1 // loop_header_branch
      %32 = sbr.rel (%p30) target = $region8
    $region5: #{tpu_custom_call.1} parent=1 // loop_body
      %s34 = ssub.s32 %s29, 1
      %s35 = ssub.s32 %s29, 2
      %s36 = sadd.s32 %s29, 1
      %s37 = ssub.s32 %s29, %s36
      %p38 = scmp.eq.s32.totalorder %s37, 0
      %s40 = sadd.s32 %s39, 1
      %s41 = scalar_select %p38, %s39, %s40
      %p44 = pneg %p38
      %p45 = scmp.eq.s32.totalorder %s29, 1
      %p46 = por %p44, %p45
      %p47 = scmp.ne.s32.totalorder %s39, %s42
      %p48 = scmp.eq.s32.totalorder %s29, 0
      %p49 = por %p47, %p48
      %p50 = scmp.ne.s32.totalorder %s39, %s42
      %p51 = scmp.eq.s32.totalorder %s34, 1
      %p52 = por %p50, %p51
      %p53 = scmp.ne.s32.totalorder %s42, %s43
      %p54 = scmp.eq.s32.totalorder %s34, 0
      %p55 = por %p53, %p54
      %p56 = scmp.ne.s32.totalorder %s42, %s43
      %p57 = scmp.eq.s32.totalorder %s35, 1
      %p58 = por %p56, %p57
      %p60 = scmp.ne.s32.totalorder %s43, %s59
      %p61 = scmp.eq.s32.totalorder %s35, 0
      %p62 = por %p60, %p61
      %s64 = sadd.s32 %s63, 1
      %p67 = scmp.eq.s32.totalorder %s29, 1
      %p68 = scmp.ne.s32.totalorder %s63, %s65
      %p69 = scmp.eq.s32.totalorder %s29, 0
      %p70 = por %p68, %p69
      %p71 = scmp.ne.s32.totalorder %s63, %s65
      %p72 = scmp.eq.s32.totalorder %s34, 1
      %p73 = por %p71, %p72
      %p74 = scmp.ne.s32.totalorder %s65, %s66
      %p75 = scmp.eq.s32.totalorder %s34, 0
      %p76 = por %p74, %p75
      %p77 = scmp.ne.s32.totalorder %s65, %s66
      %p78 = scmp.eq.s32.totalorder %s35, 1
      %p79 = por %p77, %p78
      %p81 = scmp.ne.s32.totalorder %s66, %s80
      %p82 = scmp.eq.s32.totalorder %s35, 0
      %p83 = por %p81, %p82
      %s85 = sadd.s32 %s84, 1
      %p88 = scmp.eq.s32.totalorder %s29, 1
      %p89 = scmp.ne.s32.totalorder %s84, %s86
      %p90 = scmp.eq.s32.totalorder %s29, 0
      %p91 = por %p89, %p90
      %p92 = scmp.ne.s32.totalorder %s84, %s86
      %p93 = scmp.eq.s32.totalorder %s34, 1
      %p94 = por %p92, %p93
      %p95 = scmp.ne.s32.totalorder %s86, %s87
      %p96 = scmp.eq.s32.totalorder %s34, 0
      %p97 = por %p95, %p96
      %p98 = scmp.ne.s32.totalorder %s86, %s87
      %p99 = scmp.eq.s32.totalorder %s35, 1
      %p100 = por %p98, %p99
      %p102 = scmp.ne.s32.totalorder %s87, %s101
      %p103 = scmp.eq.s32.totalorder %s35, 0
      %p104 = por %p102, %p103
      %s106 = sadd.s32 %s105, 1
      %p109 = scmp.eq.s32.totalorder %s29, 1
      %p110 = scmp.ne.s32.totalorder %s105, %s107
      %p111 = scmp.eq.s32.totalorder %s29, 0
      %p112 = por %p110, %p111
      %p113 = scmp.ne.s32.totalorder %s105, %s107
      %p114 = scmp.eq.s32.totalorder %s34, 1
      %p115 = por %p113, %p114
      %p116 = scmp.ne.s32.totalorder %s107, %s108
      %p117 = scmp.eq.s32.totalorder %s34, 0
      %p118 = por %p116, %p117
      %p119 = scmp.ne.s32.totalorder %s107, %s108
      %p120 = scmp.eq.s32.totalorder %s35, 1
      %p121 = por %p119, %p120
      %p123 = scmp.ne.s32.totalorder %s108, %s122
      %p124 = scmp.eq.s32.totalorder %s35, 0
      %p125 = por %p123, %p124
      %s127 = sadd.s32 %s126, 1
      %p130 = scmp.eq.s32.totalorder %s29, 1
      %p131 = scmp.ne.s32.totalorder %s126, %s128
      %p132 = scmp.eq.s32.totalorder %s29, 0
      %p133 = por %p131, %p132
      %p134 = scmp.ne.s32.totalorder %s126, %s128
      %p135 = scmp.eq.s32.totalorder %s34, 1
      %p136 = por %p134, %p135
      %p137 = scmp.ne.s32.totalorder %s128, %s129
      %p138 = scmp.eq.s32.totalorder %s34, 0
      %p139 = por %p137, %p138
      %p140 = scmp.ne.s32.totalorder %s128, %s129
      %p141 = scmp.eq.s32.totalorder %s35, 1
      %p142 = por %p140, %p141
      %p144 = scmp.ne.s32.totalorder %s129, %s143
      %p145 = scmp.eq.s32.totalorder %s35, 0
      %p146 = por %p144, %p145
      %s148 = sadd.s32 %s147, 1
      %p151 = scmp.eq.s32.totalorder %s29, 1
      %p152 = scmp.ne.s32.totalorder %s147, %s149
      %p153 = scmp.eq.s32.totalorder %s29, 0
      %p154 = por %p152, %p153
      %p155 = scmp.ne.s32.totalorder %s147, %s149
      %p156 = scmp.eq.s32.totalorder %s34, 1
      %p157 = por %p155, %p156
      %p158 = scmp.ne.s32.totalorder %s149, %s150
      %p159 = scmp.eq.s32.totalorder %s34, 0
      %p160 = por %p158, %p159
      %p161 = scmp.ne.s32.totalorder %s149, %s150
      %p162 = scmp.eq.s32.totalorder %s35, 1
      %p163 = por %p161, %p162
      %p165 = scmp.ne.s32.totalorder %s150, %s164
      %p166 = scmp.eq.s32.totalorder %s35, 0
      %p167 = por %p165, %p166
      %s169 = sadd.s32 %s168, 1
      %p172 = scmp.eq.s32.totalorder %s29, 1
      %p173 = scmp.ne.s32.totalorder %s168, %s170
      %p174 = scmp.eq.s32.totalorder %s29, 0
      %p175 = por %p173, %p174
      %p176 = scmp.ne.s32.totalorder %s168, %s170
      %p177 = scmp.eq.s32.totalorder %s34, 1
      %p178 = por %p176, %p177
      %p179 = scmp.ne.s32.totalorder %s170, %s171
      %p180 = scmp.eq.s32.totalorder %s34, 0
      %p181 = por %p179, %p180
      %p182 = scmp.ne.s32.totalorder %s170, %s171
      %p183 = scmp.eq.s32.totalorder %s35, 1
      %p184 = por %p182, %p183
      %p186 = scmp.ne.s32.totalorder %s171, %s185
      %p187 = scmp.eq.s32.totalorder %s35, 0
      %p188 = por %p186, %p187
      %s190 = sadd.s32 %s189, 1
      %p193 = scmp.eq.s32.totalorder %s29, 1
      %p194 = scmp.ne.s32.totalorder %s189, %s191
      %p195 = scmp.eq.s32.totalorder %s29, 0
      %p196 = por %p194, %p195
      %p197 = scmp.ne.s32.totalorder %s189, %s191
      %p198 = scmp.eq.s32.totalorder %s34, 1
      %p199 = por %p197, %p198
      %p200 = scmp.ne.s32.totalorder %s191, %s192
      %p201 = scmp.eq.s32.totalorder %s34, 0
      %p202 = por %p200, %p201
      %p203 = scmp.ne.s32.totalorder %s191, %s192
      %p204 = scmp.eq.s32.totalorder %s35, 1
      %p205 = por %p203, %p204
      %p207 = scmp.ne.s32.totalorder %s192, %s206
      %p208 = scmp.eq.s32.totalorder %s35, 0
      %p209 = por %p207, %p208
      %s211 = sadd.s32 %s210, 1
      %p214 = scmp.eq.s32.totalorder %s29, 1
      %p215 = scmp.ne.s32.totalorder %s210, %s212
      %p216 = scmp.eq.s32.totalorder %s29, 0
      %p217 = por %p215, %p216
      %p218 = scmp.ne.s32.totalorder %s210, %s212
      %p219 = scmp.eq.s32.totalorder %s34, 1
      %p220 = por %p218, %p219
      %p221 = scmp.ne.s32.totalorder %s212, %s213
      %p222 = scmp.eq.s32.totalorder %s34, 0
      %p223 = por %p221, %p222
      %p224 = scmp.ne.s32.totalorder %s212, %s213
      %p225 = scmp.eq.s32.totalorder %s35, 1
      %p226 = por %p224, %p225
      %p228 = scmp.ne.s32.totalorder %s213, %s227
      %p229 = scmp.eq.s32.totalorder %s35, 0
      %p230 = por %p228, %p229
      %s232 = sadd.s32 %s231, 1
      %p235 = scmp.eq.s32.totalorder %s29, 1
      %p236 = scmp.ne.s32.totalorder %s231, %s233
      %p237 = scmp.eq.s32.totalorder %s29, 0
      %p238 = por %p236, %p237
      %p239 = scmp.ne.s32.totalorder %s231, %s233
      %p240 = scmp.eq.s32.totalorder %s34, 1
      %p241 = por %p239, %p240
      %p242 = scmp.ne.s32.totalorder %s233, %s234
      %p243 = scmp.eq.s32.totalorder %s34, 0
      %p244 = por %p242, %p243
      %p245 = scmp.ne.s32.totalorder %s233, %s234
      %p246 = scmp.eq.s32.totalorder %s35, 1
      %p247 = por %p245, %p246
      %p249 = scmp.ne.s32.totalorder %s234, %s248
      %p250 = scmp.eq.s32.totalorder %s35, 0
      %p251 = por %p249, %p250
      %s253 = sadd.s32 %s252, 1
      %p256 = scmp.eq.s32.totalorder %s29, 1
      %p257 = scmp.ne.s32.totalorder %s252, %s254
      %p258 = scmp.eq.s32.totalorder %s29, 0
      %p259 = por %p257, %p258
      %p260 = scmp.ne.s32.totalorder %s252, %s254
      %p261 = scmp.eq.s32.totalorder %s34, 1
      %p262 = por %p260, %p261
      %p263 = scmp.ne.s32.totalorder %s254, %s255
      %p264 = scmp.eq.s32.totalorder %s34, 0
      %p265 = por %p263, %p264
      %p266 = scmp.ne.s32.totalorder %s254, %s255
      %p267 = scmp.eq.s32.totalorder %s35, 1
      %p268 = por %p266, %p267
      %p270 = scmp.ne.s32.totalorder %s255, %s269
      %p271 = scmp.eq.s32.totalorder %s35, 0
      %p272 = por %p270, %p271
      %s274 = sadd.s32 %s273, 1
      %p277 = scmp.eq.s32.totalorder %s29, 1
      %p278 = scmp.ne.s32.totalorder %s273, %s275
      %p279 = scmp.eq.s32.totalorder %s29, 0
      %p280 = por %p278, %p279
      %p281 = scmp.ne.s32.totalorder %s273, %s275
      %p282 = scmp.eq.s32.totalorder %s34, 1
      %p283 = por %p281, %p282
      %p284 = scmp.ne.s32.totalorder %s275, %s276
      %p285 = scmp.eq.s32.totalorder %s34, 0
      %p286 = por %p284, %p285
      %p287 = scmp.ne.s32.totalorder %s275, %s276
      %p288 = scmp.eq.s32.totalorder %s35, 1
      %p289 = por %p287, %p288
      %p291 = scmp.ne.s32.totalorder %s276, %s290
      %p292 = scmp.eq.s32.totalorder %s35, 0
      %p293 = por %p291, %p292
      %s295 = sadd.s32 %s294, 1
      %p298 = scmp.eq.s32.totalorder %s29, 1
      %p299 = scmp.ne.s32.totalorder %s294, %s296
      %p300 = scmp.eq.s32.totalorder %s29, 0
      %p301 = por %p299, %p300
      %p302 = scmp.ne.s32.totalorder %s294, %s296
      %p303 = scmp.eq.s32.totalorder %s34, 1
      %p304 = por %p302, %p303
      %p305 = scmp.ne.s32.totalorder %s296, %s297
      %p306 = scmp.eq.s32.totalorder %s34, 0
      %p307 = por %p305, %p306
      %p308 = scmp.ne.s32.totalorder %s296, %s297
      %p309 = scmp.eq.s32.totalorder %s35, 1
      %p310 = por %p308, %p309
      %p312 = scmp.ne.s32.totalorder %s297, %s311
      %p313 = scmp.eq.s32.totalorder %s35, 0
      %p314 = por %p312, %p313
      %s315 = ssub.s32 %s29, %s36
      %p316 = scmp.eq.s32.totalorder %s315, 0
      %s318 = sadd.s32 %s317, 1
      %s319 = scalar_select %p316, %s317, %s318
      %p322 = pneg %p316
      %p323 = scmp.eq.s32.totalorder %s29, 1
      %p324 = por %p322, %p323
      %p325 = scmp.ne.s32.totalorder %s317, %s320
      %p326 = scmp.eq.s32.totalorder %s29, 0
      %p327 = por %p325, %p326
      %p328 = scmp.ne.s32.totalorder %s317, %s320
      %p329 = scmp.eq.s32.totalorder %s34, 1
      %p330 = por %p328, %p329
      %p331 = scmp.ne.s32.totalorder %s320, %s321
      %p332 = scmp.eq.s32.totalorder %s34, 0
      %p333 = por %p331, %p332
      %p334 = scmp.ne.s32.totalorder %s320, %s321
      %p335 = scmp.eq.s32.totalorder %s35, 1
      %p336 = por %p334, %p335
      %p338 = scmp.ne.s32.totalorder %s321, %s337
      %p339 = scmp.eq.s32.totalorder %s35, 0
      %p340 = por %p338, %p339
      %p341 = scmp.le.s32.totalorder 1, %s29
      %p342 = scmp.lt.s32.totalorder %s29, 3
      %p343 = pnand %p341, %p342
      %p344 = pneg %p343
      // Predicated region
      $region9: #{tpu_custom_call.1} parent=5 // pred_check
        _
      $region10: #{tpu_custom_call.1} parent=5 // pred_check_branch
        %346 = sbr.rel (%p343) target = $region12
      $region11: #{tpu_custom_call.1} parent=5 // pred_region
        %s347 = ssub.s32 %s29, 1
        // Predicated region
        $region13: #{tpu_custom_call.1} parent=11 // pred_check
          %p348 = pneg %p76
        $region14: #{tpu_custom_call.1} parent=11 // pred_check_branch
          %350 = sbr.rel (%p348) target = $region16
        $region15: #{tpu_custom_call.1} parent=11 // pred_region
          %352 = vsyncadd [#allocation7], 0
          %s354 = sshll.u32 %s1, 4
          %s355 = int_to_ptr.hbm [resolvable:$true] %s354
          %s356 = sshll.u32 [#allocation6], 4
          %s357 = int_to_ptr.vmem [resolvable:$true] %s356
          %359 = dma.hbm_to_vmem [thread:$0]  %s355, 16, %s357, [#allocation7]
        $region16: #{tpu_custom_call.1} parent=11 // pred_fallthru
          _
        // Predicated region
        $region17: #{tpu_custom_call.1} parent=11 // pred_check
          %p360 = pneg %p97
        $region18: #{tpu_custom_call.1} parent=11 // pred_check_branch
          %362 = sbr.rel (%p360) target = $region20
        $region19: #{tpu_custom_call.1} parent=11 // pred_region
          %364 = vsyncadd [#allocation7], 0
          %s366 = sshll.u32 %s2, 4
          %s367 = int_to_ptr.hbm [resolvable:$true] %s366
          %s368 = sshll.u32 [#allocation8], 4
          %s369 = int_to_ptr.vmem [resolvable:$true] %s368
          %371 = dma.hbm_to_vmem [thread:$0]  %s367, 16, %s369, [#allocation7]
        $region20: #{tpu_custom_call.1} parent=11 // pred_fallthru
          _
        // Predicated region
        $region21: #{tpu_custom_call.1} parent=11 // pred_check
          %p372 = pneg %p118
        $region22: #{tpu_custom_call.1} parent=11 // pred_check_branch
          %374 = sbr.rel (%p372) target = $region24
        $region23: #{tpu_custom_call.1} parent=11 // pred_region
          %376 = vsyncadd [#allocation10], 0
          %s377 = sshll.u32 %s3, 4
          %s378 = int_to_ptr.hbm [resolvable:$true] %s377
          %s379 = sshll.u32 [#allocation9], 4
          %s380 = int_to_ptr.vmem [resolvable:$true] %s379
          %385 = dma.hbm_to_vmem [thread:$0]  %s378, 3072, %s380, [#allocation10], 192, 192, 12
        $region24: #{tpu_custom_call.1} parent=11 // pred_fallthru
          _
        // Predicated region
        $region25: #{tpu_custom_call.1} parent=11 // pred_check
          %p386 = pneg %p139
        $region26: #{tpu_custom_call.1} parent=11 // pred_check_branch
          %388 = sbr.rel (%p386) target = $region28
        $region27: #{tpu_custom_call.1} parent=11 // pred_region
          _
        $region28: #{tpu_custom_call.1} parent=11 // pred_fallthru
          _
        // Predicated region
        $region29: #{tpu_custom_call.1} parent=11 // pred_check
          %p389 = pneg %p160
        $region30: #{tpu_custom_call.1} parent=11 // pred_check_branch
          %391 = sbr.rel (%p389) target = $region32
        $region31: #{tpu_custom_call.1} parent=11 // pred_region
          %393 = vsyncadd [#allocation10], 0
          %s394 = sshll.u32 %s5, 4
          %s395 = int_to_ptr.hbm [resolvable:$true] %s394
          %s396 = sshll.u32 [#allocation11], 4
          %s397 = int_to_ptr.vmem [resolvable:$true] %s396
          %402 = dma.hbm_to_vmem [thread:$0]  %s395, 1024, %s397, [#allocation10], 64, 64, 4
        $region32: #{tpu_custom_call.1} parent=11 // pred_fallthru
          _
        // Predicated region
        $region33: #{tpu_custom_call.1} parent=11 // pred_check
          %p403 = pneg %p181
        $region34: #{tpu_custom_call.1} parent=11 // pred_check_branch
          %405 = sbr.rel (%p403) target = $region36
        $region35: #{tpu_custom_call.1} parent=11 // pred_region
          %407 = vsyncadd [#allocation13], 0
          %s409 = sshll.u32 %s6, 4
          %s410 = int_to_ptr.hbm [resolvable:$true] %s409
          %s411 = sshll.u32 [#allocation12], 4
          %s412 = int_to_ptr.vmem [resolvable:$true] %s411
          %414 = dma.hbm_to_vmem [thread:$0]  %s410, 16, %s412, [#allocation13]
        $region36: #{tpu_custom_call.1} parent=11 // pred_fallthru
          _
        // Predicated region
        $region37: #{tpu_custom_call.1} parent=11 // pred_check
          %p415 = pneg %p202
        $region38: #{tpu_custom_call.1} parent=11 // pred_check_branch
          %417 = sbr.rel (%p415) target = $region40
        $region39: #{tpu_custom_call.1} parent=11 // pred_region
          _
        $region40: #{tpu_custom_call.1} parent=11 // pred_fallthru
          _
        // Predicated region
        $region41: #{tpu_custom_call.1} parent=11 // pred_check
          %p418 = pneg %p223
        $region42: #{tpu_custom_call.1} parent=11 // pred_check_branch
          %420 = sbr.rel (%p418) target = $region44
        $region43: #{tpu_custom_call.1} parent=11 // pred_region
          _
        $region44: #{tpu_custom_call.1} parent=11 // pred_fallthru
          _
        // Predicated region
        $region45: #{tpu_custom_call.1} parent=11 // pred_check
          %p421 = pneg %p244
        $region46: #{tpu_custom_call.1} parent=11 // pred_check_branch
          %423 = sbr.rel (%p421) target = $region48
        $region47: #{tpu_custom_call.1} parent=11 // pred_region
          %425 = vsyncadd [#allocation13], 0
          %s426 = sshll.u32 %s9, 4
          %s427 = int_to_ptr.hbm [resolvable:$true] %s426
          %s428 = sshll.u32 [#allocation14], 4
          %s429 = int_to_ptr.vmem [resolvable:$true] %s428
          %434 = dma.hbm_to_vmem [thread:$0]  %s427, 2048, %s429, [#allocation13], 128, 128, 8
        $region48: #{tpu_custom_call.1} parent=11 // pred_fallthru
          _
        // Predicated region
        $region49: #{tpu_custom_call.1} parent=11 // pred_check
          %p435 = pneg %p265
        $region50: #{tpu_custom_call.1} parent=11 // pred_check_branch
          %437 = sbr.rel (%p435) target = $region52
        $region51: #{tpu_custom_call.1} parent=11 // pred_region
          _
        $region52: #{tpu_custom_call.1} parent=11 // pred_fallthru
          _
        // Predicated region
        $region53: #{tpu_custom_call.1} parent=11 // pred_check
          %p438 = pneg %p286
        $region54: #{tpu_custom_call.1} parent=11 // pred_check_branch
          %440 = sbr.rel (%p438) target = $region56
        $region55: #{tpu_custom_call.1} parent=11 // pred_region
          %442 = vsyncadd [#allocation16], 0
          %s443 = sshll.u32 %s11, 4
          %s444 = int_to_ptr.hbm [resolvable:$true] %s443
          %s445 = sshll.u32 [#allocation15], 4
          %s446 = int_to_ptr.vmem [resolvable:$true] %s445
          %451 = dma.hbm_to_vmem [thread:$0]  %s444, 2048, %s446, [#allocation16], 64, 64, 4
        $region56: #{tpu_custom_call.1} parent=11 // pred_fallthru
          _
        // Predicated region
        $region57: #{tpu_custom_call.1} parent=11 // pred_check
          %p452 = pneg %p307
        $region58: #{tpu_custom_call.1} parent=11 // pred_check_branch
          %454 = sbr.rel (%p452) target = $region60
        $region59: #{tpu_custom_call.1} parent=11 // pred_region
          _
        $region60: #{tpu_custom_call.1} parent=11 // pred_fallthru
          _
      $region12: #{tpu_custom_call.1} parent=5 // pred_fallthru
        _
      %p455 = scmp.lt.s32.totalorder %s29, 2
      // Predicated region
      $region61: #{tpu_custom_call.1} parent=5 // pred_check
        %p456 = pneg %p455
      $region62: #{tpu_custom_call.1} parent=5 // pred_check_branch
        %458 = sbr.rel (%p456) target = $region64
      $region63: #{tpu_custom_call.1} parent=5 // pred_region
        // Predicated region
        $region65: #{tpu_custom_call.1} parent=63 // pred_check
          %p459 = pneg %p49
        $region66: #{tpu_custom_call.1} parent=63 // pred_check_branch
          %461 = sbr.rel (%p459) target = $region68
        $region67: #{tpu_custom_call.1} parent=63 // pred_region
          %s462 = sand.u32 %s39, 1
          %s463 = scalar_lea.sflag [#allocation4], %s462
          %s464 = sand.u32 %s39, 1
          %s465 = smul.addr %s464, 16
          %s466 = scalar_lea.vmem [#allocation3], %s465
          %468 = vsyncadd %s463, 0
          %s469 = smul.addr %s29, 2
          %s470 = smul.addr %s469, 8
          %s471 = scalar_lea.hbm %s0, %s470
          %s472 = sshll.u32 %s471, 4
          %s473 = int_to_ptr.hbm [resolvable:$true] %s472
          %s474 = sshll.u32 %s466, 4
          %s475 = int_to_ptr.vmem [resolvable:$true] %s474
          %480 = dma.hbm_to_vmem [thread:$0]  %s473, 256, %s475, %s463, 128, 128, 8
        $region68: #{tpu_custom_call.1} parent=63 // pred_fallthru
          _
      $region64: #{tpu_custom_call.1} parent=5 // pred_fallthru
        _
      %p481 = scmp.le.s32.totalorder 1, %s29
      %p482 = scmp.lt.s32.totalorder %s29, 3
      %p483 = pnand %p481, %p482
      %p484 = pneg %p483
      // Predicated region
      $region69: #{tpu_custom_call.1} parent=5 // pred_check
        _
      $region70: #{tpu_custom_call.1} parent=5 // pred_check_branch
        %486 = sbr.rel (%p483) target = $region72
      $region71: #{tpu_custom_call.1} parent=5 // pred_region
        %s487 = ssub.s32 %s29, 1
        %s488 = sand.u32 %s42, 1
        %s489 = scalar_lea.sflag [#allocation4], %s488
        %s490 = sand.u32 %s42, 1
        %s491 = smul.addr %s490, 16
        %s492 = scalar_lea.vmem [#allocation3], %s491
        // Predicated region
        $region73: #{tpu_custom_call.1} parent=71 // pred_check
          %p493 = pneg %p55
        $region74: #{tpu_custom_call.1} parent=71 // pred_check_branch
          %495 = sbr.rel (%p493) target = $region76
        $region75: #{tpu_custom_call.1} parent=71 // pred_region
          %497 = dma.done %s489, 256
        $region76: #{tpu_custom_call.1} parent=71 // pred_fallthru
          _
        // Predicated region
        $region77: #{tpu_custom_call.1} parent=71 // pred_check
          %p498 = pneg %p76
        $region78: #{tpu_custom_call.1} parent=71 // pred_check_branch
          %500 = sbr.rel (%p498) target = $region80
        $region79: #{tpu_custom_call.1} parent=71 // pred_region
          %502 = dma.done [#allocation7], 16
        $region80: #{tpu_custom_call.1} parent=71 // pred_fallthru
          _
        // Predicated region
        $region81: #{tpu_custom_call.1} parent=71 // pred_check
          %p503 = pneg %p97
        $region82: #{tpu_custom_call.1} parent=71 // pred_check_branch
          %505 = sbr.rel (%p503) target = $region84
        $region83: #{tpu_custom_call.1} parent=71 // pred_region
          %507 = dma.done [#allocation7], 16
        $region84: #{tpu_custom_call.1} parent=71 // pred_fallthru
          _
        // Predicated region
        $region85: #{tpu_custom_call.1} parent=71 // pred_check
          %p508 = pneg %p118
        $region86: #{tpu_custom_call.1} parent=71 // pred_check_branch
          %510 = sbr.rel (%p508) target = $region88
        $region87: #{tpu_custom_call.1} parent=71 // pred_region
          %512 = dma.done [#allocation10], 3072
        $region88: #{tpu_custom_call.1} parent=71 // pred_fallthru
          _
        // Predicated region
        $region89: #{tpu_custom_call.1} parent=71 // pred_check
          %p513 = pneg %p160
        $region90: #{tpu_custom_call.1} parent=71 // pred_check_branch
          %515 = sbr.rel (%p513) target = $region92
        $region91: #{tpu_custom_call.1} parent=71 // pred_region
          %517 = dma.done [#allocation10], 1024
        $region92: #{tpu_custom_call.1} parent=71 // pred_fallthru
          _
        // Predicated region
        $region93: #{tpu_custom_call.1} parent=71 // pred_check
          %p518 = pneg %p181
        $region94: #{tpu_custom_call.1} parent=71 // pred_check_branch
          %520 = sbr.rel (%p518) target = $region96
        $region95: #{tpu_custom_call.1} parent=71 // pred_region
          %522 = dma.done [#allocation13], 16
        $region96: #{tpu_custom_call.1} parent=71 // pred_fallthru
          _
        // Predicated region
        $region97: #{tpu_custom_call.1} parent=71 // pred_check
          %p523 = pneg %p244
        $region98: #{tpu_custom_call.1} parent=71 // pred_check_branch
          %525 = sbr.rel (%p523) target = $region100
        $region99: #{tpu_custom_call.1} parent=71 // pred_region
          %527 = dma.done [#allocation13], 2048
        $region100: #{tpu_custom_call.1} parent=71 // pred_fallthru
          _
        // Predicated region
        $region101: #{tpu_custom_call.1} parent=71 // pred_check
          %p528 = pneg %p286
        $region102: #{tpu_custom_call.1} parent=71 // pred_check_branch
          %530 = sbr.rel (%p528) target = $region104
        $region103: #{tpu_custom_call.1} parent=71 // pred_region
          %532 = dma.done [#allocation16], 2048
        $region104: #{tpu_custom_call.1} parent=71 // pred_fallthru
          _
        %s533 = sand.u32 %s42, 1
        %s534 = scalar_lea.sflag [#allocation4], %s533
        %s535 = sand.u32 %s42, 1
        %s536 = smul.addr %s535, 16
        %s537 = scalar_lea.vmem [#allocation3], %s536
        %p538 = pneg %p55
        %p539 = pneg %p52
        %p540 = pneg %p76
        %p541 = pneg %p73
        %p542 = pneg %p97
        %p543 = pneg %p94
        %p544 = pneg %p118
        %p545 = pneg %p115
        %p546 = pneg %p139
        %p547 = pneg %p136
        %p548 = pneg %p160
        %p549 = pneg %p157
        %p550 = pneg %p181
        %p551 = pneg %p178
        %p552 = pneg %p202
        %p553 = pneg %p199
        %p554 = pneg %p223
        %p555 = pneg %p220
        %p556 = pneg %p244
        %p557 = pneg %p241
        %p558 = pneg %p265
        %p559 = pneg %p262
        %p560 = pneg %p286
        %p561 = pneg %p283
        %p562 = pneg %p307
        %p563 = pneg %p304
        %p564 = pneg %p333
        %p565 = pneg %p330
        %s566 = sand.u32 %s320, 1
        %s567 = scalar_lea.sflag [#allocation5], %s566
        %s568 = sand.u32 %s320, 1
        %s569 = smul.addr %s568, 16
        %s570 = scalar_lea.vmem [#allocation17], %s569
        %v572 = vld [vmem:[#allocation6] sm:$0x1]
        %v573 = vld [vmem:[#allocation8] sm:$0x1]
        %v574 = vld [vmem:[%s7] sm:$0x1]
        %v575 = vld [vmem:[%s8] sm:$0x1]
        %v576 = vld [vmem:[%s4] sm:$0x7]
        %v577 = vld [vmem:[#allocation12] sm:$0x1]
        %v578 = vld [vmem:[%s10] sm:$0x3]
        %v579 = vld [vmem:[%s12] sm:$0x1]
        %v580 = vld [vmem:[%s492] sm:$0xff]
        %v581 = vld [vmem:[%s492 + $0x8] sm:$0xff]
        %582 = vst [vmem:[#allocation2] sm:$0xff] %v580
        %583 = vst [vmem:[#allocation2 + $0x8] sm:$0xff] %v581
        %v584 = vld [vmem:[#allocation2] sm:$0xff]
        %v585 = vld [vmem:[#allocation2 + $0x8] sm:$0xff]
        %586 = vadd.xlane.f32.xlu0 %v584
        %v587 = vpop.xlane.xlu0 %586
        %588 = vadd.xlane.f32.xlu0 %v585
        %v589 = vpop.xlane.xlu0 %588
        %v590 = vrcp.pop 128.0
        %v591 = vmul.f32 128.0, %v590
        %v592 = vsub.f32 1.0, %v591
        %v593 = vmul.f32 %v590, %v592
        %v594 = vadd.f32 %v590, %v593
        %vm595 = vweird.f32 %v590
        %v596 = vsel %vm595, %v590, %v594
        %v597 = vmul.f32 %v587, %v596
        %v598 = vmul.f32 %v589, %v596
        %v599 = vsub.f32 %v584, %v597
        %v600 = vsub.f32 %v585, %v598
        %v601 = vmul.f32 %v599, %v599
        %v602 = vmul.f32 %v600, %v600
        %603 = vadd.xlane.f32.xlu0 %v601
        %v604 = vpop.xlane.xlu0 %603
        %605 = vadd.xlane.f32.xlu0 %v602
        %v606 = vpop.xlane.xlu0 %605
        %v607 = vmul.f32 %v604, %v596
        %v608 = vmul.f32 %v606, %v596
        %v609 = vadd.f32 %v607, 1e-05
        %v610 = vadd.f32 %v608, 1e-05
        %v611 = vrsqrt.pop %v609
        %v612 = vmul.f32 %v611, %v609
        %v613 = vmul.f32 %v612, %v611
        %v614 = vmul.f32 0.5, %v613
        %v615 = vsub.f32 1.5, %v614
        %v616 = vmul.f32 %v611, %v615
        %vm617 = vweird.f32 %v609
        %vm618 = vweird.f32 %v611
        %vm619 = vmor %vm617, %vm618
        %v620 = vsel %vm619, %v611, %v616
        %v621 = vrsqrt.pop %v610
        %v622 = vmul.f32 %v621, %v610
        %v623 = vmul.f32 %v622, %v621
        %v624 = vmul.f32 0.5, %v623
        %v625 = vsub.f32 1.5, %v624
        %v626 = vmul.f32 %v621, %v625
        %vm627 = vweird.f32 %v610
        %vm628 = vweird.f32 %v621
        %vm629 = vmor %vm627, %vm628
        %v630 = vsel %vm629, %v621, %v626
        %v631 = vmul.f32 %v599, %v620
        %v632 = vmul.f32 %v600, %v630
        %v634 = vperm.slane %v572, 0
        %v636 = vmul.f32 %v631, %v634
        %v637 = vmul.f32 %v632, %v634
        %v639 = vperm.slane %v573, 0
        %v641 = vadd.f32 %v636, %v639
        %v642 = vadd.f32 %v637, %v639
        %v643 = vpack.c.bf16 %v642, %v641
        %v644 = vld [vmem:[#allocation9] sm:$0xff]
        %v645 = vld [vmem:[#allocation9 + $0x8] sm:$0xf]
        %v646 = vld [vmem:[#allocation9 + $0xc] sm:$0xff]
        %v647 = vld [vmem:[#allocation9 + $0x14] sm:$0xf]
        %v648 = vld [vmem:[#allocation9 + $0x18] sm:$0xff]
        %v649 = vld [vmem:[#allocation9 + $0x20] sm:$0xf]
        %v650 = vld [vmem:[#allocation9 + $0x24] sm:$0xff]
        %v651 = vld [vmem:[#allocation9 + $0x2c] sm:$0xf]
        %v652 = vld [vmem:[#allocation9 + $0x30] sm:$0xff]
        %v653 = vld [vmem:[#allocation9 + $0x38] sm:$0xf]
        %v654 = vld [vmem:[#allocation9 + $0x3c] sm:$0xff]
        %v655 = vld [vmem:[#allocation9 + $0x44] sm:$0xf]
        %v656 = vld [vmem:[#allocation9 + $0x48] sm:$0xff]
        %v657 = vld [vmem:[#allocation9 + $0x50] sm:$0xf]
        %v658 = vld [vmem:[#allocation9 + $0x54] sm:$0xff]
        %v659 = vld [vmem:[#allocation9 + $0x5c] sm:$0xf]
        %v660 = vld [vmem:[#allocation9 + $0x60] sm:$0xff]
        %v661 = vld [vmem:[#allocation9 + $0x68] sm:$0xf]
        %v662 = vld [vmem:[#allocation9 + $0x6c] sm:$0xff]
        %v663 = vld [vmem:[#allocation9 + $0x74] sm:$0xf]
        %v664 = vld [vmem:[#allocation9 + $0x78] sm:$0xff]
        %v665 = vld [vmem:[#allocation9 + $0x80] sm:$0xf]
        %v666 = vld [vmem:[#allocation9 + $0x84] sm:$0xff]
        %v667 = vld [vmem:[#allocation9 + $0x8c] sm:$0xf]
        %v668 = vld [vmem:[#allocation9 + $0x90] sm:$0xff]
        %v669 = vld [vmem:[#allocation9 + $0x98] sm:$0xf]
        %v670 = vld [vmem:[#allocation9 + $0x9c] sm:$0xff]
        %v671 = vld [vmem:[#allocation9 + $0xa4] sm:$0xf]
        %v672 = vld [vmem:[#allocation9 + $0xa8] sm:$0xff]
        %v673 = vld [vmem:[#allocation9 + $0xb0] sm:$0xf]
        %v674 = vld [vmem:[#allocation9 + $0xb4] sm:$0xff]
        %v675 = vld [vmem:[#allocation9 + $0xbc] sm:$0xf]
        %v677 = vperm.slane %v576, 0
        %v678 = vperm.slane %v576, 1
        %v679 = vperm.slane %v576, 2
        %v715 = vunpack.c.l.b16 %v644
        %v716 = vunpack.c.h.b16 %v644
        %v717 = vunpack.c.l.b16 %v645
        %v718 = vunpack.c.l.b16 %v646
        %v719 = vunpack.c.h.b16 %v646
        %v720 = vunpack.c.l.b16 %v647
        %v721 = vunpack.c.l.b16 %v648
        %v722 = vunpack.c.h.b16 %v648
        %v723 = vunpack.c.l.b16 %v649
        %v724 = vunpack.c.l.b16 %v650
        %v725 = vunpack.c.h.b16 %v650
        %v726 = vunpack.c.l.b16 %v651
        %v727 = vunpack.c.l.b16 %v652
        %v728 = vunpack.c.h.b16 %v652
        %v729 = vunpack.c.l.b16 %v653
        %v730 = vunpack.c.l.b16 %v654
        %v731 = vunpack.c.h.b16 %v654
        %v732 = vunpack.c.l.b16 %v655
        %v733 = vunpack.c.l.b16 %v656
        %v734 = vunpack.c.h.b16 %v656
        %v735 = vunpack.c.l.b16 %v657
        %v736 = vunpack.c.l.b16 %v658
        %v737 = vunpack.c.h.b16 %v658
        %v738 = vunpack.c.l.b16 %v659
        %v739 = vunpack.c.l.b16 %v660
        %v740 = vunpack.c.h.b16 %v660
        %v741 = vunpack.c.l.b16 %v661
        %v742 = vunpack.c.l.b16 %v662
        %v743 = vunpack.c.h.b16 %v662
        %v744 = vunpack.c.l.b16 %v663
        %v745 = vunpack.c.l.b16 %v664
        %v746 = vunpack.c.h.b16 %v664
        %v747 = vunpack.c.l.b16 %v665
        %v748 = vunpack.c.l.b16 %v666
        %v749 = vunpack.c.h.b16 %v666
        %v750 = vunpack.c.l.b16 %v667
        %v751 = vunpack.c.l.b16 %v668
        %v752 = vunpack.c.h.b16 %v668
        %v753 = vunpack.c.l.b16 %v669
        %v754 = vunpack.c.l.b16 %v670
        %v755 = vunpack.c.h.b16 %v670
        %v756 = vunpack.c.l.b16 %v671
        %v757 = vunpack.c.l.b16 %v672
        %v758 = vunpack.c.h.b16 %v672
        %v759 = vunpack.c.l.b16 %v673
        %v760 = vunpack.c.l.b16 %v674
        %v761 = vunpack.c.h.b16 %v674
        %v762 = vunpack.c.l.b16 %v675
        %v763 = vpack.c.b16 %v718, %v715
        %v764 = vpack.c.b16 %v719, %v716
        %v765 = vpack.c.b16 %v720, %v717
        %v766 = vpack.c.b16 %v724, %v721
        %v767 = vpack.c.b16 %v725, %v722
        %v768 = vpack.c.b16 %v726, %v723
        %v769 = vpack.c.b16 %v730, %v727
        %v770 = vpack.c.b16 %v731, %v728
        %v771 = vpack.c.b16 %v732, %v729
        %v772 = vpack.c.b16 %v736, %v733
        %v773 = vpack.c.b16 %v737, %v734
        %v774 = vpack.c.b16 %v738, %v735
        %v775 = vpack.c.b16 %v742, %v739
        %v776 = vpack.c.b16 %v743, %v740
        %v777 = vpack.c.b16 %v744, %v741
        %v778 = vpack.c.b16 %v748, %v745
        %v779 = vpack.c.b16 %v749, %v746
        %v780 = vpack.c.b16 %v750, %v747
        %v781 = vpack.c.b16 %v754, %v751
        %v782 = vpack.c.b16 %v755, %v752
        %v783 = vpack.c.b16 %v756, %v753
        %v784 = vpack.c.b16 %v760, %v757
        %v785 = vpack.c.b16 %v761, %v758
        %v786 = vpack.c.b16 %v762, %v759
        %811 = vmatpush.bf16.msra.mxu0 %v784
        %812 = vmatpush.bf16.msra.mxu0 %v781
        %813 = vmatpush.bf16.msra.mxu0 %v778
        %814 = vmatpush.bf16.msra.mxu0 %v775
        %815 = vmatpush.bf16.msra.mxu0 %v772
        %816 = vmatpush.bf16.msra.mxu0 %v769
        %817 = vmatpush.bf16.msra.mxu0 %v766
        %818 = vmatpush.bf16.msra.mxu0 %v763
        %819 = vmatmul.bf16.gmra.mxu0 %v643
        %v820 = vpop.f32.mrf.mxu0
        %v821 = vadd.f32 %v677, %v820
        %v822 = vpop.f32.mrf.mxu0
        %v823 = vadd.f32 %v677, %v822
        %824 = vdwg.mxu0
        %825 = vmatpush.bf16.msra.mxu0 %v785
        %826 = vmatpush.bf16.msra.mxu0 %v782
        %827 = vmatpush.bf16.msra.mxu0 %v779
        %828 = vmatpush.bf16.msra.mxu0 %v776
        %829 = vmatpush.bf16.msra.mxu0 %v773
        %830 = vmatpush.bf16.msra.mxu0 %v770
        %831 = vmatpush.bf16.msra.mxu0 %v767
        %832 = vmatpush.bf16.msra.mxu0 %v764
        %833 = vmatmul.bf16.gmra.mxu0 %v643
        %v834 = vpop.f32.mrf.mxu0
        %v835 = vadd.f32 %v678, %v834
        %v836 = vpop.f32.mrf.mxu0
        %v837 = vadd.f32 %v678, %v836
        %838 = vdwg.mxu0
        %839 = vmatpush.bf16.msra.mxu0 %v786
        %840 = vmatpush.bf16.msra.mxu0 %v783
        %841 = vmatpush.bf16.msra.mxu0 %v780
        %842 = vmatpush.bf16.msra.mxu0 %v777
        %843 = vmatpush.bf16.msra.mxu0 %v774
        %844 = vmatpush.bf16.msra.mxu0 %v771
        %845 = vmatpush.bf16.msra.mxu0 %v768
        %846 = vmatpush.bf16.msra.mxu0 %v765
        %847 = vmatmul.bf16.gmra.mxu0 %v643
        %v848 = vpop.f32.mrf.mxu0
        %v849 = vadd.f32 %v679, %v848
        %v850 = vpop.f32.mrf.mxu0
        %v851 = vadd.f32 %v679, %v850
        %852 = vdwg.mxu0
        %v853 = vpack.c.bf16 %v835, %v821
        %v854 = vpack.c.bf16 %v849, %v849
        %v855 = vpack.c.bf16 %v837, %v823
        %v856 = vpack.c.bf16 %v851, %v851
        %v859 = vrot.slane %v853, 4
        %v860 = vrot.slane %v855, 4
        %v861 = vunpack.c.l.b16 %v853
        %v862 = vunpack.c.l.b16 %v855
        %v863 = vpack.c.b16 %v862, %v861
        %v864 = vunpack.c.l.b16 %v859
        %v865 = vunpack.c.l.b16 %v860
        %v866 = vpack.c.b16 %v865, %v864
        %vm867 = vcmask 261120
        %v869 = vsel %vm867, %v863, 0
        %v872 = vsel %vm867, %v866, 0
        %874 = vmatpush.bf16.xpose.msra.mxu0 0
        %875 = vmatpush.bf16.xpose.msra.mxu0 0
        %876 = vmatpush.bf16.xpose.msra.mxu0 0
        %877 = vmatpush.bf16.xpose.msra.mxu0 0
        %878 = vmatpush.bf16.xpose.msra.mxu0 0
        %879 = vmatpush.bf16.xpose.msra.mxu0 0
        %880 = vmatpush.bf16.xpose.msra.mxu0 0
        %881 = vmatpush.bf16.xpose.msra.mxu0 %v872
        %882 = vmatmul.bf16.gmra.mxu0 %v869
        %v883 = vpop.f32.mrf.mxu0
        %v884 = vadd.f32 0.0, %v883
        %v885 = vpop.f32.mrf.mxu0
        %v886 = vadd.f32 0.0, %v885
        %887 = vdwg.mxu0
        %vm888 = vcmask 130048
        %v889 = vsel %vm888, %v884, -inf
        %890 = vmax.xlane.f32.xlu0 %v889
        %v891 = vpop.xlane.xlu0 %890
        %v892 = vsel %vm888, %v886, -inf
        %893 = vmax.xlane.f32.xlu0 %v892
        %v894 = vpop.xlane.xlu0 %893
        %v895 = vsub.f32 %v884, %v891
        %v896 = vsub.f32 %v886, %v894
        %v897 = vmul.f32 %v895, 1.442695
        %v898 = vpow.pop %v897
        %v899 = vmul.f32 %v896, 1.442695
        %v900 = vpow.pop %v899
        %v901 = vsel %vm888, %v898, 0.0
        %902 = vadd.xlane.f32.xlu0 %v901
        %v903 = vpop.xlane.xlu0 %902
        %v904 = vsel %vm888, %v900, 0.0
        %905 = vadd.xlane.f32.xlu0 %v904
        %v906 = vpop.xlane.xlu0 %905
        %v907 = vrcp.pop %v903
        %v908 = vrcp.pop %v906
        %v909 = vmul.f32 %v898, %v907
        %v910 = vmul.f32 %v900, %v908
        %v911 = vpack.c.bf16 %v909, %v909
        %v912 = vpack.c.bf16 %v910, %v910
        %v915 = vunpack.c.l.b16 %v911
        %v916 = vunpack.c.l.b16 %v912
        %v917 = vpack.c.b16 %v916, %v915
        %v920 = vunpack.c.l.b16 %v854
        %v921 = vunpack.c.l.b16 %v856
        %v922 = vpack.c.b16 %v921, %v920
        %v925 = vsel %vm888, %v917, 0
        %927 = vmatpush.bf16.msra.mxu0 0
        %928 = vmatpush.bf16.msra.mxu0 0
        %929 = vmatpush.bf16.msra.mxu0 0
        %930 = vmatpush.bf16.msra.mxu0 0
        %931 = vmatpush.bf16.msra.mxu0 0
        %932 = vmatpush.bf16.msra.mxu0 0
        %933 = vmatpush.bf16.msra.mxu0 0
        %934 = vmatpush.bf16.msra.mxu0 %v922
        %935 = vmatmul.bf16.gmra.mxu0 %v925
        %v936 = vpop.f32.mrf.mxu0
        %v937 = vadd.f32 0.0, %v936
        %v938 = vpop.f32.mrf.mxu0
        %v939 = vadd.f32 0.0, %v938
        %940 = vdwg.mxu0
        %941 = vrot.lane.b32.xlu0 %v853, 96
        %v942 = vpop.permute.xlu0 %941
        %943 = vrot.lane.b32.xlu0 %v855, 96
        %v944 = vpop.permute.xlu0 %943
        %v945 = vrot.slane %v942, 4
        %v946 = vrot.slane %v944, 4
        %947 = vrot.lane.b32.xlu0 %v863, 96
        %v948 = vpop.permute.xlu0 %947
        %v949 = vunpack.c.l.b16 %v945
        %v950 = vunpack.c.l.b16 %v946
        %v951 = vpack.c.b16 %v950, %v949
        %v953 = vsel %vm867, %v948, 0
        %v956 = vsel %vm867, %v951, 0
        %958 = vmatpush.bf16.xpose.msra.mxu0 0
        %959 = vmatpush.bf16.xpose.msra.mxu0 0
        %960 = vmatpush.bf16.xpose.msra.mxu0 0
        %961 = vmatpush.bf16.xpose.msra.mxu0 0
        %962 = vmatpush.bf16.xpose.msra.mxu0 0
        %963 = vmatpush.bf16.xpose.msra.mxu0 0
        %964 = vmatpush.bf16.xpose.msra.mxu0 0
        %965 = vmatpush.bf16.xpose.msra.mxu0 %v956
        %966 = vmatmul.bf16.gmra.mxu0 %v953
        %v967 = vpop.f32.mrf.mxu0
        %v968 = vadd.f32 0.0, %v967
        %v969 = vpop.f32.mrf.mxu0
        %v970 = vadd.f32 0.0, %v969
        %971 = vdwg.mxu0
        %v972 = vsel %vm888, %v968, -inf
        %973 = vmax.xlane.f32.xlu0 %v972
        %v974 = vpop.xlane.xlu0 %973
        %v975 = vsel %vm888, %v970, -inf
        %976 = vmax.xlane.f32.xlu0 %v975
        %v977 = vpop.xlane.xlu0 %976
        %v978 = vsub.f32 %v968, %v974
        %v979 = vsub.f32 %v970, %v977
        %v980 = vmul.f32 %v978, 1.442695
        %v981 = vpow.pop %v980
        %v982 = vmul.f32 %v979, 1.442695
        %v983 = vpow.pop %v982
        %v984 = vsel %vm888, %v981, 0.0
        %985 = vadd.xlane.f32.xlu0 %v984
        %v986 = vpop.xlane.xlu0 %985
        %v987 = vsel %vm888, %v983, 0.0
        %988 = vadd.xlane.f32.xlu0 %v987
        %v989 = vpop.xlane.xlu0 %988
        %v990 = vrcp.pop %v986
        %v991 = vrcp.pop %v989
        %v992 = vmul.f32 %v981, %v990
        %v993 = vmul.f32 %v983, %v991
        %v994 = vpack.c.bf16 %v992, %v992
        %v995 = vpack.c.bf16 %v993, %v993
        %v998 = vunpack.c.l.b16 %v994
        %v999 = vunpack.c.l.b16 %v995
        %v1000 = vpack.c.b16 %v999, %v998
        %1001 = vrot.lane.b32.xlu0 %v922, 96
        %v1002 = vpop.permute.xlu0 %1001
        %v1005 = vsel %vm888, %v1000, 0
        %1007 = vmatpush.bf16.msra.mxu0 0
        %1008 = vmatpush.bf16.msra.mxu0 0
        %1009 = vmatpush.bf16.msra.mxu0 0
        %1010 = vmatpush.bf16.msra.mxu0 0
        %1011 = vmatpush.bf16.msra.mxu0 0
        %1012 = vmatpush.bf16.msra.mxu0 0
        %1013 = vmatpush.bf16.msra.mxu0 0
        %1014 = vmatpush.bf16.msra.mxu0 %v1002
        %1015 = vmatmul.bf16.gmra.mxu0 %v1005
        %v1016 = vpop.f32.mrf.mxu0
        %v1017 = vadd.f32 0.0, %v1016
        %v1018 = vpop.f32.mrf.mxu0
        %v1019 = vadd.f32 0.0, %v1018
        %1020 = vdwg.mxu0
        %1021 = vrot.lane.b32.xlu0 %v853, 64
        %v1022 = vpop.permute.xlu0 %1021
        %1023 = vrot.lane.b32.xlu0 %v855, 64
        %v1024 = vpop.permute.xlu0 %1023
        %v1025 = vrot.slane %v1022, 4
        %v1026 = vrot.slane %v1024, 4
        %1027 = vrot.lane.b32.xlu0 %v863, 64
        %v1028 = vpop.permute.xlu0 %1027
        %v1029 = vunpack.c.l.b16 %v1025
        %v1030 = vunpack.c.l.b16 %v1026
        %v1031 = vpack.c.b16 %v1030, %v1029
        %v1033 = vsel %vm867, %v1028, 0
        %v1036 = vsel %vm867, %v1031, 0
        %1038 = vmatpush.bf16.xpose.msra.mxu0 0
        %1039 = vmatpush.bf16.xpose.msra.mxu0 0
        %1040 = vmatpush.bf16.xpose.msra.mxu0 0
        %1041 = vmatpush.bf16.xpose.msra.mxu0 0
        %1042 = vmatpush.bf16.xpose.msra.mxu0 0
        %1043 = vmatpush.bf16.xpose.msra.mxu0 0
        %1044 = vmatpush.bf16.xpose.msra.mxu0 0
        %1045 = vmatpush.bf16.xpose.msra.mxu0 %v1036
        %1046 = vmatmul.bf16.gmra.mxu0 %v1033
        %v1047 = vpop.f32.mrf.mxu0
        %v1048 = vadd.f32 0.0, %v1047
        %v1049 = vpop.f32.mrf.mxu0
        %v1050 = vadd.f32 0.0, %v1049
        %1051 = vdwg.mxu0
        %v1052 = vsel %vm888, %v1048, -inf
        %1053 = vmax.xlane.f32.xlu0 %v1052
        %v1054 = vpop.xlane.xlu0 %1053
        %v1055 = vsel %vm888, %v1050, -inf
        %1056 = vmax.xlane.f32.xlu0 %v1055
        %v1057 = vpop.xlane.xlu0 %1056
        %v1058 = vsub.f32 %v1048, %v1054
        %v1059 = vsub.f32 %v1050, %v1057
        %v1060 = vmul.f32 %v1058, 1.442695
        %v1061 = vpow.pop %v1060
        %v1062 = vmul.f32 %v1059, 1.442695
        %v1063 = vpow.pop %v1062
        %v1064 = vsel %vm888, %v1061, 0.0
        %1065 = vadd.xlane.f32.xlu0 %v1064
        %v1066 = vpop.xlane.xlu0 %1065
        %v1067 = vsel %vm888, %v1063, 0.0
        %1068 = vadd.xlane.f32.xlu0 %v1067
        %v1069 = vpop.xlane.xlu0 %1068
        %v1070 = vrcp.pop %v1066
        %v1071 = vrcp.pop %v1069
        %v1072 = vmul.f32 %v1061, %v1070
        %v1073 = vmul.f32 %v1063, %v1071
        %v1074 = vpack.c.bf16 %v1072, %v1072
        %v1075 = vpack.c.bf16 %v1073, %v1073
        %v1078 = vunpack.c.l.b16 %v1074
        %v1079 = vunpack.c.l.b16 %v1075
        %v1080 = vpack.c.b16 %v1079, %v1078
        %1081 = vrot.lane.b32.xlu0 %v922, 64
        %v1082 = vpop.permute.xlu0 %1081
        %v1085 = vsel %vm888, %v1080, 0
        %1087 = vmatpush.bf16.msra.mxu0 0
        %1088 = vmatpush.bf16.msra.mxu0 0
        %1089 = vmatpush.bf16.msra.mxu0 0
        %1090 = vmatpush.bf16.msra.mxu0 0
        %1091 = vmatpush.bf16.msra.mxu0 0
        %1092 = vmatpush.bf16.msra.mxu0 0
        %1093 = vmatpush.bf16.msra.mxu0 0
        %1094 = vmatpush.bf16.msra.mxu0 %v1082
        %1095 = vmatmul.bf16.gmra.mxu0 %v1085
        %v1096 = vpop.f32.mrf.mxu0
        %v1097 = vadd.f32 0.0, %v1096
        %v1098 = vpop.f32.mrf.mxu0
        %v1099 = vadd.f32 0.0, %v1098
        %1100 = vdwg.mxu0
        %1101 = vrot.lane.b32.xlu0 %v853, 32
        %v1102 = vpop.permute.xlu0 %1101
        %1103 = vrot.lane.b32.xlu0 %v855, 32
        %v1104 = vpop.permute.xlu0 %1103
        %v1105 = vrot.slane %v1102, 4
        %v1106 = vrot.slane %v1104, 4
        %1107 = vrot.lane.b32.xlu0 %v863, 32
        %v1108 = vpop.permute.xlu0 %1107
        %v1109 = vunpack.c.l.b16 %v1105
        %v1110 = vunpack.c.l.b16 %v1106
        %v1111 = vpack.c.b16 %v1110, %v1109
        %v1113 = vsel %vm867, %v1108, 0
        %v1116 = vsel %vm867, %v1111, 0
        %1118 = vmatpush.bf16.xpose.msra.mxu0 0
        %1119 = vmatpush.bf16.xpose.msra.mxu0 0
        %1120 = vmatpush.bf16.xpose.msra.mxu0 0
        %1121 = vmatpush.bf16.xpose.msra.mxu0 0
        %1122 = vmatpush.bf16.xpose.msra.mxu0 0
        %1123 = vmatpush.bf16.xpose.msra.mxu0 0
        %1124 = vmatpush.bf16.xpose.msra.mxu0 0
        %1125 = vmatpush.bf16.xpose.msra.mxu0 %v1116
        %1126 = vmatmul.bf16.gmra.mxu0 %v1113
        %v1127 = vpop.f32.mrf.mxu0
        %v1128 = vadd.f32 0.0, %v1127
        %v1129 = vpop.f32.mrf.mxu0
        %v1130 = vadd.f32 0.0, %v1129
        %1131 = vdwg.mxu0
        %v1132 = vsel %vm888, %v1128, -inf
        %1133 = vmax.xlane.f32.xlu0 %v1132
        %v1134 = vpop.xlane.xlu0 %1133
        %v1135 = vsel %vm888, %v1130, -inf
        %1136 = vmax.xlane.f32.xlu0 %v1135
        %v1137 = vpop.xlane.xlu0 %1136
        %v1138 = vsub.f32 %v1128, %v1134
        %v1139 = vsub.f32 %v1130, %v1137
        %v1140 = vmul.f32 %v1138, 1.442695
        %v1141 = vpow.pop %v1140
        %v1142 = vmul.f32 %v1139, 1.442695
        %v1143 = vpow.pop %v1142
        %v1144 = vsel %vm888, %v1141, 0.0
        %1145 = vadd.xlane.f32.xlu0 %v1144
        %v1146 = vpop.xlane.xlu0 %1145
        %v1147 = vsel %vm888, %v1143, 0.0
        %1148 = vadd.xlane.f32.xlu0 %v1147
        %v1149 = vpop.xlane.xlu0 %1148
        %v1150 = vrcp.pop %v1146
        %v1151 = vrcp.pop %v1149
        %v1152 = vmul.f32 %v1141, %v1150
        %v1153 = vmul.f32 %v1143, %v1151
        %v1154 = vpack.c.bf16 %v1152, %v1152
        %v1155 = vpack.c.bf16 %v1153, %v1153
        %v1158 = vunpack.c.l.b16 %v1154
        %v1159 = vunpack.c.l.b16 %v1155
        %v1160 = vpack.c.b16 %v1159, %v1158
        %1161 = vrot.lane.b32.xlu0 %v922, 32
        %v1162 = vpop.permute.xlu0 %1161
        %v1165 = vsel %vm888, %v1160, 0
        %1167 = vmatpush.bf16.msra.mxu0 0
        %1168 = vmatpush.bf16.msra.mxu0 0
        %1169 = vmatpush.bf16.msra.mxu0 0
        %1170 = vmatpush.bf16.msra.mxu0 0
        %1171 = vmatpush.bf16.msra.mxu0 0
        %1172 = vmatpush.bf16.msra.mxu0 0
        %1173 = vmatpush.bf16.msra.mxu0 0
        %1174 = vmatpush.bf16.msra.mxu0 %v1162
        %1175 = vmatmul.bf16.gmra.mxu0 %v1165
        %v1176 = vpop.f32.mrf.mxu0
        %v1177 = vadd.f32 0.0, %v1176
        %v1178 = vpop.f32.mrf.mxu0
        %v1179 = vadd.f32 0.0, %v1178
        %1180 = vdwg.mxu0
        %1183 = vrot.lane.b32.xlu0 %v1017, 32
        %v1184 = vpop.permute.xlu0 %1183
        %1185 = vrot.lane.b32.xlu0 %v1019, 32
        %v1186 = vpop.permute.xlu0 %1185
        %1191 = vrot.lane.b32.xlu0 %v1097, 64
        %v1192 = vpop.permute.xlu0 %1191
        %1193 = vrot.lane.b32.xlu0 %v1099, 64
        %v1194 = vpop.permute.xlu0 %1193
        %1199 = vrot.lane.b32.xlu0 %v1177, 96
        %v1200 = vpop.permute.xlu0 %1199
        %1201 = vrot.lane.b32.xlu0 %v1179, 96
        %v1202 = vpop.permute.xlu0 %1201
        %v1205 = vsel %vm867, %v937, %v1184
        %v1206 = vsel %vm867, %v939, %v1186
        %vm1207 = vcmask 523264
        %v1208 = vsel %vm1207, %v1205, %v1192
        %v1209 = vsel %vm1207, %v1206, %v1194
        %vm1210 = vcmask 785408
        %v1211 = vsel %vm1210, %v1208, %v1200
        %v1212 = vsel %vm1210, %v1209, %v1202
        %v1213 = vpack.c.bf16 %v1212, %v1211
        %v1214 = vld [vmem:[#allocation11] sm:$0xf]
        %v1215 = vld [vmem:[#allocation11 + $0x4] sm:$0xf]
        %v1216 = vld [vmem:[#allocation11 + $0x8] sm:$0xf]
        %v1217 = vld [vmem:[#allocation11 + $0xc] sm:$0xf]
        %v1218 = vld [vmem:[#allocation11 + $0x10] sm:$0xf]
        %v1219 = vld [vmem:[#allocation11 + $0x14] sm:$0xf]
        %v1220 = vld [vmem:[#allocation11 + $0x18] sm:$0xf]
        %v1221 = vld [vmem:[#allocation11 + $0x1c] sm:$0xf]
        %v1222 = vld [vmem:[#allocation11 + $0x20] sm:$0xf]
        %v1223 = vld [vmem:[#allocation11 + $0x24] sm:$0xf]
        %v1224 = vld [vmem:[#allocation11 + $0x28] sm:$0xf]
        %v1225 = vld [vmem:[#allocation11 + $0x2c] sm:$0xf]
        %v1226 = vld [vmem:[#allocation11 + $0x30] sm:$0xf]
        %v1227 = vld [vmem:[#allocation11 + $0x34] sm:$0xf]
        %v1228 = vld [vmem:[#allocation11 + $0x38] sm:$0xf]
        %v1229 = vld [vmem:[#allocation11 + $0x3c] sm:$0xf]
        %v1246 = vunpack.c.l.b16 %v1214
        %v1247 = vunpack.c.l.b16 %v1215
        %v1248 = vunpack.c.l.b16 %v1216
        %v1249 = vunpack.c.l.b16 %v1217
        %v1250 = vunpack.c.l.b16 %v1218
        %v1251 = vunpack.c.l.b16 %v1219
        %v1252 = vunpack.c.l.b16 %v1220
        %v1253 = vunpack.c.l.b16 %v1221
        %v1254 = vunpack.c.l.b16 %v1222
        %v1255 = vunpack.c.l.b16 %v1223
        %v1256 = vunpack.c.l.b16 %v1224
        %v1257 = vunpack.c.l.b16 %v1225
        %v1258 = vunpack.c.l.b16 %v1226
        %v1259 = vunpack.c.l.b16 %v1227
        %v1260 = vunpack.c.l.b16 %v1228
        %v1261 = vunpack.c.l.b16 %v1229
        %v1262 = vpack.c.b16 %v1247, %v1246
        %v1263 = vpack.c.b16 %v1249, %v1248
        %v1264 = vpack.c.b16 %v1251, %v1250
        %v1265 = vpack.c.b16 %v1253, %v1252
        %v1266 = vpack.c.b16 %v1255, %v1254
        %v1267 = vpack.c.b16 %v1257, %v1256
        %v1268 = vpack.c.b16 %v1259, %v1258
        %v1269 = vpack.c.b16 %v1261, %v1260
        %1278 = vmatpush.bf16.msra.mxu0 %v1269
        %1279 = vmatpush.bf16.msra.mxu0 %v1268
        %1280 = vmatpush.bf16.msra.mxu0 %v1267
        %1281 = vmatpush.bf16.msra.mxu0 %v1266
        %1282 = vmatpush.bf16.msra.mxu0 %v1265
        %1283 = vmatpush.bf16.msra.mxu0 %v1264
        %1284 = vmatpush.bf16.msra.mxu0 %v1263
        %1285 = vmatpush.bf16.msra.mxu0 %v1262
        %1286 = vmatmul.bf16.gmra.mxu0 %v1213
        %v1287 = vpop.f32.mrf.mxu0
        %v1288 = vadd.f32 0.0, %v1287
        %v1289 = vpop.f32.mrf.mxu0
        %v1290 = vadd.f32 0.0, %v1289
        %1291 = vdwg.mxu0
        %v1292 = vadd.f32 %v584, %v1288
        %v1293 = vadd.f32 %v585, %v1290
        %v1295 = vperm.slane %v577, 0
        %v1297 = vadd.f32 %v1292, %v1295
        %v1298 = vadd.f32 %v1293, %v1295
        %1299 = vadd.xlane.f32.xlu0 %v1297
        %v1300 = vpop.xlane.xlu0 %1299
        %1301 = vadd.xlane.f32.xlu0 %v1298
        %v1302 = vpop.xlane.xlu0 %1301
        %v1303 = vmul.f32 %v1300, %v596
        %v1304 = vmul.f32 %v1302, %v596
        %v1305 = vsub.f32 %v1297, %v1303
        %v1306 = vsub.f32 %v1298, %v1304
        %v1307 = vmul.f32 %v1305, %v1305
        %v1308 = vmul.f32 %v1306, %v1306
        %1309 = vadd.xlane.f32.xlu0 %v1307
        %v1310 = vpop.xlane.xlu0 %1309
        %1311 = vadd.xlane.f32.xlu0 %v1308
        %v1312 = vpop.xlane.xlu0 %1311
        %v1313 = vmul.f32 %v1310, %v596
        %v1314 = vmul.f32 %v1312, %v596
        %v1315 = vadd.f32 %v1313, 1e-05
        %v1316 = vadd.f32 %v1314, 1e-05
        %v1317 = vrsqrt.pop %v1315
        %v1318 = vmul.f32 %v1317, %v1315
        %v1319 = vmul.f32 %v1318, %v1317
        %v1320 = vmul.f32 0.5, %v1319
        %v1321 = vsub.f32 1.5, %v1320
        %v1322 = vmul.f32 %v1317, %v1321
        %vm1323 = vweird.f32 %v1315
        %vm1324 = vweird.f32 %v1317
        %vm1325 = vmor %vm1323, %vm1324
        %v1326 = vsel %vm1325, %v1317, %v1322
        %v1327 = vrsqrt.pop %v1316
        %v1328 = vmul.f32 %v1327, %v1316
        %v1329 = vmul.f32 %v1328, %v1327
        %v1330 = vmul.f32 0.5, %v1329
        %v1331 = vsub.f32 1.5, %v1330
        %v1332 = vmul.f32 %v1327, %v1331
        %vm1333 = vweird.f32 %v1316
        %vm1334 = vweird.f32 %v1327
        %vm1335 = vmor %vm1333, %vm1334
        %v1336 = vsel %vm1335, %v1327, %v1332
        %v1337 = vmul.f32 %v1305, %v1326
        %v1338 = vmul.f32 %v1306, %v1336
        %v1340 = vperm.slane %v574, 0
        %v1342 = vmul.f32 %v1337, %v1340
        %v1343 = vmul.f32 %v1338, %v1340
        %v1345 = vperm.slane %v575, 0
        %v1347 = vadd.f32 %v1342, %v1345
        %v1348 = vadd.f32 %v1343, %v1345
        %v1349 = vpack.c.bf16 %v1348, %v1347
        %v1350 = vld [vmem:[#allocation14] sm:$0xff]
        %v1351 = vld [vmem:[#allocation14 + $0x8] sm:$0xff]
        %v1352 = vld [vmem:[#allocation14 + $0x10] sm:$0xff]
        %v1353 = vld [vmem:[#allocation14 + $0x18] sm:$0xff]
        %v1354 = vld [vmem:[#allocation14 + $0x20] sm:$0xff]
        %v1355 = vld [vmem:[#allocation14 + $0x28] sm:$0xff]
        %v1356 = vld [vmem:[#allocation14 + $0x30] sm:$0xff]
        %v1357 = vld [vmem:[#allocation14 + $0x38] sm:$0xff]
        %v1358 = vld [vmem:[#allocation14 + $0x40] sm:$0xff]
        %v1359 = vld [vmem:[#allocation14 + $0x48] sm:$0xff]
        %v1360 = vld [vmem:[#allocation14 + $0x50] sm:$0xff]
        %v1361 = vld [vmem:[#allocation14 + $0x58] sm:$0xff]
        %v1362 = vld [vmem:[#allocation14 + $0x60] sm:$0xff]
        %v1363 = vld [vmem:[#allocation14 + $0x68] sm:$0xff]
        %v1364 = vld [vmem:[#allocation14 + $0x70] sm:$0xff]
        %v1365 = vld [vmem:[#allocation14 + $0x78] sm:$0xff]
        %v1367 = vperm.slane %v578, 0
        %v1368 = vperm.slane %v578, 1
        %v1387 = vunpack.c.l.b16 %v1350
        %v1388 = vunpack.c.h.b16 %v1350
        %v1389 = vunpack.c.l.b16 %v1351
        %v1390 = vunpack.c.h.b16 %v1351
        %v1391 = vunpack.c.l.b16 %v1352
        %v1392 = vunpack.c.h.b16 %v1352
        %v1393 = vunpack.c.l.b16 %v1353
        %v1394 = vunpack.c.h.b16 %v1353
        %v1395 = vunpack.c.l.b16 %v1354
        %v1396 = vunpack.c.h.b16 %v1354
        %v1397 = vunpack.c.l.b16 %v1355
        %v1398 = vunpack.c.h.b16 %v1355
        %v1399 = vunpack.c.l.b16 %v1356
        %v1400 = vunpack.c.h.b16 %v1356
        %v1401 = vunpack.c.l.b16 %v1357
        %v1402 = vunpack.c.h.b16 %v1357
        %v1403 = vunpack.c.l.b16 %v1358
        %v1404 = vunpack.c.h.b16 %v1358
        %v1405 = vunpack.c.l.b16 %v1359
        %v1406 = vunpack.c.h.b16 %v1359
        %v1407 = vunpack.c.l.b16 %v1360
        %v1408 = vunpack.c.h.b16 %v1360
        %v1409 = vunpack.c.l.b16 %v1361
        %v1410 = vunpack.c.h.b16 %v1361
        %v1411 = vunpack.c.l.b16 %v1362
        %v1412 = vunpack.c.h.b16 %v1362
        %v1413 = vunpack.c.l.b16 %v1363
        %v1414 = vunpack.c.h.b16 %v1363
        %v1415 = vunpack.c.l.b16 %v1364
        %v1416 = vunpack.c.h.b16 %v1364
        %v1417 = vunpack.c.l.b16 %v1365
        %v1418 = vunpack.c.h.b16 %v1365
        %v1419 = vpack.c.b16 %v1389, %v1387
        %v1420 = vpack.c.b16 %v1390, %v1388
        %v1421 = vpack.c.b16 %v1393, %v1391
        %v1422 = vpack.c.b16 %v1394, %v1392
        %v1423 = vpack.c.b16 %v1397, %v1395
        %v1424 = vpack.c.b16 %v1398, %v1396
        %v1425 = vpack.c.b16 %v1401, %v1399
        %v1426 = vpack.c.b16 %v1402, %v1400
        %v1427 = vpack.c.b16 %v1405, %v1403
        %v1428 = vpack.c.b16 %v1406, %v1404
        %v1429 = vpack.c.b16 %v1409, %v1407
        %v1430 = vpack.c.b16 %v1410, %v1408
        %v1431 = vpack.c.b16 %v1413, %v1411
        %v1432 = vpack.c.b16 %v1414, %v1412
        %v1433 = vpack.c.b16 %v1417, %v1415
        %v1434 = vpack.c.b16 %v1418, %v1416
        %1451 = vmatpush.bf16.msra.mxu0 %v1433
        %1452 = vmatpush.bf16.msra.mxu0 %v1431
        %1453 = vmatpush.bf16.msra.mxu0 %v1429
        %1454 = vmatpush.bf16.msra.mxu0 %v1427
        %1455 = vmatpush.bf16.msra.mxu0 %v1425
        %1456 = vmatpush.bf16.msra.mxu0 %v1423
        %1457 = vmatpush.bf16.msra.mxu0 %v1421
        %1458 = vmatpush.bf16.msra.mxu0 %v1419
        %1459 = vmatmul.bf16.gmra.mxu0 %v1349
        %v1460 = vpop.f32.mrf.mxu0
        %v1461 = vadd.f32 %v1367, %v1460
        %v1462 = vpop.f32.mrf.mxu0
        %v1463 = vadd.f32 %v1367, %v1462
        %1464 = vdwg.mxu0
        %1465 = vmatpush.bf16.msra.mxu0 %v1434
        %1466 = vmatpush.bf16.msra.mxu0 %v1432
        %1467 = vmatpush.bf16.msra.mxu0 %v1430
        %1468 = vmatpush.bf16.msra.mxu0 %v1428
        %1469 = vmatpush.bf16.msra.mxu0 %v1426
        %1470 = vmatpush.bf16.msra.mxu0 %v1424
        %1471 = vmatpush.bf16.msra.mxu0 %v1422
        %1472 = vmatpush.bf16.msra.mxu0 %v1420
        %1473 = vmatmul.bf16.gmra.mxu0 %v1349
        %v1474 = vpop.f32.mrf.mxu0
        %v1475 = vadd.f32 %v1368, %v1474
        %v1476 = vpop.f32.mrf.mxu0
        %v1477 = vadd.f32 %v1368, %v1476
        %1478 = vdwg.mxu0
        %v1479 = vmul.f32 %v1461, %v1461
        %v1480 = vmul.f32 %v1475, %v1475
        %v1481 = vmul.f32 %v1463, %v1463
        %v1482 = vmul.f32 %v1477, %v1477
        %v1483 = vmul.f32 %v1461, %v1479
        %v1484 = vmul.f32 %v1475, %v1480
        %v1485 = vmul.f32 %v1463, %v1481
        %v1486 = vmul.f32 %v1477, %v1482
        %v1487 = vmul.f32 %v1483, 0.044715
        %v1488 = vmul.f32 %v1484, 0.044715
        %v1489 = vmul.f32 %v1485, 0.044715
        %v1490 = vmul.f32 %v1486, 0.044715
        %v1491 = vadd.f32 %v1461, %v1487
        %v1492 = vadd.f32 %v1475, %v1488
        %v1493 = vadd.f32 %v1463, %v1489
        %v1494 = vadd.f32 %v1477, %v1490
        %v1495 = vmul.f32 %v1491, 0.7978846
        %v1496 = vmul.f32 %v1492, 0.7978846
        %v1497 = vmul.f32 %v1493, 0.7978846
        %v1498 = vmul.f32 %v1494, 0.7978846
        %v1499 = vtanh.pop %v1495
        %v1500 = vtanh.pop %v1496
        %v1501 = vtanh.pop %v1497
        %v1502 = vtanh.pop %v1498
        %v1503 = vadd.f32 %v1499, 1.0
        %v1504 = vadd.f32 %v1500, 1.0
        %v1505 = vadd.f32 %v1501, 1.0
        %v1506 = vadd.f32 %v1502, 1.0
        %v1507 = vmul.f32 %v1503, 0.5
        %v1508 = vmul.f32 %v1504, 0.5
        %v1509 = vmul.f32 %v1505, 0.5
        %v1510 = vmul.f32 %v1506, 0.5
        %v1511 = vmul.f32 %v1461, %v1507
        %v1512 = vmul.f32 %v1475, %v1508
        %v1513 = vmul.f32 %v1463, %v1509
        %v1514 = vmul.f32 %v1477, %v1510
        %v1515 = vpack.c.bf16 %v1513, %v1511
        %v1516 = vpack.c.bf16 %v1514, %v1512
        %v1517 = vld [vmem:[#allocation15] sm:$0xf]
        %v1518 = vld [vmem:[#allocation15 + $0x4] sm:$0xf]
        %v1519 = vld [vmem:[#allocation15 + $0x8] sm:$0xf]
        %v1520 = vld [vmem:[#allocation15 + $0xc] sm:$0xf]
        %v1521 = vld [vmem:[#allocation15 + $0x10] sm:$0xf]
        %v1522 = vld [vmem:[#allocation15 + $0x14] sm:$0xf]
        %v1523 = vld [vmem:[#allocation15 + $0x18] sm:$0xf]
        %v1524 = vld [vmem:[#allocation15 + $0x1c] sm:$0xf]
        %v1525 = vld [vmem:[#allocation15 + $0x20] sm:$0xf]
        %v1526 = vld [vmem:[#allocation15 + $0x24] sm:$0xf]
        %v1527 = vld [vmem:[#allocation15 + $0x28] sm:$0xf]
        %v1528 = vld [vmem:[#allocation15 + $0x2c] sm:$0xf]
        %v1529 = vld [vmem:[#allocation15 + $0x30] sm:$0xf]
        %v1530 = vld [vmem:[#allocation15 + $0x34] sm:$0xf]
        %v1531 = vld [vmem:[#allocation15 + $0x38] sm:$0xf]
        %v1532 = vld [vmem:[#allocation15 + $0x3c] sm:$0xf]
        %v1533 = vld [vmem:[#allocation15 + $0x40] sm:$0xf]
        %v1534 = vld [vmem:[#allocation15 + $0x44] sm:$0xf]
        %v1535 = vld [vmem:[#allocation15 + $0x48] sm:$0xf]
        %v1536 = vld [vmem:[#allocation15 + $0x4c] sm:$0xf]
        %v1537 = vld [vmem:[#allocation15 + $0x50] sm:$0xf]
        %v1538 = vld [vmem:[#allocation15 + $0x54] sm:$0xf]
        %v1539 = vld [vmem:[#allocation15 + $0x58] sm:$0xf]
        %v1540 = vld [vmem:[#allocation15 + $0x5c] sm:$0xf]
        %v1541 = vld [vmem:[#allocation15 + $0x60] sm:$0xf]
        %v1542 = vld [vmem:[#allocation15 + $0x64] sm:$0xf]
        %v1543 = vld [vmem:[#allocation15 + $0x68] sm:$0xf]
        %v1544 = vld [vmem:[#allocation15 + $0x6c] sm:$0xf]
        %v1545 = vld [vmem:[#allocation15 + $0x70] sm:$0xf]
        %v1546 = vld [vmem:[#allocation15 + $0x74] sm:$0xf]
        %v1547 = vld [vmem:[#allocation15 + $0x78] sm:$0xf]
        %v1548 = vld [vmem:[#allocation15 + $0x7c] sm:$0xf]
        %v1550 = vperm.slane %v579, 0
        %v1584 = vunpack.c.l.b16 %v1517
        %v1585 = vunpack.c.l.b16 %v1518
        %v1586 = vunpack.c.l.b16 %v1519
        %v1587 = vunpack.c.l.b16 %v1520
        %v1588 = vunpack.c.l.b16 %v1521
        %v1589 = vunpack.c.l.b16 %v1522
        %v1590 = vunpack.c.l.b16 %v1523
        %v1591 = vunpack.c.l.b16 %v1524
        %v1592 = vunpack.c.l.b16 %v1525
        %v1593 = vunpack.c.l.b16 %v1526
        %v1594 = vunpack.c.l.b16 %v1527
        %v1595 = vunpack.c.l.b16 %v1528
        %v1596 = vunpack.c.l.b16 %v1529
        %v1597 = vunpack.c.l.b16 %v1530
        %v1598 = vunpack.c.l.b16 %v1531
        %v1599 = vunpack.c.l.b16 %v1532
        %v1600 = vunpack.c.l.b16 %v1533
        %v1601 = vunpack.c.l.b16 %v1534
        %v1602 = vunpack.c.l.b16 %v1535
        %v1603 = vunpack.c.l.b16 %v1536
        %v1604 = vunpack.c.l.b16 %v1537
        %v1605 = vunpack.c.l.b16 %v1538
        %v1606 = vunpack.c.l.b16 %v1539
        %v1607 = vunpack.c.l.b16 %v1540
        %v1608 = vunpack.c.l.b16 %v1541
        %v1609 = vunpack.c.l.b16 %v1542
        %v1610 = vunpack.c.l.b16 %v1543
        %v1611 = vunpack.c.l.b16 %v1544
        %v1612 = vunpack.c.l.b16 %v1545
        %v1613 = vunpack.c.l.b16 %v1546
        %v1614 = vunpack.c.l.b16 %v1547
        %v1615 = vunpack.c.l.b16 %v1548
        %v1616 = vpack.c.b16 %v1585, %v1584
        %v1617 = vpack.c.b16 %v1587, %v1586
        %v1618 = vpack.c.b16 %v1589, %v1588
        %v1619 = vpack.c.b16 %v1591, %v1590
        %v1620 = vpack.c.b16 %v1593, %v1592
        %v1621 = vpack.c.b16 %v1595, %v1594
        %v1622 = vpack.c.b16 %v1597, %v1596
        %v1623 = vpack.c.b16 %v1599, %v1598
        %v1624 = vpack.c.b16 %v1601, %v1600
        %v1625 = vpack.c.b16 %v1603, %v1602
        %v1626 = vpack.c.b16 %v1605, %v1604
        %v1627 = vpack.c.b16 %v1607, %v1606
        %v1628 = vpack.c.b16 %v1609, %v1608
        %v1629 = vpack.c.b16 %v1611, %v1610
        %v1630 = vpack.c.b16 %v1613, %v1612
        %v1631 = vpack.c.b16 %v1615, %v1614
        %1648 = vmatpush.bf16.msra.mxu0 %v1623
        %1649 = vmatpush.bf16.msra.mxu0 %v1622
        %1650 = vmatpush.bf16.msra.mxu0 %v1621
        %1651 = vmatpush.bf16.msra.mxu0 %v1620
        %1652 = vmatpush.bf16.msra.mxu0 %v1619
        %1653 = vmatpush.bf16.msra.mxu0 %v1618
        %1654 = vmatpush.bf16.msra.mxu0 %v1617
        %1655 = vmatpush.bf16.msra.mxu0 %v1616
        %1656 = vmatmul.bf16.gmra.mxu0 %v1515
        %v1657 = vpop.f32.mrf.mxu0
        %v1658 = vadd.f32 %v1550, %v1657
        %v1659 = vpop.f32.mrf.mxu0
        %v1660 = vadd.f32 %v1550, %v1659
        %1661 = vdwg.mxu0
        %1662 = vmatpush.bf16.msra.mxu0 %v1631
        %1663 = vmatpush.bf16.msra.mxu0 %v1630
        %1664 = vmatpush.bf16.msra.mxu0 %v1629
        %1665 = vmatpush.bf16.msra.mxu0 %v1628
        %1666 = vmatpush.bf16.msra.mxu0 %v1627
        %1667 = vmatpush.bf16.msra.mxu0 %v1626
        %1668 = vmatpush.bf16.msra.mxu0 %v1625
        %1669 = vmatpush.bf16.msra.mxu0 %v1624
        %1670 = vmatmul.bf16.gmra.mxu0 %v1516
        %v1671 = vpop.f32.mrf.mxu0
        %v1672 = vadd.f32 %v1658, %v1671
        %v1673 = vpop.f32.mrf.mxu0
        %v1674 = vadd.f32 %v1660, %v1673
        %1675 = vdwg.mxu0
        %v1676 = vadd.f32 %v1297, %v1672
        %v1677 = vadd.f32 %v1298, %v1674
        %1678 = vst [vmem:[#allocation2] sm:$0xff] %v1676
        %1679 = vst [vmem:[#allocation2 + $0x8] sm:$0xff] %v1677
        %v1680 = vld [vmem:[#allocation2] sm:$0xff]
        %v1681 = vld [vmem:[#allocation2 + $0x8] sm:$0xff]
        %1682 = vadd.xlane.f32.xlu0 %v1680
        %v1683 = vpop.xlane.xlu0 %1682
        %1684 = vadd.xlane.f32.xlu0 %v1681
        %v1685 = vpop.xlane.xlu0 %1684
        %v1686 = vmul.f32 %v1683, %v596
        %v1687 = vmul.f32 %v1685, %v596
        %v1688 = vsub.f32 %v1680, %v1686
        %v1689 = vsub.f32 %v1681, %v1687
        %v1690 = vmul.f32 %v1688, %v1688
        %v1691 = vmul.f32 %v1689, %v1689
        %1692 = vadd.xlane.f32.xlu0 %v1690
        %v1693 = vpop.xlane.xlu0 %1692
        %1694 = vadd.xlane.f32.xlu0 %v1691
        %v1695 = vpop.xlane.xlu0 %1694
        %v1696 = vmul.f32 %v1693, %v596
        %v1697 = vmul.f32 %v1695, %v596
        %v1698 = vadd.f32 %v1696, 1e-05
        %v1699 = vadd.f32 %v1697, 1e-05
        %v1700 = vrsqrt.pop %v1698
        %v1701 = vmul.f32 %v1700, %v1698
        %v1702 = vmul.f32 %v1701, %v1700
        %v1703 = vmul.f32 0.5, %v1702
        %v1704 = vsub.f32 1.5, %v1703
        %v1705 = vmul.f32 %v1700, %v1704
        %vm1706 = vweird.f32 %v1698
        %vm1707 = vweird.f32 %v1700
        %vm1708 = vmor %vm1706, %vm1707
        %v1709 = vsel %vm1708, %v1700, %v1705
        %v1710 = vrsqrt.pop %v1699
        %v1711 = vmul.f32 %v1710, %v1699
        %v1712 = vmul.f32 %v1711, %v1710
        %v1713 = vmul.f32 0.5, %v1712
        %v1714 = vsub.f32 1.5, %v1713
        %v1715 = vmul.f32 %v1710, %v1714
        %vm1716 = vweird.f32 %v1699
        %vm1717 = vweird.f32 %v1710
        %vm1718 = vmor %vm1716, %vm1717
        %v1719 = vsel %vm1718, %v1710, %v1715
        %v1720 = vmul.f32 %v1688, %v1709
        %v1721 = vmul.f32 %v1689, %v1719
        %v1722 = vmul.f32 %v1720, %v634
        %v1723 = vmul.f32 %v1721, %v634
        %v1724 = vadd.f32 %v1722, %v639
        %v1725 = vadd.f32 %v1723, %v639
        %v1726 = vpack.c.bf16 %v1725, %v1724
        %v1727 = vld [vmem:[#allocation9] sm:$0xff]
        %v1728 = vld [vmem:[#allocation9 + $0x8] sm:$0xf]
        %v1729 = vld [vmem:[#allocation9 + $0xc] sm:$0xff]
        %v1730 = vld [vmem:[#allocation9 + $0x14] sm:$0xf]
        %v1731 = vld [vmem:[#allocation9 + $0x18] sm:$0xff]
        %v1732 = vld [vmem:[#allocation9 + $0x20] sm:$0xf]
        %v1733 = vld [vmem:[#allocation9 + $0x24] sm:$0xff]
        %v1734 = vld [vmem:[#allocation9 + $0x2c] sm:$0xf]
        %v1735 = vld [vmem:[#allocation9 + $0x30] sm:$0xff]
        %v1736 = vld [vmem:[#allocation9 + $0x38] sm:$0xf]
        %v1737 = vld [vmem:[#allocation9 + $0x3c] sm:$0xff]
        %v1738 = vld [vmem:[#allocation9 + $0x44] sm:$0xf]
        %v1739 = vld [vmem:[#allocation9 + $0x48] sm:$0xff]
        %v1740 = vld [vmem:[#allocation9 + $0x50] sm:$0xf]
        %v1741 = vld [vmem:[#allocation9 + $0x54] sm:$0xff]
        %v1742 = vld [vmem:[#allocation9 + $0x5c] sm:$0xf]
        %v1743 = vld [vmem:[#allocation9 + $0x60] sm:$0xff]
        %v1744 = vld [vmem:[#allocation9 + $0x68] sm:$0xf]
        %v1745 = vld [vmem:[#allocation9 + $0x6c] sm:$0xff]
        %v1746 = vld [vmem:[#allocation9 + $0x74] sm:$0xf]
        %v1747 = vld [vmem:[#allocation9 + $0x78] sm:$0xff]
        %v1748 = vld [vmem:[#allocation9 + $0x80] sm:$0xf]
        %v1749 = vld [vmem:[#allocation9 + $0x84] sm:$0xff]
        %v1750 = vld [vmem:[#allocation9 + $0x8c] sm:$0xf]
        %v1751 = vld [vmem:[#allocation9 + $0x90] sm:$0xff]
        %v1752 = vld [vmem:[#allocation9 + $0x98] sm:$0xf]
        %v1753 = vld [vmem:[#allocation9 + $0x9c] sm:$0xff]
        %v1754 = vld [vmem:[#allocation9 + $0xa4] sm:$0xf]
        %v1755 = vld [vmem:[#allocation9 + $0xa8] sm:$0xff]
        %v1756 = vld [vmem:[#allocation9 + $0xb0] sm:$0xf]
        %v1757 = vld [vmem:[#allocation9 + $0xb4] sm:$0xff]
        %v1758 = vld [vmem:[#allocation9 + $0xbc] sm:$0xf]
        %v1791 = vunpack.c.l.b16 %v1727
        %v1792 = vunpack.c.h.b16 %v1727
        %v1793 = vunpack.c.l.b16 %v1728
        %v1794 = vunpack.c.l.b16 %v1729
        %v1795 = vunpack.c.h.b16 %v1729
        %v1796 = vunpack.c.l.b16 %v1730
        %v1797 = vunpack.c.l.b16 %v1731
        %v1798 = vunpack.c.h.b16 %v1731
        %v1799 = vunpack.c.l.b16 %v1732
        %v1800 = vunpack.c.l.b16 %v1733
        %v1801 = vunpack.c.h.b16 %v1733
        %v1802 = vunpack.c.l.b16 %v1734
        %v1803 = vunpack.c.l.b16 %v1735
        %v1804 = vunpack.c.h.b16 %v1735
        %v1805 = vunpack.c.l.b16 %v1736
        %v1806 = vunpack.c.l.b16 %v1737
        %v1807 = vunpack.c.h.b16 %v1737
        %v1808 = vunpack.c.l.b16 %v1738
        %v1809 = vunpack.c.l.b16 %v1739
        %v1810 = vunpack.c.h.b16 %v1739
        %v1811 = vunpack.c.l.b16 %v1740
        %v1812 = vunpack.c.l.b16 %v1741
        %v1813 = vunpack.c.h.b16 %v1741
        %v1814 = vunpack.c.l.b16 %v1742
        %v1815 = vunpack.c.l.b16 %v1743
        %v1816 = vunpack.c.h.b16 %v1743
        %v1817 = vunpack.c.l.b16 %v1744
        %v1818 = vunpack.c.l.b16 %v1745
        %v1819 = vunpack.c.h.b16 %v1745
        %v1820 = vunpack.c.l.b16 %v1746
        %v1821 = vunpack.c.l.b16 %v1747
        %v1822 = vunpack.c.h.b16 %v1747
        %v1823 = vunpack.c.l.b16 %v1748
        %v1824 = vunpack.c.l.b16 %v1749
        %v1825 = vunpack.c.h.b16 %v1749
        %v1826 = vunpack.c.l.b16 %v1750
        %v1827 = vunpack.c.l.b16 %v1751
        %v1828 = vunpack.c.h.b16 %v1751
        %v1829 = vunpack.c.l.b16 %v1752
        %v1830 = vunpack.c.l.b16 %v1753
        %v1831 = vunpack.c.h.b16 %v1753
        %v1832 = vunpack.c.l.b16 %v1754
        %v1833 = vunpack.c.l.b16 %v1755
        %v1834 = vunpack.c.h.b16 %v1755
        %v1835 = vunpack.c.l.b16 %v1756
        %v1836 = vunpack.c.l.b16 %v1757
        %v1837 = vunpack.c.h.b16 %v1757
        %v1838 = vunpack.c.l.b16 %v1758
        %v1839 = vpack.c.b16 %v1794, %v1791
        %v1840 = vpack.c.b16 %v1795, %v1792
        %v1841 = vpack.c.b16 %v1796, %v1793
        %v1842 = vpack.c.b16 %v1800, %v1797
        %v1843 = vpack.c.b16 %v1801, %v1798
        %v1844 = vpack.c.b16 %v1802, %v1799
        %v1845 = vpack.c.b16 %v1806, %v1803
        %v1846 = vpack.c.b16 %v1807, %v1804
        %v1847 = vpack.c.b16 %v1808, %v1805
        %v1848 = vpack.c.b16 %v1812, %v1809
        %v1849 = vpack.c.b16 %v1813, %v1810
        %v1850 = vpack.c.b16 %v1814, %v1811
        %v1851 = vpack.c.b16 %v1818, %v1815
        %v1852 = vpack.c.b16 %v1819, %v1816
        %v1853 = vpack.c.b16 %v1820, %v1817
        %v1854 = vpack.c.b16 %v1824, %v1821
        %v1855 = vpack.c.b16 %v1825, %v1822
        %v1856 = vpack.c.b16 %v1826, %v1823
        %v1857 = vpack.c.b16 %v1830, %v1827
        %v1858 = vpack.c.b16 %v1831, %v1828
        %v1859 = vpack.c.b16 %v1832, %v1829
        %v1860 = vpack.c.b16 %v1836, %v1833
        %v1861 = vpack.c.b16 %v1837, %v1834
        %v1862 = vpack.c.b16 %v1838, %v1835
        %1887 = vmatpush.bf16.msra.mxu0 %v1860
        %1888 = vmatpush.bf16.msra.mxu0 %v1857
        %1889 = vmatpush.bf16.msra.mxu0 %v1854
        %1890 = vmatpush.bf16.msra.mxu0 %v1851
        %1891 = vmatpush.bf16.msra.mxu0 %v1848
        %1892 = vmatpush.bf16.msra.mxu0 %v1845
        %1893 = vmatpush.bf16.msra.mxu0 %v1842
        %1894 = vmatpush.bf16.msra.mxu0 %v1839
        %1895 = vmatmul.bf16.gmra.mxu0 %v1726
        %v1896 = vpop.f32.mrf.mxu0
        %v1897 = vadd.f32 %v677, %v1896
        %v1898 = vpop.f32.mrf.mxu0
        %v1899 = vadd.f32 %v677, %v1898
        %1900 = vdwg.mxu0
        %1901 = vmatpush.bf16.msra.mxu0 %v1861
        %1902 = vmatpush.bf16.msra.mxu0 %v1858
        %1903 = vmatpush.bf16.msra.mxu0 %v1855
        %1904 = vmatpush.bf16.msra.mxu0 %v1852
        %1905 = vmatpush.bf16.msra.mxu0 %v1849
        %1906 = vmatpush.bf16.msra.mxu0 %v1846
        %1907 = vmatpush.bf16.msra.mxu0 %v1843
        %1908 = vmatpush.bf16.msra.mxu0 %v1840
        %1909 = vmatmul.bf16.gmra.mxu0 %v1726
        %v1910 = vpop.f32.mrf.mxu0
        %v1911 = vadd.f32 %v678, %v1910
        %v1912 = vpop.f32.mrf.mxu0
        %v1913 = vadd.f32 %v678, %v1912
        %1914 = vdwg.mxu0
        %1915 = vmatpush.bf16.msra.mxu0 %v1862
        %1916 = vmatpush.bf16.msra.mxu0 %v1859
        %1917 = vmatpush.bf16.msra.mxu0 %v1856
        %1918 = vmatpush.bf16.msra.mxu0 %v1853
        %1919 = vmatpush.bf16.msra.mxu0 %v1850
        %1920 = vmatpush.bf16.msra.mxu0 %v1847
        %1921 = vmatpush.bf16.msra.mxu0 %v1844
        %1922 = vmatpush.bf16.msra.mxu0 %v1841
        %1923 = vmatmul.bf16.gmra.mxu0 %v1726
        %v1924 = vpop.f32.mrf.mxu0
        %v1925 = vadd.f32 %v679, %v1924
        %v1926 = vpop.f32.mrf.mxu0
        %v1927 = vadd.f32 %v679, %v1926
        %1928 = vdwg.mxu0
        %v1929 = vpack.c.bf16 %v1911, %v1897
        %v1930 = vpack.c.bf16 %v1925, %v1925
        %v1931 = vpack.c.bf16 %v1913, %v1899
        %v1932 = vpack.c.bf16 %v1927, %v1927
        %v1935 = vrot.slane %v1929, 4
        %v1936 = vrot.slane %v1931, 4
        %v1937 = vunpack.c.l.b16 %v1929
        %v1938 = vunpack.c.l.b16 %v1931
        %v1939 = vpack.c.b16 %v1938, %v1937
        %v1940 = vunpack.c.l.b16 %v1935
        %v1941 = vunpack.c.l.b16 %v1936
        %v1942 = vpack.c.b16 %v1941, %v1940
        %v1944 = vsel %vm867, %v1939, 0
        %v1947 = vsel %vm867, %v1942, 0
        %1949 = vmatpush.bf16.xpose.msra.mxu0 0
        %1950 = vmatpush.bf16.xpose.msra.mxu0 0
        %1951 = vmatpush.bf16.xpose.msra.mxu0 0
        %1952 = vmatpush.bf16.xpose.msra.mxu0 0
        %1953 = vmatpush.bf16.xpose.msra.mxu0 0
        %1954 = vmatpush.bf16.xpose.msra.mxu0 0
        %1955 = vmatpush.bf16.xpose.msra.mxu0 0
        %1956 = vmatpush.bf16.xpose.msra.mxu0 %v1947
        %1957 = vmatmul.bf16.gmra.mxu0 %v1944
        %v1958 = vpop.f32.mrf.mxu0
        %v1959 = vadd.f32 0.0, %v1958
        %v1960 = vpop.f32.mrf.mxu0
        %v1961 = vadd.f32 0.0, %v1960
        %1962 = vdwg.mxu0
        %v1963 = vsel %vm888, %v1959, -inf
        %1964 = vmax.xlane.f32.xlu0 %v1963
        %v1965 = vpop.xlane.xlu0 %1964
        %v1966 = vsel %vm888, %v1961, -inf
        %1967 = vmax.xlane.f32.xlu0 %v1966
        %v1968 = vpop.xlane.xlu0 %1967
        %v1969 = vsub.f32 %v1959, %v1965
        %v1970 = vsub.f32 %v1961, %v1968
        %v1971 = vmul.f32 %v1969, 1.442695
        %v1972 = vpow.pop %v1971
        %v1973 = vmul.f32 %v1970, 1.442695
        %v1974 = vpow.pop %v1973
        %v1975 = vsel %vm888, %v1972, 0.0
        %1976 = vadd.xlane.f32.xlu0 %v1975
        %v1977 = vpop.xlane.xlu0 %1976
        %v1978 = vsel %vm888, %v1974, 0.0
        %1979 = vadd.xlane.f32.xlu0 %v1978
        %v1980 = vpop.xlane.xlu0 %1979
        %v1981 = vrcp.pop %v1977
        %v1982 = vrcp.pop %v1980
        %v1983 = vmul.f32 %v1972, %v1981
        %v1984 = vmul.f32 %v1974, %v1982
        %v1985 = vpack.c.bf16 %v1983, %v1983
        %v1986 = vpack.c.bf16 %v1984, %v1984
        %v1989 = vunpack.c.l.b16 %v1985
        %v1990 = vunpack.c.l.b16 %v1986
        %v1991 = vpack.c.b16 %v1990, %v1989
        %v1994 = vunpack.c.l.b16 %v1930
        %v1995 = vunpack.c.l.b16 %v1932
        %v1996 = vpack.c.b16 %v1995, %v1994
        %v1999 = vsel %vm888, %v1991, 0
        %2001 = vmatpush.bf16.msra.mxu0 0
        %2002 = vmatpush.bf16.msra.mxu0 0
        %2003 = vmatpush.bf16.msra.mxu0 0
        %2004 = vmatpush.bf16.msra.mxu0 0
        %2005 = vmatpush.bf16.msra.mxu0 0
        %2006 = vmatpush.bf16.msra.mxu0 0
        %2007 = vmatpush.bf16.msra.mxu0 0
        %2008 = vmatpush.bf16.msra.mxu0 %v1996
        %2009 = vmatmul.bf16.gmra.mxu0 %v1999
        %v2010 = vpop.f32.mrf.mxu0
        %v2011 = vadd.f32 0.0, %v2010
        %v2012 = vpop.f32.mrf.mxu0
        %v2013 = vadd.f32 0.0, %v2012
        %2014 = vdwg.mxu0
        %2015 = vrot.lane.b32.xlu0 %v1929, 96
        %v2016 = vpop.permute.xlu0 %2015
        %2017 = vrot.lane.b32.xlu0 %v1931, 96
        %v2018 = vpop.permute.xlu0 %2017
        %v2019 = vrot.slane %v2016, 4
        %v2020 = vrot.slane %v2018, 4
        %2021 = vrot.lane.b32.xlu0 %v1939, 96
        %v2022 = vpop.permute.xlu0 %2021
        %v2023 = vunpack.c.l.b16 %v2019
        %v2024 = vunpack.c.l.b16 %v2020
        %v2025 = vpack.c.b16 %v2024, %v2023
        %v2027 = vsel %vm867, %v2022, 0
        %v2030 = vsel %vm867, %v2025, 0
        %2032 = vmatpush.bf16.xpose.msra.mxu0 0
        %2033 = vmatpush.bf16.xpose.msra.mxu0 0
        %2034 = vmatpush.bf16.xpose.msra.mxu0 0
        %2035 = vmatpush.bf16.xpose.msra.mxu0 0
        %2036 = vmatpush.bf16.xpose.msra.mxu0 0
        %2037 = vmatpush.bf16.xpose.msra.mxu0 0
        %2038 = vmatpush.bf16.xpose.msra.mxu0 0
        %2039 = vmatpush.bf16.xpose.msra.mxu0 %v2030
        %2040 = vmatmul.bf16.gmra.mxu0 %v2027
        %v2041 = vpop.f32.mrf.mxu0
        %v2042 = vadd.f32 0.0, %v2041
        %v2043 = vpop.f32.mrf.mxu0
        %v2044 = vadd.f32 0.0, %v2043
        %2045 = vdwg.mxu0
        %v2046 = vsel %vm888, %v2042, -inf
        %2047 = vmax.xlane.f32.xlu0 %v2046
        %v2048 = vpop.xlane.xlu0 %2047
        %v2049 = vsel %vm888, %v2044, -inf
        %2050 = vmax.xlane.f32.xlu0 %v2049
        %v2051 = vpop.xlane.xlu0 %2050
        %v2052 = vsub.f32 %v2042, %v2048
        %v2053 = vsub.f32 %v2044, %v2051
        %v2054 = vmul.f32 %v2052, 1.442695
        %v2055 = vpow.pop %v2054
        %v2056 = vmul.f32 %v2053, 1.442695
        %v2057 = vpow.pop %v2056
        %v2058 = vsel %vm888, %v2055, 0.0
        %2059 = vadd.xlane.f32.xlu0 %v2058
        %v2060 = vpop.xlane.xlu0 %2059
        %v2061 = vsel %vm888, %v2057, 0.0
        %2062 = vadd.xlane.f32.xlu0 %v2061
        %v2063 = vpop.xlane.xlu0 %2062
        %v2064 = vrcp.pop %v2060
        %v2065 = vrcp.pop %v2063
        %v2066 = vmul.f32 %v2055, %v2064
        %v2067 = vmul.f32 %v2057, %v2065
        %v2068 = vpack.c.bf16 %v2066, %v2066
        %v2069 = vpack.c.bf16 %v2067, %v2067
        %v2072 = vunpack.c.l.b16 %v2068
        %v2073 = vunpack.c.l.b16 %v2069
        %v2074 = vpack.c.b16 %v2073, %v2072
        %2075 = vrot.lane.b32.xlu0 %v1996, 96
        %v2076 = vpop.permute.xlu0 %2075
        %v2079 = vsel %vm888, %v2074, 0
        %2081 = vmatpush.bf16.msra.mxu0 0
        %2082 = vmatpush.bf16.msra.mxu0 0
        %2083 = vmatpush.bf16.msra.mxu0 0
        %2084 = vmatpush.bf16.msra.mxu0 0
        %2085 = vmatpush.bf16.msra.mxu0 0
        %2086 = vmatpush.bf16.msra.mxu0 0
        %2087 = vmatpush.bf16.msra.mxu0 0
        %2088 = vmatpush.bf16.msra.mxu0 %v2076
        %2089 = vmatmul.bf16.gmra.mxu0 %v2079
        %v2090 = vpop.f32.mrf.mxu0
        %v2091 = vadd.f32 0.0, %v2090
        %v2092 = vpop.f32.mrf.mxu0
        %v2093 = vadd.f32 0.0, %v2092
        %2094 = vdwg.mxu0
        %2095 = vrot.lane.b32.xlu0 %v1929, 64
        %v2096 = vpop.permute.xlu0 %2095
        %2097 = vrot.lane.b32.xlu0 %v1931, 64
        %v2098 = vpop.permute.xlu0 %2097
        %v2099 = vrot.slane %v2096, 4
        %v2100 = vrot.slane %v2098, 4
        %2101 = vrot.lane.b32.xlu0 %v1939, 64
        %v2102 = vpop.permute.xlu0 %2101
        %v2103 = vunpack.c.l.b16 %v2099
        %v2104 = vunpack.c.l.b16 %v2100
        %v2105 = vpack.c.b16 %v2104, %v2103
        %v2107 = vsel %vm867, %v2102, 0
        %v2110 = vsel %vm867, %v2105, 0
        %2112 = vmatpush.bf16.xpose.msra.mxu0 0
        %2113 = vmatpush.bf16.xpose.msra.mxu0 0
        %2114 = vmatpush.bf16.xpose.msra.mxu0 0
        %2115 = vmatpush.bf16.xpose.msra.mxu0 0
        %2116 = vmatpush.bf16.xpose.msra.mxu0 0
        %2117 = vmatpush.bf16.xpose.msra.mxu0 0
        %2118 = vmatpush.bf16.xpose.msra.mxu0 0
        %2119 = vmatpush.bf16.xpose.msra.mxu0 %v2110
        %2120 = vmatmul.bf16.gmra.mxu0 %v2107
        %v2121 = vpop.f32.mrf.mxu0
        %v2122 = vadd.f32 0.0, %v2121
        %v2123 = vpop.f32.mrf.mxu0
        %v2124 = vadd.f32 0.0, %v2123
        %2125 = vdwg.mxu0
        %v2126 = vsel %vm888, %v2122, -inf
        %2127 = vmax.xlane.f32.xlu0 %v2126
        %v2128 = vpop.xlane.xlu0 %2127
        %v2129 = vsel %vm888, %v2124, -inf
        %2130 = vmax.xlane.f32.xlu0 %v2129
        %v2131 = vpop.xlane.xlu0 %2130
        %v2132 = vsub.f32 %v2122, %v2128
        %v2133 = vsub.f32 %v2124, %v2131
        %v2134 = vmul.f32 %v2132, 1.442695
        %v2135 = vpow.pop %v2134
        %v2136 = vmul.f32 %v2133, 1.442695
        %v2137 = vpow.pop %v2136
        %v2138 = vsel %vm888, %v2135, 0.0
        %2139 = vadd.xlane.f32.xlu0 %v2138
        %v2140 = vpop.xlane.xlu0 %2139
        %v2141 = vsel %vm888, %v2137, 0.0
        %2142 = vadd.xlane.f32.xlu0 %v2141
        %v2143 = vpop.xlane.xlu0 %2142
        %v2144 = vrcp.pop %v2140
        %v2145 = vrcp.pop %v2143
        %v2146 = vmul.f32 %v2135, %v2144
        %v2147 = vmul.f32 %v2137, %v2145
        %v2148 = vpack.c.bf16 %v2146, %v2146
        %v2149 = vpack.c.bf16 %v2147, %v2147
        %v2152 = vunpack.c.l.b16 %v2148
        %v2153 = vunpack.c.l.b16 %v2149
        %v2154 = vpack.c.b16 %v2153, %v2152
        %2155 = vrot.lane.b32.xlu0 %v1996, 64
        %v2156 = vpop.permute.xlu0 %2155
        %v2159 = vsel %vm888, %v2154, 0
        %2161 = vmatpush.bf16.msra.mxu0 0
        %2162 = vmatpush.bf16.msra.mxu0 0
        %2163 = vmatpush.bf16.msra.mxu0 0
        %2164 = vmatpush.bf16.msra.mxu0 0
        %2165 = vmatpush.bf16.msra.mxu0 0
        %2166 = vmatpush.bf16.msra.mxu0 0
        %2167 = vmatpush.bf16.msra.mxu0 0
        %2168 = vmatpush.bf16.msra.mxu0 %v2156
        %2169 = vmatmul.bf16.gmra.mxu0 %v2159
        %v2170 = vpop.f32.mrf.mxu0
        %v2171 = vadd.f32 0.0, %v2170
        %v2172 = vpop.f32.mrf.mxu0
        %v2173 = vadd.f32 0.0, %v2172
        %2174 = vdwg.mxu0
        %2175 = vrot.lane.b32.xlu0 %v1929, 32
        %v2176 = vpop.permute.xlu0 %2175
        %2177 = vrot.lane.b32.xlu0 %v1931, 32
        %v2178 = vpop.permute.xlu0 %2177
        %v2179 = vrot.slane %v2176, 4
        %v2180 = vrot.slane %v2178, 4
        %2181 = vrot.lane.b32.xlu0 %v1939, 32
        %v2182 = vpop.permute.xlu0 %2181
        %v2183 = vunpack.c.l.b16 %v2179
        %v2184 = vunpack.c.l.b16 %v2180
        %v2185 = vpack.c.b16 %v2184, %v2183
        %v2187 = vsel %vm867, %v2182, 0
        %v2190 = vsel %vm867, %v2185, 0
        %2192 = vmatpush.bf16.xpose.msra.mxu0 0
        %2193 = vmatpush.bf16.xpose.msra.mxu0 0
        %2194 = vmatpush.bf16.xpose.msra.mxu0 0
        %2195 = vmatpush.bf16.xpose.msra.mxu0 0
        %2196 = vmatpush.bf16.xpose.msra.mxu0 0
        %2197 = vmatpush.bf16.xpose.msra.mxu0 0
        %2198 = vmatpush.bf16.xpose.msra.mxu0 0
        %2199 = vmatpush.bf16.xpose.msra.mxu0 %v2190
        %2200 = vmatmul.bf16.gmra.mxu0 %v2187
        %v2201 = vpop.f32.mrf.mxu0
        %v2202 = vadd.f32 0.0, %v2201
        %v2203 = vpop.f32.mrf.mxu0
        %v2204 = vadd.f32 0.0, %v2203
        %2205 = vdwg.mxu0
        %v2206 = vsel %vm888, %v2202, -inf
        %2207 = vmax.xlane.f32.xlu0 %v2206
        %v2208 = vpop.xlane.xlu0 %2207
        %v2209 = vsel %vm888, %v2204, -inf
        %2210 = vmax.xlane.f32.xlu0 %v2209
        %v2211 = vpop.xlane.xlu0 %2210
        %v2212 = vsub.f32 %v2202, %v2208
        %v2213 = vsub.f32 %v2204, %v2211
        %v2214 = vmul.f32 %v2212, 1.442695
        %v2215 = vpow.pop %v2214
        %v2216 = vmul.f32 %v2213, 1.442695
        %v2217 = vpow.pop %v2216
        %v2218 = vsel %vm888, %v2215, 0.0
        %2219 = vadd.xlane.f32.xlu0 %v2218
        %v2220 = vpop.xlane.xlu0 %2219
        %v2221 = vsel %vm888, %v2217, 0.0
        %2222 = vadd.xlane.f32.xlu0 %v2221
        %v2223 = vpop.xlane.xlu0 %2222
        %v2224 = vrcp.pop %v2220
        %v2225 = vrcp.pop %v2223
        %v2226 = vmul.f32 %v2215, %v2224
        %v2227 = vmul.f32 %v2217, %v2225
        %v2228 = vpack.c.bf16 %v2226, %v2226
        %v2229 = vpack.c.bf16 %v2227, %v2227
        %v2232 = vunpack.c.l.b16 %v2228
        %v2233 = vunpack.c.l.b16 %v2229
        %v2234 = vpack.c.b16 %v2233, %v2232
        %2235 = vrot.lane.b32.xlu0 %v1996, 32
        %v2236 = vpop.permute.xlu0 %2235
        %v2239 = vsel %vm888, %v2234, 0
        %2241 = vmatpush.bf16.msra.mxu0 0
        %2242 = vmatpush.bf16.msra.mxu0 0
        %2243 = vmatpush.bf16.msra.mxu0 0
        %2244 = vmatpush.bf16.msra.mxu0 0
        %2245 = vmatpush.bf16.msra.mxu0 0
        %2246 = vmatpush.bf16.msra.mxu0 0
        %2247 = vmatpush.bf16.msra.mxu0 0
        %2248 = vmatpush.bf16.msra.mxu0 %v2236
        %2249 = vmatmul.bf16.gmra.mxu0 %v2239
        %v2250 = vpop.f32.mrf.mxu0
        %v2251 = vadd.f32 0.0, %v2250
        %v2252 = vpop.f32.mrf.mxu0
        %v2253 = vadd.f32 0.0, %v2252
        %2254 = vdwg.mxu0
        %2257 = vrot.lane.b32.xlu0 %v2091, 32
        %v2258 = vpop.permute.xlu0 %2257
        %2259 = vrot.lane.b32.xlu0 %v2093, 32
        %v2260 = vpop.permute.xlu0 %2259
        %2265 = vrot.lane.b32.xlu0 %v2171, 64
        %v2266 = vpop.permute.xlu0 %2265
        %2267 = vrot.lane.b32.xlu0 %v2173, 64
        %v2268 = vpop.permute.xlu0 %2267
        %2273 = vrot.lane.b32.xlu0 %v2251, 96
        %v2274 = vpop.permute.xlu0 %2273
        %2275 = vrot.lane.b32.xlu0 %v2253, 96
        %v2276 = vpop.permute.xlu0 %2275
        %v2279 = vsel %vm867, %v2011, %v2258
        %v2280 = vsel %vm867, %v2013, %v2260
        %v2281 = vsel %vm1207, %v2279, %v2266
        %v2282 = vsel %vm1207, %v2280, %v2268
        %v2283 = vsel %vm1210, %v2281, %v2274
        %v2284 = vsel %vm1210, %v2282, %v2276
        %v2285 = vpack.c.bf16 %v2284, %v2283
        %v2286 = vld [vmem:[#allocation11] sm:$0xf]
        %v2287 = vld [vmem:[#allocation11 + $0x4] sm:$0xf]
        %v2288 = vld [vmem:[#allocation11 + $0x8] sm:$0xf]
        %v2289 = vld [vmem:[#allocation11 + $0xc] sm:$0xf]
        %v2290 = vld [vmem:[#allocation11 + $0x10] sm:$0xf]
        %v2291 = vld [vmem:[#allocation11 + $0x14] sm:$0xf]
        %v2292 = vld [vmem:[#allocation11 + $0x18] sm:$0xf]
        %v2293 = vld [vmem:[#allocation11 + $0x1c] sm:$0xf]
        %v2294 = vld [vmem:[#allocation11 + $0x20] sm:$0xf]
        %v2295 = vld [vmem:[#allocation11 + $0x24] sm:$0xf]
        %v2296 = vld [vmem:[#allocation11 + $0x28] sm:$0xf]
        %v2297 = vld [vmem:[#allocation11 + $0x2c] sm:$0xf]
        %v2298 = vld [vmem:[#allocation11 + $0x30] sm:$0xf]
        %v2299 = vld [vmem:[#allocation11 + $0x34] sm:$0xf]
        %v2300 = vld [vmem:[#allocation11 + $0x38] sm:$0xf]
        %v2301 = vld [vmem:[#allocation11 + $0x3c] sm:$0xf]
        %v2318 = vunpack.c.l.b16 %v2286
        %v2319 = vunpack.c.l.b16 %v2287
        %v2320 = vunpack.c.l.b16 %v2288
        %v2321 = vunpack.c.l.b16 %v2289
        %v2322 = vunpack.c.l.b16 %v2290
        %v2323 = vunpack.c.l.b16 %v2291
        %v2324 = vunpack.c.l.b16 %v2292
        %v2325 = vunpack.c.l.b16 %v2293
        %v2326 = vunpack.c.l.b16 %v2294
        %v2327 = vunpack.c.l.b16 %v2295
        %v2328 = vunpack.c.l.b16 %v2296
        %v2329 = vunpack.c.l.b16 %v2297
        %v2330 = vunpack.c.l.b16 %v2298
        %v2331 = vunpack.c.l.b16 %v2299
        %v2332 = vunpack.c.l.b16 %v2300
        %v2333 = vunpack.c.l.b16 %v2301
        %v2334 = vpack.c.b16 %v2319, %v2318
        %v2335 = vpack.c.b16 %v2321, %v2320
        %v2336 = vpack.c.b16 %v2323, %v2322
        %v2337 = vpack.c.b16 %v2325, %v2324
        %v2338 = vpack.c.b16 %v2327, %v2326
        %v2339 = vpack.c.b16 %v2329, %v2328
        %v2340 = vpack.c.b16 %v2331, %v2330
        %v2341 = vpack.c.b16 %v2333, %v2332
        %2350 = vmatpush.bf16.msra.mxu0 %v2341
        %2351 = vmatpush.bf16.msra.mxu0 %v2340
        %2352 = vmatpush.bf16.msra.mxu0 %v2339
        %2353 = vmatpush.bf16.msra.mxu0 %v2338
        %2354 = vmatpush.bf16.msra.mxu0 %v2337
        %2355 = vmatpush.bf16.msra.mxu0 %v2336
        %2356 = vmatpush.bf16.msra.mxu0 %v2335
        %2357 = vmatpush.bf16.msra.mxu0 %v2334
        %2358 = vmatmul.bf16.gmra.mxu0 %v2285
        %v2359 = vpop.f32.mrf.mxu0
        %v2360 = vadd.f32 0.0, %v2359
        %v2361 = vpop.f32.mrf.mxu0
        %v2362 = vadd.f32 0.0, %v2361
        %2363 = vdwg.mxu0
        %v2364 = vadd.f32 %v1680, %v2360
        %v2365 = vadd.f32 %v1681, %v2362
        %v2366 = vadd.f32 %v2364, %v1295
        %v2367 = vadd.f32 %v2365, %v1295
        %2368 = vadd.xlane.f32.xlu0 %v2366
        %v2369 = vpop.xlane.xlu0 %2368
        %2370 = vadd.xlane.f32.xlu0 %v2367
        %v2371 = vpop.xlane.xlu0 %2370
        %v2372 = vmul.f32 %v2369, %v596
        %v2373 = vmul.f32 %v2371, %v596
        %v2374 = vsub.f32 %v2366, %v2372
        %v2375 = vsub.f32 %v2367, %v2373
        %v2376 = vmul.f32 %v2374, %v2374
        %v2377 = vmul.f32 %v2375, %v2375
        %2378 = vadd.xlane.f32.xlu0 %v2376
        %v2379 = vpop.xlane.xlu0 %2378
        %2380 = vadd.xlane.f32.xlu0 %v2377
        %v2381 = vpop.xlane.xlu0 %2380
        %v2382 = vmul.f32 %v2379, %v596
        %v2383 = vmul.f32 %v2381, %v596
        %v2384 = vadd.f32 %v2382, 1e-05
        %v2385 = vadd.f32 %v2383, 1e-05
        %v2386 = vrsqrt.pop %v2384
        %v2387 = vmul.f32 %v2386, %v2384
        %v2388 = vmul.f32 %v2387, %v2386
        %v2389 = vmul.f32 0.5, %v2388
        %v2390 = vsub.f32 1.5, %v2389
        %v2391 = vmul.f32 %v2386, %v2390
        %vm2392 = vweird.f32 %v2384
        %vm2393 = vweird.f32 %v2386
        %vm2394 = vmor %vm2392, %vm2393
        %v2395 = vsel %vm2394, %v2386, %v2391
        %v2396 = vrsqrt.pop %v2385
        %v2397 = vmul.f32 %v2396, %v2385
        %v2398 = vmul.f32 %v2397, %v2396
        %v2399 = vmul.f32 0.5, %v2398
        %v2400 = vsub.f32 1.5, %v2399
        %v2401 = vmul.f32 %v2396, %v2400
        %vm2402 = vweird.f32 %v2385
        %vm2403 = vweird.f32 %v2396
        %vm2404 = vmor %vm2402, %vm2403
        %v2405 = vsel %vm2404, %v2396, %v2401
        %v2406 = vmul.f32 %v2374, %v2395
        %v2407 = vmul.f32 %v2375, %v2405
        %v2408 = vmul.f32 %v2406, %v1340
        %v2409 = vmul.f32 %v2407, %v1340
        %v2410 = vadd.f32 %v2408, %v1345
        %v2411 = vadd.f32 %v2409, %v1345
        %v2412 = vpack.c.bf16 %v2411, %v2410
        %v2413 = vld [vmem:[#allocation14] sm:$0xff]
        %v2414 = vld [vmem:[#allocation14 + $0x8] sm:$0xff]
        %v2415 = vld [vmem:[#allocation14 + $0x10] sm:$0xff]
        %v2416 = vld [vmem:[#allocation14 + $0x18] sm:$0xff]
        %v2417 = vld [vmem:[#allocation14 + $0x20] sm:$0xff]
        %v2418 = vld [vmem:[#allocation14 + $0x28] sm:$0xff]
        %v2419 = vld [vmem:[#allocation14 + $0x30] sm:$0xff]
        %v2420 = vld [vmem:[#allocation14 + $0x38] sm:$0xff]
        %v2421 = vld [vmem:[#allocation14 + $0x40] sm:$0xff]
        %v2422 = vld [vmem:[#allocation14 + $0x48] sm:$0xff]
        %v2423 = vld [vmem:[#allocation14 + $0x50] sm:$0xff]
        %v2424 = vld [vmem:[#allocation14 + $0x58] sm:$0xff]
        %v2425 = vld [vmem:[#allocation14 + $0x60] sm:$0xff]
        %v2426 = vld [vmem:[#allocation14 + $0x68] sm:$0xff]
        %v2427 = vld [vmem:[#allocation14 + $0x70] sm:$0xff]
        %v2428 = vld [vmem:[#allocation14 + $0x78] sm:$0xff]
        %v2445 = vunpack.c.l.b16 %v2413
        %v2446 = vunpack.c.h.b16 %v2413
        %v2447 = vunpack.c.l.b16 %v2414
        %v2448 = vunpack.c.h.b16 %v2414
        %v2449 = vunpack.c.l.b16 %v2415
        %v2450 = vunpack.c.h.b16 %v2415
        %v2451 = vunpack.c.l.b16 %v2416
        %v2452 = vunpack.c.h.b16 %v2416
        %v2453 = vunpack.c.l.b16 %v2417
        %v2454 = vunpack.c.h.b16 %v2417
        %v2455 = vunpack.c.l.b16 %v2418
        %v2456 = vunpack.c.h.b16 %v2418
        %v2457 = vunpack.c.l.b16 %v2419
        %v2458 = vunpack.c.h.b16 %v2419
        %v2459 = vunpack.c.l.b16 %v2420
        %v2460 = vunpack.c.h.b16 %v2420
        %v2461 = vunpack.c.l.b16 %v2421
        %v2462 = vunpack.c.h.b16 %v2421
        %v2463 = vunpack.c.l.b16 %v2422
        %v2464 = vunpack.c.h.b16 %v2422
        %v2465 = vunpack.c.l.b16 %v2423
        %v2466 = vunpack.c.h.b16 %v2423
        %v2467 = vunpack.c.l.b16 %v2424
        %v2468 = vunpack.c.h.b16 %v2424
        %v2469 = vunpack.c.l.b16 %v2425
        %v2470 = vunpack.c.h.b16 %v2425
        %v2471 = vunpack.c.l.b16 %v2426
        %v2472 = vunpack.c.h.b16 %v2426
        %v2473 = vunpack.c.l.b16 %v2427
        %v2474 = vunpack.c.h.b16 %v2427
        %v2475 = vunpack.c.l.b16 %v2428
        %v2476 = vunpack.c.h.b16 %v2428
        %v2477 = vpack.c.b16 %v2447, %v2445
        %v2478 = vpack.c.b16 %v2448, %v2446
        %v2479 = vpack.c.b16 %v2451, %v2449
        %v2480 = vpack.c.b16 %v2452, %v2450
        %v2481 = vpack.c.b16 %v2455, %v2453
        %v2482 = vpack.c.b16 %v2456, %v2454
        %v2483 = vpack.c.b16 %v2459, %v2457
        %v2484 = vpack.c.b16 %v2460, %v2458
        %v2485 = vpack.c.b16 %v2463, %v2461
        %v2486 = vpack.c.b16 %v2464, %v2462
        %v2487 = vpack.c.b16 %v2467, %v2465
        %v2488 = vpack.c.b16 %v2468, %v2466
        %v2489 = vpack.c.b16 %v2471, %v2469
        %v2490 = vpack.c.b16 %v2472, %v2470
        %v2491 = vpack.c.b16 %v2475, %v2473
        %v2492 = vpack.c.b16 %v2476, %v2474
        %2509 = vmatpush.bf16.msra.mxu0 %v2491
        %2510 = vmatpush.bf16.msra.mxu0 %v2489
        %2511 = vmatpush.bf16.msra.mxu0 %v2487
        %2512 = vmatpush.bf16.msra.mxu0 %v2485
        %2513 = vmatpush.bf16.msra.mxu0 %v2483
        %2514 = vmatpush.bf16.msra.mxu0 %v2481
        %2515 = vmatpush.bf16.msra.mxu0 %v2479
        %2516 = vmatpush.bf16.msra.mxu0 %v2477
        %2517 = vmatmul.bf16.gmra.mxu0 %v2412
        %v2518 = vpop.f32.mrf.mxu0
        %v2519 = vadd.f32 %v1367, %v2518
        %v2520 = vpop.f32.mrf.mxu0
        %v2521 = vadd.f32 %v1367, %v2520
        %2522 = vdwg.mxu0
        %2523 = vmatpush.bf16.msra.mxu0 %v2492
        %2524 = vmatpush.bf16.msra.mxu0 %v2490
        %2525 = vmatpush.bf16.msra.mxu0 %v2488
        %2526 = vmatpush.bf16.msra.mxu0 %v2486
        %2527 = vmatpush.bf16.msra.mxu0 %v2484
        %2528 = vmatpush.bf16.msra.mxu0 %v2482
        %2529 = vmatpush.bf16.msra.mxu0 %v2480
        %2530 = vmatpush.bf16.msra.mxu0 %v2478
        %2531 = vmatmul.bf16.gmra.mxu0 %v2412
        %v2532 = vpop.f32.mrf.mxu0
        %v2533 = vadd.f32 %v1368, %v2532
        %v2534 = vpop.f32.mrf.mxu0
        %v2535 = vadd.f32 %v1368, %v2534
        %2536 = vdwg.mxu0
        %v2537 = vmul.f32 %v2519, %v2519
        %v2538 = vmul.f32 %v2533, %v2533
        %v2539 = vmul.f32 %v2521, %v2521
        %v2540 = vmul.f32 %v2535, %v2535
        %v2541 = vmul.f32 %v2519, %v2537
        %v2542 = vmul.f32 %v2533, %v2538
        %v2543 = vmul.f32 %v2521, %v2539
        %v2544 = vmul.f32 %v2535, %v2540
        %v2545 = vmul.f32 %v2541, 0.044715
        %v2546 = vmul.f32 %v2542, 0.044715
        %v2547 = vmul.f32 %v2543, 0.044715
        %v2548 = vmul.f32 %v2544, 0.044715
        %v2549 = vadd.f32 %v2519, %v2545
        %v2550 = vadd.f32 %v2533, %v2546
        %v2551 = vadd.f32 %v2521, %v2547
        %v2552 = vadd.f32 %v2535, %v2548
        %v2553 = vmul.f32 %v2549, 0.7978846
        %v2554 = vmul.f32 %v2550, 0.7978846
        %v2555 = vmul.f32 %v2551, 0.7978846
        %v2556 = vmul.f32 %v2552, 0.7978846
        %v2557 = vtanh.pop %v2553
        %v2558 = vtanh.pop %v2554
        %v2559 = vtanh.pop %v2555
        %v2560 = vtanh.pop %v2556
        %v2561 = vadd.f32 %v2557, 1.0
        %v2562 = vadd.f32 %v2558, 1.0
        %v2563 = vadd.f32 %v2559, 1.0
        %v2564 = vadd.f32 %v2560, 1.0
        %v2565 = vmul.f32 %v2561, 0.5
        %v2566 = vmul.f32 %v2562, 0.5
        %v2567 = vmul.f32 %v2563, 0.5
        %v2568 = vmul.f32 %v2564, 0.5
        %v2569 = vmul.f32 %v2519, %v2565
        %v2570 = vmul.f32 %v2533, %v2566
        %v2571 = vmul.f32 %v2521, %v2567
        %v2572 = vmul.f32 %v2535, %v2568
        %v2573 = vpack.c.bf16 %v2571, %v2569
        %v2574 = vpack.c.bf16 %v2572, %v2570
        %v2575 = vld [vmem:[#allocation15] sm:$0xf]
        %v2576 = vld [vmem:[#allocation15 + $0x4] sm:$0xf]
        %v2577 = vld [vmem:[#allocation15 + $0x8] sm:$0xf]
        %v2578 = vld [vmem:[#allocation15 + $0xc] sm:$0xf]
        %v2579 = vld [vmem:[#allocation15 + $0x10] sm:$0xf]
        %v2580 = vld [vmem:[#allocation15 + $0x14] sm:$0xf]
        %v2581 = vld [vmem:[#allocation15 + $0x18] sm:$0xf]
        %v2582 = vld [vmem:[#allocation15 + $0x1c] sm:$0xf]
        %v2583 = vld [vmem:[#allocation15 + $0x20] sm:$0xf]
        %v2584 = vld [vmem:[#allocation15 + $0x24] sm:$0xf]
        %v2585 = vld [vmem:[#allocation15 + $0x28] sm:$0xf]
        %v2586 = vld [vmem:[#allocation15 + $0x2c] sm:$0xf]
        %v2587 = vld [vmem:[#allocation15 + $0x30] sm:$0xf]
        %v2588 = vld [vmem:[#allocation15 + $0x34] sm:$0xf]
        %v2589 = vld [vmem:[#allocation15 + $0x38] sm:$0xf]
        %v2590 = vld [vmem:[#allocation15 + $0x3c] sm:$0xf]
        %v2591 = vld [vmem:[#allocation15 + $0x40] sm:$0xf]
        %v2592 = vld [vmem:[#allocation15 + $0x44] sm:$0xf]
        %v2593 = vld [vmem:[#allocation15 + $0x48] sm:$0xf]
        %v2594 = vld [vmem:[#allocation15 + $0x4c] sm:$0xf]
        %v2595 = vld [vmem:[#allocation15 + $0x50] sm:$0xf]
        %v2596 = vld [vmem:[#allocation15 + $0x54] sm:$0xf]
        %v2597 = vld [vmem:[#allocation15 + $0x58] sm:$0xf]
        %v2598 = vld [vmem:[#allocation15 + $0x5c] sm:$0xf]
        %v2599 = vld [vmem:[#allocation15 + $0x60] sm:$0xf]
        %v2600 = vld [vmem:[#allocation15 + $0x64] sm:$0xf]
        %v2601 = vld [vmem:[#allocation15 + $0x68] sm:$0xf]
        %v2602 = vld [vmem:[#allocation15 + $0x6c] sm:$0xf]
        %v2603 = vld [vmem:[#allocation15 + $0x70] sm:$0xf]
        %v2604 = vld [vmem:[#allocation15 + $0x74] sm:$0xf]
        %v2605 = vld [vmem:[#allocation15 + $0x78] sm:$0xf]
        %v2606 = vld [vmem:[#allocation15 + $0x7c] sm:$0xf]
        %v2639 = vunpack.c.l.b16 %v2575
        %v2640 = vunpack.c.l.b16 %v2576
        %v2641 = vunpack.c.l.b16 %v2577
        %v2642 = vunpack.c.l.b16 %v2578
        %v2643 = vunpack.c.l.b16 %v2579
        %v2644 = vunpack.c.l.b16 %v2580
        %v2645 = vunpack.c.l.b16 %v2581
        %v2646 = vunpack.c.l.b16 %v2582
        %v2647 = vunpack.c.l.b16 %v2583
        %v2648 = vunpack.c.l.b16 %v2584
        %v2649 = vunpack.c.l.b16 %v2585
        %v2650 = vunpack.c.l.b16 %v2586
        %v2651 = vunpack.c.l.b16 %v2587
        %v2652 = vunpack.c.l.b16 %v2588
        %v2653 = vunpack.c.l.b16 %v2589
        %v2654 = vunpack.c.l.b16 %v2590
        %v2655 = vunpack.c.l.b16 %v2591
        %v2656 = vunpack.c.l.b16 %v2592
        %v2657 = vunpack.c.l.b16 %v2593
        %v2658 = vunpack.c.l.b16 %v2594
        %v2659 = vunpack.c.l.b16 %v2595
        %v2660 = vunpack.c.l.b16 %v2596
        %v2661 = vunpack.c.l.b16 %v2597
        %v2662 = vunpack.c.l.b16 %v2598
        %v2663 = vunpack.c.l.b16 %v2599
        %v2664 = vunpack.c.l.b16 %v2600
        %v2665 = vunpack.c.l.b16 %v2601
        %v2666 = vunpack.c.l.b16 %v2602
        %v2667 = vunpack.c.l.b16 %v2603
        %v2668 = vunpack.c.l.b16 %v2604
        %v2669 = vunpack.c.l.b16 %v2605
        %v2670 = vunpack.c.l.b16 %v2606
        %v2671 = vpack.c.b16 %v2640, %v2639
        %v2672 = vpack.c.b16 %v2642, %v2641
        %v2673 = vpack.c.b16 %v2644, %v2643
        %v2674 = vpack.c.b16 %v2646, %v2645
        %v2675 = vpack.c.b16 %v2648, %v2647
        %v2676 = vpack.c.b16 %v2650, %v2649
        %v2677 = vpack.c.b16 %v2652, %v2651
        %v2678 = vpack.c.b16 %v2654, %v2653
        %v2679 = vpack.c.b16 %v2656, %v2655
        %v2680 = vpack.c.b16 %v2658, %v2657
        %v2681 = vpack.c.b16 %v2660, %v2659
        %v2682 = vpack.c.b16 %v2662, %v2661
        %v2683 = vpack.c.b16 %v2664, %v2663
        %v2684 = vpack.c.b16 %v2666, %v2665
        %v2685 = vpack.c.b16 %v2668, %v2667
        %v2686 = vpack.c.b16 %v2670, %v2669
        %2703 = vmatpush.bf16.msra.mxu0 %v2678
        %2704 = vmatpush.bf16.msra.mxu0 %v2677
        %2705 = vmatpush.bf16.msra.mxu0 %v2676
        %2706 = vmatpush.bf16.msra.mxu0 %v2675
        %2707 = vmatpush.bf16.msra.mxu0 %v2674
        %2708 = vmatpush.bf16.msra.mxu0 %v2673
        %2709 = vmatpush.bf16.msra.mxu0 %v2672
        %2710 = vmatpush.bf16.msra.mxu0 %v2671
        %2711 = vmatmul.bf16.gmra.mxu0 %v2573
        %v2712 = vpop.f32.mrf.mxu0
        %v2713 = vadd.f32 %v1550, %v2712
        %v2714 = vpop.f32.mrf.mxu0
        %v2715 = vadd.f32 %v1550, %v2714
        %2716 = vdwg.mxu0
        %2717 = vmatpush.bf16.msra.mxu0 %v2686
        %2718 = vmatpush.bf16.msra.mxu0 %v2685
        %2719 = vmatpush.bf16.msra.mxu0 %v2684
        %2720 = vmatpush.bf16.msra.mxu0 %v2683
        %2721 = vmatpush.bf16.msra.mxu0 %v2682
        %2722 = vmatpush.bf16.msra.mxu0 %v2681
        %2723 = vmatpush.bf16.msra.mxu0 %v2680
        %2724 = vmatpush.bf16.msra.mxu0 %v2679
        %2725 = vmatmul.bf16.gmra.mxu0 %v2574
        %v2726 = vpop.f32.mrf.mxu0
        %v2727 = vadd.f32 %v2713, %v2726
        %v2728 = vpop.f32.mrf.mxu0
        %v2729 = vadd.f32 %v2715, %v2728
        %2730 = vdwg.mxu0
        %v2731 = vadd.f32 %v2366, %v2727
        %v2732 = vadd.f32 %v2367, %v2729
        %2733 = vst [vmem:[#allocation2] sm:$0xff] %v2731
        %2734 = vst [vmem:[#allocation2 + $0x8] sm:$0xff] %v2732
        %v2735 = vld [vmem:[#allocation2] sm:$0xff]
        %v2736 = vld [vmem:[#allocation2 + $0x8] sm:$0xff]
        %2737 = vst [vmem:[%s570] sm:$0xff] %v2735
        %2738 = vst [vmem:[%s570 + $0x8] sm:$0xff] %v2736
        %s2739 = sand.u32 %s320, 1
        %s2740 = scalar_lea.sflag [#allocation5], %s2739
        %s2741 = sand.u32 %s320, 1
        %s2742 = smul.addr %s2741, 16
        %s2743 = scalar_lea.vmem [#allocation17], %s2742
        // Predicated region
        $region105: #{tpu_custom_call.1} parent=71 // pred_check
          %p2744 = pneg %p330
        $region106: #{tpu_custom_call.1} parent=71 // pred_check_branch
          %2746 = sbr.rel (%p2744) target = $region108
        $region107: #{tpu_custom_call.1} parent=71 // pred_region
          %2748 = vsyncadd %s2740, 0
          %s2749 = smul.addr %s34, 2
          %s2750 = smul.addr %s2749, 8
          %s2751 = scalar_lea.hbm %s13, %s2750
          %s2752 = sshll.u32 %s2743, 4
          %s2753 = int_to_ptr.vmem [resolvable:$true] %s2752
          %s2754 = sshll.u32 %s2751, 4
          %s2755 = int_to_ptr.hbm [resolvable:$true] %s2754
          %2760 = dma.vmem_to_hbm [thread:$0]  %s2753, 256, %s2755, %s2740, 128, 128, 8
        $region108: #{tpu_custom_call.1} parent=71 // pred_fallthru
          _
      $region72: #{tpu_custom_call.1} parent=5 // pred_fallthru
        _
      %p2761 = scmp.le.s32.totalorder 2, %s29
      // Predicated region
      $region109: #{tpu_custom_call.1} parent=5 // pred_check
        %p2762 = pneg %p2761
      $region110: #{tpu_custom_call.1} parent=5 // pred_check_branch
        %2764 = sbr.rel (%p2762) target = $region112
      $region111: #{tpu_custom_call.1} parent=5 // pred_region
        %s2765 = ssub.s32 %s29, 2
        // Predicated region
        $region113: #{tpu_custom_call.1} parent=111 // pred_check
          %p2766 = pneg %p336
        $region114: #{tpu_custom_call.1} parent=111 // pred_check_branch
          %2768 = sbr.rel (%p2766) target = $region116
        $region115: #{tpu_custom_call.1} parent=111 // pred_region
          %s2769 = sand.u32 %s321, 1
          %s2770 = scalar_lea.sflag [#allocation5], %s2769
          %s2771 = sand.u32 %s321, 1
          %s2772 = smul.addr %s2771, 16
          %s2773 = scalar_lea.vmem [#allocation17], %s2772
          %2775 = dma.done %s2770, 256
        $region116: #{tpu_custom_call.1} parent=111 // pred_fallthru
          _
      $region112: #{tpu_custom_call.1} parent=5 // pred_fallthru
        _
    $region6: #{tpu_custom_call.1} parent=1 // loop_footer
      %s33 = sadd.s32 1, %s29
    $region7: #{tpu_custom_call.1} parent=1 // loop_footer_branch
      %28 = sbr.rel target = $region3
    $region8: #{tpu_custom_call.1} parent=1 // loop_exit
      _
    %2776 = vsyncpa [#allocation4], 1
    %s2777 = scalar_lea.sflag [#allocation4], 1
    %2778 = vsyncpa %s2777, 1
    %2779 = vsyncpa [#allocation7], 1
    %2780 = vsyncpa [#allocation10], 1
    %2781 = vsyncpa [#allocation13], 1
    %2782 = vsyncpa [#allocation16], 1
    %2783 = vsyncpa [#allocation5], 1
    %s2784 = scalar_lea.sflag [#allocation5], 1
    %2785 = vsyncpa %s2784, 1

</llo_original>
